<compile_context>
chip_gen: v5e
topology: v5e:2x2
jax: 0.10.0
libtpu: 0.0.40
codegen_flags: <defaults>
</compile_context>

<pallas_src>
import math

import jax
import jax.numpy as jnp
from jax.experimental import pallas as pl
from jax.experimental.pallas import tpu as pltpu

# Static SharedCNN dimensions (1x28x28 input pinned by fc = Linear(20*6*6, 200)).
C1, C2, NOUT = 10, 20, 200
# conv1 output (13x13) is stored phase-split over its two stride-2 phases per
# spatial axis: 4 phases, per-phase grid padded to 7 (rows) x 9 (cols) so that
# conv2's nine shifted windows are plain contiguous slices.
NPH, NY, NX = 4, 7, 9
NPOS = NPH * NY * NX            # 252 conv1 rows per image fed to the MXU
TB = 16                         # images per grid step (16 => bf16/f32 sublane aligned)


def _round_up(x, m):
    return (x + m - 1) // m * m


# ----------------------------------------------------------------------------
# The fused kernel: one grid step processes TB images end-to-end.
# ----------------------------------------------------------------------------
def _fused_cnn_kernel(p1_ref, w1_ref, b1_ref, w2_ref, b2_ref, wk_ref, bfc_ref,
                      out_ref):
    f32 = jnp.float32
    tb = out_ref.shape[0]

    # ---- conv1 + ReLU: one MXU matmul over all (phase, y', x', b) rows ------
    p1 = p1_ref[...]                                   # (NPOS, TB, 9) bf16
    a1 = p1.reshape(NPOS * tb, 9)                      # tile-aligned collapse
    h1 = jnp.dot(a1, w1_ref[...], preferred_element_type=f32)
    h1 = jnp.maximum(h1 + b1_ref[...], 0.0)            # bias + ReLU in f32
    # back to (phase, y', x', batch, C1); channels stay in lanes, bf16 for MXU
    h1 = h1.astype(jnp.bfloat16).reshape(NPH, NY, NX, tb, C1)

    # ---- conv2 + ReLU: accumulate 9 shifted matmuls (K = C1) ----------------
    # rows are (h2, w2', b) with w2' padded 6 -> 8; the 2 pad columns are never
    # read by the fc stage.
    acc2 = jnp.zeros((6 * 8 * tb, C2), f32)
    for i2 in range(3):
        for j2 in range(3):
            ph = (i2 % 2) * 2 + (j2 % 2)               # conv1 phase feeding this tap
            dy, dx = i2 // 2, j2 // 2
            x_off = h1[ph, dy:dy + 6, dx:dx + 8]        # (6, 8, TB, C1), contiguous
            x_off = x_off.reshape(6 * 8 * tb, C1)
            acc2 = acc2 + jnp.dot(x_off, w2_ref[3 * i2 + j2],
                                  preferred_element_type=f32)
    h2 = jnp.maximum(acc2 + b2_ref[...], 0.0)
    h2 = h2.astype(jnp.bfloat16).reshape(6, 8, tb, C2)

    # ---- fc + ReLU: 36 accumulated (TB, C2) @ (C2, 200) MXU dots ------------
    # (flatten is folded into the pre-permuted fc weights, so no relayout here)
    accf = jnp.zeros((tb, NOUT), f32)
    for h in range(6):
        for w in range(6):
            accf = accf + jnp.dot(h2[h, w], wk_ref[h * 6 + w],
                                  preferred_element_type=f32)
    out_ref[...] = jnp.maximum(accf + bfc_ref[...], 0.0)


def _fused_forward(p1, w1m, b1, w2m, b2, wk, bfc):
    bp = p1.shape[1]
    return pl.pallas_call(
        _fused_cnn_kernel,
        out_shape=jax.ShapeDtypeStruct((bp, NOUT), jnp.float32),
        grid=(bp // TB,),
        in_specs=[
            pl.BlockSpec((NPOS, TB, 9), lambda i: (0, i, 0)),     # per-tile input
            pl.BlockSpec((9, C1), lambda i: (0, 0)),              # conv1 weights
            pl.BlockSpec((1, C1), lambda i: (0, 0)),              # conv1 bias
            pl.BlockSpec((9, C1, C2), lambda i: (0, 0, 0)),       # conv2 weights
            pl.BlockSpec((1, C2), lambda i: (0, 0)),              # conv2 bias
            pl.BlockSpec((36, C2, NOUT), lambda i: (0, 0, 0)),    # fc weights
            pl.BlockSpec((1, NOUT), lambda i: (0, 0)),            # fc bias
        ],
        out_specs=pl.BlockSpec((TB, NOUT), lambda i: (i, 0)),
        compiler_params=pltpu.CompilerParams(
            dimension_semantics=("parallel",),
            vmem_limit_bytes=32 * 1024 * 1024,
        ),
    )(p1, w1m, b1, w2m, b2, wk, bfc)


# ----------------------------------------------------------------------------
# Input / weight preparation (cheap XLA glue; weight prep runs once).
# ----------------------------------------------------------------------------
def _conv1_patches(x, batch_pad):
    """x: (B, 1, 28, 28) -> (NPOS, batch_pad, 9) bf16.

    Phase-split stride-2 im2col: row index = ((2*py+px)*NY + y')*NX + x',
    column k = 3*i + j holds input pixel (4*y' + 2*py + i, 4*x' + 2*px + j),
    i.e. conv1 output position (2*y'+py, 2*x'+px).  Unused (padding) rows are 0.
    """
    B = x.shape[0]
    xin = x.reshape(B, 28, 28).astype(jnp.float32)
    cols = [xin[:, i:i + 25:2, j:j + 25:2] for i in range(3) for j in range(3)]
    patches = jnp.stack(cols, axis=-1)                       # (B, 13, 13, 9)
    if batch_pad != B:
        patches = jnp.pad(patches, ((0, batch_pad - B), (0, 0), (0, 0), (0, 0)))
    p1 = jnp.zeros((2, 2, NY, NX, batch_pad, 9), jnp.bfloat16)
    for py in range(2):
        for px in range(2):
            ny, nx = 7 - py, 7 - px
            blk = patches[:, py::2, px::2, :]                # (Bp, ny, nx, 9)
            blk = jnp.transpose(blk, (1, 2, 0, 3)).astype(jnp.bfloat16)
            p1 = p1.at[py, px, :ny, :nx].set(blk)
    return p1.reshape(NPOS, batch_pad, 9)


def prep_params(params):
    """One-time weight packing (hoisted out of the per-forward jit)."""
    w1m = params["conv1_w"].reshape(C1, 9).T.astype(jnp.bfloat16)        # (9, 10)
    b1 = params["conv1_b"].reshape(1, C1).astype(jnp.float32)
    w2m = (jnp.transpose(params["conv2_w"], (2, 3, 1, 0))                # (i,j,ci,co)
           .reshape(9, C1, C2).astype(jnp.bfloat16))
    b2 = params["conv2_b"].reshape(1, C2).astype(jnp.float32)
    # torch Flatten order is (C, H, W); permute fc weights to the kernel's
    # (h2, w2, c2) order so no activation relayout is needed at the flatten.
    wk = (params["fc_w"].reshape(NOUT, C2, 6, 6)
          .transpose(2, 3, 1, 0).reshape(36, C2, NOUT).astype(jnp.bfloat16))
    bfc = params["fc_b"].reshape(1, NOUT).astype(jnp.float32)
    return {"w1m": w1m, "b1": b1, "w2m": w2m, "b2": b2, "wk": wk, "bfc": bfc}


def init_params(key):
    # Deterministic init mimicking PyTorch default uniform(-1/sqrt(fan_in), ...).
    def uniform(k, shape, fan_in):
        bound = 1.0 / math.sqrt(fan_in)
        return jax.random.uniform(k, shape, jnp.float32, -bound, bound)

    ks = jax.random.split(key, 6)
    return {
        "conv1_w": uniform(ks[0], (10, 1, 3, 3), 1 * 3 * 3),
        "conv1_b": uniform(ks[1], (10,), 1 * 3 * 3),
        "conv2_w": uniform(ks[2], (20, 10, 3, 3), 10 * 3 * 3),
        "conv2_b": uniform(ks[3], (20,), 10 * 3 * 3),
        "fc_w": uniform(ks[4], (200, 720), 720),    # torch Linear: (out, in)
        "fc_b": uniform(ks[5], (200,), 720),
    }


@jax.jit
def shared_cnn_forward(prepped, x):
    # rescale = Identity
    B = x.shape[0]
    bp = _round_up(B, TB)
    p1 = _conv1_patches(x, bp)
    out = _fused_forward(p1, prepped["w1m"], prepped["b1"], prepped["w2m"],
                         prepped["b2"], prepped["wk"], prepped["bfc"])
    return out[:B]


# ----------------------------------------------------------------------------
# Pure-JAX f32 reference (mirrors the PyTorch module) for a numerical check.
# ----------------------------------------------------------------------------
def _reference_forward(params, x):
    def conv_relu(x_nchw, w, b, stride):
        B, cin, H, W = x_nchw.shape
        cout, _, kh, kw = w.shape
        ho = (H - kh) // stride + 1
        wo = (W - kw) // stride + 1
        cols = []
        for ci in range(cin):
            for i in range(kh):
                for j in range(kw):
                    cols.append(x_nchw[:, ci,
                                       i:i + stride * (ho - 1) + 1:stride,
                                       j:j + stride * (wo - 1) + 1:stride])
        patches = jnp.stack(cols, axis=-1).reshape(B * ho * wo, cin * kh * kw)
        wmat = w.reshape(cout, cin * kh * kw).T
        out = jnp.maximum(patches @ wmat + b, 0.0)
        return out.reshape(B, ho, wo, cout).transpose(0, 3, 1, 2)

    h = conv_relu(x, params["conv1_w"], params["conv1_b"], 2)   # (B,10,13,13)
    h = conv_relu(h, params["conv2_w"], params["conv2_b"], 2)   # (B,20,6,6)
    h = h.reshape(h.shape[0], -1)                               # torch (C,H,W) flatten
    return jnp.maximum(h @ params["fc_w"].T + params["fc_b"], 0.0)


if __name__ == "__main__":
    key = jax.random.PRNGKey(0)
    pkey, xkey = jax.random.split(key)
    params = init_params(pkey)
    prepped = prep_params(params)
    # fc expects 20*6*6 features, which pins the input to 1x28x28 (MNIST).
    x = jax.random.normal(xkey, (2, 1, 28, 28), jnp.float32)
    out = jax.block_until_ready(shared_cnn_forward(prepped, x))
    assert out.shape == (2, NOUT), out.shape
    ref = _reference_forward(params, x)
    err = float(jnp.max(jnp.abs(out - ref)))
    assert err < 3e-2, f"max |err| vs f32 reference too large: {err}"
    print("KERNEL_OK")
</pallas_src>

<mosaic_0001>
module attributes {stable_mosaic.version = 11 : i64} {
  func.func @_fused_cnn_kernel(%arg0: i32, %arg1: memref<252x16x9xbf16, #tpu.memory_space<vmem>>, %arg2: memref<9x10xbf16, #tpu.memory_space<vmem>>, %arg3: memref<1x10xf32, #tpu.memory_space<vmem>>, %arg4: memref<9x10x20xbf16, #tpu.memory_space<vmem>>, %arg5: memref<1x20xf32, #tpu.memory_space<vmem>>, %arg6: memref<36x20x200xbf16, #tpu.memory_space<vmem>>, %arg7: memref<1x200xf32, #tpu.memory_space<vmem>>, %arg8: memref<16x200xf32, #tpu.memory_space<vmem>>) attributes {dimension_semantics = [#tpu.dimension_semantics<parallel>], iteration_bounds = array<i64: 1>, scalar_prefetch = 0 : i64, scratch_operands = 0 : i64, tpu.core_type = #tpu.core_type<tc>, window_params = [{transform_indices = @transform_0, window_bounds = array<i64: 252, 16, 9>}, {pipeline_mode = #tpu.pipeline_mode<synchronous>, transform_indices = @transform_1, window_bounds = array<i64: 9, 10>}, {pipeline_mode = #tpu.pipeline_mode<synchronous>, transform_indices = @transform_2, window_bounds = array<i64: 1, 10>}, {pipeline_mode = #tpu.pipeline_mode<synchronous>, transform_indices = @transform_3, window_bounds = array<i64: 9, 10, 20>}, {pipeline_mode = #tpu.pipeline_mode<synchronous>, transform_indices = @transform_4, window_bounds = array<i64: 1, 20>}, {pipeline_mode = #tpu.pipeline_mode<synchronous>, transform_indices = @transform_5, window_bounds = array<i64: 36, 20, 200>}, {pipeline_mode = #tpu.pipeline_mode<synchronous>, transform_indices = @transform_6, window_bounds = array<i64: 1, 200>}, {transform_indices = @transform_7, window_bounds = array<i64: 16, 200>}]} {
    %c0 = arith.constant 0 : index
    %c0_0 = arith.constant 0 : index
    %c0_1 = arith.constant 0 : index
    %0 = vector.load %arg1[%c0, %c0_0, %c0_1] : memref<252x16x9xbf16, #tpu.memory_space<vmem>>, vector<252x16x9xbf16>
    %1 = vector.shape_cast %0 : vector<252x16x9xbf16> to vector<4032x9xbf16>
    %c0_2 = arith.constant 0 : index
    %c0_3 = arith.constant 0 : index
    %2 = vector.load %arg2[%c0_2, %c0_3] : memref<9x10xbf16, #tpu.memory_space<vmem>>, vector<9x10xbf16>
    %cst = arith.constant dense<0.000000e+00> : vector<4032x10xf32>
    %3 = tpu.matmul %1, %2, %cst {dimension_numbers = #tpu.dot_dimension_numbers<[1], [0], [0], [1], [0, 0, 1, 1], [], []>} : vector<4032x9xbf16>, vector<9x10xbf16>, vector<4032x10xf32> -> vector<4032x10xf32>
    %c0_4 = arith.constant 0 : index
    %c0_5 = arith.constant 0 : index
    %4 = vector.load %arg3[%c0_4, %c0_5] : memref<1x10xf32, #tpu.memory_space<vmem>>, vector<1x10xf32>
    %5 = vector.broadcast %4 : vector<1x10xf32> to vector<4032x10xf32>
    %6 = arith.addf %3, %5 : vector<4032x10xf32>
    %cst_6 = arith.constant 0.000000e+00 : f32
    %7 = vector.broadcast %cst_6 : f32 to vector<4032x10xf32>
    %8 = arith.maximumf %6, %7 : vector<4032x10xf32>
    %9 = arith.truncf %8 : vector<4032x10xf32> to vector<4032x10xbf16>
    %10 = vector.shape_cast %9 : vector<4032x10xbf16> to vector<4x7x9x16x10xbf16>
    %cst_7 = arith.constant 0.000000e+00 : f32
    %11 = vector.broadcast %cst_7 : f32 to vector<768x20xf32>
    %12 = vector.extract_strided_slice %10 {offsets = [0, 0, 0, 0, 0], sizes = [1, 6, 8, 16, 10], strides = [1, 1, 1, 1, 1]} : vector<4x7x9x16x10xbf16> to vector<1x6x8x16x10xbf16>
    %13 = vector.shape_cast %12 : vector<1x6x8x16x10xbf16> to vector<6x8x16x10xbf16>
    %14 = vector.shape_cast %13 : vector<6x8x16x10xbf16> to vector<768x10xbf16>
    %c0_8 = arith.constant 0 : index
    %c0_9 = arith.constant 0 : index
    %c0_10 = arith.constant 0 : index
    %15 = vector.load %arg4[%c0_8, %c0_9, %c0_10] : memref<9x10x20xbf16, #tpu.memory_space<vmem>>, vector<1x10x20xbf16>
    %16 = vector.shape_cast %15 : vector<1x10x20xbf16> to vector<10x20xbf16>
    %cst_11 = arith.constant dense<0.000000e+00> : vector<768x20xf32>
    %17 = tpu.matmul %14, %16, %cst_11 {dimension_numbers = #tpu.dot_dimension_numbers<[1], [0], [0], [1], [0, 0, 1, 1], [], []>} : vector<768x10xbf16>, vector<10x20xbf16>, vector<768x20xf32> -> vector<768x20xf32>
    %18 = arith.addf %11, %17 : vector<768x20xf32>
    %19 = vector.extract_strided_slice %10 {offsets = [1, 0, 0, 0, 0], sizes = [1, 6, 8, 16, 10], strides = [1, 1, 1, 1, 1]} : vector<4x7x9x16x10xbf16> to vector<1x6x8x16x10xbf16>
    %20 = vector.shape_cast %19 : vector<1x6x8x16x10xbf16> to vector<6x8x16x10xbf16>
    %21 = vector.shape_cast %20 : vector<6x8x16x10xbf16> to vector<768x10xbf16>
    %c1 = arith.constant 1 : index
    %c0_12 = arith.constant 0 : index
    %c0_13 = arith.constant 0 : index
    %22 = vector.load %arg4[%c1, %c0_12, %c0_13] : memref<9x10x20xbf16, #tpu.memory_space<vmem>>, vector<1x10x20xbf16>
    %23 = vector.shape_cast %22 : vector<1x10x20xbf16> to vector<10x20xbf16>
    %cst_14 = arith.constant dense<0.000000e+00> : vector<768x20xf32>
    %24 = tpu.matmul %21, %23, %cst_14 {dimension_numbers = #tpu.dot_dimension_numbers<[1], [0], [0], [1], [0, 0, 1, 1], [], []>} : vector<768x10xbf16>, vector<10x20xbf16>, vector<768x20xf32> -> vector<768x20xf32>
    %25 = arith.addf %18, %24 : vector<768x20xf32>
    %26 = vector.extract_strided_slice %10 {offsets = [0, 0, 1, 0, 0], sizes = [1, 6, 8, 16, 10], strides = [1, 1, 1, 1, 1]} : vector<4x7x9x16x10xbf16> to vector<1x6x8x16x10xbf16>
    %27 = vector.shape_cast %26 : vector<1x6x8x16x10xbf16> to vector<6x8x16x10xbf16>
    %28 = vector.shape_cast %27 : vector<6x8x16x10xbf16> to vector<768x10xbf16>
    %c2 = arith.constant 2 : index
    %c0_15 = arith.constant 0 : index
    %c0_16 = arith.constant 0 : index
    %29 = vector.load %arg4[%c2, %c0_15, %c0_16] : memref<9x10x20xbf16, #tpu.memory_space<vmem>>, vector<1x10x20xbf16>
    %30 = vector.shape_cast %29 : vector<1x10x20xbf16> to vector<10x20xbf16>
    %cst_17 = arith.constant dense<0.000000e+00> : vector<768x20xf32>
    %31 = tpu.matmul %28, %30, %cst_17 {dimension_numbers = #tpu.dot_dimension_numbers<[1], [0], [0], [1], [0, 0, 1, 1], [], []>} : vector<768x10xbf16>, vector<10x20xbf16>, vector<768x20xf32> -> vector<768x20xf32>
    %32 = arith.addf %25, %31 : vector<768x20xf32>
    %33 = vector.extract_strided_slice %10 {offsets = [2, 0, 0, 0, 0], sizes = [1, 6, 8, 16, 10], strides = [1, 1, 1, 1, 1]} : vector<4x7x9x16x10xbf16> to vector<1x6x8x16x10xbf16>
    %34 = vector.shape_cast %33 : vector<1x6x8x16x10xbf16> to vector<6x8x16x10xbf16>
    %35 = vector.shape_cast %34 : vector<6x8x16x10xbf16> to vector<768x10xbf16>
    %c3 = arith.constant 3 : index
    %c0_18 = arith.constant 0 : index
    %c0_19 = arith.constant 0 : index
    %36 = vector.load %arg4[%c3, %c0_18, %c0_19] : memref<9x10x20xbf16, #tpu.memory_space<vmem>>, vector<1x10x20xbf16>
    %37 = vector.shape_cast %36 : vector<1x10x20xbf16> to vector<10x20xbf16>
    %cst_20 = arith.constant dense<0.000000e+00> : vector<768x20xf32>
    %38 = tpu.matmul %35, %37, %cst_20 {dimension_numbers = #tpu.dot_dimension_numbers<[1], [0], [0], [1], [0, 0, 1, 1], [], []>} : vector<768x10xbf16>, vector<10x20xbf16>, vector<768x20xf32> -> vector<768x20xf32>
    %39 = arith.addf %32, %38 : vector<768x20xf32>
    %40 = vector.extract_strided_slice %10 {offsets = [3, 0, 0, 0, 0], sizes = [1, 6, 8, 16, 10], strides = [1, 1, 1, 1, 1]} : vector<4x7x9x16x10xbf16> to vector<1x6x8x16x10xbf16>
    %41 = vector.shape_cast %40 : vector<1x6x8x16x10xbf16> to vector<6x8x16x10xbf16>
    %42 = vector.shape_cast %41 : vector<6x8x16x10xbf16> to vector<768x10xbf16>
    %c4 = arith.constant 4 : index
    %c0_21 = arith.constant 0 : index
    %c0_22 = arith.constant 0 : index
    %43 = vector.load %arg4[%c4, %c0_21, %c0_22] : memref<9x10x20xbf16, #tpu.memory_space<vmem>>, vector<1x10x20xbf16>
    %44 = vector.shape_cast %43 : vector<1x10x20xbf16> to vector<10x20xbf16>
    %cst_23 = arith.constant dense<0.000000e+00> : vector<768x20xf32>
    %45 = tpu.matmul %42, %44, %cst_23 {dimension_numbers = #tpu.dot_dimension_numbers<[1], [0], [0], [1], [0, 0, 1, 1], [], []>} : vector<768x10xbf16>, vector<10x20xbf16>, vector<768x20xf32> -> vector<768x20xf32>
    %46 = arith.addf %39, %45 : vector<768x20xf32>
    %47 = vector.extract_strided_slice %10 {offsets = [2, 0, 1, 0, 0], sizes = [1, 6, 8, 16, 10], strides = [1, 1, 1, 1, 1]} : vector<4x7x9x16x10xbf16> to vector<1x6x8x16x10xbf16>
    %48 = vector.shape_cast %47 : vector<1x6x8x16x10xbf16> to vector<6x8x16x10xbf16>
    %49 = vector.shape_cast %48 : vector<6x8x16x10xbf16> to vector<768x10xbf16>
    %c5 = arith.constant 5 : index
    %c0_24 = arith.constant 0 : index
    %c0_25 = arith.constant 0 : index
    %50 = vector.load %arg4[%c5, %c0_24, %c0_25] : memref<9x10x20xbf16, #tpu.memory_space<vmem>>, vector<1x10x20xbf16>
    %51 = vector.shape_cast %50 : vector<1x10x20xbf16> to vector<10x20xbf16>
    %cst_26 = arith.constant dense<0.000000e+00> : vector<768x20xf32>
    %52 = tpu.matmul %49, %51, %cst_26 {dimension_numbers = #tpu.dot_dimension_numbers<[1], [0], [0], [1], [0, 0, 1, 1], [], []>} : vector<768x10xbf16>, vector<10x20xbf16>, vector<768x20xf32> -> vector<768x20xf32>
    %53 = arith.addf %46, %52 : vector<768x20xf32>
    %54 = vector.extract_strided_slice %10 {offsets = [0, 1, 0, 0, 0], sizes = [1, 6, 8, 16, 10], strides = [1, 1, 1, 1, 1]} : vector<4x7x9x16x10xbf16> to vector<1x6x8x16x10xbf16>
    %55 = vector.shape_cast %54 : vector<1x6x8x16x10xbf16> to vector<6x8x16x10xbf16>
    %56 = vector.shape_cast %55 : vector<6x8x16x10xbf16> to vector<768x10xbf16>
    %c6 = arith.constant 6 : index
    %c0_27 = arith.constant 0 : index
    %c0_28 = arith.constant 0 : index
    %57 = vector.load %arg4[%c6, %c0_27, %c0_28] : memref<9x10x20xbf16, #tpu.memory_space<vmem>>, vector<1x10x20xbf16>
    %58 = vector.shape_cast %57 : vector<1x10x20xbf16> to vector<10x20xbf16>
    %cst_29 = arith.constant dense<0.000000e+00> : vector<768x20xf32>
    %59 = tpu.matmul %56, %58, %cst_29 {dimension_numbers = #tpu.dot_dimension_numbers<[1], [0], [0], [1], [0, 0, 1, 1], [], []>} : vector<768x10xbf16>, vector<10x20xbf16>, vector<768x20xf32> -> vector<768x20xf32>
    %60 = arith.addf %53, %59 : vector<768x20xf32>
    %61 = vector.extract_strided_slice %10 {offsets = [1, 1, 0, 0, 0], sizes = [1, 6, 8, 16, 10], strides = [1, 1, 1, 1, 1]} : vector<4x7x9x16x10xbf16> to vector<1x6x8x16x10xbf16>
    %62 = vector.shape_cast %61 : vector<1x6x8x16x10xbf16> to vector<6x8x16x10xbf16>
    %63 = vector.shape_cast %62 : vector<6x8x16x10xbf16> to vector<768x10xbf16>
    %c7 = arith.constant 7 : index
    %c0_30 = arith.constant 0 : index
    %c0_31 = arith.constant 0 : index
    %64 = vector.load %arg4[%c7, %c0_30, %c0_31] : memref<9x10x20xbf16, #tpu.memory_space<vmem>>, vector<1x10x20xbf16>
    %65 = vector.shape_cast %64 : vector<1x10x20xbf16> to vector<10x20xbf16>
    %cst_32 = arith.constant dense<0.000000e+00> : vector<768x20xf32>
    %66 = tpu.matmul %63, %65, %cst_32 {dimension_numbers = #tpu.dot_dimension_numbers<[1], [0], [0], [1], [0, 0, 1, 1], [], []>} : vector<768x10xbf16>, vector<10x20xbf16>, vector<768x20xf32> -> vector<768x20xf32>
    %67 = arith.addf %60, %66 : vector<768x20xf32>
    %68 = vector.extract_strided_slice %10 {offsets = [0, 1, 1, 0, 0], sizes = [1, 6, 8, 16, 10], strides = [1, 1, 1, 1, 1]} : vector<4x7x9x16x10xbf16> to vector<1x6x8x16x10xbf16>
    %69 = vector.shape_cast %68 : vector<1x6x8x16x10xbf16> to vector<6x8x16x10xbf16>
    %70 = vector.shape_cast %69 : vector<6x8x16x10xbf16> to vector<768x10xbf16>
    %c8 = arith.constant 8 : index
    %c0_33 = arith.constant 0 : index
    %c0_34 = arith.constant 0 : index
    %71 = vector.load %arg4[%c8, %c0_33, %c0_34] : memref<9x10x20xbf16, #tpu.memory_space<vmem>>, vector<1x10x20xbf16>
    %72 = vector.shape_cast %71 : vector<1x10x20xbf16> to vector<10x20xbf16>
    %cst_35 = arith.constant dense<0.000000e+00> : vector<768x20xf32>
    %73 = tpu.matmul %70, %72, %cst_35 {dimension_numbers = #tpu.dot_dimension_numbers<[1], [0], [0], [1], [0, 0, 1, 1], [], []>} : vector<768x10xbf16>, vector<10x20xbf16>, vector<768x20xf32> -> vector<768x20xf32>
    %74 = arith.addf %67, %73 : vector<768x20xf32>
    %c0_36 = arith.constant 0 : index
    %c0_37 = arith.constant 0 : index
    %75 = vector.load %arg5[%c0_36, %c0_37] : memref<1x20xf32, #tpu.memory_space<vmem>>, vector<1x20xf32>
    %76 = vector.broadcast %75 : vector<1x20xf32> to vector<768x20xf32>
    %77 = arith.addf %74, %76 : vector<768x20xf32>
    %cst_38 = arith.constant 0.000000e+00 : f32
    %78 = vector.broadcast %cst_38 : f32 to vector<768x20xf32>
    %79 = arith.maximumf %77, %78 : vector<768x20xf32>
    %80 = arith.truncf %79 : vector<768x20xf32> to vector<768x20xbf16>
    %81 = vector.shape_cast %80 : vector<768x20xbf16> to vector<6x8x16x20xbf16>
    %cst_39 = arith.constant 0.000000e+00 : f32
    %82 = vector.broadcast %cst_39 : f32 to vector<16x200xf32>
    %83 = vector.extract_strided_slice %81 {offsets = [0, 0, 0, 0], sizes = [1, 1, 16, 20], strides = [1, 1, 1, 1]} : vector<6x8x16x20xbf16> to vector<1x1x16x20xbf16>
    %84 = vector.shape_cast %83 : vector<1x1x16x20xbf16> to vector<16x20xbf16>
    %c0_40 = arith.constant 0 : index
    %c0_41 = arith.constant 0 : index
    %c0_42 = arith.constant 0 : index
    %85 = vector.load %arg6[%c0_40, %c0_41, %c0_42] : memref<36x20x200xbf16, #tpu.memory_space<vmem>>, vector<1x20x200xbf16>
    %86 = vector.shape_cast %85 : vector<1x20x200xbf16> to vector<20x200xbf16>
    %cst_43 = arith.constant dense<0.000000e+00> : vector<16x200xf32>
    %87 = tpu.matmul %84, %86, %cst_43 {dimension_numbers = #tpu.dot_dimension_numbers<[1], [0], [0], [1], [0, 0, 1, 1], [], []>} : vector<16x20xbf16>, vector<20x200xbf16>, vector<16x200xf32> -> vector<16x200xf32>
    %88 = arith.addf %82, %87 : vector<16x200xf32>
    %89 = vector.extract_strided_slice %81 {offsets = [0, 1, 0, 0], sizes = [1, 1, 16, 20], strides = [1, 1, 1, 1]} : vector<6x8x16x20xbf16> to vector<1x1x16x20xbf16>
    %90 = vector.shape_cast %89 : vector<1x1x16x20xbf16> to vector<16x20xbf16>
    %c1_44 = arith.constant 1 : index
    %c0_45 = arith.constant 0 : index
    %c0_46 = arith.constant 0 : index
    %91 = vector.load %arg6[%c1_44, %c0_45, %c0_46] : memref<36x20x200xbf16, #tpu.memory_space<vmem>>, vector<1x20x200xbf16>
    %92 = vector.shape_cast %91 : vector<1x20x200xbf16> to vector<20x200xbf16>
    %cst_47 = arith.constant dense<0.000000e+00> : vector<16x200xf32>
    %93 = tpu.matmul %90, %92, %cst_47 {dimension_numbers = #tpu.dot_dimension_numbers<[1], [0], [0], [1], [0, 0, 1, 1], [], []>} : vector<16x20xbf16>, vector<20x200xbf16>, vector<16x200xf32> -> vector<16x200xf32>
    %94 = arith.addf %88, %93 : vector<16x200xf32>
    %95 = vector.extract_strided_slice %81 {offsets = [0, 2, 0, 0], sizes = [1, 1, 16, 20], strides = [1, 1, 1, 1]} : vector<6x8x16x20xbf16> to vector<1x1x16x20xbf16>
    %96 = vector.shape_cast %95 : vector<1x1x16x20xbf16> to vector<16x20xbf16>
    %c2_48 = arith.constant 2 : index
    %c0_49 = arith.constant 0 : index
    %c0_50 = arith.constant 0 : index
    %97 = vector.load %arg6[%c2_48, %c0_49, %c0_50] : memref<36x20x200xbf16, #tpu.memory_space<vmem>>, vector<1x20x200xbf16>
    %98 = vector.shape_cast %97 : vector<1x20x200xbf16> to vector<20x200xbf16>
    %cst_51 = arith.constant dense<0.000000e+00> : vector<16x200xf32>
    %99 = tpu.matmul %96, %98, %cst_51 {dimension_numbers = #tpu.dot_dimension_numbers<[1], [0], [0], [1], [0, 0, 1, 1], [], []>} : vector<16x20xbf16>, vector<20x200xbf16>, vector<16x200xf32> -> vector<16x200xf32>
    %100 = arith.addf %94, %99 : vector<16x200xf32>
    %101 = vector.extract_strided_slice %81 {offsets = [0, 3, 0, 0], sizes = [1, 1, 16, 20], strides = [1, 1, 1, 1]} : vector<6x8x16x20xbf16> to vector<1x1x16x20xbf16>
    %102 = vector.shape_cast %101 : vector<1x1x16x20xbf16> to vector<16x20xbf16>
    %c3_52 = arith.constant 3 : index
    %c0_53 = arith.constant 0 : index
    %c0_54 = arith.constant 0 : index
    %103 = vector.load %arg6[%c3_52, %c0_53, %c0_54] : memref<36x20x200xbf16, #tpu.memory_space<vmem>>, vector<1x20x200xbf16>
    %104 = vector.shape_cast %103 : vector<1x20x200xbf16> to vector<20x200xbf16>
    %cst_55 = arith.constant dense<0.000000e+00> : vector<16x200xf32>
    %105 = tpu.matmul %102, %104, %cst_55 {dimension_numbers = #tpu.dot_dimension_numbers<[1], [0], [0], [1], [0, 0, 1, 1], [], []>} : vector<16x20xbf16>, vector<20x200xbf16>, vector<16x200xf32> -> vector<16x200xf32>
    %106 = arith.addf %100, %105 : vector<16x200xf32>
    %107 = vector.extract_strided_slice %81 {offsets = [0, 4, 0, 0], sizes = [1, 1, 16, 20], strides = [1, 1, 1, 1]} : vector<6x8x16x20xbf16> to vector<1x1x16x20xbf16>
    %108 = vector.shape_cast %107 : vector<1x1x16x20xbf16> to vector<16x20xbf16>
    %c4_56 = arith.constant 4 : index
    %c0_57 = arith.constant 0 : index
    %c0_58 = arith.constant 0 : index
    %109 = vector.load %arg6[%c4_56, %c0_57, %c0_58] : memref<36x20x200xbf16, #tpu.memory_space<vmem>>, vector<1x20x200xbf16>
    %110 = vector.shape_cast %109 : vector<1x20x200xbf16> to vector<20x200xbf16>
    %cst_59 = arith.constant dense<0.000000e+00> : vector<16x200xf32>
    %111 = tpu.matmul %108, %110, %cst_59 {dimension_numbers = #tpu.dot_dimension_numbers<[1], [0], [0], [1], [0, 0, 1, 1], [], []>} : vector<16x20xbf16>, vector<20x200xbf16>, vector<16x200xf32> -> vector<16x200xf32>
    %112 = arith.addf %106, %111 : vector<16x200xf32>
    %113 = vector.extract_strided_slice %81 {offsets = [0, 5, 0, 0], sizes = [1, 1, 16, 20], strides = [1, 1, 1, 1]} : vector<6x8x16x20xbf16> to vector<1x1x16x20xbf16>
    %114 = vector.shape_cast %113 : vector<1x1x16x20xbf16> to vector<16x20xbf16>
    %c5_60 = arith.constant 5 : index
    %c0_61 = arith.constant 0 : index
    %c0_62 = arith.constant 0 : index
    %115 = vector.load %arg6[%c5_60, %c0_61, %c0_62] : memref<36x20x200xbf16, #tpu.memory_space<vmem>>, vector<1x20x200xbf16>
    %116 = vector.shape_cast %115 : vector<1x20x200xbf16> to vector<20x200xbf16>
    %cst_63 = arith.constant dense<0.000000e+00> : vector<16x200xf32>
    %117 = tpu.matmul %114, %116, %cst_63 {dimension_numbers = #tpu.dot_dimension_numbers<[1], [0], [0], [1], [0, 0, 1, 1], [], []>} : vector<16x20xbf16>, vector<20x200xbf16>, vector<16x200xf32> -> vector<16x200xf32>
    %118 = arith.addf %112, %117 : vector<16x200xf32>
    %119 = vector.extract_strided_slice %81 {offsets = [1, 0, 0, 0], sizes = [1, 1, 16, 20], strides = [1, 1, 1, 1]} : vector<6x8x16x20xbf16> to vector<1x1x16x20xbf16>
    %120 = vector.shape_cast %119 : vector<1x1x16x20xbf16> to vector<16x20xbf16>
    %c6_64 = arith.constant 6 : index
    %c0_65 = arith.constant 0 : index
    %c0_66 = arith.constant 0 : index
    %121 = vector.load %arg6[%c6_64, %c0_65, %c0_66] : memref<36x20x200xbf16, #tpu.memory_space<vmem>>, vector<1x20x200xbf16>
    %122 = vector.shape_cast %121 : vector<1x20x200xbf16> to vector<20x200xbf16>
    %cst_67 = arith.constant dense<0.000000e+00> : vector<16x200xf32>
    %123 = tpu.matmul %120, %122, %cst_67 {dimension_numbers = #tpu.dot_dimension_numbers<[1], [0], [0], [1], [0, 0, 1, 1], [], []>} : vector<16x20xbf16>, vector<20x200xbf16>, vector<16x200xf32> -> vector<16x200xf32>
    %124 = arith.addf %118, %123 : vector<16x200xf32>
    %125 = vector.extract_strided_slice %81 {offsets = [1, 1, 0, 0], sizes = [1, 1, 16, 20], strides = [1, 1, 1, 1]} : vector<6x8x16x20xbf16> to vector<1x1x16x20xbf16>
    %126 = vector.shape_cast %125 : vector<1x1x16x20xbf16> to vector<16x20xbf16>
    %c7_68 = arith.constant 7 : index
    %c0_69 = arith.constant 0 : index
    %c0_70 = arith.constant 0 : index
    %127 = vector.load %arg6[%c7_68, %c0_69, %c0_70] : memref<36x20x200xbf16, #tpu.memory_space<vmem>>, vector<1x20x200xbf16>
    %128 = vector.shape_cast %127 : vector<1x20x200xbf16> to vector<20x200xbf16>
    %cst_71 = arith.constant dense<0.000000e+00> : vector<16x200xf32>
    %129 = tpu.matmul %126, %128, %cst_71 {dimension_numbers = #tpu.dot_dimension_numbers<[1], [0], [0], [1], [0, 0, 1, 1], [], []>} : vector<16x20xbf16>, vector<20x200xbf16>, vector<16x200xf32> -> vector<16x200xf32>
    %130 = arith.addf %124, %129 : vector<16x200xf32>
    %131 = vector.extract_strided_slice %81 {offsets = [1, 2, 0, 0], sizes = [1, 1, 16, 20], strides = [1, 1, 1, 1]} : vector<6x8x16x20xbf16> to vector<1x1x16x20xbf16>
    %132 = vector.shape_cast %131 : vector<1x1x16x20xbf16> to vector<16x20xbf16>
    %c8_72 = arith.constant 8 : index
    %c0_73 = arith.constant 0 : index
    %c0_74 = arith.constant 0 : index
    %133 = vector.load %arg6[%c8_72, %c0_73, %c0_74] : memref<36x20x200xbf16, #tpu.memory_space<vmem>>, vector<1x20x200xbf16>
    %134 = vector.shape_cast %133 : vector<1x20x200xbf16> to vector<20x200xbf16>
    %cst_75 = arith.constant dense<0.000000e+00> : vector<16x200xf32>
    %135 = tpu.matmul %132, %134, %cst_75 {dimension_numbers = #tpu.dot_dimension_numbers<[1], [0], [0], [1], [0, 0, 1, 1], [], []>} : vector<16x20xbf16>, vector<20x200xbf16>, vector<16x200xf32> -> vector<16x200xf32>
    %136 = arith.addf %130, %135 : vector<16x200xf32>
    %137 = vector.extract_strided_slice %81 {offsets = [1, 3, 0, 0], sizes = [1, 1, 16, 20], strides = [1, 1, 1, 1]} : vector<6x8x16x20xbf16> to vector<1x1x16x20xbf16>
    %138 = vector.shape_cast %137 : vector<1x1x16x20xbf16> to vector<16x20xbf16>
    %c9 = arith.constant 9 : index
    %c0_76 = arith.constant 0 : index
    %c0_77 = arith.constant 0 : index
    %139 = vector.load %arg6[%c9, %c0_76, %c0_77] : memref<36x20x200xbf16, #tpu.memory_space<vmem>>, vector<1x20x200xbf16>
    %140 = vector.shape_cast %139 : vector<1x20x200xbf16> to vector<20x200xbf16>
    %cst_78 = arith.constant dense<0.000000e+00> : vector<16x200xf32>
    %141 = tpu.matmul %138, %140, %cst_78 {dimension_numbers = #tpu.dot_dimension_numbers<[1], [0], [0], [1], [0, 0, 1, 1], [], []>} : vector<16x20xbf16>, vector<20x200xbf16>, vector<16x200xf32> -> vector<16x200xf32>
    %142 = arith.addf %136, %141 : vector<16x200xf32>
    %143 = vector.extract_strided_slice %81 {offsets = [1, 4, 0, 0], sizes = [1, 1, 16, 20], strides = [1, 1, 1, 1]} : vector<6x8x16x20xbf16> to vector<1x1x16x20xbf16>
    %144 = vector.shape_cast %143 : vector<1x1x16x20xbf16> to vector<16x20xbf16>
    %c10 = arith.constant 10 : index
    %c0_79 = arith.constant 0 : index
    %c0_80 = arith.constant 0 : index
    %145 = vector.load %arg6[%c10, %c0_79, %c0_80] : memref<36x20x200xbf16, #tpu.memory_space<vmem>>, vector<1x20x200xbf16>
    %146 = vector.shape_cast %145 : vector<1x20x200xbf16> to vector<20x200xbf16>
    %cst_81 = arith.constant dense<0.000000e+00> : vector<16x200xf32>
    %147 = tpu.matmul %144, %146, %cst_81 {dimension_numbers = #tpu.dot_dimension_numbers<[1], [0], [0], [1], [0, 0, 1, 1], [], []>} : vector<16x20xbf16>, vector<20x200xbf16>, vector<16x200xf32> -> vector<16x200xf32>
    %148 = arith.addf %142, %147 : vector<16x200xf32>
    %149 = vector.extract_strided_slice %81 {offsets = [1, 5, 0, 0], sizes = [1, 1, 16, 20], strides = [1, 1, 1, 1]} : vector<6x8x16x20xbf16> to vector<1x1x16x20xbf16>
    %150 = vector.shape_cast %149 : vector<1x1x16x20xbf16> to vector<16x20xbf16>
    %c11 = arith.constant 11 : index
    %c0_82 = arith.constant 0 : index
    %c0_83 = arith.constant 0 : index
    %151 = vector.load %arg6[%c11, %c0_82, %c0_83] : memref<36x20x200xbf16, #tpu.memory_space<vmem>>, vector<1x20x200xbf16>
    %152 = vector.shape_cast %151 : vector<1x20x200xbf16> to vector<20x200xbf16>
    %cst_84 = arith.constant dense<0.000000e+00> : vector<16x200xf32>
    %153 = tpu.matmul %150, %152, %cst_84 {dimension_numbers = #tpu.dot_dimension_numbers<[1], [0], [0], [1], [0, 0, 1, 1], [], []>} : vector<16x20xbf16>, vector<20x200xbf16>, vector<16x200xf32> -> vector<16x200xf32>
    %154 = arith.addf %148, %153 : vector<16x200xf32>
    %155 = vector.extract_strided_slice %81 {offsets = [2, 0, 0, 0], sizes = [1, 1, 16, 20], strides = [1, 1, 1, 1]} : vector<6x8x16x20xbf16> to vector<1x1x16x20xbf16>
    %156 = vector.shape_cast %155 : vector<1x1x16x20xbf16> to vector<16x20xbf16>
    %c12 = arith.constant 12 : index
    %c0_85 = arith.constant 0 : index
    %c0_86 = arith.constant 0 : index
    %157 = vector.load %arg6[%c12, %c0_85, %c0_86] : memref<36x20x200xbf16, #tpu.memory_space<vmem>>, vector<1x20x200xbf16>
    %158 = vector.shape_cast %157 : vector<1x20x200xbf16> to vector<20x200xbf16>
    %cst_87 = arith.constant dense<0.000000e+00> : vector<16x200xf32>
    %159 = tpu.matmul %156, %158, %cst_87 {dimension_numbers = #tpu.dot_dimension_numbers<[1], [0], [0], [1], [0, 0, 1, 1], [], []>} : vector<16x20xbf16>, vector<20x200xbf16>, vector<16x200xf32> -> vector<16x200xf32>
    %160 = arith.addf %154, %159 : vector<16x200xf32>
    %161 = vector.extract_strided_slice %81 {offsets = [2, 1, 0, 0], sizes = [1, 1, 16, 20], strides = [1, 1, 1, 1]} : vector<6x8x16x20xbf16> to vector<1x1x16x20xbf16>
    %162 = vector.shape_cast %161 : vector<1x1x16x20xbf16> to vector<16x20xbf16>
    %c13 = arith.constant 13 : index
    %c0_88 = arith.constant 0 : index
    %c0_89 = arith.constant 0 : index
    %163 = vector.load %arg6[%c13, %c0_88, %c0_89] : memref<36x20x200xbf16, #tpu.memory_space<vmem>>, vector<1x20x200xbf16>
    %164 = vector.shape_cast %163 : vector<1x20x200xbf16> to vector<20x200xbf16>
    %cst_90 = arith.constant dense<0.000000e+00> : vector<16x200xf32>
    %165 = tpu.matmul %162, %164, %cst_90 {dimension_numbers = #tpu.dot_dimension_numbers<[1], [0], [0], [1], [0, 0, 1, 1], [], []>} : vector<16x20xbf16>, vector<20x200xbf16>, vector<16x200xf32> -> vector<16x200xf32>
    %166 = arith.addf %160, %165 : vector<16x200xf32>
    %167 = vector.extract_strided_slice %81 {offsets = [2, 2, 0, 0], sizes = [1, 1, 16, 20], strides = [1, 1, 1, 1]} : vector<6x8x16x20xbf16> to vector<1x1x16x20xbf16>
    %168 = vector.shape_cast %167 : vector<1x1x16x20xbf16> to vector<16x20xbf16>
    %c14 = arith.constant 14 : index
    %c0_91 = arith.constant 0 : index
    %c0_92 = arith.constant 0 : index
    %169 = vector.load %arg6[%c14, %c0_91, %c0_92] : memref<36x20x200xbf16, #tpu.memory_space<vmem>>, vector<1x20x200xbf16>
    %170 = vector.shape_cast %169 : vector<1x20x200xbf16> to vector<20x200xbf16>
    %cst_93 = arith.constant dense<0.000000e+00> : vector<16x200xf32>
    %171 = tpu.matmul %168, %170, %cst_93 {dimension_numbers = #tpu.dot_dimension_numbers<[1], [0], [0], [1], [0, 0, 1, 1], [], []>} : vector<16x20xbf16>, vector<20x200xbf16>, vector<16x200xf32> -> vector<16x200xf32>
    %172 = arith.addf %166, %171 : vector<16x200xf32>
    %173 = vector.extract_strided_slice %81 {offsets = [2, 3, 0, 0], sizes = [1, 1, 16, 20], strides = [1, 1, 1, 1]} : vector<6x8x16x20xbf16> to vector<1x1x16x20xbf16>
    %174 = vector.shape_cast %173 : vector<1x1x16x20xbf16> to vector<16x20xbf16>
    %c15 = arith.constant 15 : index
    %c0_94 = arith.constant 0 : index
    %c0_95 = arith.constant 0 : index
    %175 = vector.load %arg6[%c15, %c0_94, %c0_95] : memref<36x20x200xbf16, #tpu.memory_space<vmem>>, vector<1x20x200xbf16>
    %176 = vector.shape_cast %175 : vector<1x20x200xbf16> to vector<20x200xbf16>
    %cst_96 = arith.constant dense<0.000000e+00> : vector<16x200xf32>
    %177 = tpu.matmul %174, %176, %cst_96 {dimension_numbers = #tpu.dot_dimension_numbers<[1], [0], [0], [1], [0, 0, 1, 1], [], []>} : vector<16x20xbf16>, vector<20x200xbf16>, vector<16x200xf32> -> vector<16x200xf32>
    %178 = arith.addf %172, %177 : vector<16x200xf32>
    %179 = vector.extract_strided_slice %81 {offsets = [2, 4, 0, 0], sizes = [1, 1, 16, 20], strides = [1, 1, 1, 1]} : vector<6x8x16x20xbf16> to vector<1x1x16x20xbf16>
    %180 = vector.shape_cast %179 : vector<1x1x16x20xbf16> to vector<16x20xbf16>
    %c16 = arith.constant 16 : index
    %c0_97 = arith.constant 0 : index
    %c0_98 = arith.constant 0 : index
    %181 = vector.load %arg6[%c16, %c0_97, %c0_98] : memref<36x20x200xbf16, #tpu.memory_space<vmem>>, vector<1x20x200xbf16>
    %182 = vector.shape_cast %181 : vector<1x20x200xbf16> to vector<20x200xbf16>
    %cst_99 = arith.constant dense<0.000000e+00> : vector<16x200xf32>
    %183 = tpu.matmul %180, %182, %cst_99 {dimension_numbers = #tpu.dot_dimension_numbers<[1], [0], [0], [1], [0, 0, 1, 1], [], []>} : vector<16x20xbf16>, vector<20x200xbf16>, vector<16x200xf32> -> vector<16x200xf32>
    %184 = arith.addf %178, %183 : vector<16x200xf32>
    %185 = vector.extract_strided_slice %81 {offsets = [2, 5, 0, 0], sizes = [1, 1, 16, 20], strides = [1, 1, 1, 1]} : vector<6x8x16x20xbf16> to vector<1x1x16x20xbf16>
    %186 = vector.shape_cast %185 : vector<1x1x16x20xbf16> to vector<16x20xbf16>
    %c17 = arith.constant 17 : index
    %c0_100 = arith.constant 0 : index
    %c0_101 = arith.constant 0 : index
    %187 = vector.load %arg6[%c17, %c0_100, %c0_101] : memref<36x20x200xbf16, #tpu.memory_space<vmem>>, vector<1x20x200xbf16>
    %188 = vector.shape_cast %187 : vector<1x20x200xbf16> to vector<20x200xbf16>
    %cst_102 = arith.constant dense<0.000000e+00> : vector<16x200xf32>
    %189 = tpu.matmul %186, %188, %cst_102 {dimension_numbers = #tpu.dot_dimension_numbers<[1], [0], [0], [1], [0, 0, 1, 1], [], []>} : vector<16x20xbf16>, vector<20x200xbf16>, vector<16x200xf32> -> vector<16x200xf32>
    %190 = arith.addf %184, %189 : vector<16x200xf32>
    %191 = vector.extract_strided_slice %81 {offsets = [3, 0, 0, 0], sizes = [1, 1, 16, 20], strides = [1, 1, 1, 1]} : vector<6x8x16x20xbf16> to vector<1x1x16x20xbf16>
    %192 = vector.shape_cast %191 : vector<1x1x16x20xbf16> to vector<16x20xbf16>
    %c18 = arith.constant 18 : index
    %c0_103 = arith.constant 0 : index
    %c0_104 = arith.constant 0 : index
    %193 = vector.load %arg6[%c18, %c0_103, %c0_104] : memref<36x20x200xbf16, #tpu.memory_space<vmem>>, vector<1x20x200xbf16>
    %194 = vector.shape_cast %193 : vector<1x20x200xbf16> to vector<20x200xbf16>
    %cst_105 = arith.constant dense<0.000000e+00> : vector<16x200xf32>
    %195 = tpu.matmul %192, %194, %cst_105 {dimension_numbers = #tpu.dot_dimension_numbers<[1], [0], [0], [1], [0, 0, 1, 1], [], []>} : vector<16x20xbf16>, vector<20x200xbf16>, vector<16x200xf32> -> vector<16x200xf32>
    %196 = arith.addf %190, %195 : vector<16x200xf32>
    %197 = vector.extract_strided_slice %81 {offsets = [3, 1, 0, 0], sizes = [1, 1, 16, 20], strides = [1, 1, 1, 1]} : vector<6x8x16x20xbf16> to vector<1x1x16x20xbf16>
    %198 = vector.shape_cast %197 : vector<1x1x16x20xbf16> to vector<16x20xbf16>
    %c19 = arith.constant 19 : index
    %c0_106 = arith.constant 0 : index
    %c0_107 = arith.constant 0 : index
    %199 = vector.load %arg6[%c19, %c0_106, %c0_107] : memref<36x20x200xbf16, #tpu.memory_space<vmem>>, vector<1x20x200xbf16>
    %200 = vector.shape_cast %199 : vector<1x20x200xbf16> to vector<20x200xbf16>
    %cst_108 = arith.constant dense<0.000000e+00> : vector<16x200xf32>
    %201 = tpu.matmul %198, %200, %cst_108 {dimension_numbers = #tpu.dot_dimension_numbers<[1], [0], [0], [1], [0, 0, 1, 1], [], []>} : vector<16x20xbf16>, vector<20x200xbf16>, vector<16x200xf32> -> vector<16x200xf32>
    %202 = arith.addf %196, %201 : vector<16x200xf32>
    %203 = vector.extract_strided_slice %81 {offsets = [3, 2, 0, 0], sizes = [1, 1, 16, 20], strides = [1, 1, 1, 1]} : vector<6x8x16x20xbf16> to vector<1x1x16x20xbf16>
    %204 = vector.shape_cast %203 : vector<1x1x16x20xbf16> to vector<16x20xbf16>
    %c20 = arith.constant 20 : index
    %c0_109 = arith.constant 0 : index
    %c0_110 = arith.constant 0 : index
    %205 = vector.load %arg6[%c20, %c0_109, %c0_110] : memref<36x20x200xbf16, #tpu.memory_space<vmem>>, vector<1x20x200xbf16>
    %206 = vector.shape_cast %205 : vector<1x20x200xbf16> to vector<20x200xbf16>
    %cst_111 = arith.constant dense<0.000000e+00> : vector<16x200xf32>
    %207 = tpu.matmul %204, %206, %cst_111 {dimension_numbers = #tpu.dot_dimension_numbers<[1], [0], [0], [1], [0, 0, 1, 1], [], []>} : vector<16x20xbf16>, vector<20x200xbf16>, vector<16x200xf32> -> vector<16x200xf32>
    %208 = arith.addf %202, %207 : vector<16x200xf32>
    %209 = vector.extract_strided_slice %81 {offsets = [3, 3, 0, 0], sizes = [1, 1, 16, 20], strides = [1, 1, 1, 1]} : vector<6x8x16x20xbf16> to vector<1x1x16x20xbf16>
    %210 = vector.shape_cast %209 : vector<1x1x16x20xbf16> to vector<16x20xbf16>
    %c21 = arith.constant 21 : index
    %c0_112 = arith.constant 0 : index
    %c0_113 = arith.constant 0 : index
    %211 = vector.load %arg6[%c21, %c0_112, %c0_113] : memref<36x20x200xbf16, #tpu.memory_space<vmem>>, vector<1x20x200xbf16>
    %212 = vector.shape_cast %211 : vector<1x20x200xbf16> to vector<20x200xbf16>
    %cst_114 = arith.constant dense<0.000000e+00> : vector<16x200xf32>
    %213 = tpu.matmul %210, %212, %cst_114 {dimension_numbers = #tpu.dot_dimension_numbers<[1], [0], [0], [1], [0, 0, 1, 1], [], []>} : vector<16x20xbf16>, vector<20x200xbf16>, vector<16x200xf32> -> vector<16x200xf32>
    %214 = arith.addf %208, %213 : vector<16x200xf32>
    %215 = vector.extract_strided_slice %81 {offsets = [3, 4, 0, 0], sizes = [1, 1, 16, 20], strides = [1, 1, 1, 1]} : vector<6x8x16x20xbf16> to vector<1x1x16x20xbf16>
    %216 = vector.shape_cast %215 : vector<1x1x16x20xbf16> to vector<16x20xbf16>
    %c22 = arith.constant 22 : index
    %c0_115 = arith.constant 0 : index
    %c0_116 = arith.constant 0 : index
    %217 = vector.load %arg6[%c22, %c0_115, %c0_116] : memref<36x20x200xbf16, #tpu.memory_space<vmem>>, vector<1x20x200xbf16>
    %218 = vector.shape_cast %217 : vector<1x20x200xbf16> to vector<20x200xbf16>
    %cst_117 = arith.constant dense<0.000000e+00> : vector<16x200xf32>
    %219 = tpu.matmul %216, %218, %cst_117 {dimension_numbers = #tpu.dot_dimension_numbers<[1], [0], [0], [1], [0, 0, 1, 1], [], []>} : vector<16x20xbf16>, vector<20x200xbf16>, vector<16x200xf32> -> vector<16x200xf32>
    %220 = arith.addf %214, %219 : vector<16x200xf32>
    %221 = vector.extract_strided_slice %81 {offsets = [3, 5, 0, 0], sizes = [1, 1, 16, 20], strides = [1, 1, 1, 1]} : vector<6x8x16x20xbf16> to vector<1x1x16x20xbf16>
    %222 = vector.shape_cast %221 : vector<1x1x16x20xbf16> to vector<16x20xbf16>
    %c23 = arith.constant 23 : index
    %c0_118 = arith.constant 0 : index
    %c0_119 = arith.constant 0 : index
    %223 = vector.load %arg6[%c23, %c0_118, %c0_119] : memref<36x20x200xbf16, #tpu.memory_space<vmem>>, vector<1x20x200xbf16>
    %224 = vector.shape_cast %223 : vector<1x20x200xbf16> to vector<20x200xbf16>
    %cst_120 = arith.constant dense<0.000000e+00> : vector<16x200xf32>
    %225 = tpu.matmul %222, %224, %cst_120 {dimension_numbers = #tpu.dot_dimension_numbers<[1], [0], [0], [1], [0, 0, 1, 1], [], []>} : vector<16x20xbf16>, vector<20x200xbf16>, vector<16x200xf32> -> vector<16x200xf32>
    %226 = arith.addf %220, %225 : vector<16x200xf32>
    %227 = vector.extract_strided_slice %81 {offsets = [4, 0, 0, 0], sizes = [1, 1, 16, 20], strides = [1, 1, 1, 1]} : vector<6x8x16x20xbf16> to vector<1x1x16x20xbf16>
    %228 = vector.shape_cast %227 : vector<1x1x16x20xbf16> to vector<16x20xbf16>
    %c24 = arith.constant 24 : index
    %c0_121 = arith.constant 0 : index
    %c0_122 = arith.constant 0 : index
    %229 = vector.load %arg6[%c24, %c0_121, %c0_122] : memref<36x20x200xbf16, #tpu.memory_space<vmem>>, vector<1x20x200xbf16>
    %230 = vector.shape_cast %229 : vector<1x20x200xbf16> to vector<20x200xbf16>
    %cst_123 = arith.constant dense<0.000000e+00> : vector<16x200xf32>
    %231 = tpu.matmul %228, %230, %cst_123 {dimension_numbers = #tpu.dot_dimension_numbers<[1], [0], [0], [1], [0, 0, 1, 1], [], []>} : vector<16x20xbf16>, vector<20x200xbf16>, vector<16x200xf32> -> vector<16x200xf32>
    %232 = arith.addf %226, %231 : vector<16x200xf32>
    %233 = vector.extract_strided_slice %81 {offsets = [4, 1, 0, 0], sizes = [1, 1, 16, 20], strides = [1, 1, 1, 1]} : vector<6x8x16x20xbf16> to vector<1x1x16x20xbf16>
    %234 = vector.shape_cast %233 : vector<1x1x16x20xbf16> to vector<16x20xbf16>
    %c25 = arith.constant 25 : index
    %c0_124 = arith.constant 0 : index
    %c0_125 = arith.constant 0 : index
    %235 = vector.load %arg6[%c25, %c0_124, %c0_125] : memref<36x20x200xbf16, #tpu.memory_space<vmem>>, vector<1x20x200xbf16>
    %236 = vector.shape_cast %235 : vector<1x20x200xbf16> to vector<20x200xbf16>
    %cst_126 = arith.constant dense<0.000000e+00> : vector<16x200xf32>
    %237 = tpu.matmul %234, %236, %cst_126 {dimension_numbers = #tpu.dot_dimension_numbers<[1], [0], [0], [1], [0, 0, 1, 1], [], []>} : vector<16x20xbf16>, vector<20x200xbf16>, vector<16x200xf32> -> vector<16x200xf32>
    %238 = arith.addf %232, %237 : vector<16x200xf32>
    %239 = vector.extract_strided_slice %81 {offsets = [4, 2, 0, 0], sizes = [1, 1, 16, 20], strides = [1, 1, 1, 1]} : vector<6x8x16x20xbf16> to vector<1x1x16x20xbf16>
    %240 = vector.shape_cast %239 : vector<1x1x16x20xbf16> to vector<16x20xbf16>
    %c26 = arith.constant 26 : index
    %c0_127 = arith.constant 0 : index
    %c0_128 = arith.constant 0 : index
    %241 = vector.load %arg6[%c26, %c0_127, %c0_128] : memref<36x20x200xbf16, #tpu.memory_space<vmem>>, vector<1x20x200xbf16>
    %242 = vector.shape_cast %241 : vector<1x20x200xbf16> to vector<20x200xbf16>
    %cst_129 = arith.constant dense<0.000000e+00> : vector<16x200xf32>
    %243 = tpu.matmul %240, %242, %cst_129 {dimension_numbers = #tpu.dot_dimension_numbers<[1], [0], [0], [1], [0, 0, 1, 1], [], []>} : vector<16x20xbf16>, vector<20x200xbf16>, vector<16x200xf32> -> vector<16x200xf32>
    %244 = arith.addf %238, %243 : vector<16x200xf32>
    %245 = vector.extract_strided_slice %81 {offsets = [4, 3, 0, 0], sizes = [1, 1, 16, 20], strides = [1, 1, 1, 1]} : vector<6x8x16x20xbf16> to vector<1x1x16x20xbf16>
    %246 = vector.shape_cast %245 : vector<1x1x16x20xbf16> to vector<16x20xbf16>
    %c27 = arith.constant 27 : index
    %c0_130 = arith.constant 0 : index
    %c0_131 = arith.constant 0 : index
    %247 = vector.load %arg6[%c27, %c0_130, %c0_131] : memref<36x20x200xbf16, #tpu.memory_space<vmem>>, vector<1x20x200xbf16>
    %248 = vector.shape_cast %247 : vector<1x20x200xbf16> to vector<20x200xbf16>
    %cst_132 = arith.constant dense<0.000000e+00> : vector<16x200xf32>
    %249 = tpu.matmul %246, %248, %cst_132 {dimension_numbers = #tpu.dot_dimension_numbers<[1], [0], [0], [1], [0, 0, 1, 1], [], []>} : vector<16x20xbf16>, vector<20x200xbf16>, vector<16x200xf32> -> vector<16x200xf32>
    %250 = arith.addf %244, %249 : vector<16x200xf32>
    %251 = vector.extract_strided_slice %81 {offsets = [4, 4, 0, 0], sizes = [1, 1, 16, 20], strides = [1, 1, 1, 1]} : vector<6x8x16x20xbf16> to vector<1x1x16x20xbf16>
    %252 = vector.shape_cast %251 : vector<1x1x16x20xbf16> to vector<16x20xbf16>
    %c28 = arith.constant 28 : index
    %c0_133 = arith.constant 0 : index
    %c0_134 = arith.constant 0 : index
    %253 = vector.load %arg6[%c28, %c0_133, %c0_134] : memref<36x20x200xbf16, #tpu.memory_space<vmem>>, vector<1x20x200xbf16>
    %254 = vector.shape_cast %253 : vector<1x20x200xbf16> to vector<20x200xbf16>
    %cst_135 = arith.constant dense<0.000000e+00> : vector<16x200xf32>
    %255 = tpu.matmul %252, %254, %cst_135 {dimension_numbers = #tpu.dot_dimension_numbers<[1], [0], [0], [1], [0, 0, 1, 1], [], []>} : vector<16x20xbf16>, vector<20x200xbf16>, vector<16x200xf32> -> vector<16x200xf32>
    %256 = arith.addf %250, %255 : vector<16x200xf32>
    %257 = vector.extract_strided_slice %81 {offsets = [4, 5, 0, 0], sizes = [1, 1, 16, 20], strides = [1, 1, 1, 1]} : vector<6x8x16x20xbf16> to vector<1x1x16x20xbf16>
    %258 = vector.shape_cast %257 : vector<1x1x16x20xbf16> to vector<16x20xbf16>
    %c29 = arith.constant 29 : index
    %c0_136 = arith.constant 0 : index
    %c0_137 = arith.constant 0 : index
    %259 = vector.load %arg6[%c29, %c0_136, %c0_137] : memref<36x20x200xbf16, #tpu.memory_space<vmem>>, vector<1x20x200xbf16>
    %260 = vector.shape_cast %259 : vector<1x20x200xbf16> to vector<20x200xbf16>
    %cst_138 = arith.constant dense<0.000000e+00> : vector<16x200xf32>
    %261 = tpu.matmul %258, %260, %cst_138 {dimension_numbers = #tpu.dot_dimension_numbers<[1], [0], [0], [1], [0, 0, 1, 1], [], []>} : vector<16x20xbf16>, vector<20x200xbf16>, vector<16x200xf32> -> vector<16x200xf32>
    %262 = arith.addf %256, %261 : vector<16x200xf32>
    %263 = vector.extract_strided_slice %81 {offsets = [5, 0, 0, 0], sizes = [1, 1, 16, 20], strides = [1, 1, 1, 1]} : vector<6x8x16x20xbf16> to vector<1x1x16x20xbf16>
    %264 = vector.shape_cast %263 : vector<1x1x16x20xbf16> to vector<16x20xbf16>
    %c30 = arith.constant 30 : index
    %c0_139 = arith.constant 0 : index
    %c0_140 = arith.constant 0 : index
    %265 = vector.load %arg6[%c30, %c0_139, %c0_140] : memref<36x20x200xbf16, #tpu.memory_space<vmem>>, vector<1x20x200xbf16>
    %266 = vector.shape_cast %265 : vector<1x20x200xbf16> to vector<20x200xbf16>
    %cst_141 = arith.constant dense<0.000000e+00> : vector<16x200xf32>
    %267 = tpu.matmul %264, %266, %cst_141 {dimension_numbers = #tpu.dot_dimension_numbers<[1], [0], [0], [1], [0, 0, 1, 1], [], []>} : vector<16x20xbf16>, vector<20x200xbf16>, vector<16x200xf32> -> vector<16x200xf32>
    %268 = arith.addf %262, %267 : vector<16x200xf32>
    %269 = vector.extract_strided_slice %81 {offsets = [5, 1, 0, 0], sizes = [1, 1, 16, 20], strides = [1, 1, 1, 1]} : vector<6x8x16x20xbf16> to vector<1x1x16x20xbf16>
    %270 = vector.shape_cast %269 : vector<1x1x16x20xbf16> to vector<16x20xbf16>
    %c31 = arith.constant 31 : index
    %c0_142 = arith.constant 0 : index
    %c0_143 = arith.constant 0 : index
    %271 = vector.load %arg6[%c31, %c0_142, %c0_143] : memref<36x20x200xbf16, #tpu.memory_space<vmem>>, vector<1x20x200xbf16>
    %272 = vector.shape_cast %271 : vector<1x20x200xbf16> to vector<20x200xbf16>
    %cst_144 = arith.constant dense<0.000000e+00> : vector<16x200xf32>
    %273 = tpu.matmul %270, %272, %cst_144 {dimension_numbers = #tpu.dot_dimension_numbers<[1], [0], [0], [1], [0, 0, 1, 1], [], []>} : vector<16x20xbf16>, vector<20x200xbf16>, vector<16x200xf32> -> vector<16x200xf32>
    %274 = arith.addf %268, %273 : vector<16x200xf32>
    %275 = vector.extract_strided_slice %81 {offsets = [5, 2, 0, 0], sizes = [1, 1, 16, 20], strides = [1, 1, 1, 1]} : vector<6x8x16x20xbf16> to vector<1x1x16x20xbf16>
    %276 = vector.shape_cast %275 : vector<1x1x16x20xbf16> to vector<16x20xbf16>
    %c32 = arith.constant 32 : index
    %c0_145 = arith.constant 0 : index
    %c0_146 = arith.constant 0 : index
    %277 = vector.load %arg6[%c32, %c0_145, %c0_146] : memref<36x20x200xbf16, #tpu.memory_space<vmem>>, vector<1x20x200xbf16>
    %278 = vector.shape_cast %277 : vector<1x20x200xbf16> to vector<20x200xbf16>
    %cst_147 = arith.constant dense<0.000000e+00> : vector<16x200xf32>
    %279 = tpu.matmul %276, %278, %cst_147 {dimension_numbers = #tpu.dot_dimension_numbers<[1], [0], [0], [1], [0, 0, 1, 1], [], []>} : vector<16x20xbf16>, vector<20x200xbf16>, vector<16x200xf32> -> vector<16x200xf32>
    %280 = arith.addf %274, %279 : vector<16x200xf32>
    %281 = vector.extract_strided_slice %81 {offsets = [5, 3, 0, 0], sizes = [1, 1, 16, 20], strides = [1, 1, 1, 1]} : vector<6x8x16x20xbf16> to vector<1x1x16x20xbf16>
    %282 = vector.shape_cast %281 : vector<1x1x16x20xbf16> to vector<16x20xbf16>
    %c33 = arith.constant 33 : index
    %c0_148 = arith.constant 0 : index
    %c0_149 = arith.constant 0 : index
    %283 = vector.load %arg6[%c33, %c0_148, %c0_149] : memref<36x20x200xbf16, #tpu.memory_space<vmem>>, vector<1x20x200xbf16>
    %284 = vector.shape_cast %283 : vector<1x20x200xbf16> to vector<20x200xbf16>
    %cst_150 = arith.constant dense<0.000000e+00> : vector<16x200xf32>
    %285 = tpu.matmul %282, %284, %cst_150 {dimension_numbers = #tpu.dot_dimension_numbers<[1], [0], [0], [1], [0, 0, 1, 1], [], []>} : vector<16x20xbf16>, vector<20x200xbf16>, vector<16x200xf32> -> vector<16x200xf32>
    %286 = arith.addf %280, %285 : vector<16x200xf32>
    %287 = vector.extract_strided_slice %81 {offsets = [5, 4, 0, 0], sizes = [1, 1, 16, 20], strides = [1, 1, 1, 1]} : vector<6x8x16x20xbf16> to vector<1x1x16x20xbf16>
    %288 = vector.shape_cast %287 : vector<1x1x16x20xbf16> to vector<16x20xbf16>
    %c34 = arith.constant 34 : index
    %c0_151 = arith.constant 0 : index
    %c0_152 = arith.constant 0 : index
    %289 = vector.load %arg6[%c34, %c0_151, %c0_152] : memref<36x20x200xbf16, #tpu.memory_space<vmem>>, vector<1x20x200xbf16>
    %290 = vector.shape_cast %289 : vector<1x20x200xbf16> to vector<20x200xbf16>
    %cst_153 = arith.constant dense<0.000000e+00> : vector<16x200xf32>
    %291 = tpu.matmul %288, %290, %cst_153 {dimension_numbers = #tpu.dot_dimension_numbers<[1], [0], [0], [1], [0, 0, 1, 1], [], []>} : vector<16x20xbf16>, vector<20x200xbf16>, vector<16x200xf32> -> vector<16x200xf32>
    %292 = arith.addf %286, %291 : vector<16x200xf32>
    %293 = vector.extract_strided_slice %81 {offsets = [5, 5, 0, 0], sizes = [1, 1, 16, 20], strides = [1, 1, 1, 1]} : vector<6x8x16x20xbf16> to vector<1x1x16x20xbf16>
    %294 = vector.shape_cast %293 : vector<1x1x16x20xbf16> to vector<16x20xbf16>
    %c35 = arith.constant 35 : index
    %c0_154 = arith.constant 0 : index
    %c0_155 = arith.constant 0 : index
    %295 = vector.load %arg6[%c35, %c0_154, %c0_155] : memref<36x20x200xbf16, #tpu.memory_space<vmem>>, vector<1x20x200xbf16>
    %296 = vector.shape_cast %295 : vector<1x20x200xbf16> to vector<20x200xbf16>
    %cst_156 = arith.constant dense<0.000000e+00> : vector<16x200xf32>
    %297 = tpu.matmul %294, %296, %cst_156 {dimension_numbers = #tpu.dot_dimension_numbers<[1], [0], [0], [1], [0, 0, 1, 1], [], []>} : vector<16x20xbf16>, vector<20x200xbf16>, vector<16x200xf32> -> vector<16x200xf32>
    %298 = arith.addf %292, %297 : vector<16x200xf32>
    %c0_157 = arith.constant 0 : index
    %c0_158 = arith.constant 0 : index
    %299 = vector.load %arg7[%c0_157, %c0_158] : memref<1x200xf32, #tpu.memory_space<vmem>>, vector<1x200xf32>
    %300 = vector.broadcast %299 : vector<1x200xf32> to vector<16x200xf32>
    %301 = arith.addf %298, %300 : vector<16x200xf32>
    %cst_159 = arith.constant 0.000000e+00 : f32
    %302 = vector.broadcast %cst_159 : f32 to vector<16x200xf32>
    %303 = arith.maximumf %301, %302 : vector<16x200xf32>
    %c0_160 = arith.constant 0 : index
    %c0_161 = arith.constant 0 : index
    %304 = vector.load %arg8[%c0_160, %c0_161] : memref<16x200xf32, #tpu.memory_space<vmem>>, vector<16x200xf32>
    tpu.vector_store %arg8[%c0_160, %c0_161], %303 {strides = array<i32>} : memref<16x200xf32, #tpu.memory_space<vmem>>, vector<16x200xf32>,
    return
  }
  func.func @transform_0(%arg0: i32) -> (i32, i32, i32) {
    %c0_i32 = arith.constant 0 : i32
    %c0_i32_0 = arith.constant 0 : i32
    %c0_i32_1 = arith.constant 0 : i32
    return %c0_i32, %arg0, %c0_i32_0 : i32, i32, i32
  }
  func.func @transform_1(%arg0: i32) -> (i32, i32) {
    %c0_i32 = arith.constant 0 : i32
    %c0_i32_0 = arith.constant 0 : i32
    %c0_i32_1 = arith.constant 0 : i32
    return %c0_i32, %c0_i32_0 : i32, i32
  }
  func.func @transform_2(%arg0: i32) -> (i32, i32) {
    %c0_i32 = arith.constant 0 : i32
    %c0_i32_0 = arith.constant 0 : i32
    %c0_i32_1 = arith.constant 0 : i32
    return %c0_i32, %c0_i32_0 : i32, i32
  }
  func.func @transform_3(%arg0: i32) -> (i32, i32, i32) {
    %c0_i32 = arith.constant 0 : i32
    %c0_i32_0 = arith.constant 0 : i32
    %c0_i32_1 = arith.constant 0 : i32
    %c0_i32_2 = arith.constant 0 : i32
    return %c0_i32, %c0_i32_0, %c0_i32_1 : i32, i32, i32
  }
  func.func @transform_4(%arg0: i32) -> (i32, i32) {
    %c0_i32 = arith.constant 0 : i32
    %c0_i32_0 = arith.constant 0 : i32
    %c0_i32_1 = arith.constant 0 : i32
    return %c0_i32, %c0_i32_0 : i32, i32
  }
  func.func @transform_5(%arg0: i32) -> (i32, i32, i32) {
    %c0_i32 = arith.constant 0 : i32
    %c0_i32_0 = arith.constant 0 : i32
    %c0_i32_1 = arith.constant 0 : i32
    %c0_i32_2 = arith.constant 0 : i32
    return %c0_i32, %c0_i32_0, %c0_i32_1 : i32, i32, i32
  }
  func.func @transform_6(%arg0: i32) -> (i32, i32) {
    %c0_i32 = arith.constant 0 : i32
    %c0_i32_0 = arith.constant 0 : i32
    %c0_i32_1 = arith.constant 0 : i32
    return %c0_i32, %c0_i32_0 : i32, i32
  }
  func.func @transform_7(%arg0: i32) -> (i32, i32) {
    %c0_i32 = arith.constant 0 : i32
    %c0_i32_0 = arith.constant 0 : i32
    return %arg0, %c0_i32 : i32, i32
  }
}

</mosaic_0001>

<llo_original>
// kernel: shared_cnn_forward.1
$region0: #{shared_cnn_forward.1}
  #allocation0 [shape = 'u32[]', space=smem, size = 0x4, offset = 0x4, fixed_abs, tag = 'smem constant byte address 0x4 - core index']
  #allocation1 [shape = 'u32[72,128]{1,0:T(1,128)}', space=vmem, size = 0x9000, scoped, tag = 'internal scratch']
  %s0 = inlined_call_operand.vmem [shape: bf16[252,16,9], index: 0, kind: input, shape index: {}]
  %s1 = inlined_call_operand.vmem [shape: bf16[9,10], index: 1, kind: input, shape index: {}]
  %s2 = inlined_call_operand.vmem [shape: f32[1,10], index: 2, kind: input, shape index: {}]
  %s3 = inlined_call_operand.vmem [shape: bf16[9,10,20], index: 3, kind: input, shape index: {}]
  %s4 = inlined_call_operand.vmem [shape: f32[1,20], index: 4, kind: input, shape index: {}]
  %s5 = inlined_call_operand.vmem [shape: bf16[36,20,200], index: 5, kind: input, shape index: {}]
  %s6 = inlined_call_operand.vmem [shape: f32[1,200], index: 6, kind: input, shape index: {}]
  %s7 = inlined_call_operand.vmem [shape: f32[16,200], index: 7, kind: output, shape index: {}]
  %s8 = sld [smem:[#allocation0]]
  $region38: #{shared_cnn_forward.1} parent=0
    _
  %s10 = ssub.s32 1, %s8
  %s11 = scalar_select 0, %s10, %s8
  // Predicated region
  $region2: #{shared_cnn_forward.1} parent=0 // pred_check
    _
  $region3: #{shared_cnn_forward.1} parent=0 // pred_check_branch
    %13 = sbr.rel (0) target = $region5
  $region4: #{shared_cnn_forward.1} parent=0 // pred_region
    _
  $region5: #{shared_cnn_forward.1} parent=0 // pred_fallthru
    _
  // Predicated region
  $region6: #{shared_cnn_forward.1} parent=0 // pred_check
    _
  $region7: #{shared_cnn_forward.1} parent=0 // pred_check_branch
    %15 = sbr.rel (0) target = $region9
  $region8: #{shared_cnn_forward.1} parent=0 // pred_region
    _
  $region9: #{shared_cnn_forward.1} parent=0 // pred_fallthru
    _
  // Predicated region
  $region10: #{shared_cnn_forward.1} parent=0 // pred_check
    _
  $region11: #{shared_cnn_forward.1} parent=0 // pred_check_branch
    %17 = sbr.rel (0) target = $region13
  $region12: #{shared_cnn_forward.1} parent=0 // pred_region
    _
  $region13: #{shared_cnn_forward.1} parent=0 // pred_fallthru
    _
  // Predicated region
  $region14: #{shared_cnn_forward.1} parent=0 // pred_check
    _
  $region15: #{shared_cnn_forward.1} parent=0 // pred_check_branch
    %19 = sbr.rel (0) target = $region17
  $region16: #{shared_cnn_forward.1} parent=0 // pred_region
    _
  $region17: #{shared_cnn_forward.1} parent=0 // pred_fallthru
    _
  // Predicated region
  $region18: #{shared_cnn_forward.1} parent=0 // pred_check
    _
  $region19: #{shared_cnn_forward.1} parent=0 // pred_check_branch
    %21 = sbr.rel (0) target = $region21
  $region20: #{shared_cnn_forward.1} parent=0 // pred_region
    _
  $region21: #{shared_cnn_forward.1} parent=0 // pred_fallthru
    _
  // Predicated region
  $region22: #{shared_cnn_forward.1} parent=0 // pred_check
    _
  $region23: #{shared_cnn_forward.1} parent=0 // pred_check_branch
    %23 = sbr.rel (0) target = $region25
  $region24: #{shared_cnn_forward.1} parent=0 // pred_region
    _
  $region25: #{shared_cnn_forward.1} parent=0 // pred_fallthru
    _
  // Predicated region
  $region26: #{shared_cnn_forward.1} parent=0 // pred_check
    _
  $region27: #{shared_cnn_forward.1} parent=0 // pred_check_branch
    %25 = sbr.rel (0) target = $region29
  $region28: #{shared_cnn_forward.1} parent=0 // pred_region
    _
  $region29: #{shared_cnn_forward.1} parent=0 // pred_fallthru
    _
  %v27 = vld [vmem:[%s0] sm:$0xf]
  %v28 = vld [vmem:[%s0 + $0x4] sm:$0xf]
  %v29 = vld [vmem:[%s0 + $0x8] sm:$0xf]
  %v30 = vld [vmem:[%s0 + $0xc] sm:$0xf]
  %v31 = vld [vmem:[%s0 + $0x10] sm:$0xf]
  %v32 = vld [vmem:[%s0 + $0x14] sm:$0xf]
  %v33 = vld [vmem:[%s0 + $0x18] sm:$0xf]
  %v34 = vld [vmem:[%s0 + $0x1c] sm:$0xf]
  %v35 = vld [vmem:[%s0 + $0x20] sm:$0xf]
  %v36 = vld [vmem:[%s0 + $0x24] sm:$0xf]
  %v37 = vld [vmem:[%s0 + $0x28] sm:$0xf]
  %v38 = vld [vmem:[%s0 + $0x2c] sm:$0xf]
  %v39 = vld [vmem:[%s0 + $0x30] sm:$0xf]
  %v40 = vld [vmem:[%s0 + $0x34] sm:$0xf]
  %v41 = vld [vmem:[%s0 + $0x38] sm:$0xf]
  %v42 = vld [vmem:[%s0 + $0x3c] sm:$0xf]
  %v43 = vld [vmem:[%s0 + $0x40] sm:$0xf]
  %v44 = vld [vmem:[%s0 + $0x44] sm:$0xf]
  %v45 = vld [vmem:[%s0 + $0x48] sm:$0xf]
  %v46 = vld [vmem:[%s0 + $0x4c] sm:$0xf]
  %v47 = vld [vmem:[%s0 + $0x50] sm:$0xf]
  %v48 = vld [vmem:[%s0 + $0x54] sm:$0xf]
  %v49 = vld [vmem:[%s0 + $0x58] sm:$0xf]
  %v50 = vld [vmem:[%s0 + $0x5c] sm:$0xf]
  %v51 = vld [vmem:[%s0 + $0x60] sm:$0xf]
  %v52 = vld [vmem:[%s0 + $0x64] sm:$0xf]
  %v53 = vld [vmem:[%s0 + $0x68] sm:$0xf]
  %v54 = vld [vmem:[%s0 + $0x6c] sm:$0xf]
  %v55 = vld [vmem:[%s0 + $0x70] sm:$0xf]
  %v56 = vld [vmem:[%s0 + $0x74] sm:$0xf]
  %v57 = vld [vmem:[%s0 + $0x78] sm:$0xf]
  %v58 = vld [vmem:[%s0 + $0x7c] sm:$0xf]
  %v59 = vld [vmem:[%s0 + $0x80] sm:$0xf]
  %v60 = vld [vmem:[%s0 + $0x84] sm:$0xf]
  %v61 = vld [vmem:[%s0 + $0x88] sm:$0xf]
  %v62 = vld [vmem:[%s0 + $0x8c] sm:$0xf]
  %v63 = vld [vmem:[%s0 + $0x90] sm:$0xf]
  %v64 = vld [vmem:[%s0 + $0x94] sm:$0xf]
  %v65 = vld [vmem:[%s0 + $0x98] sm:$0xf]
  %v66 = vld [vmem:[%s0 + $0x9c] sm:$0xf]
  %v67 = vld [vmem:[%s0 + $0xa0] sm:$0xf]
  %v68 = vld [vmem:[%s0 + $0xa4] sm:$0xf]
  %v69 = vld [vmem:[%s0 + $0xa8] sm:$0xf]
  %v70 = vld [vmem:[%s0 + $0xac] sm:$0xf]
  %v71 = vld [vmem:[%s0 + $0xb0] sm:$0xf]
  %v72 = vld [vmem:[%s0 + $0xb4] sm:$0xf]
  %v73 = vld [vmem:[%s0 + $0xb8] sm:$0xf]
  %v74 = vld [vmem:[%s0 + $0xbc] sm:$0xf]
  %v75 = vld [vmem:[%s0 + $0xc0] sm:$0xf]
  %v76 = vld [vmem:[%s0 + $0xc4] sm:$0xf]
  %v77 = vld [vmem:[%s0 + $0xc8] sm:$0xf]
  %v78 = vld [vmem:[%s0 + $0xcc] sm:$0xf]
  %v79 = vld [vmem:[%s0 + $0xd0] sm:$0xf]
  %v80 = vld [vmem:[%s0 + $0xd4] sm:$0xf]
  %v81 = vld [vmem:[%s0 + $0xd8] sm:$0xf]
  %v82 = vld [vmem:[%s0 + $0xdc] sm:$0xf]
  %v83 = vld [vmem:[%s0 + $0xe0] sm:$0xf]
  %v84 = vld [vmem:[%s0 + $0xe4] sm:$0xf]
  %v85 = vld [vmem:[%s0 + $0xe8] sm:$0xf]
  %v86 = vld [vmem:[%s0 + $0xec] sm:$0xf]
  %v87 = vld [vmem:[%s0 + $0xf0] sm:$0xf]
  %v88 = vld [vmem:[%s0 + $0xf4] sm:$0xf]
  %v89 = vld [vmem:[%s0 + $0xf8] sm:$0xf]
  %v90 = vld [vmem:[%s0 + $0xfc] sm:$0xf]
  %v91 = vld [vmem:[%s0 + $0x100] sm:$0xf]
  %v92 = vld [vmem:[%s0 + $0x104] sm:$0xf]
  %v93 = vld [vmem:[%s0 + $0x108] sm:$0xf]
  %v94 = vld [vmem:[%s0 + $0x10c] sm:$0xf]
  %v95 = vld [vmem:[%s0 + $0x110] sm:$0xf]
  %v96 = vld [vmem:[%s0 + $0x114] sm:$0xf]
  %v97 = vld [vmem:[%s0 + $0x118] sm:$0xf]
  %v98 = vld [vmem:[%s0 + $0x11c] sm:$0xf]
  %v99 = vld [vmem:[%s0 + $0x120] sm:$0xf]
  %v100 = vld [vmem:[%s0 + $0x124] sm:$0xf]
  %v101 = vld [vmem:[%s0 + $0x128] sm:$0xf]
  %v102 = vld [vmem:[%s0 + $0x12c] sm:$0xf]
  %v103 = vld [vmem:[%s0 + $0x130] sm:$0xf]
  %v104 = vld [vmem:[%s0 + $0x134] sm:$0xf]
  %v105 = vld [vmem:[%s0 + $0x138] sm:$0xf]
  %v106 = vld [vmem:[%s0 + $0x13c] sm:$0xf]
  %v107 = vld [vmem:[%s0 + $0x140] sm:$0xf]
  %v108 = vld [vmem:[%s0 + $0x144] sm:$0xf]
  %v109 = vld [vmem:[%s0 + $0x148] sm:$0xf]
  %v110 = vld [vmem:[%s0 + $0x14c] sm:$0xf]
  %v111 = vld [vmem:[%s0 + $0x150] sm:$0xf]
  %v112 = vld [vmem:[%s0 + $0x154] sm:$0xf]
  %v113 = vld [vmem:[%s0 + $0x158] sm:$0xf]
  %v114 = vld [vmem:[%s0 + $0x15c] sm:$0xf]
  %v115 = vld [vmem:[%s0 + $0x160] sm:$0xf]
  %v116 = vld [vmem:[%s0 + $0x164] sm:$0xf]
  %v117 = vld [vmem:[%s0 + $0x168] sm:$0xf]
  %v118 = vld [vmem:[%s0 + $0x16c] sm:$0xf]
  %v119 = vld [vmem:[%s0 + $0x170] sm:$0xf]
  %v120 = vld [vmem:[%s0 + $0x174] sm:$0xf]
  %v121 = vld [vmem:[%s0 + $0x178] sm:$0xf]
  %v122 = vld [vmem:[%s0 + $0x17c] sm:$0xf]
  %v123 = vld [vmem:[%s0 + $0x180] sm:$0xf]
  %v124 = vld [vmem:[%s0 + $0x184] sm:$0xf]
  %v125 = vld [vmem:[%s0 + $0x188] sm:$0xf]
  %v126 = vld [vmem:[%s0 + $0x18c] sm:$0xf]
  %v127 = vld [vmem:[%s0 + $0x190] sm:$0xf]
  %v128 = vld [vmem:[%s0 + $0x194] sm:$0xf]
  %v129 = vld [vmem:[%s0 + $0x198] sm:$0xf]
  %v130 = vld [vmem:[%s0 + $0x19c] sm:$0xf]
  %v131 = vld [vmem:[%s0 + $0x1a0] sm:$0xf]
  %v132 = vld [vmem:[%s0 + $0x1a4] sm:$0xf]
  %v133 = vld [vmem:[%s0 + $0x1a8] sm:$0xf]
  %v134 = vld [vmem:[%s0 + $0x1ac] sm:$0xf]
  %v135 = vld [vmem:[%s0 + $0x1b0] sm:$0xf]
  %v136 = vld [vmem:[%s0 + $0x1b4] sm:$0xf]
  %v137 = vld [vmem:[%s0 + $0x1b8] sm:$0xf]
  %v138 = vld [vmem:[%s0 + $0x1bc] sm:$0xf]
  %v139 = vld [vmem:[%s0 + $0x1c0] sm:$0xf]
  %v140 = vld [vmem:[%s0 + $0x1c4] sm:$0xf]
  %v141 = vld [vmem:[%s0 + $0x1c8] sm:$0xf]
  %v142 = vld [vmem:[%s0 + $0x1cc] sm:$0xf]
  %v143 = vld [vmem:[%s0 + $0x1d0] sm:$0xf]
  %v144 = vld [vmem:[%s0 + $0x1d4] sm:$0xf]
  %v145 = vld [vmem:[%s0 + $0x1d8] sm:$0xf]
  %v146 = vld [vmem:[%s0 + $0x1dc] sm:$0xf]
  %v147 = vld [vmem:[%s0 + $0x1e0] sm:$0xf]
  %v148 = vld [vmem:[%s0 + $0x1e4] sm:$0xf]
  %v149 = vld [vmem:[%s0 + $0x1e8] sm:$0xf]
  %v150 = vld [vmem:[%s0 + $0x1ec] sm:$0xf]
  %v151 = vld [vmem:[%s0 + $0x1f0] sm:$0xf]
  %v152 = vld [vmem:[%s0 + $0x1f4] sm:$0xf]
  %v153 = vld [vmem:[%s0 + $0x1f8] sm:$0xf]
  %v154 = vld [vmem:[%s0 + $0x1fc] sm:$0xf]
  %v155 = vld [vmem:[%s0 + $0x200] sm:$0xf]
  %v156 = vld [vmem:[%s0 + $0x204] sm:$0xf]
  %v157 = vld [vmem:[%s0 + $0x208] sm:$0xf]
  %v158 = vld [vmem:[%s0 + $0x20c] sm:$0xf]
  %v159 = vld [vmem:[%s0 + $0x210] sm:$0xf]
  %v160 = vld [vmem:[%s0 + $0x214] sm:$0xf]
  %v161 = vld [vmem:[%s0 + $0x218] sm:$0xf]
  %v162 = vld [vmem:[%s0 + $0x21c] sm:$0xf]
  %v163 = vld [vmem:[%s0 + $0x220] sm:$0xf]
  %v164 = vld [vmem:[%s0 + $0x224] sm:$0xf]
  %v165 = vld [vmem:[%s0 + $0x228] sm:$0xf]
  %v166 = vld [vmem:[%s0 + $0x22c] sm:$0xf]
  %v167 = vld [vmem:[%s0 + $0x230] sm:$0xf]
  %v168 = vld [vmem:[%s0 + $0x234] sm:$0xf]
  %v169 = vld [vmem:[%s0 + $0x238] sm:$0xf]
  %v170 = vld [vmem:[%s0 + $0x23c] sm:$0xf]
  %v171 = vld [vmem:[%s0 + $0x240] sm:$0xf]
  %v172 = vld [vmem:[%s0 + $0x244] sm:$0xf]
  %v173 = vld [vmem:[%s0 + $0x248] sm:$0xf]
  %v174 = vld [vmem:[%s0 + $0x24c] sm:$0xf]
  %v175 = vld [vmem:[%s0 + $0x250] sm:$0xf]
  %v176 = vld [vmem:[%s0 + $0x254] sm:$0xf]
  %v177 = vld [vmem:[%s0 + $0x258] sm:$0xf]
  %v178 = vld [vmem:[%s0 + $0x25c] sm:$0xf]
  %v179 = vld [vmem:[%s0 + $0x260] sm:$0xf]
  %v180 = vld [vmem:[%s0 + $0x264] sm:$0xf]
  %v181 = vld [vmem:[%s0 + $0x268] sm:$0xf]
  %v182 = vld [vmem:[%s0 + $0x26c] sm:$0xf]
  %v183 = vld [vmem:[%s0 + $0x270] sm:$0xf]
  %v184 = vld [vmem:[%s0 + $0x274] sm:$0xf]
  %v185 = vld [vmem:[%s0 + $0x278] sm:$0xf]
  %v186 = vld [vmem:[%s0 + $0x27c] sm:$0xf]
  %v187 = vld [vmem:[%s0 + $0x280] sm:$0xf]
  %v188 = vld [vmem:[%s0 + $0x284] sm:$0xf]
  %v189 = vld [vmem:[%s0 + $0x288] sm:$0xf]
  %v190 = vld [vmem:[%s0 + $0x28c] sm:$0xf]
  %v191 = vld [vmem:[%s0 + $0x290] sm:$0xf]
  %v192 = vld [vmem:[%s0 + $0x294] sm:$0xf]
  %v193 = vld [vmem:[%s0 + $0x298] sm:$0xf]
  %v194 = vld [vmem:[%s0 + $0x29c] sm:$0xf]
  %v195 = vld [vmem:[%s0 + $0x2a0] sm:$0xf]
  %v196 = vld [vmem:[%s0 + $0x2a4] sm:$0xf]
  %v197 = vld [vmem:[%s0 + $0x2a8] sm:$0xf]
  %v198 = vld [vmem:[%s0 + $0x2ac] sm:$0xf]
  %v199 = vld [vmem:[%s0 + $0x2b0] sm:$0xf]
  %v200 = vld [vmem:[%s0 + $0x2b4] sm:$0xf]
  %v201 = vld [vmem:[%s0 + $0x2b8] sm:$0xf]
  %v202 = vld [vmem:[%s0 + $0x2bc] sm:$0xf]
  %v203 = vld [vmem:[%s0 + $0x2c0] sm:$0xf]
  %v204 = vld [vmem:[%s0 + $0x2c4] sm:$0xf]
  %v205 = vld [vmem:[%s0 + $0x2c8] sm:$0xf]
  %v206 = vld [vmem:[%s0 + $0x2cc] sm:$0xf]
  %v207 = vld [vmem:[%s0 + $0x2d0] sm:$0xf]
  %v208 = vld [vmem:[%s0 + $0x2d4] sm:$0xf]
  %v209 = vld [vmem:[%s0 + $0x2d8] sm:$0xf]
  %v210 = vld [vmem:[%s0 + $0x2dc] sm:$0xf]
  %v211 = vld [vmem:[%s0 + $0x2e0] sm:$0xf]
  %v212 = vld [vmem:[%s0 + $0x2e4] sm:$0xf]
  %v213 = vld [vmem:[%s0 + $0x2e8] sm:$0xf]
  %v214 = vld [vmem:[%s0 + $0x2ec] sm:$0xf]
  %v215 = vld [vmem:[%s0 + $0x2f0] sm:$0xf]
  %v216 = vld [vmem:[%s0 + $0x2f4] sm:$0xf]
  %v217 = vld [vmem:[%s0 + $0x2f8] sm:$0xf]
  %v218 = vld [vmem:[%s0 + $0x2fc] sm:$0xf]
  %v219 = vld [vmem:[%s0 + $0x300] sm:$0xf]
  %v220 = vld [vmem:[%s0 + $0x304] sm:$0xf]
  %v221 = vld [vmem:[%s0 + $0x308] sm:$0xf]
  %v222 = vld [vmem:[%s0 + $0x30c] sm:$0xf]
  %v223 = vld [vmem:[%s0 + $0x310] sm:$0xf]
  %v224 = vld [vmem:[%s0 + $0x314] sm:$0xf]
  %v225 = vld [vmem:[%s0 + $0x318] sm:$0xf]
  %v226 = vld [vmem:[%s0 + $0x31c] sm:$0xf]
  %v227 = vld [vmem:[%s0 + $0x320] sm:$0xf]
  %v228 = vld [vmem:[%s0 + $0x324] sm:$0xf]
  %v229 = vld [vmem:[%s0 + $0x328] sm:$0xf]
  %v230 = vld [vmem:[%s0 + $0x32c] sm:$0xf]
  %v231 = vld [vmem:[%s0 + $0x330] sm:$0xf]
  %v232 = vld [vmem:[%s0 + $0x334] sm:$0xf]
  %v233 = vld [vmem:[%s0 + $0x338] sm:$0xf]
  %v234 = vld [vmem:[%s0 + $0x33c] sm:$0xf]
  %v235 = vld [vmem:[%s0 + $0x340] sm:$0xf]
  %v236 = vld [vmem:[%s0 + $0x344] sm:$0xf]
  %v237 = vld [vmem:[%s0 + $0x348] sm:$0xf]
  %v238 = vld [vmem:[%s0 + $0x34c] sm:$0xf]
  %v239 = vld [vmem:[%s0 + $0x350] sm:$0xf]
  %v240 = vld [vmem:[%s0 + $0x354] sm:$0xf]
  %v241 = vld [vmem:[%s0 + $0x358] sm:$0xf]
  %v242 = vld [vmem:[%s0 + $0x35c] sm:$0xf]
  %v243 = vld [vmem:[%s0 + $0x360] sm:$0xf]
  %v244 = vld [vmem:[%s0 + $0x364] sm:$0xf]
  %v245 = vld [vmem:[%s0 + $0x368] sm:$0xf]
  %v246 = vld [vmem:[%s0 + $0x36c] sm:$0xf]
  %v247 = vld [vmem:[%s0 + $0x370] sm:$0xf]
  %v248 = vld [vmem:[%s0 + $0x374] sm:$0xf]
  %v249 = vld [vmem:[%s0 + $0x378] sm:$0xf]
  %v250 = vld [vmem:[%s0 + $0x37c] sm:$0xf]
  %v251 = vld [vmem:[%s0 + $0x380] sm:$0xf]
  %v252 = vld [vmem:[%s0 + $0x384] sm:$0xf]
  %v253 = vld [vmem:[%s0 + $0x388] sm:$0xf]
  %v254 = vld [vmem:[%s0 + $0x38c] sm:$0xf]
  %v255 = vld [vmem:[%s0 + $0x390] sm:$0xf]
  %v256 = vld [vmem:[%s0 + $0x394] sm:$0xf]
  %v257 = vld [vmem:[%s0 + $0x398] sm:$0xf]
  %v258 = vld [vmem:[%s0 + $0x39c] sm:$0xf]
  %v259 = vld [vmem:[%s0 + $0x3a0] sm:$0xf]
  %v260 = vld [vmem:[%s0 + $0x3a4] sm:$0xf]
  %v261 = vld [vmem:[%s0 + $0x3a8] sm:$0xf]
  %v262 = vld [vmem:[%s0 + $0x3ac] sm:$0xf]
  %v263 = vld [vmem:[%s0 + $0x3b0] sm:$0xf]
  %v264 = vld [vmem:[%s0 + $0x3b4] sm:$0xf]
  %v265 = vld [vmem:[%s0 + $0x3b8] sm:$0xf]
  %v266 = vld [vmem:[%s0 + $0x3bc] sm:$0xf]
  %v267 = vld [vmem:[%s0 + $0x3c0] sm:$0xf]
  %v268 = vld [vmem:[%s0 + $0x3c4] sm:$0xf]
  %v269 = vld [vmem:[%s0 + $0x3c8] sm:$0xf]
  %v270 = vld [vmem:[%s0 + $0x3cc] sm:$0xf]
  %v271 = vld [vmem:[%s0 + $0x3d0] sm:$0xf]
  %v272 = vld [vmem:[%s0 + $0x3d4] sm:$0xf]
  %v273 = vld [vmem:[%s0 + $0x3d8] sm:$0xf]
  %v274 = vld [vmem:[%s0 + $0x3dc] sm:$0xf]
  %v275 = vld [vmem:[%s0 + $0x3e0] sm:$0xf]
  %v276 = vld [vmem:[%s0 + $0x3e4] sm:$0xf]
  %v277 = vld [vmem:[%s0 + $0x3e8] sm:$0xf]
  %v278 = vld [vmem:[%s0 + $0x3ec] sm:$0xf]
  %v279 = vld [vmem:[%s0 + $0x3f0] sm:$0xf]
  %v280 = vld [vmem:[%s0 + $0x3f4] sm:$0xf]
  %v281 = vld [vmem:[%s0 + $0x3f8] sm:$0xf]
  %v282 = vld [vmem:[%s0 + $0x3fc] sm:$0xf]
  %v283 = vld [vmem:[%s0 + $0x400] sm:$0xf]
  %v284 = vld [vmem:[%s0 + $0x404] sm:$0xf]
  %v285 = vld [vmem:[%s0 + $0x408] sm:$0xf]
  %v286 = vld [vmem:[%s0 + $0x40c] sm:$0xf]
  %v287 = vld [vmem:[%s0 + $0x410] sm:$0xf]
  %v288 = vld [vmem:[%s0 + $0x414] sm:$0xf]
  %v289 = vld [vmem:[%s0 + $0x418] sm:$0xf]
  %v290 = vld [vmem:[%s0 + $0x41c] sm:$0xf]
  %v291 = vld [vmem:[%s0 + $0x420] sm:$0xf]
  %v292 = vld [vmem:[%s0 + $0x424] sm:$0xf]
  %v293 = vld [vmem:[%s0 + $0x428] sm:$0xf]
  %v294 = vld [vmem:[%s0 + $0x42c] sm:$0xf]
  %v295 = vld [vmem:[%s0 + $0x430] sm:$0xf]
  %v296 = vld [vmem:[%s0 + $0x434] sm:$0xf]
  %v297 = vld [vmem:[%s0 + $0x438] sm:$0xf]
  %v298 = vld [vmem:[%s0 + $0x43c] sm:$0xf]
  %v299 = vld [vmem:[%s0 + $0x440] sm:$0xf]
  %v300 = vld [vmem:[%s0 + $0x444] sm:$0xf]
  %v301 = vld [vmem:[%s0 + $0x448] sm:$0xf]
  %v302 = vld [vmem:[%s0 + $0x44c] sm:$0xf]
  %v303 = vld [vmem:[%s0 + $0x450] sm:$0xf]
  %v304 = vld [vmem:[%s0 + $0x454] sm:$0xf]
  %v305 = vld [vmem:[%s0 + $0x458] sm:$0xf]
  %v306 = vld [vmem:[%s0 + $0x45c] sm:$0xf]
  %v307 = vld [vmem:[%s0 + $0x460] sm:$0xf]
  %v308 = vld [vmem:[%s0 + $0x464] sm:$0xf]
  %v309 = vld [vmem:[%s0 + $0x468] sm:$0xf]
  %v310 = vld [vmem:[%s0 + $0x46c] sm:$0xf]
  %v311 = vld [vmem:[%s0 + $0x470] sm:$0xf]
  %v312 = vld [vmem:[%s0 + $0x474] sm:$0xf]
  %v313 = vld [vmem:[%s0 + $0x478] sm:$0xf]
  %v314 = vld [vmem:[%s0 + $0x47c] sm:$0xf]
  %v315 = vld [vmem:[%s0 + $0x480] sm:$0xf]
  %v316 = vld [vmem:[%s0 + $0x484] sm:$0xf]
  %v317 = vld [vmem:[%s0 + $0x488] sm:$0xf]
  %v318 = vld [vmem:[%s0 + $0x48c] sm:$0xf]
  %v319 = vld [vmem:[%s0 + $0x490] sm:$0xf]
  %v320 = vld [vmem:[%s0 + $0x494] sm:$0xf]
  %v321 = vld [vmem:[%s0 + $0x498] sm:$0xf]
  %v322 = vld [vmem:[%s0 + $0x49c] sm:$0xf]
  %v323 = vld [vmem:[%s0 + $0x4a0] sm:$0xf]
  %v324 = vld [vmem:[%s0 + $0x4a4] sm:$0xf]
  %v325 = vld [vmem:[%s0 + $0x4a8] sm:$0xf]
  %v326 = vld [vmem:[%s0 + $0x4ac] sm:$0xf]
  %v327 = vld [vmem:[%s0 + $0x4b0] sm:$0xf]
  %v328 = vld [vmem:[%s0 + $0x4b4] sm:$0xf]
  %v329 = vld [vmem:[%s0 + $0x4b8] sm:$0xf]
  %v330 = vld [vmem:[%s0 + $0x4bc] sm:$0xf]
  %v331 = vld [vmem:[%s0 + $0x4c0] sm:$0xf]
  %v332 = vld [vmem:[%s0 + $0x4c4] sm:$0xf]
  %v333 = vld [vmem:[%s0 + $0x4c8] sm:$0xf]
  %v334 = vld [vmem:[%s0 + $0x4cc] sm:$0xf]
  %v335 = vld [vmem:[%s0 + $0x4d0] sm:$0xf]
  %v336 = vld [vmem:[%s0 + $0x4d4] sm:$0xf]
  %v337 = vld [vmem:[%s0 + $0x4d8] sm:$0xf]
  %v338 = vld [vmem:[%s0 + $0x4dc] sm:$0xf]
  %v339 = vld [vmem:[%s0 + $0x4e0] sm:$0xf]
  %v340 = vld [vmem:[%s0 + $0x4e4] sm:$0xf]
  %v341 = vld [vmem:[%s0 + $0x4e8] sm:$0xf]
  %v342 = vld [vmem:[%s0 + $0x4ec] sm:$0xf]
  %v343 = vld [vmem:[%s0 + $0x4f0] sm:$0xf]
  %v344 = vld [vmem:[%s0 + $0x4f4] sm:$0xf]
  %v345 = vld [vmem:[%s0 + $0x4f8] sm:$0xf]
  %v346 = vld [vmem:[%s0 + $0x4fc] sm:$0xf]
  %v347 = vld [vmem:[%s0 + $0x500] sm:$0xf]
  %v348 = vld [vmem:[%s0 + $0x504] sm:$0xf]
  %v349 = vld [vmem:[%s0 + $0x508] sm:$0xf]
  %v350 = vld [vmem:[%s0 + $0x50c] sm:$0xf]
  %v351 = vld [vmem:[%s0 + $0x510] sm:$0xf]
  %v352 = vld [vmem:[%s0 + $0x514] sm:$0xf]
  %v353 = vld [vmem:[%s0 + $0x518] sm:$0xf]
  %v354 = vld [vmem:[%s0 + $0x51c] sm:$0xf]
  %v355 = vld [vmem:[%s0 + $0x520] sm:$0xf]
  %v356 = vld [vmem:[%s0 + $0x524] sm:$0xf]
  %v357 = vld [vmem:[%s0 + $0x528] sm:$0xf]
  %v358 = vld [vmem:[%s0 + $0x52c] sm:$0xf]
  %v359 = vld [vmem:[%s0 + $0x530] sm:$0xf]
  %v360 = vld [vmem:[%s0 + $0x534] sm:$0xf]
  %v361 = vld [vmem:[%s0 + $0x538] sm:$0xf]
  %v362 = vld [vmem:[%s0 + $0x53c] sm:$0xf]
  %v363 = vld [vmem:[%s0 + $0x540] sm:$0xf]
  %v364 = vld [vmem:[%s0 + $0x544] sm:$0xf]
  %v365 = vld [vmem:[%s0 + $0x548] sm:$0xf]
  %v366 = vld [vmem:[%s0 + $0x54c] sm:$0xf]
  %v367 = vld [vmem:[%s0 + $0x550] sm:$0xf]
  %v368 = vld [vmem:[%s0 + $0x554] sm:$0xf]
  %v369 = vld [vmem:[%s0 + $0x558] sm:$0xf]
  %v370 = vld [vmem:[%s0 + $0x55c] sm:$0xf]
  %v371 = vld [vmem:[%s0 + $0x560] sm:$0xf]
  %v372 = vld [vmem:[%s0 + $0x564] sm:$0xf]
  %v373 = vld [vmem:[%s0 + $0x568] sm:$0xf]
  %v374 = vld [vmem:[%s0 + $0x56c] sm:$0xf]
  %v375 = vld [vmem:[%s0 + $0x570] sm:$0xf]
  %v376 = vld [vmem:[%s0 + $0x574] sm:$0xf]
  %v377 = vld [vmem:[%s0 + $0x578] sm:$0xf]
  %v378 = vld [vmem:[%s0 + $0x57c] sm:$0xf]
  %v379 = vld [vmem:[%s0 + $0x580] sm:$0xf]
  %v380 = vld [vmem:[%s0 + $0x584] sm:$0xf]
  %v381 = vld [vmem:[%s0 + $0x588] sm:$0xf]
  %v382 = vld [vmem:[%s0 + $0x58c] sm:$0xf]
  %v383 = vld [vmem:[%s0 + $0x590] sm:$0xf]
  %v384 = vld [vmem:[%s0 + $0x594] sm:$0xf]
  %v385 = vld [vmem:[%s0 + $0x598] sm:$0xf]
  %v386 = vld [vmem:[%s0 + $0x59c] sm:$0xf]
  %v387 = vld [vmem:[%s0 + $0x5a0] sm:$0xf]
  %v388 = vld [vmem:[%s0 + $0x5a4] sm:$0xf]
  %v389 = vld [vmem:[%s0 + $0x5a8] sm:$0xf]
  %v390 = vld [vmem:[%s0 + $0x5ac] sm:$0xf]
  %v391 = vld [vmem:[%s0 + $0x5b0] sm:$0xf]
  %v392 = vld [vmem:[%s0 + $0x5b4] sm:$0xf]
  %v393 = vld [vmem:[%s0 + $0x5b8] sm:$0xf]
  %v394 = vld [vmem:[%s0 + $0x5bc] sm:$0xf]
  %v395 = vld [vmem:[%s0 + $0x5c0] sm:$0xf]
  %v396 = vld [vmem:[%s0 + $0x5c4] sm:$0xf]
  %v397 = vld [vmem:[%s0 + $0x5c8] sm:$0xf]
  %v398 = vld [vmem:[%s0 + $0x5cc] sm:$0xf]
  %v399 = vld [vmem:[%s0 + $0x5d0] sm:$0xf]
  %v400 = vld [vmem:[%s0 + $0x5d4] sm:$0xf]
  %v401 = vld [vmem:[%s0 + $0x5d8] sm:$0xf]
  %v402 = vld [vmem:[%s0 + $0x5dc] sm:$0xf]
  %v403 = vld [vmem:[%s0 + $0x5e0] sm:$0xf]
  %v404 = vld [vmem:[%s0 + $0x5e4] sm:$0xf]
  %v405 = vld [vmem:[%s0 + $0x5e8] sm:$0xf]
  %v406 = vld [vmem:[%s0 + $0x5ec] sm:$0xf]
  %v407 = vld [vmem:[%s0 + $0x5f0] sm:$0xf]
  %v408 = vld [vmem:[%s0 + $0x5f4] sm:$0xf]
  %v409 = vld [vmem:[%s0 + $0x5f8] sm:$0xf]
  %v410 = vld [vmem:[%s0 + $0x5fc] sm:$0xf]
  %v411 = vld [vmem:[%s0 + $0x600] sm:$0xf]
  %v412 = vld [vmem:[%s0 + $0x604] sm:$0xf]
  %v413 = vld [vmem:[%s0 + $0x608] sm:$0xf]
  %v414 = vld [vmem:[%s0 + $0x60c] sm:$0xf]
  %v415 = vld [vmem:[%s0 + $0x610] sm:$0xf]
  %v416 = vld [vmem:[%s0 + $0x614] sm:$0xf]
  %v417 = vld [vmem:[%s0 + $0x618] sm:$0xf]
  %v418 = vld [vmem:[%s0 + $0x61c] sm:$0xf]
  %v419 = vld [vmem:[%s0 + $0x620] sm:$0xf]
  %v420 = vld [vmem:[%s0 + $0x624] sm:$0xf]
  %v421 = vld [vmem:[%s0 + $0x628] sm:$0xf]
  %v422 = vld [vmem:[%s0 + $0x62c] sm:$0xf]
  %v423 = vld [vmem:[%s0 + $0x630] sm:$0xf]
  %v424 = vld [vmem:[%s0 + $0x634] sm:$0xf]
  %v425 = vld [vmem:[%s0 + $0x638] sm:$0xf]
  %v426 = vld [vmem:[%s0 + $0x63c] sm:$0xf]
  %v427 = vld [vmem:[%s0 + $0x640] sm:$0xf]
  %v428 = vld [vmem:[%s0 + $0x644] sm:$0xf]
  %v429 = vld [vmem:[%s0 + $0x648] sm:$0xf]
  %v430 = vld [vmem:[%s0 + $0x64c] sm:$0xf]
  %v431 = vld [vmem:[%s0 + $0x650] sm:$0xf]
  %v432 = vld [vmem:[%s0 + $0x654] sm:$0xf]
  %v433 = vld [vmem:[%s0 + $0x658] sm:$0xf]
  %v434 = vld [vmem:[%s0 + $0x65c] sm:$0xf]
  %v435 = vld [vmem:[%s0 + $0x660] sm:$0xf]
  %v436 = vld [vmem:[%s0 + $0x664] sm:$0xf]
  %v437 = vld [vmem:[%s0 + $0x668] sm:$0xf]
  %v438 = vld [vmem:[%s0 + $0x66c] sm:$0xf]
  %v439 = vld [vmem:[%s0 + $0x670] sm:$0xf]
  %v440 = vld [vmem:[%s0 + $0x674] sm:$0xf]
  %v441 = vld [vmem:[%s0 + $0x678] sm:$0xf]
  %v442 = vld [vmem:[%s0 + $0x67c] sm:$0xf]
  %v443 = vld [vmem:[%s0 + $0x680] sm:$0xf]
  %v444 = vld [vmem:[%s0 + $0x684] sm:$0xf]
  %v445 = vld [vmem:[%s0 + $0x688] sm:$0xf]
  %v446 = vld [vmem:[%s0 + $0x68c] sm:$0xf]
  %v447 = vld [vmem:[%s0 + $0x690] sm:$0xf]
  %v448 = vld [vmem:[%s0 + $0x694] sm:$0xf]
  %v449 = vld [vmem:[%s0 + $0x698] sm:$0xf]
  %v450 = vld [vmem:[%s0 + $0x69c] sm:$0xf]
  %v451 = vld [vmem:[%s0 + $0x6a0] sm:$0xf]
  %v452 = vld [vmem:[%s0 + $0x6a4] sm:$0xf]
  %v453 = vld [vmem:[%s0 + $0x6a8] sm:$0xf]
  %v454 = vld [vmem:[%s0 + $0x6ac] sm:$0xf]
  %v455 = vld [vmem:[%s0 + $0x6b0] sm:$0xf]
  %v456 = vld [vmem:[%s0 + $0x6b4] sm:$0xf]
  %v457 = vld [vmem:[%s0 + $0x6b8] sm:$0xf]
  %v458 = vld [vmem:[%s0 + $0x6bc] sm:$0xf]
  %v459 = vld [vmem:[%s0 + $0x6c0] sm:$0xf]
  %v460 = vld [vmem:[%s0 + $0x6c4] sm:$0xf]
  %v461 = vld [vmem:[%s0 + $0x6c8] sm:$0xf]
  %v462 = vld [vmem:[%s0 + $0x6cc] sm:$0xf]
  %v463 = vld [vmem:[%s0 + $0x6d0] sm:$0xf]
  %v464 = vld [vmem:[%s0 + $0x6d4] sm:$0xf]
  %v465 = vld [vmem:[%s0 + $0x6d8] sm:$0xf]
  %v466 = vld [vmem:[%s0 + $0x6dc] sm:$0xf]
  %v467 = vld [vmem:[%s0 + $0x6e0] sm:$0xf]
  %v468 = vld [vmem:[%s0 + $0x6e4] sm:$0xf]
  %v469 = vld [vmem:[%s0 + $0x6e8] sm:$0xf]
  %v470 = vld [vmem:[%s0 + $0x6ec] sm:$0xf]
  %v471 = vld [vmem:[%s0 + $0x6f0] sm:$0xf]
  %v472 = vld [vmem:[%s0 + $0x6f4] sm:$0xf]
  %v473 = vld [vmem:[%s0 + $0x6f8] sm:$0xf]
  %v474 = vld [vmem:[%s0 + $0x6fc] sm:$0xf]
  %v475 = vld [vmem:[%s0 + $0x700] sm:$0xf]
  %v476 = vld [vmem:[%s0 + $0x704] sm:$0xf]
  %v477 = vld [vmem:[%s0 + $0x708] sm:$0xf]
  %v478 = vld [vmem:[%s0 + $0x70c] sm:$0xf]
  %v479 = vld [vmem:[%s0 + $0x710] sm:$0xf]
  %v480 = vld [vmem:[%s0 + $0x714] sm:$0xf]
  %v481 = vld [vmem:[%s0 + $0x718] sm:$0xf]
  %v482 = vld [vmem:[%s0 + $0x71c] sm:$0xf]
  %v483 = vld [vmem:[%s0 + $0x720] sm:$0xf]
  %v484 = vld [vmem:[%s0 + $0x724] sm:$0xf]
  %v485 = vld [vmem:[%s0 + $0x728] sm:$0xf]
  %v486 = vld [vmem:[%s0 + $0x72c] sm:$0xf]
  %v487 = vld [vmem:[%s0 + $0x730] sm:$0xf]
  %v488 = vld [vmem:[%s0 + $0x734] sm:$0xf]
  %v489 = vld [vmem:[%s0 + $0x738] sm:$0xf]
  %v490 = vld [vmem:[%s0 + $0x73c] sm:$0xf]
  %v491 = vld [vmem:[%s0 + $0x740] sm:$0xf]
  %v492 = vld [vmem:[%s0 + $0x744] sm:$0xf]
  %v493 = vld [vmem:[%s0 + $0x748] sm:$0xf]
  %v494 = vld [vmem:[%s0 + $0x74c] sm:$0xf]
  %v495 = vld [vmem:[%s0 + $0x750] sm:$0xf]
  %v496 = vld [vmem:[%s0 + $0x754] sm:$0xf]
  %v497 = vld [vmem:[%s0 + $0x758] sm:$0xf]
  %v498 = vld [vmem:[%s0 + $0x75c] sm:$0xf]
  %v499 = vld [vmem:[%s0 + $0x760] sm:$0xf]
  %v500 = vld [vmem:[%s0 + $0x764] sm:$0xf]
  %v501 = vld [vmem:[%s0 + $0x768] sm:$0xf]
  %v502 = vld [vmem:[%s0 + $0x76c] sm:$0xf]
  %v503 = vld [vmem:[%s0 + $0x770] sm:$0xf]
  %v504 = vld [vmem:[%s0 + $0x774] sm:$0xf]
  %v505 = vld [vmem:[%s0 + $0x778] sm:$0xf]
  %v506 = vld [vmem:[%s0 + $0x77c] sm:$0xf]
  %v507 = vld [vmem:[%s0 + $0x780] sm:$0xf]
  %v508 = vld [vmem:[%s0 + $0x784] sm:$0xf]
  %v509 = vld [vmem:[%s0 + $0x788] sm:$0xf]
  %v510 = vld [vmem:[%s0 + $0x78c] sm:$0xf]
  %v511 = vld [vmem:[%s0 + $0x790] sm:$0xf]
  %v512 = vld [vmem:[%s0 + $0x794] sm:$0xf]
  %v513 = vld [vmem:[%s0 + $0x798] sm:$0xf]
  %v514 = vld [vmem:[%s0 + $0x79c] sm:$0xf]
  %v515 = vld [vmem:[%s0 + $0x7a0] sm:$0xf]
  %v516 = vld [vmem:[%s0 + $0x7a4] sm:$0xf]
  %v517 = vld [vmem:[%s0 + $0x7a8] sm:$0xf]
  %v518 = vld [vmem:[%s0 + $0x7ac] sm:$0xf]
  %v519 = vld [vmem:[%s0 + $0x7b0] sm:$0xf]
  %v520 = vld [vmem:[%s0 + $0x7b4] sm:$0xf]
  %v521 = vld [vmem:[%s0 + $0x7b8] sm:$0xf]
  %v522 = vld [vmem:[%s0 + $0x7bc] sm:$0xf]
  %v523 = vld [vmem:[%s0 + $0x7c0] sm:$0xf]
  %v524 = vld [vmem:[%s0 + $0x7c4] sm:$0xf]
  %v525 = vld [vmem:[%s0 + $0x7c8] sm:$0xf]
  %v526 = vld [vmem:[%s0 + $0x7cc] sm:$0xf]
  %v527 = vld [vmem:[%s0 + $0x7d0] sm:$0xf]
  %v528 = vld [vmem:[%s0 + $0x7d4] sm:$0xf]
  %v529 = vld [vmem:[%s0 + $0x7d8] sm:$0xf]
  %v530 = vld [vmem:[%s0 + $0x7dc] sm:$0xf]
  %v531 = vld [vmem:[%s1] sm:$0xf]
  %v532 = vld [vmem:[%s1 + $0x4] sm:$0x1]
  %v533 = vld [vmem:[%s2] sm:$0x1]
  %v535 = vperm.slane %v533, 0
  %v1041 = vunpack.c.l.b16 %v27
  %v1042 = vunpack.c.l.b16 %v28
  %v1043 = vunpack.c.l.b16 %v29
  %v1044 = vunpack.c.l.b16 %v30
  %v1045 = vunpack.c.l.b16 %v31
  %v1046 = vunpack.c.l.b16 %v32
  %v1047 = vunpack.c.l.b16 %v33
  %v1048 = vunpack.c.l.b16 %v34
  %v1049 = vunpack.c.l.b16 %v35
  %v1050 = vunpack.c.l.b16 %v36
  %v1051 = vunpack.c.l.b16 %v37
  %v1052 = vunpack.c.l.b16 %v38
  %v1053 = vunpack.c.l.b16 %v39
  %v1054 = vunpack.c.l.b16 %v40
  %v1055 = vunpack.c.l.b16 %v41
  %v1056 = vunpack.c.l.b16 %v42
  %v1057 = vunpack.c.l.b16 %v43
  %v1058 = vunpack.c.l.b16 %v44
  %v1059 = vunpack.c.l.b16 %v45
  %v1060 = vunpack.c.l.b16 %v46
  %v1061 = vunpack.c.l.b16 %v47
  %v1062 = vunpack.c.l.b16 %v48
  %v1063 = vunpack.c.l.b16 %v49
  %v1064 = vunpack.c.l.b16 %v50
  %v1065 = vunpack.c.l.b16 %v51
  %v1066 = vunpack.c.l.b16 %v52
  %v1067 = vunpack.c.l.b16 %v53
  %v1068 = vunpack.c.l.b16 %v54
  %v1069 = vunpack.c.l.b16 %v55
  %v1070 = vunpack.c.l.b16 %v56
  %v1071 = vunpack.c.l.b16 %v57
  %v1072 = vunpack.c.l.b16 %v58
  %v1073 = vunpack.c.l.b16 %v59
  %v1074 = vunpack.c.l.b16 %v60
  %v1075 = vunpack.c.l.b16 %v61
  %v1076 = vunpack.c.l.b16 %v62
  %v1077 = vunpack.c.l.b16 %v63
  %v1078 = vunpack.c.l.b16 %v64
  %v1079 = vunpack.c.l.b16 %v65
  %v1080 = vunpack.c.l.b16 %v66
  %v1081 = vunpack.c.l.b16 %v67
  %v1082 = vunpack.c.l.b16 %v68
  %v1083 = vunpack.c.l.b16 %v69
  %v1084 = vunpack.c.l.b16 %v70
  %v1085 = vunpack.c.l.b16 %v71
  %v1086 = vunpack.c.l.b16 %v72
  %v1087 = vunpack.c.l.b16 %v73
  %v1088 = vunpack.c.l.b16 %v74
  %v1089 = vunpack.c.l.b16 %v75
  %v1090 = vunpack.c.l.b16 %v76
  %v1091 = vunpack.c.l.b16 %v77
  %v1092 = vunpack.c.l.b16 %v78
  %v1093 = vunpack.c.l.b16 %v79
  %v1094 = vunpack.c.l.b16 %v80
  %v1095 = vunpack.c.l.b16 %v81
  %v1096 = vunpack.c.l.b16 %v82
  %v1097 = vunpack.c.l.b16 %v83
  %v1098 = vunpack.c.l.b16 %v84
  %v1099 = vunpack.c.l.b16 %v85
  %v1100 = vunpack.c.l.b16 %v86
  %v1101 = vunpack.c.l.b16 %v87
  %v1102 = vunpack.c.l.b16 %v88
  %v1103 = vunpack.c.l.b16 %v89
  %v1104 = vunpack.c.l.b16 %v90
  %v1105 = vunpack.c.l.b16 %v91
  %v1106 = vunpack.c.l.b16 %v92
  %v1107 = vunpack.c.l.b16 %v93
  %v1108 = vunpack.c.l.b16 %v94
  %v1109 = vunpack.c.l.b16 %v95
  %v1110 = vunpack.c.l.b16 %v96
  %v1111 = vunpack.c.l.b16 %v97
  %v1112 = vunpack.c.l.b16 %v98
  %v1113 = vunpack.c.l.b16 %v99
  %v1114 = vunpack.c.l.b16 %v100
  %v1115 = vunpack.c.l.b16 %v101
  %v1116 = vunpack.c.l.b16 %v102
  %v1117 = vunpack.c.l.b16 %v103
  %v1118 = vunpack.c.l.b16 %v104
  %v1119 = vunpack.c.l.b16 %v105
  %v1120 = vunpack.c.l.b16 %v106
  %v1121 = vunpack.c.l.b16 %v107
  %v1122 = vunpack.c.l.b16 %v108
  %v1123 = vunpack.c.l.b16 %v109
  %v1124 = vunpack.c.l.b16 %v110
  %v1125 = vunpack.c.l.b16 %v111
  %v1126 = vunpack.c.l.b16 %v112
  %v1127 = vunpack.c.l.b16 %v113
  %v1128 = vunpack.c.l.b16 %v114
  %v1129 = vunpack.c.l.b16 %v115
  %v1130 = vunpack.c.l.b16 %v116
  %v1131 = vunpack.c.l.b16 %v117
  %v1132 = vunpack.c.l.b16 %v118
  %v1133 = vunpack.c.l.b16 %v119
  %v1134 = vunpack.c.l.b16 %v120
  %v1135 = vunpack.c.l.b16 %v121
  %v1136 = vunpack.c.l.b16 %v122
  %v1137 = vunpack.c.l.b16 %v123
  %v1138 = vunpack.c.l.b16 %v124
  %v1139 = vunpack.c.l.b16 %v125
  %v1140 = vunpack.c.l.b16 %v126
  %v1141 = vunpack.c.l.b16 %v127
  %v1142 = vunpack.c.l.b16 %v128
  %v1143 = vunpack.c.l.b16 %v129
  %v1144 = vunpack.c.l.b16 %v130
  %v1145 = vunpack.c.l.b16 %v131
  %v1146 = vunpack.c.l.b16 %v132
  %v1147 = vunpack.c.l.b16 %v133
  %v1148 = vunpack.c.l.b16 %v134
  %v1149 = vunpack.c.l.b16 %v135
  %v1150 = vunpack.c.l.b16 %v136
  %v1151 = vunpack.c.l.b16 %v137
  %v1152 = vunpack.c.l.b16 %v138
  %v1153 = vunpack.c.l.b16 %v139
  %v1154 = vunpack.c.l.b16 %v140
  %v1155 = vunpack.c.l.b16 %v141
  %v1156 = vunpack.c.l.b16 %v142
  %v1157 = vunpack.c.l.b16 %v143
  %v1158 = vunpack.c.l.b16 %v144
  %v1159 = vunpack.c.l.b16 %v145
  %v1160 = vunpack.c.l.b16 %v146
  %v1161 = vunpack.c.l.b16 %v147
  %v1162 = vunpack.c.l.b16 %v148
  %v1163 = vunpack.c.l.b16 %v149
  %v1164 = vunpack.c.l.b16 %v150
  %v1165 = vunpack.c.l.b16 %v151
  %v1166 = vunpack.c.l.b16 %v152
  %v1167 = vunpack.c.l.b16 %v153
  %v1168 = vunpack.c.l.b16 %v154
  %v1169 = vunpack.c.l.b16 %v155
  %v1170 = vunpack.c.l.b16 %v156
  %v1171 = vunpack.c.l.b16 %v157
  %v1172 = vunpack.c.l.b16 %v158
  %v1173 = vunpack.c.l.b16 %v159
  %v1174 = vunpack.c.l.b16 %v160
  %v1175 = vunpack.c.l.b16 %v161
  %v1176 = vunpack.c.l.b16 %v162
  %v1177 = vunpack.c.l.b16 %v163
  %v1178 = vunpack.c.l.b16 %v164
  %v1179 = vunpack.c.l.b16 %v165
  %v1180 = vunpack.c.l.b16 %v166
  %v1181 = vunpack.c.l.b16 %v167
  %v1182 = vunpack.c.l.b16 %v168
  %v1183 = vunpack.c.l.b16 %v169
  %v1184 = vunpack.c.l.b16 %v170
  %v1185 = vunpack.c.l.b16 %v171
  %v1186 = vunpack.c.l.b16 %v172
  %v1187 = vunpack.c.l.b16 %v173
  %v1188 = vunpack.c.l.b16 %v174
  %v1189 = vunpack.c.l.b16 %v175
  %v1190 = vunpack.c.l.b16 %v176
  %v1191 = vunpack.c.l.b16 %v177
  %v1192 = vunpack.c.l.b16 %v178
  %v1193 = vunpack.c.l.b16 %v179
  %v1194 = vunpack.c.l.b16 %v180
  %v1195 = vunpack.c.l.b16 %v181
  %v1196 = vunpack.c.l.b16 %v182
  %v1197 = vunpack.c.l.b16 %v183
  %v1198 = vunpack.c.l.b16 %v184
  %v1199 = vunpack.c.l.b16 %v185
  %v1200 = vunpack.c.l.b16 %v186
  %v1201 = vunpack.c.l.b16 %v187
  %v1202 = vunpack.c.l.b16 %v188
  %v1203 = vunpack.c.l.b16 %v189
  %v1204 = vunpack.c.l.b16 %v190
  %v1205 = vunpack.c.l.b16 %v191
  %v1206 = vunpack.c.l.b16 %v192
  %v1207 = vunpack.c.l.b16 %v193
  %v1208 = vunpack.c.l.b16 %v194
  %v1209 = vunpack.c.l.b16 %v195
  %v1210 = vunpack.c.l.b16 %v196
  %v1211 = vunpack.c.l.b16 %v197
  %v1212 = vunpack.c.l.b16 %v198
  %v1213 = vunpack.c.l.b16 %v199
  %v1214 = vunpack.c.l.b16 %v200
  %v1215 = vunpack.c.l.b16 %v201
  %v1216 = vunpack.c.l.b16 %v202
  %v1217 = vunpack.c.l.b16 %v203
  %v1218 = vunpack.c.l.b16 %v204
  %v1219 = vunpack.c.l.b16 %v205
  %v1220 = vunpack.c.l.b16 %v206
  %v1221 = vunpack.c.l.b16 %v207
  %v1222 = vunpack.c.l.b16 %v208
  %v1223 = vunpack.c.l.b16 %v209
  %v1224 = vunpack.c.l.b16 %v210
  %v1225 = vunpack.c.l.b16 %v211
  %v1226 = vunpack.c.l.b16 %v212
  %v1227 = vunpack.c.l.b16 %v213
  %v1228 = vunpack.c.l.b16 %v214
  %v1229 = vunpack.c.l.b16 %v215
  %v1230 = vunpack.c.l.b16 %v216
  %v1231 = vunpack.c.l.b16 %v217
  %v1232 = vunpack.c.l.b16 %v218
  %v1233 = vunpack.c.l.b16 %v219
  %v1234 = vunpack.c.l.b16 %v220
  %v1235 = vunpack.c.l.b16 %v221
  %v1236 = vunpack.c.l.b16 %v222
  %v1237 = vunpack.c.l.b16 %v223
  %v1238 = vunpack.c.l.b16 %v224
  %v1239 = vunpack.c.l.b16 %v225
  %v1240 = vunpack.c.l.b16 %v226
  %v1241 = vunpack.c.l.b16 %v227
  %v1242 = vunpack.c.l.b16 %v228
  %v1243 = vunpack.c.l.b16 %v229
  %v1244 = vunpack.c.l.b16 %v230
  %v1245 = vunpack.c.l.b16 %v231
  %v1246 = vunpack.c.l.b16 %v232
  %v1247 = vunpack.c.l.b16 %v233
  %v1248 = vunpack.c.l.b16 %v234
  %v1249 = vunpack.c.l.b16 %v235
  %v1250 = vunpack.c.l.b16 %v236
  %v1251 = vunpack.c.l.b16 %v237
  %v1252 = vunpack.c.l.b16 %v238
  %v1253 = vunpack.c.l.b16 %v239
  %v1254 = vunpack.c.l.b16 %v240
  %v1255 = vunpack.c.l.b16 %v241
  %v1256 = vunpack.c.l.b16 %v242
  %v1257 = vunpack.c.l.b16 %v243
  %v1258 = vunpack.c.l.b16 %v244
  %v1259 = vunpack.c.l.b16 %v245
  %v1260 = vunpack.c.l.b16 %v246
  %v1261 = vunpack.c.l.b16 %v247
  %v1262 = vunpack.c.l.b16 %v248
  %v1263 = vunpack.c.l.b16 %v249
  %v1264 = vunpack.c.l.b16 %v250
  %v1265 = vunpack.c.l.b16 %v251
  %v1266 = vunpack.c.l.b16 %v252
  %v1267 = vunpack.c.l.b16 %v253
  %v1268 = vunpack.c.l.b16 %v254
  %v1269 = vunpack.c.l.b16 %v255
  %v1270 = vunpack.c.l.b16 %v256
  %v1271 = vunpack.c.l.b16 %v257
  %v1272 = vunpack.c.l.b16 %v258
  %v1273 = vunpack.c.l.b16 %v259
  %v1274 = vunpack.c.l.b16 %v260
  %v1275 = vunpack.c.l.b16 %v261
  %v1276 = vunpack.c.l.b16 %v262
  %v1277 = vunpack.c.l.b16 %v263
  %v1278 = vunpack.c.l.b16 %v264
  %v1279 = vunpack.c.l.b16 %v265
  %v1280 = vunpack.c.l.b16 %v266
  %v1281 = vunpack.c.l.b16 %v267
  %v1282 = vunpack.c.l.b16 %v268
  %v1283 = vunpack.c.l.b16 %v269
  %v1284 = vunpack.c.l.b16 %v270
  %v1285 = vunpack.c.l.b16 %v271
  %v1286 = vunpack.c.l.b16 %v272
  %v1287 = vunpack.c.l.b16 %v273
  %v1288 = vunpack.c.l.b16 %v274
  %v1289 = vunpack.c.l.b16 %v275
  %v1290 = vunpack.c.l.b16 %v276
  %v1291 = vunpack.c.l.b16 %v277
  %v1292 = vunpack.c.l.b16 %v278
  %v1293 = vunpack.c.l.b16 %v279
  %v1294 = vunpack.c.l.b16 %v280
  %v1295 = vunpack.c.l.b16 %v281
  %v1296 = vunpack.c.l.b16 %v282
  %v1297 = vunpack.c.l.b16 %v283
  %v1298 = vunpack.c.l.b16 %v284
  %v1299 = vunpack.c.l.b16 %v285
  %v1300 = vunpack.c.l.b16 %v286
  %v1301 = vunpack.c.l.b16 %v287
  %v1302 = vunpack.c.l.b16 %v288
  %v1303 = vunpack.c.l.b16 %v289
  %v1304 = vunpack.c.l.b16 %v290
  %v1305 = vunpack.c.l.b16 %v291
  %v1306 = vunpack.c.l.b16 %v292
  %v1307 = vunpack.c.l.b16 %v293
  %v1308 = vunpack.c.l.b16 %v294
  %v1309 = vunpack.c.l.b16 %v295
  %v1310 = vunpack.c.l.b16 %v296
  %v1311 = vunpack.c.l.b16 %v297
  %v1312 = vunpack.c.l.b16 %v298
  %v1313 = vunpack.c.l.b16 %v299
  %v1314 = vunpack.c.l.b16 %v300
  %v1315 = vunpack.c.l.b16 %v301
  %v1316 = vunpack.c.l.b16 %v302
  %v1317 = vunpack.c.l.b16 %v303
  %v1318 = vunpack.c.l.b16 %v304
  %v1319 = vunpack.c.l.b16 %v305
  %v1320 = vunpack.c.l.b16 %v306
  %v1321 = vunpack.c.l.b16 %v307
  %v1322 = vunpack.c.l.b16 %v308
  %v1323 = vunpack.c.l.b16 %v309
  %v1324 = vunpack.c.l.b16 %v310
  %v1325 = vunpack.c.l.b16 %v311
  %v1326 = vunpack.c.l.b16 %v312
  %v1327 = vunpack.c.l.b16 %v313
  %v1328 = vunpack.c.l.b16 %v314
  %v1329 = vunpack.c.l.b16 %v315
  %v1330 = vunpack.c.l.b16 %v316
  %v1331 = vunpack.c.l.b16 %v317
  %v1332 = vunpack.c.l.b16 %v318
  %v1333 = vunpack.c.l.b16 %v319
  %v1334 = vunpack.c.l.b16 %v320
  %v1335 = vunpack.c.l.b16 %v321
  %v1336 = vunpack.c.l.b16 %v322
  %v1337 = vunpack.c.l.b16 %v323
  %v1338 = vunpack.c.l.b16 %v324
  %v1339 = vunpack.c.l.b16 %v325
  %v1340 = vunpack.c.l.b16 %v326
  %v1341 = vunpack.c.l.b16 %v327
  %v1342 = vunpack.c.l.b16 %v328
  %v1343 = vunpack.c.l.b16 %v329
  %v1344 = vunpack.c.l.b16 %v330
  %v1345 = vunpack.c.l.b16 %v331
  %v1346 = vunpack.c.l.b16 %v332
  %v1347 = vunpack.c.l.b16 %v333
  %v1348 = vunpack.c.l.b16 %v334
  %v1349 = vunpack.c.l.b16 %v335
  %v1350 = vunpack.c.l.b16 %v336
  %v1351 = vunpack.c.l.b16 %v337
  %v1352 = vunpack.c.l.b16 %v338
  %v1353 = vunpack.c.l.b16 %v339
  %v1354 = vunpack.c.l.b16 %v340
  %v1355 = vunpack.c.l.b16 %v341
  %v1356 = vunpack.c.l.b16 %v342
  %v1357 = vunpack.c.l.b16 %v343
  %v1358 = vunpack.c.l.b16 %v344
  %v1359 = vunpack.c.l.b16 %v345
  %v1360 = vunpack.c.l.b16 %v346
  %v1361 = vunpack.c.l.b16 %v347
  %v1362 = vunpack.c.l.b16 %v348
  %v1363 = vunpack.c.l.b16 %v349
  %v1364 = vunpack.c.l.b16 %v350
  %v1365 = vunpack.c.l.b16 %v351
  %v1366 = vunpack.c.l.b16 %v352
  %v1367 = vunpack.c.l.b16 %v353
  %v1368 = vunpack.c.l.b16 %v354
  %v1369 = vunpack.c.l.b16 %v355
  %v1370 = vunpack.c.l.b16 %v356
  %v1371 = vunpack.c.l.b16 %v357
  %v1372 = vunpack.c.l.b16 %v358
  %v1373 = vunpack.c.l.b16 %v359
  %v1374 = vunpack.c.l.b16 %v360
  %v1375 = vunpack.c.l.b16 %v361
  %v1376 = vunpack.c.l.b16 %v362
  %v1377 = vunpack.c.l.b16 %v363
  %v1378 = vunpack.c.l.b16 %v364
  %v1379 = vunpack.c.l.b16 %v365
  %v1380 = vunpack.c.l.b16 %v366
  %v1381 = vunpack.c.l.b16 %v367
  %v1382 = vunpack.c.l.b16 %v368
  %v1383 = vunpack.c.l.b16 %v369
  %v1384 = vunpack.c.l.b16 %v370
  %v1385 = vunpack.c.l.b16 %v371
  %v1386 = vunpack.c.l.b16 %v372
  %v1387 = vunpack.c.l.b16 %v373
  %v1388 = vunpack.c.l.b16 %v374
  %v1389 = vunpack.c.l.b16 %v375
  %v1390 = vunpack.c.l.b16 %v376
  %v1391 = vunpack.c.l.b16 %v377
  %v1392 = vunpack.c.l.b16 %v378
  %v1393 = vunpack.c.l.b16 %v379
  %v1394 = vunpack.c.l.b16 %v380
  %v1395 = vunpack.c.l.b16 %v381
  %v1396 = vunpack.c.l.b16 %v382
  %v1397 = vunpack.c.l.b16 %v383
  %v1398 = vunpack.c.l.b16 %v384
  %v1399 = vunpack.c.l.b16 %v385
  %v1400 = vunpack.c.l.b16 %v386
  %v1401 = vunpack.c.l.b16 %v387
  %v1402 = vunpack.c.l.b16 %v388
  %v1403 = vunpack.c.l.b16 %v389
  %v1404 = vunpack.c.l.b16 %v390
  %v1405 = vunpack.c.l.b16 %v391
  %v1406 = vunpack.c.l.b16 %v392
  %v1407 = vunpack.c.l.b16 %v393
  %v1408 = vunpack.c.l.b16 %v394
  %v1409 = vunpack.c.l.b16 %v395
  %v1410 = vunpack.c.l.b16 %v396
  %v1411 = vunpack.c.l.b16 %v397
  %v1412 = vunpack.c.l.b16 %v398
  %v1413 = vunpack.c.l.b16 %v399
  %v1414 = vunpack.c.l.b16 %v400
  %v1415 = vunpack.c.l.b16 %v401
  %v1416 = vunpack.c.l.b16 %v402
  %v1417 = vunpack.c.l.b16 %v403
  %v1418 = vunpack.c.l.b16 %v404
  %v1419 = vunpack.c.l.b16 %v405
  %v1420 = vunpack.c.l.b16 %v406
  %v1421 = vunpack.c.l.b16 %v407
  %v1422 = vunpack.c.l.b16 %v408
  %v1423 = vunpack.c.l.b16 %v409
  %v1424 = vunpack.c.l.b16 %v410
  %v1425 = vunpack.c.l.b16 %v411
  %v1426 = vunpack.c.l.b16 %v412
  %v1427 = vunpack.c.l.b16 %v413
  %v1428 = vunpack.c.l.b16 %v414
  %v1429 = vunpack.c.l.b16 %v415
  %v1430 = vunpack.c.l.b16 %v416
  %v1431 = vunpack.c.l.b16 %v417
  %v1432 = vunpack.c.l.b16 %v418
  %v1433 = vunpack.c.l.b16 %v419
  %v1434 = vunpack.c.l.b16 %v420
  %v1435 = vunpack.c.l.b16 %v421
  %v1436 = vunpack.c.l.b16 %v422
  %v1437 = vunpack.c.l.b16 %v423
  %v1438 = vunpack.c.l.b16 %v424
  %v1439 = vunpack.c.l.b16 %v425
  %v1440 = vunpack.c.l.b16 %v426
  %v1441 = vunpack.c.l.b16 %v427
  %v1442 = vunpack.c.l.b16 %v428
  %v1443 = vunpack.c.l.b16 %v429
  %v1444 = vunpack.c.l.b16 %v430
  %v1445 = vunpack.c.l.b16 %v431
  %v1446 = vunpack.c.l.b16 %v432
  %v1447 = vunpack.c.l.b16 %v433
  %v1448 = vunpack.c.l.b16 %v434
  %v1449 = vunpack.c.l.b16 %v435
  %v1450 = vunpack.c.l.b16 %v436
  %v1451 = vunpack.c.l.b16 %v437
  %v1452 = vunpack.c.l.b16 %v438
  %v1453 = vunpack.c.l.b16 %v439
  %v1454 = vunpack.c.l.b16 %v440
  %v1455 = vunpack.c.l.b16 %v441
  %v1456 = vunpack.c.l.b16 %v442
  %v1457 = vunpack.c.l.b16 %v443
  %v1458 = vunpack.c.l.b16 %v444
  %v1459 = vunpack.c.l.b16 %v445
  %v1460 = vunpack.c.l.b16 %v446
  %v1461 = vunpack.c.l.b16 %v447
  %v1462 = vunpack.c.l.b16 %v448
  %v1463 = vunpack.c.l.b16 %v449
  %v1464 = vunpack.c.l.b16 %v450
  %v1465 = vunpack.c.l.b16 %v451
  %v1466 = vunpack.c.l.b16 %v452
  %v1467 = vunpack.c.l.b16 %v453
  %v1468 = vunpack.c.l.b16 %v454
  %v1469 = vunpack.c.l.b16 %v455
  %v1470 = vunpack.c.l.b16 %v456
  %v1471 = vunpack.c.l.b16 %v457
  %v1472 = vunpack.c.l.b16 %v458
  %v1473 = vunpack.c.l.b16 %v459
  %v1474 = vunpack.c.l.b16 %v460
  %v1475 = vunpack.c.l.b16 %v461
  %v1476 = vunpack.c.l.b16 %v462
  %v1477 = vunpack.c.l.b16 %v463
  %v1478 = vunpack.c.l.b16 %v464
  %v1479 = vunpack.c.l.b16 %v465
  %v1480 = vunpack.c.l.b16 %v466
  %v1481 = vunpack.c.l.b16 %v467
  %v1482 = vunpack.c.l.b16 %v468
  %v1483 = vunpack.c.l.b16 %v469
  %v1484 = vunpack.c.l.b16 %v470
  %v1485 = vunpack.c.l.b16 %v471
  %v1486 = vunpack.c.l.b16 %v472
  %v1487 = vunpack.c.l.b16 %v473
  %v1488 = vunpack.c.l.b16 %v474
  %v1489 = vunpack.c.l.b16 %v475
  %v1490 = vunpack.c.l.b16 %v476
  %v1491 = vunpack.c.l.b16 %v477
  %v1492 = vunpack.c.l.b16 %v478
  %v1493 = vunpack.c.l.b16 %v479
  %v1494 = vunpack.c.l.b16 %v480
  %v1495 = vunpack.c.l.b16 %v481
  %v1496 = vunpack.c.l.b16 %v482
  %v1497 = vunpack.c.l.b16 %v483
  %v1498 = vunpack.c.l.b16 %v484
  %v1499 = vunpack.c.l.b16 %v485
  %v1500 = vunpack.c.l.b16 %v486
  %v1501 = vunpack.c.l.b16 %v487
  %v1502 = vunpack.c.l.b16 %v488
  %v1503 = vunpack.c.l.b16 %v489
  %v1504 = vunpack.c.l.b16 %v490
  %v1505 = vunpack.c.l.b16 %v491
  %v1506 = vunpack.c.l.b16 %v492
  %v1507 = vunpack.c.l.b16 %v493
  %v1508 = vunpack.c.l.b16 %v494
  %v1509 = vunpack.c.l.b16 %v495
  %v1510 = vunpack.c.l.b16 %v496
  %v1511 = vunpack.c.l.b16 %v497
  %v1512 = vunpack.c.l.b16 %v498
  %v1513 = vunpack.c.l.b16 %v499
  %v1514 = vunpack.c.l.b16 %v500
  %v1515 = vunpack.c.l.b16 %v501
  %v1516 = vunpack.c.l.b16 %v502
  %v1517 = vunpack.c.l.b16 %v503
  %v1518 = vunpack.c.l.b16 %v504
  %v1519 = vunpack.c.l.b16 %v505
  %v1520 = vunpack.c.l.b16 %v506
  %v1521 = vunpack.c.l.b16 %v507
  %v1522 = vunpack.c.l.b16 %v508
  %v1523 = vunpack.c.l.b16 %v509
  %v1524 = vunpack.c.l.b16 %v510
  %v1525 = vunpack.c.l.b16 %v511
  %v1526 = vunpack.c.l.b16 %v512
  %v1527 = vunpack.c.l.b16 %v513
  %v1528 = vunpack.c.l.b16 %v514
  %v1529 = vunpack.c.l.b16 %v515
  %v1530 = vunpack.c.l.b16 %v516
  %v1531 = vunpack.c.l.b16 %v517
  %v1532 = vunpack.c.l.b16 %v518
  %v1533 = vunpack.c.l.b16 %v519
  %v1534 = vunpack.c.l.b16 %v520
  %v1535 = vunpack.c.l.b16 %v521
  %v1536 = vunpack.c.l.b16 %v522
  %v1537 = vunpack.c.l.b16 %v523
  %v1538 = vunpack.c.l.b16 %v524
  %v1539 = vunpack.c.l.b16 %v525
  %v1540 = vunpack.c.l.b16 %v526
  %v1541 = vunpack.c.l.b16 %v527
  %v1542 = vunpack.c.l.b16 %v528
  %v1543 = vunpack.c.l.b16 %v529
  %v1544 = vunpack.c.l.b16 %v530
  %v1545 = vpack.c.b16 %v1042, %v1041
  %v1546 = vpack.c.b16 %v1044, %v1043
  %v1547 = vpack.c.b16 %v1046, %v1045
  %v1548 = vpack.c.b16 %v1048, %v1047
  %v1549 = vpack.c.b16 %v1050, %v1049
  %v1550 = vpack.c.b16 %v1052, %v1051
  %v1551 = vpack.c.b16 %v1054, %v1053
  %v1552 = vpack.c.b16 %v1056, %v1055
  %v1553 = vpack.c.b16 %v1058, %v1057
  %v1554 = vpack.c.b16 %v1060, %v1059
  %v1555 = vpack.c.b16 %v1062, %v1061
  %v1556 = vpack.c.b16 %v1064, %v1063
  %v1557 = vpack.c.b16 %v1066, %v1065
  %v1558 = vpack.c.b16 %v1068, %v1067
  %v1559 = vpack.c.b16 %v1070, %v1069
  %v1560 = vpack.c.b16 %v1072, %v1071
  %v1561 = vpack.c.b16 %v1074, %v1073
  %v1562 = vpack.c.b16 %v1076, %v1075
  %v1563 = vpack.c.b16 %v1078, %v1077
  %v1564 = vpack.c.b16 %v1080, %v1079
  %v1565 = vpack.c.b16 %v1082, %v1081
  %v1566 = vpack.c.b16 %v1084, %v1083
  %v1567 = vpack.c.b16 %v1086, %v1085
  %v1568 = vpack.c.b16 %v1088, %v1087
  %v1569 = vpack.c.b16 %v1090, %v1089
  %v1570 = vpack.c.b16 %v1092, %v1091
  %v1571 = vpack.c.b16 %v1094, %v1093
  %v1572 = vpack.c.b16 %v1096, %v1095
  %v1573 = vpack.c.b16 %v1098, %v1097
  %v1574 = vpack.c.b16 %v1100, %v1099
  %v1575 = vpack.c.b16 %v1102, %v1101
  %v1576 = vpack.c.b16 %v1104, %v1103
  %v1577 = vpack.c.b16 %v1106, %v1105
  %v1578 = vpack.c.b16 %v1108, %v1107
  %v1579 = vpack.c.b16 %v1110, %v1109
  %v1580 = vpack.c.b16 %v1112, %v1111
  %v1581 = vpack.c.b16 %v1114, %v1113
  %v1582 = vpack.c.b16 %v1116, %v1115
  %v1583 = vpack.c.b16 %v1118, %v1117
  %v1584 = vpack.c.b16 %v1120, %v1119
  %v1585 = vpack.c.b16 %v1122, %v1121
  %v1586 = vpack.c.b16 %v1124, %v1123
  %v1587 = vpack.c.b16 %v1126, %v1125
  %v1588 = vpack.c.b16 %v1128, %v1127
  %v1589 = vpack.c.b16 %v1130, %v1129
  %v1590 = vpack.c.b16 %v1132, %v1131
  %v1591 = vpack.c.b16 %v1134, %v1133
  %v1592 = vpack.c.b16 %v1136, %v1135
  %v1593 = vpack.c.b16 %v1138, %v1137
  %v1594 = vpack.c.b16 %v1140, %v1139
  %v1595 = vpack.c.b16 %v1142, %v1141
  %v1596 = vpack.c.b16 %v1144, %v1143
  %v1597 = vpack.c.b16 %v1146, %v1145
  %v1598 = vpack.c.b16 %v1148, %v1147
  %v1599 = vpack.c.b16 %v1150, %v1149
  %v1600 = vpack.c.b16 %v1152, %v1151
  %v1601 = vpack.c.b16 %v1154, %v1153
  %v1602 = vpack.c.b16 %v1156, %v1155
  %v1603 = vpack.c.b16 %v1158, %v1157
  %v1604 = vpack.c.b16 %v1160, %v1159
  %v1605 = vpack.c.b16 %v1162, %v1161
  %v1606 = vpack.c.b16 %v1164, %v1163
  %v1607 = vpack.c.b16 %v1166, %v1165
  %v1608 = vpack.c.b16 %v1168, %v1167
  %v1609 = vpack.c.b16 %v1170, %v1169
  %v1610 = vpack.c.b16 %v1172, %v1171
  %v1611 = vpack.c.b16 %v1174, %v1173
  %v1612 = vpack.c.b16 %v1176, %v1175
  %v1613 = vpack.c.b16 %v1178, %v1177
  %v1614 = vpack.c.b16 %v1180, %v1179
  %v1615 = vpack.c.b16 %v1182, %v1181
  %v1616 = vpack.c.b16 %v1184, %v1183
  %v1617 = vpack.c.b16 %v1186, %v1185
  %v1618 = vpack.c.b16 %v1188, %v1187
  %v1619 = vpack.c.b16 %v1190, %v1189
  %v1620 = vpack.c.b16 %v1192, %v1191
  %v1621 = vpack.c.b16 %v1194, %v1193
  %v1622 = vpack.c.b16 %v1196, %v1195
  %v1623 = vpack.c.b16 %v1198, %v1197
  %v1624 = vpack.c.b16 %v1200, %v1199
  %v1625 = vpack.c.b16 %v1202, %v1201
  %v1626 = vpack.c.b16 %v1204, %v1203
  %v1627 = vpack.c.b16 %v1206, %v1205
  %v1628 = vpack.c.b16 %v1208, %v1207
  %v1629 = vpack.c.b16 %v1210, %v1209
  %v1630 = vpack.c.b16 %v1212, %v1211
  %v1631 = vpack.c.b16 %v1214, %v1213
  %v1632 = vpack.c.b16 %v1216, %v1215
  %v1633 = vpack.c.b16 %v1218, %v1217
  %v1634 = vpack.c.b16 %v1220, %v1219
  %v1635 = vpack.c.b16 %v1222, %v1221
  %v1636 = vpack.c.b16 %v1224, %v1223
  %v1637 = vpack.c.b16 %v1226, %v1225
  %v1638 = vpack.c.b16 %v1228, %v1227
  %v1639 = vpack.c.b16 %v1230, %v1229
  %v1640 = vpack.c.b16 %v1232, %v1231
  %v1641 = vpack.c.b16 %v1234, %v1233
  %v1642 = vpack.c.b16 %v1236, %v1235
  %v1643 = vpack.c.b16 %v1238, %v1237
  %v1644 = vpack.c.b16 %v1240, %v1239
  %v1645 = vpack.c.b16 %v1242, %v1241
  %v1646 = vpack.c.b16 %v1244, %v1243
  %v1647 = vpack.c.b16 %v1246, %v1245
  %v1648 = vpack.c.b16 %v1248, %v1247
  %v1649 = vpack.c.b16 %v1250, %v1249
  %v1650 = vpack.c.b16 %v1252, %v1251
  %v1651 = vpack.c.b16 %v1254, %v1253
  %v1652 = vpack.c.b16 %v1256, %v1255
  %v1653 = vpack.c.b16 %v1258, %v1257
  %v1654 = vpack.c.b16 %v1260, %v1259
  %v1655 = vpack.c.b16 %v1262, %v1261
  %v1656 = vpack.c.b16 %v1264, %v1263
  %v1657 = vpack.c.b16 %v1266, %v1265
  %v1658 = vpack.c.b16 %v1268, %v1267
  %v1659 = vpack.c.b16 %v1270, %v1269
  %v1660 = vpack.c.b16 %v1272, %v1271
  %v1661 = vpack.c.b16 %v1274, %v1273
  %v1662 = vpack.c.b16 %v1276, %v1275
  %v1663 = vpack.c.b16 %v1278, %v1277
  %v1664 = vpack.c.b16 %v1280, %v1279
  %v1665 = vpack.c.b16 %v1282, %v1281
  %v1666 = vpack.c.b16 %v1284, %v1283
  %v1667 = vpack.c.b16 %v1286, %v1285
  %v1668 = vpack.c.b16 %v1288, %v1287
  %v1669 = vpack.c.b16 %v1290, %v1289
  %v1670 = vpack.c.b16 %v1292, %v1291
  %v1671 = vpack.c.b16 %v1294, %v1293
  %v1672 = vpack.c.b16 %v1296, %v1295
  %v1673 = vpack.c.b16 %v1298, %v1297
  %v1674 = vpack.c.b16 %v1300, %v1299
  %v1675 = vpack.c.b16 %v1302, %v1301
  %v1676 = vpack.c.b16 %v1304, %v1303
  %v1677 = vpack.c.b16 %v1306, %v1305
  %v1678 = vpack.c.b16 %v1308, %v1307
  %v1679 = vpack.c.b16 %v1310, %v1309
  %v1680 = vpack.c.b16 %v1312, %v1311
  %v1681 = vpack.c.b16 %v1314, %v1313
  %v1682 = vpack.c.b16 %v1316, %v1315
  %v1683 = vpack.c.b16 %v1318, %v1317
  %v1684 = vpack.c.b16 %v1320, %v1319
  %v1685 = vpack.c.b16 %v1322, %v1321
  %v1686 = vpack.c.b16 %v1324, %v1323
  %v1687 = vpack.c.b16 %v1326, %v1325
  %v1688 = vpack.c.b16 %v1328, %v1327
  %v1689 = vpack.c.b16 %v1330, %v1329
  %v1690 = vpack.c.b16 %v1332, %v1331
  %v1691 = vpack.c.b16 %v1334, %v1333
  %v1692 = vpack.c.b16 %v1336, %v1335
  %v1693 = vpack.c.b16 %v1338, %v1337
  %v1694 = vpack.c.b16 %v1340, %v1339
  %v1695 = vpack.c.b16 %v1342, %v1341
  %v1696 = vpack.c.b16 %v1344, %v1343
  %v1697 = vpack.c.b16 %v1346, %v1345
  %v1698 = vpack.c.b16 %v1348, %v1347
  %v1699 = vpack.c.b16 %v1350, %v1349
  %v1700 = vpack.c.b16 %v1352, %v1351
  %v1701 = vpack.c.b16 %v1354, %v1353
  %v1702 = vpack.c.b16 %v1356, %v1355
  %v1703 = vpack.c.b16 %v1358, %v1357
  %v1704 = vpack.c.b16 %v1360, %v1359
  %v1705 = vpack.c.b16 %v1362, %v1361
  %v1706 = vpack.c.b16 %v1364, %v1363
  %v1707 = vpack.c.b16 %v1366, %v1365
  %v1708 = vpack.c.b16 %v1368, %v1367
  %v1709 = vpack.c.b16 %v1370, %v1369
  %v1710 = vpack.c.b16 %v1372, %v1371
  %v1711 = vpack.c.b16 %v1374, %v1373
  %v1712 = vpack.c.b16 %v1376, %v1375
  %v1713 = vpack.c.b16 %v1378, %v1377
  %v1714 = vpack.c.b16 %v1380, %v1379
  %v1715 = vpack.c.b16 %v1382, %v1381
  %v1716 = vpack.c.b16 %v1384, %v1383
  %v1717 = vpack.c.b16 %v1386, %v1385
  %v1718 = vpack.c.b16 %v1388, %v1387
  %v1719 = vpack.c.b16 %v1390, %v1389
  %v1720 = vpack.c.b16 %v1392, %v1391
  %v1721 = vpack.c.b16 %v1394, %v1393
  %v1722 = vpack.c.b16 %v1396, %v1395
  %v1723 = vpack.c.b16 %v1398, %v1397
  %v1724 = vpack.c.b16 %v1400, %v1399
  %v1725 = vpack.c.b16 %v1402, %v1401
  %v1726 = vpack.c.b16 %v1404, %v1403
  %v1727 = vpack.c.b16 %v1406, %v1405
  %v1728 = vpack.c.b16 %v1408, %v1407
  %v1729 = vpack.c.b16 %v1410, %v1409
  %v1730 = vpack.c.b16 %v1412, %v1411
  %v1731 = vpack.c.b16 %v1414, %v1413
  %v1732 = vpack.c.b16 %v1416, %v1415
  %v1733 = vpack.c.b16 %v1418, %v1417
  %v1734 = vpack.c.b16 %v1420, %v1419
  %v1735 = vpack.c.b16 %v1422, %v1421
  %v1736 = vpack.c.b16 %v1424, %v1423
  %v1737 = vpack.c.b16 %v1426, %v1425
  %v1738 = vpack.c.b16 %v1428, %v1427
  %v1739 = vpack.c.b16 %v1430, %v1429
  %v1740 = vpack.c.b16 %v1432, %v1431
  %v1741 = vpack.c.b16 %v1434, %v1433
  %v1742 = vpack.c.b16 %v1436, %v1435
  %v1743 = vpack.c.b16 %v1438, %v1437
  %v1744 = vpack.c.b16 %v1440, %v1439
  %v1745 = vpack.c.b16 %v1442, %v1441
  %v1746 = vpack.c.b16 %v1444, %v1443
  %v1747 = vpack.c.b16 %v1446, %v1445
  %v1748 = vpack.c.b16 %v1448, %v1447
  %v1749 = vpack.c.b16 %v1450, %v1449
  %v1750 = vpack.c.b16 %v1452, %v1451
  %v1751 = vpack.c.b16 %v1454, %v1453
  %v1752 = vpack.c.b16 %v1456, %v1455
  %v1753 = vpack.c.b16 %v1458, %v1457
  %v1754 = vpack.c.b16 %v1460, %v1459
  %v1755 = vpack.c.b16 %v1462, %v1461
  %v1756 = vpack.c.b16 %v1464, %v1463
  %v1757 = vpack.c.b16 %v1466, %v1465
  %v1758 = vpack.c.b16 %v1468, %v1467
  %v1759 = vpack.c.b16 %v1470, %v1469
  %v1760 = vpack.c.b16 %v1472, %v1471
  %v1761 = vpack.c.b16 %v1474, %v1473
  %v1762 = vpack.c.b16 %v1476, %v1475
  %v1763 = vpack.c.b16 %v1478, %v1477
  %v1764 = vpack.c.b16 %v1480, %v1479
  %v1765 = vpack.c.b16 %v1482, %v1481
  %v1766 = vpack.c.b16 %v1484, %v1483
  %v1767 = vpack.c.b16 %v1486, %v1485
  %v1768 = vpack.c.b16 %v1488, %v1487
  %v1769 = vpack.c.b16 %v1490, %v1489
  %v1770 = vpack.c.b16 %v1492, %v1491
  %v1771 = vpack.c.b16 %v1494, %v1493
  %v1772 = vpack.c.b16 %v1496, %v1495
  %v1773 = vpack.c.b16 %v1498, %v1497
  %v1774 = vpack.c.b16 %v1500, %v1499
  %v1775 = vpack.c.b16 %v1502, %v1501
  %v1776 = vpack.c.b16 %v1504, %v1503
  %v1777 = vpack.c.b16 %v1506, %v1505
  %v1778 = vpack.c.b16 %v1508, %v1507
  %v1779 = vpack.c.b16 %v1510, %v1509
  %v1780 = vpack.c.b16 %v1512, %v1511
  %v1781 = vpack.c.b16 %v1514, %v1513
  %v1782 = vpack.c.b16 %v1516, %v1515
  %v1783 = vpack.c.b16 %v1518, %v1517
  %v1784 = vpack.c.b16 %v1520, %v1519
  %v1785 = vpack.c.b16 %v1522, %v1521
  %v1786 = vpack.c.b16 %v1524, %v1523
  %v1787 = vpack.c.b16 %v1526, %v1525
  %v1788 = vpack.c.b16 %v1528, %v1527
  %v1789 = vpack.c.b16 %v1530, %v1529
  %v1790 = vpack.c.b16 %v1532, %v1531
  %v1791 = vpack.c.b16 %v1534, %v1533
  %v1792 = vpack.c.b16 %v1536, %v1535
  %v1793 = vpack.c.b16 %v1538, %v1537
  %v1794 = vpack.c.b16 %v1540, %v1539
  %v1795 = vpack.c.b16 %v1542, %v1541
  %v1796 = vpack.c.b16 %v1544, %v1543
  %v1799 = vunpack.c.l.b16 %v531
  %v1800 = vunpack.c.l.b16 %v532
  %v1801 = vpack.c.b16 %v1800, %v1799
  %vm1802 = vcmask 72704
  %v1804 = vsel %vm1802, %v1545, 0
  %v1807 = vsel %vm1802, %v1546, 0
  %v1810 = vsel %vm1802, %v1547, 0
  %v1813 = vsel %vm1802, %v1548, 0
  %v1816 = vsel %vm1802, %v1549, 0
  %v1819 = vsel %vm1802, %v1550, 0
  %v1822 = vsel %vm1802, %v1551, 0
  %v1825 = vsel %vm1802, %v1552, 0
  %v1828 = vsel %vm1802, %v1553, 0
  %v1831 = vsel %vm1802, %v1554, 0
  %v1834 = vsel %vm1802, %v1555, 0
  %v1837 = vsel %vm1802, %v1556, 0
  %v1840 = vsel %vm1802, %v1557, 0
  %v1843 = vsel %vm1802, %v1558, 0
  %v1846 = vsel %vm1802, %v1559, 0
  %v1849 = vsel %vm1802, %v1560, 0
  %v1852 = vsel %vm1802, %v1561, 0
  %v1855 = vsel %vm1802, %v1562, 0
  %v1858 = vsel %vm1802, %v1563, 0
  %v1861 = vsel %vm1802, %v1564, 0
  %v1864 = vsel %vm1802, %v1565, 0
  %v1867 = vsel %vm1802, %v1566, 0
  %v1870 = vsel %vm1802, %v1567, 0
  %v1873 = vsel %vm1802, %v1568, 0
  %v1876 = vsel %vm1802, %v1569, 0
  %v1879 = vsel %vm1802, %v1570, 0
  %v1882 = vsel %vm1802, %v1571, 0
  %v1885 = vsel %vm1802, %v1572, 0
  %v1888 = vsel %vm1802, %v1573, 0
  %v1891 = vsel %vm1802, %v1574, 0
  %v1894 = vsel %vm1802, %v1575, 0
  %v1897 = vsel %vm1802, %v1576, 0
  %v1900 = vsel %vm1802, %v1577, 0
  %v1903 = vsel %vm1802, %v1578, 0
  %v1906 = vsel %vm1802, %v1579, 0
  %v1909 = vsel %vm1802, %v1580, 0
  %v1912 = vsel %vm1802, %v1581, 0
  %v1915 = vsel %vm1802, %v1582, 0
  %v1918 = vsel %vm1802, %v1583, 0
  %v1921 = vsel %vm1802, %v1584, 0
  %v1924 = vsel %vm1802, %v1585, 0
  %v1927 = vsel %vm1802, %v1586, 0
  %v1930 = vsel %vm1802, %v1587, 0
  %v1933 = vsel %vm1802, %v1588, 0
  %v1936 = vsel %vm1802, %v1589, 0
  %v1939 = vsel %vm1802, %v1590, 0
  %v1942 = vsel %vm1802, %v1591, 0
  %v1945 = vsel %vm1802, %v1592, 0
  %v1948 = vsel %vm1802, %v1593, 0
  %v1951 = vsel %vm1802, %v1594, 0
  %v1954 = vsel %vm1802, %v1595, 0
  %v1957 = vsel %vm1802, %v1596, 0
  %v1960 = vsel %vm1802, %v1597, 0
  %v1963 = vsel %vm1802, %v1598, 0
  %v1966 = vsel %vm1802, %v1599, 0
  %v1969 = vsel %vm1802, %v1600, 0
  %v1972 = vsel %vm1802, %v1601, 0
  %v1975 = vsel %vm1802, %v1602, 0
  %v1978 = vsel %vm1802, %v1603, 0
  %v1981 = vsel %vm1802, %v1604, 0
  %v1984 = vsel %vm1802, %v1605, 0
  %v1987 = vsel %vm1802, %v1606, 0
  %v1990 = vsel %vm1802, %v1607, 0
  %v1993 = vsel %vm1802, %v1608, 0
  %v1996 = vsel %vm1802, %v1609, 0
  %v1999 = vsel %vm1802, %v1610, 0
  %v2002 = vsel %vm1802, %v1611, 0
  %v2005 = vsel %vm1802, %v1612, 0
  %v2008 = vsel %vm1802, %v1613, 0
  %v2011 = vsel %vm1802, %v1614, 0
  %v2014 = vsel %vm1802, %v1615, 0
  %v2017 = vsel %vm1802, %v1616, 0
  %v2020 = vsel %vm1802, %v1617, 0
  %v2023 = vsel %vm1802, %v1618, 0
  %v2026 = vsel %vm1802, %v1619, 0
  %v2029 = vsel %vm1802, %v1620, 0
  %v2032 = vsel %vm1802, %v1621, 0
  %v2035 = vsel %vm1802, %v1622, 0
  %v2038 = vsel %vm1802, %v1623, 0
  %v2041 = vsel %vm1802, %v1624, 0
  %v2044 = vsel %vm1802, %v1625, 0
  %v2047 = vsel %vm1802, %v1626, 0
  %v2050 = vsel %vm1802, %v1627, 0
  %v2053 = vsel %vm1802, %v1628, 0
  %v2056 = vsel %vm1802, %v1629, 0
  %v2059 = vsel %vm1802, %v1630, 0
  %v2062 = vsel %vm1802, %v1631, 0
  %v2065 = vsel %vm1802, %v1632, 0
  %v2068 = vsel %vm1802, %v1633, 0
  %v2071 = vsel %vm1802, %v1634, 0
  %v2074 = vsel %vm1802, %v1635, 0
  %v2077 = vsel %vm1802, %v1636, 0
  %v2080 = vsel %vm1802, %v1637, 0
  %v2083 = vsel %vm1802, %v1638, 0
  %v2086 = vsel %vm1802, %v1639, 0
  %v2089 = vsel %vm1802, %v1640, 0
  %v2092 = vsel %vm1802, %v1641, 0
  %v2095 = vsel %vm1802, %v1642, 0
  %v2098 = vsel %vm1802, %v1643, 0
  %v2101 = vsel %vm1802, %v1644, 0
  %v2104 = vsel %vm1802, %v1645, 0
  %v2107 = vsel %vm1802, %v1646, 0
  %v2110 = vsel %vm1802, %v1647, 0
  %v2113 = vsel %vm1802, %v1648, 0
  %v2116 = vsel %vm1802, %v1649, 0
  %v2119 = vsel %vm1802, %v1650, 0
  %v2122 = vsel %vm1802, %v1651, 0
  %v2125 = vsel %vm1802, %v1652, 0
  %v2128 = vsel %vm1802, %v1653, 0
  %v2131 = vsel %vm1802, %v1654, 0
  %v2134 = vsel %vm1802, %v1655, 0
  %v2137 = vsel %vm1802, %v1656, 0
  %v2140 = vsel %vm1802, %v1657, 0
  %v2143 = vsel %vm1802, %v1658, 0
  %v2146 = vsel %vm1802, %v1659, 0
  %v2149 = vsel %vm1802, %v1660, 0
  %v2152 = vsel %vm1802, %v1661, 0
  %v2155 = vsel %vm1802, %v1662, 0
  %v2158 = vsel %vm1802, %v1663, 0
  %v2161 = vsel %vm1802, %v1664, 0
  %v2164 = vsel %vm1802, %v1665, 0
  %v2167 = vsel %vm1802, %v1666, 0
  %v2170 = vsel %vm1802, %v1667, 0
  %v2173 = vsel %vm1802, %v1668, 0
  %v2176 = vsel %vm1802, %v1669, 0
  %v2179 = vsel %vm1802, %v1670, 0
  %v2182 = vsel %vm1802, %v1671, 0
  %v2185 = vsel %vm1802, %v1672, 0
  %v2188 = vsel %vm1802, %v1673, 0
  %v2191 = vsel %vm1802, %v1674, 0
  %v2194 = vsel %vm1802, %v1675, 0
  %v2197 = vsel %vm1802, %v1676, 0
  %v2200 = vsel %vm1802, %v1677, 0
  %v2203 = vsel %vm1802, %v1678, 0
  %v2206 = vsel %vm1802, %v1679, 0
  %v2209 = vsel %vm1802, %v1680, 0
  %v2212 = vsel %vm1802, %v1681, 0
  %v2215 = vsel %vm1802, %v1682, 0
  %v2218 = vsel %vm1802, %v1683, 0
  %v2221 = vsel %vm1802, %v1684, 0
  %v2224 = vsel %vm1802, %v1685, 0
  %v2227 = vsel %vm1802, %v1686, 0
  %v2230 = vsel %vm1802, %v1687, 0
  %v2233 = vsel %vm1802, %v1688, 0
  %v2236 = vsel %vm1802, %v1689, 0
  %v2239 = vsel %vm1802, %v1690, 0
  %v2242 = vsel %vm1802, %v1691, 0
  %v2245 = vsel %vm1802, %v1692, 0
  %v2248 = vsel %vm1802, %v1693, 0
  %v2251 = vsel %vm1802, %v1694, 0
  %v2254 = vsel %vm1802, %v1695, 0
  %v2257 = vsel %vm1802, %v1696, 0
  %v2260 = vsel %vm1802, %v1697, 0
  %v2263 = vsel %vm1802, %v1698, 0
  %v2266 = vsel %vm1802, %v1699, 0
  %v2269 = vsel %vm1802, %v1700, 0
  %v2272 = vsel %vm1802, %v1701, 0
  %v2275 = vsel %vm1802, %v1702, 0
  %v2278 = vsel %vm1802, %v1703, 0
  %v2281 = vsel %vm1802, %v1704, 0
  %v2284 = vsel %vm1802, %v1705, 0
  %v2287 = vsel %vm1802, %v1706, 0
  %v2290 = vsel %vm1802, %v1707, 0
  %v2293 = vsel %vm1802, %v1708, 0
  %v2296 = vsel %vm1802, %v1709, 0
  %v2299 = vsel %vm1802, %v1710, 0
  %v2302 = vsel %vm1802, %v1711, 0
  %v2305 = vsel %vm1802, %v1712, 0
  %v2308 = vsel %vm1802, %v1713, 0
  %v2311 = vsel %vm1802, %v1714, 0
  %v2314 = vsel %vm1802, %v1715, 0
  %v2317 = vsel %vm1802, %v1716, 0
  %v2320 = vsel %vm1802, %v1717, 0
  %v2323 = vsel %vm1802, %v1718, 0
  %v2326 = vsel %vm1802, %v1719, 0
  %v2329 = vsel %vm1802, %v1720, 0
  %v2332 = vsel %vm1802, %v1721, 0
  %v2335 = vsel %vm1802, %v1722, 0
  %v2338 = vsel %vm1802, %v1723, 0
  %v2341 = vsel %vm1802, %v1724, 0
  %v2344 = vsel %vm1802, %v1725, 0
  %v2347 = vsel %vm1802, %v1726, 0
  %v2350 = vsel %vm1802, %v1727, 0
  %v2353 = vsel %vm1802, %v1728, 0
  %v2356 = vsel %vm1802, %v1729, 0
  %v2359 = vsel %vm1802, %v1730, 0
  %v2362 = vsel %vm1802, %v1731, 0
  %v2365 = vsel %vm1802, %v1732, 0
  %v2368 = vsel %vm1802, %v1733, 0
  %v2371 = vsel %vm1802, %v1734, 0
  %v2374 = vsel %vm1802, %v1735, 0
  %v2377 = vsel %vm1802, %v1736, 0
  %v2380 = vsel %vm1802, %v1737, 0
  %v2383 = vsel %vm1802, %v1738, 0
  %v2386 = vsel %vm1802, %v1739, 0
  %v2389 = vsel %vm1802, %v1740, 0
  %v2392 = vsel %vm1802, %v1741, 0
  %v2395 = vsel %vm1802, %v1742, 0
  %v2398 = vsel %vm1802, %v1743, 0
  %v2401 = vsel %vm1802, %v1744, 0
  %v2404 = vsel %vm1802, %v1745, 0
  %v2407 = vsel %vm1802, %v1746, 0
  %v2410 = vsel %vm1802, %v1747, 0
  %v2413 = vsel %vm1802, %v1748, 0
  %v2416 = vsel %vm1802, %v1749, 0
  %v2419 = vsel %vm1802, %v1750, 0
  %v2422 = vsel %vm1802, %v1751, 0
  %v2425 = vsel %vm1802, %v1752, 0
  %v2428 = vsel %vm1802, %v1753, 0
  %v2431 = vsel %vm1802, %v1754, 0
  %v2434 = vsel %vm1802, %v1755, 0
  %v2437 = vsel %vm1802, %v1756, 0
  %v2440 = vsel %vm1802, %v1757, 0
  %v2443 = vsel %vm1802, %v1758, 0
  %v2446 = vsel %vm1802, %v1759, 0
  %v2449 = vsel %vm1802, %v1760, 0
  %v2452 = vsel %vm1802, %v1761, 0
  %v2455 = vsel %vm1802, %v1762, 0
  %v2458 = vsel %vm1802, %v1763, 0
  %v2461 = vsel %vm1802, %v1764, 0
  %v2464 = vsel %vm1802, %v1765, 0
  %v2467 = vsel %vm1802, %v1766, 0
  %v2470 = vsel %vm1802, %v1767, 0
  %v2473 = vsel %vm1802, %v1768, 0
  %v2476 = vsel %vm1802, %v1769, 0
  %v2479 = vsel %vm1802, %v1770, 0
  %v2482 = vsel %vm1802, %v1771, 0
  %v2485 = vsel %vm1802, %v1772, 0
  %v2488 = vsel %vm1802, %v1773, 0
  %v2491 = vsel %vm1802, %v1774, 0
  %v2494 = vsel %vm1802, %v1775, 0
  %v2497 = vsel %vm1802, %v1776, 0
  %v2500 = vsel %vm1802, %v1777, 0
  %v2503 = vsel %vm1802, %v1778, 0
  %v2506 = vsel %vm1802, %v1779, 0
  %v2509 = vsel %vm1802, %v1780, 0
  %v2512 = vsel %vm1802, %v1781, 0
  %v2515 = vsel %vm1802, %v1782, 0
  %v2518 = vsel %vm1802, %v1783, 0
  %v2521 = vsel %vm1802, %v1784, 0
  %v2524 = vsel %vm1802, %v1785, 0
  %v2527 = vsel %vm1802, %v1786, 0
  %v2530 = vsel %vm1802, %v1787, 0
  %v2533 = vsel %vm1802, %v1788, 0
  %v2536 = vsel %vm1802, %v1789, 0
  %v2539 = vsel %vm1802, %v1790, 0
  %v2542 = vsel %vm1802, %v1791, 0
  %v2545 = vsel %vm1802, %v1792, 0
  %v2548 = vsel %vm1802, %v1793, 0
  %v2551 = vsel %vm1802, %v1794, 0
  %v2554 = vsel %vm1802, %v1795, 0
  %v2557 = vsel %vm1802, %v1796, 0
  %vm2559 = vcmask 1043456
  %vm2560 = vcmask 1044480
  %v2561 = vsel %vm2559, 4294967295, 65535
  %v2562 = vsel %vm2560, %v2561, 0
  %v2564 = vand.u32 %v1801, %v2562
  %2566 = vmatpush.bf16.msra.mxu0 0
  %2567 = vmatpush.bf16.msra.mxu0 0
  %2568 = vmatpush.bf16.msra.mxu0 0
  %2569 = vmatpush.bf16.msra.mxu0 0
  %2570 = vmatpush.bf16.msra.mxu0 0
  %2571 = vmatpush.bf16.msra.mxu0 0
  %2572 = vmatpush.bf16.msra.mxu0 0
  %2573 = vmatpush.bf16.msra.mxu0 %v2564
  %2574 = vmatmul.bf16.gmra.mxu0 %v1804
  %v2575 = vpop.f32.mrf.mxu0
  %v2576 = vadd.f32 %v535, %v2575
  %v2577 = vpop.f32.mrf.mxu0
  %v2578 = vadd.f32 %v535, %v2577
  %2579 = vmatmul.bf16.gmra.mxu0 %v1807
  %v2580 = vpop.f32.mrf.mxu0
  %v2581 = vadd.f32 %v535, %v2580
  %v2582 = vpop.f32.mrf.mxu0
  %v2583 = vadd.f32 %v535, %v2582
  %2584 = vmatmul.bf16.gmra.mxu0 %v1810
  %v2585 = vpop.f32.mrf.mxu0
  %v2586 = vadd.f32 %v535, %v2585
  %v2587 = vpop.f32.mrf.mxu0
  %v2588 = vadd.f32 %v535, %v2587
  %2589 = vmatmul.bf16.gmra.mxu0 %v1813
  %v2590 = vpop.f32.mrf.mxu0
  %v2591 = vadd.f32 %v535, %v2590
  %v2592 = vpop.f32.mrf.mxu0
  %v2593 = vadd.f32 %v535, %v2592
  %2594 = vmatmul.bf16.gmra.mxu0 %v1816
  %v2595 = vpop.f32.mrf.mxu0
  %v2596 = vadd.f32 %v535, %v2595
  %v2597 = vpop.f32.mrf.mxu0
  %v2598 = vadd.f32 %v535, %v2597
  %2599 = vmatmul.bf16.gmra.mxu0 %v1819
  %v2600 = vpop.f32.mrf.mxu0
  %v2601 = vadd.f32 %v535, %v2600
  %v2602 = vpop.f32.mrf.mxu0
  %v2603 = vadd.f32 %v535, %v2602
  %2604 = vmatmul.bf16.gmra.mxu0 %v1822
  %v2605 = vpop.f32.mrf.mxu0
  %v2606 = vadd.f32 %v535, %v2605
  %v2607 = vpop.f32.mrf.mxu0
  %v2608 = vadd.f32 %v535, %v2607
  %2609 = vmatmul.bf16.gmra.mxu0 %v1825
  %v2610 = vpop.f32.mrf.mxu0
  %v2611 = vadd.f32 %v535, %v2610
  %v2612 = vpop.f32.mrf.mxu0
  %v2613 = vadd.f32 %v535, %v2612
  %2614 = vmatmul.bf16.gmra.mxu0 %v1828
  %v2615 = vpop.f32.mrf.mxu0
  %v2616 = vadd.f32 %v535, %v2615
  %v2617 = vpop.f32.mrf.mxu0
  %v2618 = vadd.f32 %v535, %v2617
  %2619 = vmatmul.bf16.gmra.mxu0 %v1831
  %v2620 = vpop.f32.mrf.mxu0
  %v2621 = vadd.f32 %v535, %v2620
  %v2622 = vpop.f32.mrf.mxu0
  %v2623 = vadd.f32 %v535, %v2622
  %2624 = vmatmul.bf16.gmra.mxu0 %v1834
  %v2625 = vpop.f32.mrf.mxu0
  %v2626 = vadd.f32 %v535, %v2625
  %v2627 = vpop.f32.mrf.mxu0
  %v2628 = vadd.f32 %v535, %v2627
  %2629 = vmatmul.bf16.gmra.mxu0 %v1837
  %v2630 = vpop.f32.mrf.mxu0
  %v2631 = vadd.f32 %v535, %v2630
  %v2632 = vpop.f32.mrf.mxu0
  %v2633 = vadd.f32 %v535, %v2632
  %2634 = vmatmul.bf16.gmra.mxu0 %v1840
  %v2635 = vpop.f32.mrf.mxu0
  %v2636 = vadd.f32 %v535, %v2635
  %v2637 = vpop.f32.mrf.mxu0
  %v2638 = vadd.f32 %v535, %v2637
  %2639 = vmatmul.bf16.gmra.mxu0 %v1843
  %v2640 = vpop.f32.mrf.mxu0
  %v2641 = vadd.f32 %v535, %v2640
  %v2642 = vpop.f32.mrf.mxu0
  %v2643 = vadd.f32 %v535, %v2642
  %2644 = vmatmul.bf16.gmra.mxu0 %v1846
  %v2645 = vpop.f32.mrf.mxu0
  %v2646 = vadd.f32 %v535, %v2645
  %v2647 = vpop.f32.mrf.mxu0
  %v2648 = vadd.f32 %v535, %v2647
  %2649 = vmatmul.bf16.gmra.mxu0 %v1849
  %v2650 = vpop.f32.mrf.mxu0
  %v2651 = vadd.f32 %v535, %v2650
  %v2652 = vpop.f32.mrf.mxu0
  %v2653 = vadd.f32 %v535, %v2652
  %2654 = vmatmul.bf16.gmra.mxu0 %v1852
  %v2655 = vpop.f32.mrf.mxu0
  %v2656 = vadd.f32 %v535, %v2655
  %v2657 = vpop.f32.mrf.mxu0
  %v2658 = vadd.f32 %v535, %v2657
  %2659 = vmatmul.bf16.gmra.mxu0 %v1855
  %v2660 = vpop.f32.mrf.mxu0
  %v2661 = vadd.f32 %v535, %v2660
  %v2662 = vpop.f32.mrf.mxu0
  %v2663 = vadd.f32 %v535, %v2662
  %2664 = vmatmul.bf16.gmra.mxu0 %v1858
  %v2665 = vpop.f32.mrf.mxu0
  %v2666 = vadd.f32 %v535, %v2665
  %v2667 = vpop.f32.mrf.mxu0
  %v2668 = vadd.f32 %v535, %v2667
  %2669 = vmatmul.bf16.gmra.mxu0 %v1861
  %v2670 = vpop.f32.mrf.mxu0
  %v2671 = vadd.f32 %v535, %v2670
  %v2672 = vpop.f32.mrf.mxu0
  %v2673 = vadd.f32 %v535, %v2672
  %2674 = vmatmul.bf16.gmra.mxu0 %v1864
  %v2675 = vpop.f32.mrf.mxu0
  %v2676 = vadd.f32 %v535, %v2675
  %v2677 = vpop.f32.mrf.mxu0
  %v2678 = vadd.f32 %v535, %v2677
  %2679 = vmatmul.bf16.gmra.mxu0 %v1867
  %v2680 = vpop.f32.mrf.mxu0
  %v2681 = vadd.f32 %v535, %v2680
  %v2682 = vpop.f32.mrf.mxu0
  %v2683 = vadd.f32 %v535, %v2682
  %2684 = vmatmul.bf16.gmra.mxu0 %v1870
  %v2685 = vpop.f32.mrf.mxu0
  %v2686 = vadd.f32 %v535, %v2685
  %v2687 = vpop.f32.mrf.mxu0
  %v2688 = vadd.f32 %v535, %v2687
  %2689 = vmatmul.bf16.gmra.mxu0 %v1873
  %v2690 = vpop.f32.mrf.mxu0
  %v2691 = vadd.f32 %v535, %v2690
  %v2692 = vpop.f32.mrf.mxu0
  %v2693 = vadd.f32 %v535, %v2692
  %2694 = vmatmul.bf16.gmra.mxu0 %v1876
  %v2695 = vpop.f32.mrf.mxu0
  %v2696 = vadd.f32 %v535, %v2695
  %v2697 = vpop.f32.mrf.mxu0
  %v2698 = vadd.f32 %v535, %v2697
  %2699 = vmatmul.bf16.gmra.mxu0 %v1879
  %v2700 = vpop.f32.mrf.mxu0
  %v2701 = vadd.f32 %v535, %v2700
  %v2702 = vpop.f32.mrf.mxu0
  %v2703 = vadd.f32 %v535, %v2702
  %2704 = vmatmul.bf16.gmra.mxu0 %v1882
  %v2705 = vpop.f32.mrf.mxu0
  %v2706 = vadd.f32 %v535, %v2705
  %v2707 = vpop.f32.mrf.mxu0
  %v2708 = vadd.f32 %v535, %v2707
  %2709 = vmatmul.bf16.gmra.mxu0 %v1885
  %v2710 = vpop.f32.mrf.mxu0
  %v2711 = vadd.f32 %v535, %v2710
  %v2712 = vpop.f32.mrf.mxu0
  %v2713 = vadd.f32 %v535, %v2712
  %2714 = vmatmul.bf16.gmra.mxu0 %v1888
  %v2715 = vpop.f32.mrf.mxu0
  %v2716 = vadd.f32 %v535, %v2715
  %v2717 = vpop.f32.mrf.mxu0
  %v2718 = vadd.f32 %v535, %v2717
  %2719 = vmatmul.bf16.gmra.mxu0 %v1891
  %v2720 = vpop.f32.mrf.mxu0
  %v2721 = vadd.f32 %v535, %v2720
  %v2722 = vpop.f32.mrf.mxu0
  %v2723 = vadd.f32 %v535, %v2722
  %2724 = vmatmul.bf16.gmra.mxu0 %v1894
  %v2725 = vpop.f32.mrf.mxu0
  %v2726 = vadd.f32 %v535, %v2725
  %v2727 = vpop.f32.mrf.mxu0
  %v2728 = vadd.f32 %v535, %v2727
  %2729 = vmatmul.bf16.gmra.mxu0 %v1897
  %v2730 = vpop.f32.mrf.mxu0
  %v2731 = vadd.f32 %v535, %v2730
  %v2732 = vpop.f32.mrf.mxu0
  %v2733 = vadd.f32 %v535, %v2732
  %2734 = vmatmul.bf16.gmra.mxu0 %v1900
  %v2735 = vpop.f32.mrf.mxu0
  %v2736 = vadd.f32 %v535, %v2735
  %v2737 = vpop.f32.mrf.mxu0
  %v2738 = vadd.f32 %v535, %v2737
  %2739 = vmatmul.bf16.gmra.mxu0 %v1903
  %v2740 = vpop.f32.mrf.mxu0
  %v2741 = vadd.f32 %v535, %v2740
  %v2742 = vpop.f32.mrf.mxu0
  %v2743 = vadd.f32 %v535, %v2742
  %2744 = vmatmul.bf16.gmra.mxu0 %v1906
  %v2745 = vpop.f32.mrf.mxu0
  %v2746 = vadd.f32 %v535, %v2745
  %v2747 = vpop.f32.mrf.mxu0
  %v2748 = vadd.f32 %v535, %v2747
  %2749 = vmatmul.bf16.gmra.mxu0 %v1909
  %v2750 = vpop.f32.mrf.mxu0
  %v2751 = vadd.f32 %v535, %v2750
  %v2752 = vpop.f32.mrf.mxu0
  %v2753 = vadd.f32 %v535, %v2752
  %2754 = vmatmul.bf16.gmra.mxu0 %v1912
  %v2755 = vpop.f32.mrf.mxu0
  %v2756 = vadd.f32 %v535, %v2755
  %v2757 = vpop.f32.mrf.mxu0
  %v2758 = vadd.f32 %v535, %v2757
  %2759 = vmatmul.bf16.gmra.mxu0 %v1915
  %v2760 = vpop.f32.mrf.mxu0
  %v2761 = vadd.f32 %v535, %v2760
  %v2762 = vpop.f32.mrf.mxu0
  %v2763 = vadd.f32 %v535, %v2762
  %2764 = vmatmul.bf16.gmra.mxu0 %v1918
  %v2765 = vpop.f32.mrf.mxu0
  %v2766 = vadd.f32 %v535, %v2765
  %v2767 = vpop.f32.mrf.mxu0
  %v2768 = vadd.f32 %v535, %v2767
  %2769 = vmatmul.bf16.gmra.mxu0 %v1921
  %v2770 = vpop.f32.mrf.mxu0
  %v2771 = vadd.f32 %v535, %v2770
  %v2772 = vpop.f32.mrf.mxu0
  %v2773 = vadd.f32 %v535, %v2772
  %2774 = vmatmul.bf16.gmra.mxu0 %v1924
  %v2775 = vpop.f32.mrf.mxu0
  %v2776 = vadd.f32 %v535, %v2775
  %v2777 = vpop.f32.mrf.mxu0
  %v2778 = vadd.f32 %v535, %v2777
  %2779 = vmatmul.bf16.gmra.mxu0 %v1927
  %v2780 = vpop.f32.mrf.mxu0
  %v2781 = vadd.f32 %v535, %v2780
  %v2782 = vpop.f32.mrf.mxu0
  %v2783 = vadd.f32 %v535, %v2782
  %2784 = vmatmul.bf16.gmra.mxu0 %v1930
  %v2785 = vpop.f32.mrf.mxu0
  %v2786 = vadd.f32 %v535, %v2785
  %v2787 = vpop.f32.mrf.mxu0
  %v2788 = vadd.f32 %v535, %v2787
  %2789 = vmatmul.bf16.gmra.mxu0 %v1933
  %v2790 = vpop.f32.mrf.mxu0
  %v2791 = vadd.f32 %v535, %v2790
  %v2792 = vpop.f32.mrf.mxu0
  %v2793 = vadd.f32 %v535, %v2792
  %2794 = vmatmul.bf16.gmra.mxu0 %v1936
  %v2795 = vpop.f32.mrf.mxu0
  %v2796 = vadd.f32 %v535, %v2795
  %v2797 = vpop.f32.mrf.mxu0
  %v2798 = vadd.f32 %v535, %v2797
  %2799 = vmatmul.bf16.gmra.mxu0 %v1939
  %v2800 = vpop.f32.mrf.mxu0
  %v2801 = vadd.f32 %v535, %v2800
  %v2802 = vpop.f32.mrf.mxu0
  %v2803 = vadd.f32 %v535, %v2802
  %2804 = vmatmul.bf16.gmra.mxu0 %v1942
  %v2805 = vpop.f32.mrf.mxu0
  %v2806 = vadd.f32 %v535, %v2805
  %v2807 = vpop.f32.mrf.mxu0
  %v2808 = vadd.f32 %v535, %v2807
  %2809 = vmatmul.bf16.gmra.mxu0 %v1945
  %v2810 = vpop.f32.mrf.mxu0
  %v2811 = vadd.f32 %v535, %v2810
  %v2812 = vpop.f32.mrf.mxu0
  %v2813 = vadd.f32 %v535, %v2812
  %2814 = vmatmul.bf16.gmra.mxu0 %v1948
  %v2815 = vpop.f32.mrf.mxu0
  %v2816 = vadd.f32 %v535, %v2815
  %v2817 = vpop.f32.mrf.mxu0
  %v2818 = vadd.f32 %v535, %v2817
  %2819 = vmatmul.bf16.gmra.mxu0 %v1951
  %v2820 = vpop.f32.mrf.mxu0
  %v2821 = vadd.f32 %v535, %v2820
  %v2822 = vpop.f32.mrf.mxu0
  %v2823 = vadd.f32 %v535, %v2822
  %2824 = vmatmul.bf16.gmra.mxu0 %v1954
  %v2825 = vpop.f32.mrf.mxu0
  %v2826 = vadd.f32 %v535, %v2825
  %v2827 = vpop.f32.mrf.mxu0
  %v2828 = vadd.f32 %v535, %v2827
  %2829 = vmatmul.bf16.gmra.mxu0 %v1957
  %v2830 = vpop.f32.mrf.mxu0
  %v2831 = vadd.f32 %v535, %v2830
  %v2832 = vpop.f32.mrf.mxu0
  %v2833 = vadd.f32 %v535, %v2832
  %2834 = vmatmul.bf16.gmra.mxu0 %v1960
  %v2835 = vpop.f32.mrf.mxu0
  %v2836 = vadd.f32 %v535, %v2835
  %v2837 = vpop.f32.mrf.mxu0
  %v2838 = vadd.f32 %v535, %v2837
  %2839 = vmatmul.bf16.gmra.mxu0 %v1963
  %v2840 = vpop.f32.mrf.mxu0
  %v2841 = vadd.f32 %v535, %v2840
  %v2842 = vpop.f32.mrf.mxu0
  %v2843 = vadd.f32 %v535, %v2842
  %2844 = vmatmul.bf16.gmra.mxu0 %v1966
  %v2845 = vpop.f32.mrf.mxu0
  %v2846 = vadd.f32 %v535, %v2845
  %v2847 = vpop.f32.mrf.mxu0
  %v2848 = vadd.f32 %v535, %v2847
  %2849 = vmatmul.bf16.gmra.mxu0 %v1969
  %v2850 = vpop.f32.mrf.mxu0
  %v2851 = vadd.f32 %v535, %v2850
  %v2852 = vpop.f32.mrf.mxu0
  %v2853 = vadd.f32 %v535, %v2852
  %2854 = vmatmul.bf16.gmra.mxu0 %v1972
  %v2855 = vpop.f32.mrf.mxu0
  %v2856 = vadd.f32 %v535, %v2855
  %v2857 = vpop.f32.mrf.mxu0
  %v2858 = vadd.f32 %v535, %v2857
  %2859 = vmatmul.bf16.gmra.mxu0 %v1975
  %v2860 = vpop.f32.mrf.mxu0
  %v2861 = vadd.f32 %v535, %v2860
  %v2862 = vpop.f32.mrf.mxu0
  %v2863 = vadd.f32 %v535, %v2862
  %2864 = vmatmul.bf16.gmra.mxu0 %v1978
  %v2865 = vpop.f32.mrf.mxu0
  %v2866 = vadd.f32 %v535, %v2865
  %v2867 = vpop.f32.mrf.mxu0
  %v2868 = vadd.f32 %v535, %v2867
  %2869 = vmatmul.bf16.gmra.mxu0 %v1981
  %v2870 = vpop.f32.mrf.mxu0
  %v2871 = vadd.f32 %v535, %v2870
  %v2872 = vpop.f32.mrf.mxu0
  %v2873 = vadd.f32 %v535, %v2872
  %2874 = vmatmul.bf16.gmra.mxu0 %v1984
  %v2875 = vpop.f32.mrf.mxu0
  %v2876 = vadd.f32 %v535, %v2875
  %v2877 = vpop.f32.mrf.mxu0
  %v2878 = vadd.f32 %v535, %v2877
  %2879 = vmatmul.bf16.gmra.mxu0 %v1987
  %v2880 = vpop.f32.mrf.mxu0
  %v2881 = vadd.f32 %v535, %v2880
  %v2882 = vpop.f32.mrf.mxu0
  %v2883 = vadd.f32 %v535, %v2882
  %2884 = vmatmul.bf16.gmra.mxu0 %v1990
  %v2885 = vpop.f32.mrf.mxu0
  %v2886 = vadd.f32 %v535, %v2885
  %v2887 = vpop.f32.mrf.mxu0
  %v2888 = vadd.f32 %v535, %v2887
  %2889 = vmatmul.bf16.gmra.mxu0 %v1993
  %v2890 = vpop.f32.mrf.mxu0
  %v2891 = vadd.f32 %v535, %v2890
  %v2892 = vpop.f32.mrf.mxu0
  %v2893 = vadd.f32 %v535, %v2892
  %2894 = vmatmul.bf16.gmra.mxu0 %v1996
  %v2895 = vpop.f32.mrf.mxu0
  %v2896 = vadd.f32 %v535, %v2895
  %v2897 = vpop.f32.mrf.mxu0
  %v2898 = vadd.f32 %v535, %v2897
  %2899 = vmatmul.bf16.gmra.mxu0 %v1999
  %v2900 = vpop.f32.mrf.mxu0
  %v2901 = vadd.f32 %v535, %v2900
  %v2902 = vpop.f32.mrf.mxu0
  %v2903 = vadd.f32 %v535, %v2902
  %2904 = vmatmul.bf16.gmra.mxu0 %v2002
  %v2905 = vpop.f32.mrf.mxu0
  %v2906 = vadd.f32 %v535, %v2905
  %v2907 = vpop.f32.mrf.mxu0
  %v2908 = vadd.f32 %v535, %v2907
  %2909 = vmatmul.bf16.gmra.mxu0 %v2005
  %v2910 = vpop.f32.mrf.mxu0
  %v2911 = vadd.f32 %v535, %v2910
  %v2912 = vpop.f32.mrf.mxu0
  %v2913 = vadd.f32 %v535, %v2912
  %2914 = vmatmul.bf16.gmra.mxu0 %v2008
  %v2915 = vpop.f32.mrf.mxu0
  %v2916 = vadd.f32 %v535, %v2915
  %v2917 = vpop.f32.mrf.mxu0
  %v2918 = vadd.f32 %v535, %v2917
  %2919 = vmatmul.bf16.gmra.mxu0 %v2011
  %v2920 = vpop.f32.mrf.mxu0
  %v2921 = vadd.f32 %v535, %v2920
  %v2922 = vpop.f32.mrf.mxu0
  %v2923 = vadd.f32 %v535, %v2922
  %2924 = vmatmul.bf16.gmra.mxu0 %v2014
  %v2925 = vpop.f32.mrf.mxu0
  %v2926 = vadd.f32 %v535, %v2925
  %v2927 = vpop.f32.mrf.mxu0
  %v2928 = vadd.f32 %v535, %v2927
  %2929 = vmatmul.bf16.gmra.mxu0 %v2017
  %v2930 = vpop.f32.mrf.mxu0
  %v2931 = vpop.f32.mrf.mxu0
  %2932 = vmatmul.bf16.gmra.mxu0 %v2020
  %v2933 = vpop.f32.mrf.mxu0
  %v2934 = vadd.f32 %v535, %v2933
  %v2935 = vpop.f32.mrf.mxu0
  %v2936 = vadd.f32 %v535, %v2935
  %2937 = vmatmul.bf16.gmra.mxu0 %v2023
  %v2938 = vpop.f32.mrf.mxu0
  %v2939 = vadd.f32 %v535, %v2938
  %v2940 = vpop.f32.mrf.mxu0
  %v2941 = vadd.f32 %v535, %v2940
  %2942 = vmatmul.bf16.gmra.mxu0 %v2026
  %v2943 = vpop.f32.mrf.mxu0
  %v2944 = vadd.f32 %v535, %v2943
  %v2945 = vpop.f32.mrf.mxu0
  %v2946 = vadd.f32 %v535, %v2945
  %2947 = vmatmul.bf16.gmra.mxu0 %v2029
  %v2948 = vpop.f32.mrf.mxu0
  %v2949 = vadd.f32 %v535, %v2948
  %v2950 = vpop.f32.mrf.mxu0
  %v2951 = vadd.f32 %v535, %v2950
  %2952 = vmatmul.bf16.gmra.mxu0 %v2032
  %v2953 = vpop.f32.mrf.mxu0
  %v2954 = vadd.f32 %v535, %v2953
  %v2955 = vpop.f32.mrf.mxu0
  %v2956 = vadd.f32 %v535, %v2955
  %2957 = vmatmul.bf16.gmra.mxu0 %v2035
  %v2958 = vpop.f32.mrf.mxu0
  %v2959 = vadd.f32 %v535, %v2958
  %v2960 = vpop.f32.mrf.mxu0
  %v2961 = vadd.f32 %v535, %v2960
  %2962 = vmatmul.bf16.gmra.mxu0 %v2038
  %v2963 = vpop.f32.mrf.mxu0
  %v2964 = vadd.f32 %v535, %v2963
  %v2965 = vpop.f32.mrf.mxu0
  %v2966 = vadd.f32 %v535, %v2965
  %2967 = vmatmul.bf16.gmra.mxu0 %v2041
  %v2968 = vpop.f32.mrf.mxu0
  %v2969 = vadd.f32 %v535, %v2968
  %v2970 = vpop.f32.mrf.mxu0
  %v2971 = vadd.f32 %v535, %v2970
  %2972 = vmatmul.bf16.gmra.mxu0 %v2044
  %v2973 = vpop.f32.mrf.mxu0
  %v2974 = vpop.f32.mrf.mxu0
  %2975 = vmatmul.bf16.gmra.mxu0 %v2047
  %v2976 = vpop.f32.mrf.mxu0
  %v2977 = vadd.f32 %v535, %v2976
  %v2978 = vpop.f32.mrf.mxu0
  %v2979 = vadd.f32 %v535, %v2978
  %2980 = vmatmul.bf16.gmra.mxu0 %v2050
  %v2981 = vpop.f32.mrf.mxu0
  %v2982 = vadd.f32 %v535, %v2981
  %v2983 = vpop.f32.mrf.mxu0
  %v2984 = vadd.f32 %v535, %v2983
  %2985 = vmatmul.bf16.gmra.mxu0 %v2053
  %v2986 = vpop.f32.mrf.mxu0
  %v2987 = vadd.f32 %v535, %v2986
  %v2988 = vpop.f32.mrf.mxu0
  %v2989 = vadd.f32 %v535, %v2988
  %2990 = vmatmul.bf16.gmra.mxu0 %v2056
  %v2991 = vpop.f32.mrf.mxu0
  %v2992 = vadd.f32 %v535, %v2991
  %v2993 = vpop.f32.mrf.mxu0
  %v2994 = vadd.f32 %v535, %v2993
  %2995 = vmatmul.bf16.gmra.mxu0 %v2059
  %v2996 = vpop.f32.mrf.mxu0
  %v2997 = vadd.f32 %v535, %v2996
  %v2998 = vpop.f32.mrf.mxu0
  %v2999 = vadd.f32 %v535, %v2998
  %3000 = vmatmul.bf16.gmra.mxu0 %v2062
  %v3001 = vpop.f32.mrf.mxu0
  %v3002 = vadd.f32 %v535, %v3001
  %v3003 = vpop.f32.mrf.mxu0
  %v3004 = vadd.f32 %v535, %v3003
  %3005 = vmatmul.bf16.gmra.mxu0 %v2065
  %v3006 = vpop.f32.mrf.mxu0
  %v3007 = vadd.f32 %v535, %v3006
  %v3008 = vpop.f32.mrf.mxu0
  %v3009 = vadd.f32 %v535, %v3008
  %3010 = vmatmul.bf16.gmra.mxu0 %v2068
  %v3011 = vpop.f32.mrf.mxu0
  %v3012 = vadd.f32 %v535, %v3011
  %v3013 = vpop.f32.mrf.mxu0
  %v3014 = vadd.f32 %v535, %v3013
  %3015 = vmatmul.bf16.gmra.mxu0 %v2071
  %v3016 = vpop.f32.mrf.mxu0
  %v3017 = vpop.f32.mrf.mxu0
  %3018 = vmatmul.bf16.gmra.mxu0 %v2074
  %v3019 = vpop.f32.mrf.mxu0
  %v3020 = vadd.f32 %v535, %v3019
  %v3021 = vpop.f32.mrf.mxu0
  %v3022 = vadd.f32 %v535, %v3021
  %3023 = vmatmul.bf16.gmra.mxu0 %v2077
  %v3024 = vpop.f32.mrf.mxu0
  %v3025 = vadd.f32 %v535, %v3024
  %v3026 = vpop.f32.mrf.mxu0
  %v3027 = vadd.f32 %v535, %v3026
  %3028 = vmatmul.bf16.gmra.mxu0 %v2080
  %v3029 = vpop.f32.mrf.mxu0
  %v3030 = vadd.f32 %v535, %v3029
  %v3031 = vpop.f32.mrf.mxu0
  %v3032 = vadd.f32 %v535, %v3031
  %3033 = vmatmul.bf16.gmra.mxu0 %v2083
  %v3034 = vpop.f32.mrf.mxu0
  %v3035 = vadd.f32 %v535, %v3034
  %v3036 = vpop.f32.mrf.mxu0
  %v3037 = vadd.f32 %v535, %v3036
  %3038 = vmatmul.bf16.gmra.mxu0 %v2086
  %v3039 = vpop.f32.mrf.mxu0
  %v3040 = vadd.f32 %v535, %v3039
  %v3041 = vpop.f32.mrf.mxu0
  %v3042 = vadd.f32 %v535, %v3041
  %3043 = vmatmul.bf16.gmra.mxu0 %v2089
  %v3044 = vpop.f32.mrf.mxu0
  %v3045 = vadd.f32 %v535, %v3044
  %v3046 = vpop.f32.mrf.mxu0
  %v3047 = vadd.f32 %v535, %v3046
  %3048 = vmatmul.bf16.gmra.mxu0 %v2092
  %v3049 = vpop.f32.mrf.mxu0
  %v3050 = vadd.f32 %v535, %v3049
  %v3051 = vpop.f32.mrf.mxu0
  %v3052 = vadd.f32 %v535, %v3051
  %3053 = vmatmul.bf16.gmra.mxu0 %v2095
  %v3054 = vpop.f32.mrf.mxu0
  %v3055 = vadd.f32 %v535, %v3054
  %v3056 = vpop.f32.mrf.mxu0
  %v3057 = vadd.f32 %v535, %v3056
  %3058 = vmatmul.bf16.gmra.mxu0 %v2098
  %v3059 = vpop.f32.mrf.mxu0
  %v3060 = vpop.f32.mrf.mxu0
  %3061 = vmatmul.bf16.gmra.mxu0 %v2101
  %v3062 = vpop.f32.mrf.mxu0
  %v3063 = vadd.f32 %v535, %v3062
  %v3064 = vpop.f32.mrf.mxu0
  %v3065 = vadd.f32 %v535, %v3064
  %3066 = vmatmul.bf16.gmra.mxu0 %v2104
  %v3067 = vpop.f32.mrf.mxu0
  %v3068 = vadd.f32 %v535, %v3067
  %v3069 = vpop.f32.mrf.mxu0
  %v3070 = vadd.f32 %v535, %v3069
  %3071 = vmatmul.bf16.gmra.mxu0 %v2107
  %v3072 = vpop.f32.mrf.mxu0
  %v3073 = vadd.f32 %v535, %v3072
  %v3074 = vpop.f32.mrf.mxu0
  %v3075 = vadd.f32 %v535, %v3074
  %3076 = vmatmul.bf16.gmra.mxu0 %v2110
  %v3077 = vpop.f32.mrf.mxu0
  %v3078 = vadd.f32 %v535, %v3077
  %v3079 = vpop.f32.mrf.mxu0
  %v3080 = vadd.f32 %v535, %v3079
  %3081 = vmatmul.bf16.gmra.mxu0 %v2113
  %v3082 = vpop.f32.mrf.mxu0
  %v3083 = vadd.f32 %v535, %v3082
  %v3084 = vpop.f32.mrf.mxu0
  %v3085 = vadd.f32 %v535, %v3084
  %3086 = vmatmul.bf16.gmra.mxu0 %v2116
  %v3087 = vpop.f32.mrf.mxu0
  %v3088 = vadd.f32 %v535, %v3087
  %v3089 = vpop.f32.mrf.mxu0
  %v3090 = vadd.f32 %v535, %v3089
  %3091 = vmatmul.bf16.gmra.mxu0 %v2119
  %v3092 = vpop.f32.mrf.mxu0
  %v3093 = vadd.f32 %v535, %v3092
  %v3094 = vpop.f32.mrf.mxu0
  %v3095 = vadd.f32 %v535, %v3094
  %3096 = vmatmul.bf16.gmra.mxu0 %v2122
  %v3097 = vpop.f32.mrf.mxu0
  %v3098 = vadd.f32 %v535, %v3097
  %v3099 = vpop.f32.mrf.mxu0
  %v3100 = vadd.f32 %v535, %v3099
  %3101 = vmatmul.bf16.gmra.mxu0 %v2125
  %v3102 = vpop.f32.mrf.mxu0
  %v3103 = vpop.f32.mrf.mxu0
  %3104 = vmatmul.bf16.gmra.mxu0 %v2128
  %v3105 = vpop.f32.mrf.mxu0
  %v3106 = vadd.f32 %v535, %v3105
  %v3107 = vpop.f32.mrf.mxu0
  %v3108 = vadd.f32 %v535, %v3107
  %3109 = vmatmul.bf16.gmra.mxu0 %v2131
  %v3110 = vpop.f32.mrf.mxu0
  %v3111 = vadd.f32 %v535, %v3110
  %v3112 = vpop.f32.mrf.mxu0
  %v3113 = vadd.f32 %v535, %v3112
  %3114 = vmatmul.bf16.gmra.mxu0 %v2134
  %v3115 = vpop.f32.mrf.mxu0
  %v3116 = vadd.f32 %v535, %v3115
  %v3117 = vpop.f32.mrf.mxu0
  %v3118 = vadd.f32 %v535, %v3117
  %3119 = vmatmul.bf16.gmra.mxu0 %v2137
  %v3120 = vpop.f32.mrf.mxu0
  %v3121 = vadd.f32 %v535, %v3120
  %v3122 = vpop.f32.mrf.mxu0
  %v3123 = vadd.f32 %v535, %v3122
  %3124 = vmatmul.bf16.gmra.mxu0 %v2140
  %v3125 = vpop.f32.mrf.mxu0
  %v3126 = vadd.f32 %v535, %v3125
  %v3127 = vpop.f32.mrf.mxu0
  %v3128 = vadd.f32 %v535, %v3127
  %3129 = vmatmul.bf16.gmra.mxu0 %v2143
  %v3130 = vpop.f32.mrf.mxu0
  %v3131 = vadd.f32 %v535, %v3130
  %v3132 = vpop.f32.mrf.mxu0
  %v3133 = vadd.f32 %v535, %v3132
  %3134 = vmatmul.bf16.gmra.mxu0 %v2146
  %v3135 = vpop.f32.mrf.mxu0
  %v3136 = vadd.f32 %v535, %v3135
  %v3137 = vpop.f32.mrf.mxu0
  %v3138 = vadd.f32 %v535, %v3137
  %3139 = vmatmul.bf16.gmra.mxu0 %v2149
  %v3140 = vpop.f32.mrf.mxu0
  %v3141 = vadd.f32 %v535, %v3140
  %v3142 = vpop.f32.mrf.mxu0
  %v3143 = vadd.f32 %v535, %v3142
  %3144 = vmatmul.bf16.gmra.mxu0 %v2152
  %v3145 = vpop.f32.mrf.mxu0
  %v3146 = vpop.f32.mrf.mxu0
  %3147 = vmatmul.bf16.gmra.mxu0 %v2155
  %v3148 = vpop.f32.mrf.mxu0
  %v3149 = vadd.f32 %v535, %v3148
  %v3150 = vpop.f32.mrf.mxu0
  %v3151 = vadd.f32 %v535, %v3150
  %3152 = vmatmul.bf16.gmra.mxu0 %v2158
  %v3153 = vpop.f32.mrf.mxu0
  %v3154 = vadd.f32 %v535, %v3153
  %v3155 = vpop.f32.mrf.mxu0
  %v3156 = vadd.f32 %v535, %v3155
  %3157 = vmatmul.bf16.gmra.mxu0 %v2161
  %v3158 = vpop.f32.mrf.mxu0
  %v3159 = vadd.f32 %v535, %v3158
  %v3160 = vpop.f32.mrf.mxu0
  %v3161 = vadd.f32 %v535, %v3160
  %3162 = vmatmul.bf16.gmra.mxu0 %v2164
  %v3163 = vpop.f32.mrf.mxu0
  %v3164 = vadd.f32 %v535, %v3163
  %v3165 = vpop.f32.mrf.mxu0
  %v3166 = vadd.f32 %v535, %v3165
  %3167 = vmatmul.bf16.gmra.mxu0 %v2167
  %v3168 = vpop.f32.mrf.mxu0
  %v3169 = vadd.f32 %v535, %v3168
  %v3170 = vpop.f32.mrf.mxu0
  %v3171 = vadd.f32 %v535, %v3170
  %3172 = vmatmul.bf16.gmra.mxu0 %v2170
  %v3173 = vpop.f32.mrf.mxu0
  %v3174 = vadd.f32 %v535, %v3173
  %v3175 = vpop.f32.mrf.mxu0
  %v3176 = vadd.f32 %v535, %v3175
  %3177 = vmatmul.bf16.gmra.mxu0 %v2173
  %v3178 = vpop.f32.mrf.mxu0
  %v3179 = vadd.f32 %v535, %v3178
  %v3180 = vpop.f32.mrf.mxu0
  %v3181 = vadd.f32 %v535, %v3180
  %3182 = vmatmul.bf16.gmra.mxu0 %v2176
  %v3183 = vpop.f32.mrf.mxu0
  %v3184 = vadd.f32 %v535, %v3183
  %v3185 = vpop.f32.mrf.mxu0
  %v3186 = vadd.f32 %v535, %v3185
  %3187 = vmatmul.bf16.gmra.mxu0 %v2179
  %v3188 = vpop.f32.mrf.mxu0
  %v3189 = vpop.f32.mrf.mxu0
  %3190 = vmatmul.bf16.gmra.mxu0 %v2182
  %v3191 = vpop.f32.mrf.mxu0
  %v3192 = vadd.f32 %v535, %v3191
  %v3193 = vpop.f32.mrf.mxu0
  %v3194 = vadd.f32 %v535, %v3193
  %3195 = vmatmul.bf16.gmra.mxu0 %v2185
  %v3196 = vpop.f32.mrf.mxu0
  %v3197 = vadd.f32 %v535, %v3196
  %v3198 = vpop.f32.mrf.mxu0
  %v3199 = vadd.f32 %v535, %v3198
  %3200 = vmatmul.bf16.gmra.mxu0 %v2188
  %v3201 = vpop.f32.mrf.mxu0
  %v3202 = vadd.f32 %v535, %v3201
  %v3203 = vpop.f32.mrf.mxu0
  %v3204 = vadd.f32 %v535, %v3203
  %3205 = vmatmul.bf16.gmra.mxu0 %v2191
  %v3206 = vpop.f32.mrf.mxu0
  %v3207 = vadd.f32 %v535, %v3206
  %v3208 = vpop.f32.mrf.mxu0
  %v3209 = vadd.f32 %v535, %v3208
  %3210 = vmatmul.bf16.gmra.mxu0 %v2194
  %v3211 = vpop.f32.mrf.mxu0
  %v3212 = vadd.f32 %v535, %v3211
  %v3213 = vpop.f32.mrf.mxu0
  %v3214 = vadd.f32 %v535, %v3213
  %3215 = vmatmul.bf16.gmra.mxu0 %v2197
  %v3216 = vpop.f32.mrf.mxu0
  %v3217 = vadd.f32 %v535, %v3216
  %v3218 = vpop.f32.mrf.mxu0
  %v3219 = vadd.f32 %v535, %v3218
  %3220 = vmatmul.bf16.gmra.mxu0 %v2200
  %v3221 = vpop.f32.mrf.mxu0
  %v3222 = vadd.f32 %v535, %v3221
  %v3223 = vpop.f32.mrf.mxu0
  %v3224 = vadd.f32 %v535, %v3223
  %3225 = vmatmul.bf16.gmra.mxu0 %v2203
  %v3226 = vpop.f32.mrf.mxu0
  %v3227 = vadd.f32 %v535, %v3226
  %v3228 = vpop.f32.mrf.mxu0
  %v3229 = vadd.f32 %v535, %v3228
  %3230 = vmatmul.bf16.gmra.mxu0 %v2206
  %v3231 = vpop.f32.mrf.mxu0
  %v3232 = vadd.f32 %v535, %v3231
  %v3233 = vpop.f32.mrf.mxu0
  %v3234 = vadd.f32 %v535, %v3233
  %3235 = vmatmul.bf16.gmra.mxu0 %v2209
  %v3236 = vpop.f32.mrf.mxu0
  %v3237 = vadd.f32 %v535, %v3236
  %v3238 = vpop.f32.mrf.mxu0
  %v3239 = vadd.f32 %v535, %v3238
  %3240 = vmatmul.bf16.gmra.mxu0 %v2212
  %v3241 = vpop.f32.mrf.mxu0
  %v3242 = vadd.f32 %v535, %v3241
  %v3243 = vpop.f32.mrf.mxu0
  %v3244 = vadd.f32 %v535, %v3243
  %3245 = vmatmul.bf16.gmra.mxu0 %v2215
  %v3246 = vpop.f32.mrf.mxu0
  %v3247 = vadd.f32 %v535, %v3246
  %v3248 = vpop.f32.mrf.mxu0
  %v3249 = vadd.f32 %v535, %v3248
  %3250 = vmatmul.bf16.gmra.mxu0 %v2218
  %v3251 = vpop.f32.mrf.mxu0
  %v3252 = vadd.f32 %v535, %v3251
  %v3253 = vpop.f32.mrf.mxu0
  %v3254 = vadd.f32 %v535, %v3253
  %3255 = vmatmul.bf16.gmra.mxu0 %v2221
  %v3256 = vpop.f32.mrf.mxu0
  %v3257 = vadd.f32 %v535, %v3256
  %v3258 = vpop.f32.mrf.mxu0
  %v3259 = vadd.f32 %v535, %v3258
  %3260 = vmatmul.bf16.gmra.mxu0 %v2224
  %v3261 = vpop.f32.mrf.mxu0
  %v3262 = vadd.f32 %v535, %v3261
  %v3263 = vpop.f32.mrf.mxu0
  %v3264 = vadd.f32 %v535, %v3263
  %3265 = vmatmul.bf16.gmra.mxu0 %v2227
  %v3266 = vpop.f32.mrf.mxu0
  %v3267 = vadd.f32 %v535, %v3266
  %v3268 = vpop.f32.mrf.mxu0
  %v3269 = vadd.f32 %v535, %v3268
  %3270 = vmatmul.bf16.gmra.mxu0 %v2230
  %v3271 = vpop.f32.mrf.mxu0
  %v3272 = vadd.f32 %v535, %v3271
  %v3273 = vpop.f32.mrf.mxu0
  %v3274 = vadd.f32 %v535, %v3273
  %3275 = vmatmul.bf16.gmra.mxu0 %v2233
  %v3276 = vpop.f32.mrf.mxu0
  %v3277 = vadd.f32 %v535, %v3276
  %v3278 = vpop.f32.mrf.mxu0
  %v3279 = vadd.f32 %v535, %v3278
  %3280 = vmatmul.bf16.gmra.mxu0 %v2236
  %v3281 = vpop.f32.mrf.mxu0
  %v3282 = vadd.f32 %v535, %v3281
  %v3283 = vpop.f32.mrf.mxu0
  %v3284 = vadd.f32 %v535, %v3283
  %3285 = vmatmul.bf16.gmra.mxu0 %v2239
  %v3286 = vpop.f32.mrf.mxu0
  %v3287 = vadd.f32 %v535, %v3286
  %v3288 = vpop.f32.mrf.mxu0
  %v3289 = vadd.f32 %v535, %v3288
  %3290 = vmatmul.bf16.gmra.mxu0 %v2242
  %v3291 = vpop.f32.mrf.mxu0
  %v3292 = vadd.f32 %v535, %v3291
  %v3293 = vpop.f32.mrf.mxu0
  %v3294 = vadd.f32 %v535, %v3293
  %3295 = vmatmul.bf16.gmra.mxu0 %v2245
  %v3296 = vpop.f32.mrf.mxu0
  %v3297 = vadd.f32 %v535, %v3296
  %v3298 = vpop.f32.mrf.mxu0
  %v3299 = vadd.f32 %v535, %v3298
  %3300 = vmatmul.bf16.gmra.mxu0 %v2248
  %v3301 = vpop.f32.mrf.mxu0
  %v3302 = vadd.f32 %v535, %v3301
  %v3303 = vpop.f32.mrf.mxu0
  %v3304 = vadd.f32 %v535, %v3303
  %3305 = vmatmul.bf16.gmra.mxu0 %v2251
  %v3306 = vpop.f32.mrf.mxu0
  %v3307 = vadd.f32 %v535, %v3306
  %v3308 = vpop.f32.mrf.mxu0
  %v3309 = vadd.f32 %v535, %v3308
  %3310 = vmatmul.bf16.gmra.mxu0 %v2254
  %v3311 = vpop.f32.mrf.mxu0
  %v3312 = vadd.f32 %v535, %v3311
  %v3313 = vpop.f32.mrf.mxu0
  %v3314 = vadd.f32 %v535, %v3313
  %3315 = vmatmul.bf16.gmra.mxu0 %v2257
  %v3316 = vpop.f32.mrf.mxu0
  %v3317 = vadd.f32 %v535, %v3316
  %v3318 = vpop.f32.mrf.mxu0
  %v3319 = vadd.f32 %v535, %v3318
  %3320 = vmatmul.bf16.gmra.mxu0 %v2260
  %v3321 = vpop.f32.mrf.mxu0
  %v3322 = vadd.f32 %v535, %v3321
  %v3323 = vpop.f32.mrf.mxu0
  %v3324 = vadd.f32 %v535, %v3323
  %3325 = vmatmul.bf16.gmra.mxu0 %v2263
  %v3326 = vpop.f32.mrf.mxu0
  %v3327 = vadd.f32 %v535, %v3326
  %v3328 = vpop.f32.mrf.mxu0
  %v3329 = vadd.f32 %v535, %v3328
  %3330 = vmatmul.bf16.gmra.mxu0 %v2266
  %v3331 = vpop.f32.mrf.mxu0
  %v3332 = vadd.f32 %v535, %v3331
  %v3333 = vpop.f32.mrf.mxu0
  %v3334 = vadd.f32 %v535, %v3333
  %3335 = vmatmul.bf16.gmra.mxu0 %v2269
  %v3336 = vpop.f32.mrf.mxu0
  %v3337 = vadd.f32 %v535, %v3336
  %v3338 = vpop.f32.mrf.mxu0
  %v3339 = vadd.f32 %v535, %v3338
  %3340 = vmatmul.bf16.gmra.mxu0 %v2272
  %v3341 = vpop.f32.mrf.mxu0
  %v3342 = vadd.f32 %v535, %v3341
  %v3343 = vpop.f32.mrf.mxu0
  %v3344 = vadd.f32 %v535, %v3343
  %3345 = vmatmul.bf16.gmra.mxu0 %v2275
  %v3346 = vpop.f32.mrf.mxu0
  %v3347 = vadd.f32 %v535, %v3346
  %v3348 = vpop.f32.mrf.mxu0
  %v3349 = vadd.f32 %v535, %v3348
  %3350 = vmatmul.bf16.gmra.mxu0 %v2278
  %v3351 = vpop.f32.mrf.mxu0
  %v3352 = vadd.f32 %v535, %v3351
  %v3353 = vpop.f32.mrf.mxu0
  %v3354 = vadd.f32 %v535, %v3353
  %3355 = vmatmul.bf16.gmra.mxu0 %v2281
  %v3356 = vpop.f32.mrf.mxu0
  %v3357 = vadd.f32 %v535, %v3356
  %v3358 = vpop.f32.mrf.mxu0
  %v3359 = vadd.f32 %v535, %v3358
  %3360 = vmatmul.bf16.gmra.mxu0 %v2284
  %v3361 = vpop.f32.mrf.mxu0
  %v3362 = vadd.f32 %v535, %v3361
  %v3363 = vpop.f32.mrf.mxu0
  %v3364 = vadd.f32 %v535, %v3363
  %3365 = vmatmul.bf16.gmra.mxu0 %v2287
  %v3366 = vpop.f32.mrf.mxu0
  %v3367 = vadd.f32 %v535, %v3366
  %v3368 = vpop.f32.mrf.mxu0
  %v3369 = vadd.f32 %v535, %v3368
  %3370 = vmatmul.bf16.gmra.mxu0 %v2290
  %v3371 = vpop.f32.mrf.mxu0
  %v3372 = vadd.f32 %v535, %v3371
  %v3373 = vpop.f32.mrf.mxu0
  %v3374 = vadd.f32 %v535, %v3373
  %3375 = vmatmul.bf16.gmra.mxu0 %v2293
  %v3376 = vpop.f32.mrf.mxu0
  %v3377 = vadd.f32 %v535, %v3376
  %v3378 = vpop.f32.mrf.mxu0
  %v3379 = vadd.f32 %v535, %v3378
  %3380 = vmatmul.bf16.gmra.mxu0 %v2296
  %v3381 = vpop.f32.mrf.mxu0
  %v3382 = vadd.f32 %v535, %v3381
  %v3383 = vpop.f32.mrf.mxu0
  %v3384 = vadd.f32 %v535, %v3383
  %3385 = vmatmul.bf16.gmra.mxu0 %v2299
  %v3386 = vpop.f32.mrf.mxu0
  %v3387 = vadd.f32 %v535, %v3386
  %v3388 = vpop.f32.mrf.mxu0
  %v3389 = vadd.f32 %v535, %v3388
  %3390 = vmatmul.bf16.gmra.mxu0 %v2302
  %v3391 = vpop.f32.mrf.mxu0
  %v3392 = vadd.f32 %v535, %v3391
  %v3393 = vpop.f32.mrf.mxu0
  %v3394 = vadd.f32 %v535, %v3393
  %3395 = vmatmul.bf16.gmra.mxu0 %v2305
  %v3396 = vpop.f32.mrf.mxu0
  %v3397 = vadd.f32 %v535, %v3396
  %v3398 = vpop.f32.mrf.mxu0
  %v3399 = vadd.f32 %v535, %v3398
  %3400 = vmatmul.bf16.gmra.mxu0 %v2308
  %v3401 = vpop.f32.mrf.mxu0
  %v3402 = vadd.f32 %v535, %v3401
  %v3403 = vpop.f32.mrf.mxu0
  %v3404 = vadd.f32 %v535, %v3403
  %3405 = vmatmul.bf16.gmra.mxu0 %v2311
  %v3406 = vpop.f32.mrf.mxu0
  %v3407 = vadd.f32 %v535, %v3406
  %v3408 = vpop.f32.mrf.mxu0
  %v3409 = vadd.f32 %v535, %v3408
  %3410 = vmatmul.bf16.gmra.mxu0 %v2314
  %v3411 = vpop.f32.mrf.mxu0
  %v3412 = vadd.f32 %v535, %v3411
  %v3413 = vpop.f32.mrf.mxu0
  %v3414 = vadd.f32 %v535, %v3413
  %3415 = vmatmul.bf16.gmra.mxu0 %v2317
  %v3416 = vpop.f32.mrf.mxu0
  %v3417 = vadd.f32 %v535, %v3416
  %v3418 = vpop.f32.mrf.mxu0
  %v3419 = vadd.f32 %v535, %v3418
  %3420 = vmatmul.bf16.gmra.mxu0 %v2320
  %v3421 = vpop.f32.mrf.mxu0
  %v3422 = vadd.f32 %v535, %v3421
  %v3423 = vpop.f32.mrf.mxu0
  %v3424 = vadd.f32 %v535, %v3423
  %3425 = vmatmul.bf16.gmra.mxu0 %v2323
  %v3426 = vpop.f32.mrf.mxu0
  %v3427 = vadd.f32 %v535, %v3426
  %v3428 = vpop.f32.mrf.mxu0
  %v3429 = vadd.f32 %v535, %v3428
  %3430 = vmatmul.bf16.gmra.mxu0 %v2326
  %v3431 = vpop.f32.mrf.mxu0
  %v3432 = vadd.f32 %v535, %v3431
  %v3433 = vpop.f32.mrf.mxu0
  %v3434 = vadd.f32 %v535, %v3433
  %3435 = vmatmul.bf16.gmra.mxu0 %v2329
  %v3436 = vpop.f32.mrf.mxu0
  %v3437 = vadd.f32 %v535, %v3436
  %v3438 = vpop.f32.mrf.mxu0
  %v3439 = vadd.f32 %v535, %v3438
  %3440 = vmatmul.bf16.gmra.mxu0 %v2332
  %v3441 = vpop.f32.mrf.mxu0
  %v3442 = vadd.f32 %v535, %v3441
  %v3443 = vpop.f32.mrf.mxu0
  %v3444 = vadd.f32 %v535, %v3443
  %3445 = vmatmul.bf16.gmra.mxu0 %v2335
  %v3446 = vpop.f32.mrf.mxu0
  %v3447 = vadd.f32 %v535, %v3446
  %v3448 = vpop.f32.mrf.mxu0
  %v3449 = vadd.f32 %v535, %v3448
  %3450 = vmatmul.bf16.gmra.mxu0 %v2338
  %v3451 = vpop.f32.mrf.mxu0
  %v3452 = vadd.f32 %v535, %v3451
  %v3453 = vpop.f32.mrf.mxu0
  %v3454 = vadd.f32 %v535, %v3453
  %3455 = vmatmul.bf16.gmra.mxu0 %v2341
  %v3456 = vpop.f32.mrf.mxu0
  %v3457 = vadd.f32 %v535, %v3456
  %v3458 = vpop.f32.mrf.mxu0
  %v3459 = vadd.f32 %v535, %v3458
  %3460 = vmatmul.bf16.gmra.mxu0 %v2344
  %v3461 = vpop.f32.mrf.mxu0
  %v3462 = vpop.f32.mrf.mxu0
  %3463 = vmatmul.bf16.gmra.mxu0 %v2347
  %v3464 = vpop.f32.mrf.mxu0
  %v3465 = vpop.f32.mrf.mxu0
  %3466 = vmatmul.bf16.gmra.mxu0 %v2350
  %v3467 = vpop.f32.mrf.mxu0
  %v3468 = vpop.f32.mrf.mxu0
  %3469 = vmatmul.bf16.gmra.mxu0 %v2353
  %v3470 = vpop.f32.mrf.mxu0
  %v3471 = vpop.f32.mrf.mxu0
  %3472 = vmatmul.bf16.gmra.mxu0 %v2356
  %v3473 = vpop.f32.mrf.mxu0
  %v3474 = vpop.f32.mrf.mxu0
  %3475 = vmatmul.bf16.gmra.mxu0 %v2359
  %v3476 = vpop.f32.mrf.mxu0
  %v3477 = vpop.f32.mrf.mxu0
  %3478 = vmatmul.bf16.gmra.mxu0 %v2362
  %v3479 = vpop.f32.mrf.mxu0
  %v3480 = vpop.f32.mrf.mxu0
  %3481 = vmatmul.bf16.gmra.mxu0 %v2365
  %v3482 = vpop.f32.mrf.mxu0
  %v3483 = vpop.f32.mrf.mxu0
  %3484 = vmatmul.bf16.gmra.mxu0 %v2368
  %v3485 = vpop.f32.mrf.mxu0
  %v3486 = vpop.f32.mrf.mxu0
  %3487 = vmatmul.bf16.gmra.mxu0 %v2371
  %v3488 = vpop.f32.mrf.mxu0
  %v3489 = vadd.f32 %v535, %v3488
  %v3490 = vpop.f32.mrf.mxu0
  %v3491 = vadd.f32 %v535, %v3490
  %3492 = vmatmul.bf16.gmra.mxu0 %v2374
  %v3493 = vpop.f32.mrf.mxu0
  %v3494 = vadd.f32 %v535, %v3493
  %v3495 = vpop.f32.mrf.mxu0
  %v3496 = vadd.f32 %v535, %v3495
  %3497 = vmatmul.bf16.gmra.mxu0 %v2377
  %v3498 = vpop.f32.mrf.mxu0
  %v3499 = vadd.f32 %v535, %v3498
  %v3500 = vpop.f32.mrf.mxu0
  %v3501 = vadd.f32 %v535, %v3500
  %3502 = vmatmul.bf16.gmra.mxu0 %v2380
  %v3503 = vpop.f32.mrf.mxu0
  %v3504 = vadd.f32 %v535, %v3503
  %v3505 = vpop.f32.mrf.mxu0
  %v3506 = vadd.f32 %v535, %v3505
  %3507 = vmatmul.bf16.gmra.mxu0 %v2383
  %v3508 = vpop.f32.mrf.mxu0
  %v3509 = vadd.f32 %v535, %v3508
  %v3510 = vpop.f32.mrf.mxu0
  %v3511 = vadd.f32 %v535, %v3510
  %3512 = vmatmul.bf16.gmra.mxu0 %v2386
  %v3513 = vpop.f32.mrf.mxu0
  %v3514 = vadd.f32 %v535, %v3513
  %v3515 = vpop.f32.mrf.mxu0
  %v3516 = vadd.f32 %v535, %v3515
  %3517 = vmatmul.bf16.gmra.mxu0 %v2389
  %v3518 = vpop.f32.mrf.mxu0
  %v3519 = vadd.f32 %v535, %v3518
  %v3520 = vpop.f32.mrf.mxu0
  %v3521 = vadd.f32 %v535, %v3520
  %3522 = vmatmul.bf16.gmra.mxu0 %v2392
  %v3523 = vpop.f32.mrf.mxu0
  %v3524 = vadd.f32 %v535, %v3523
  %v3525 = vpop.f32.mrf.mxu0
  %v3526 = vadd.f32 %v535, %v3525
  %3527 = vmatmul.bf16.gmra.mxu0 %v2395
  %v3528 = vpop.f32.mrf.mxu0
  %v3529 = vpop.f32.mrf.mxu0
  %3530 = vmatmul.bf16.gmra.mxu0 %v2398
  %v3531 = vpop.f32.mrf.mxu0
  %v3532 = vadd.f32 %v535, %v3531
  %v3533 = vpop.f32.mrf.mxu0
  %v3534 = vadd.f32 %v535, %v3533
  %3535 = vmatmul.bf16.gmra.mxu0 %v2401
  %v3536 = vpop.f32.mrf.mxu0
  %v3537 = vadd.f32 %v535, %v3536
  %v3538 = vpop.f32.mrf.mxu0
  %v3539 = vadd.f32 %v535, %v3538
  %3540 = vmatmul.bf16.gmra.mxu0 %v2404
  %v3541 = vpop.f32.mrf.mxu0
  %v3542 = vadd.f32 %v535, %v3541
  %v3543 = vpop.f32.mrf.mxu0
  %v3544 = vadd.f32 %v535, %v3543
  %3545 = vmatmul.bf16.gmra.mxu0 %v2407
  %v3546 = vpop.f32.mrf.mxu0
  %v3547 = vadd.f32 %v535, %v3546
  %v3548 = vpop.f32.mrf.mxu0
  %v3549 = vadd.f32 %v535, %v3548
  %3550 = vmatmul.bf16.gmra.mxu0 %v2410
  %v3551 = vpop.f32.mrf.mxu0
  %v3552 = vadd.f32 %v535, %v3551
  %v3553 = vpop.f32.mrf.mxu0
  %v3554 = vadd.f32 %v535, %v3553
  %3555 = vmatmul.bf16.gmra.mxu0 %v2413
  %v3556 = vpop.f32.mrf.mxu0
  %v3557 = vadd.f32 %v535, %v3556
  %v3558 = vpop.f32.mrf.mxu0
  %v3559 = vadd.f32 %v535, %v3558
  %3560 = vmatmul.bf16.gmra.mxu0 %v2416
  %v3561 = vpop.f32.mrf.mxu0
  %v3562 = vadd.f32 %v535, %v3561
  %v3563 = vpop.f32.mrf.mxu0
  %v3564 = vadd.f32 %v535, %v3563
  %3565 = vmatmul.bf16.gmra.mxu0 %v2419
  %v3566 = vpop.f32.mrf.mxu0
  %v3567 = vadd.f32 %v535, %v3566
  %v3568 = vpop.f32.mrf.mxu0
  %v3569 = vadd.f32 %v535, %v3568
  %3570 = vmatmul.bf16.gmra.mxu0 %v2422
  %v3571 = vpop.f32.mrf.mxu0
  %v3572 = vpop.f32.mrf.mxu0
  %3573 = vmatmul.bf16.gmra.mxu0 %v2425
  %v3574 = vpop.f32.mrf.mxu0
  %v3575 = vadd.f32 %v535, %v3574
  %v3576 = vpop.f32.mrf.mxu0
  %v3577 = vadd.f32 %v535, %v3576
  %3578 = vmatmul.bf16.gmra.mxu0 %v2428
  %v3579 = vpop.f32.mrf.mxu0
  %v3580 = vadd.f32 %v535, %v3579
  %v3581 = vpop.f32.mrf.mxu0
  %v3582 = vadd.f32 %v535, %v3581
  %3583 = vmatmul.bf16.gmra.mxu0 %v2431
  %v3584 = vpop.f32.mrf.mxu0
  %v3585 = vadd.f32 %v535, %v3584
  %v3586 = vpop.f32.mrf.mxu0
  %v3587 = vadd.f32 %v535, %v3586
  %3588 = vmatmul.bf16.gmra.mxu0 %v2434
  %v3589 = vpop.f32.mrf.mxu0
  %v3590 = vadd.f32 %v535, %v3589
  %v3591 = vpop.f32.mrf.mxu0
  %v3592 = vadd.f32 %v535, %v3591
  %3593 = vmatmul.bf16.gmra.mxu0 %v2437
  %v3594 = vpop.f32.mrf.mxu0
  %v3595 = vadd.f32 %v535, %v3594
  %v3596 = vpop.f32.mrf.mxu0
  %v3597 = vadd.f32 %v535, %v3596
  %3598 = vmatmul.bf16.gmra.mxu0 %v2440
  %v3599 = vpop.f32.mrf.mxu0
  %v3600 = vadd.f32 %v535, %v3599
  %v3601 = vpop.f32.mrf.mxu0
  %v3602 = vadd.f32 %v535, %v3601
  %3603 = vmatmul.bf16.gmra.mxu0 %v2443
  %v3604 = vpop.f32.mrf.mxu0
  %v3605 = vadd.f32 %v535, %v3604
  %v3606 = vpop.f32.mrf.mxu0
  %v3607 = vadd.f32 %v535, %v3606
  %3608 = vmatmul.bf16.gmra.mxu0 %v2446
  %v3609 = vpop.f32.mrf.mxu0
  %v3610 = vadd.f32 %v535, %v3609
  %v3611 = vpop.f32.mrf.mxu0
  %v3612 = vadd.f32 %v535, %v3611
  %3613 = vmatmul.bf16.gmra.mxu0 %v2449
  %v3614 = vpop.f32.mrf.mxu0
  %v3615 = vpop.f32.mrf.mxu0
  %3616 = vmatmul.bf16.gmra.mxu0 %v2452
  %v3617 = vpop.f32.mrf.mxu0
  %v3618 = vadd.f32 %v535, %v3617
  %v3619 = vpop.f32.mrf.mxu0
  %v3620 = vadd.f32 %v535, %v3619
  %3621 = vmatmul.bf16.gmra.mxu0 %v2455
  %v3622 = vpop.f32.mrf.mxu0
  %v3623 = vadd.f32 %v535, %v3622
  %v3624 = vpop.f32.mrf.mxu0
  %v3625 = vadd.f32 %v535, %v3624
  %3626 = vmatmul.bf16.gmra.mxu0 %v2458
  %v3627 = vpop.f32.mrf.mxu0
  %v3628 = vadd.f32 %v535, %v3627
  %v3629 = vpop.f32.mrf.mxu0
  %v3630 = vadd.f32 %v535, %v3629
  %3631 = vmatmul.bf16.gmra.mxu0 %v2461
  %v3632 = vpop.f32.mrf.mxu0
  %v3633 = vadd.f32 %v535, %v3632
  %v3634 = vpop.f32.mrf.mxu0
  %v3635 = vadd.f32 %v535, %v3634
  %3636 = vmatmul.bf16.gmra.mxu0 %v2464
  %v3637 = vpop.f32.mrf.mxu0
  %v3638 = vadd.f32 %v535, %v3637
  %v3639 = vpop.f32.mrf.mxu0
  %v3640 = vadd.f32 %v535, %v3639
  %3641 = vmatmul.bf16.gmra.mxu0 %v2467
  %v3642 = vpop.f32.mrf.mxu0
  %v3643 = vadd.f32 %v535, %v3642
  %v3644 = vpop.f32.mrf.mxu0
  %v3645 = vadd.f32 %v535, %v3644
  %3646 = vmatmul.bf16.gmra.mxu0 %v2470
  %v3647 = vpop.f32.mrf.mxu0
  %v3648 = vadd.f32 %v535, %v3647
  %v3649 = vpop.f32.mrf.mxu0
  %v3650 = vadd.f32 %v535, %v3649
  %3651 = vmatmul.bf16.gmra.mxu0 %v2473
  %v3652 = vpop.f32.mrf.mxu0
  %v3653 = vadd.f32 %v535, %v3652
  %v3654 = vpop.f32.mrf.mxu0
  %v3655 = vadd.f32 %v535, %v3654
  %3656 = vmatmul.bf16.gmra.mxu0 %v2476
  %v3657 = vpop.f32.mrf.mxu0
  %v3658 = vpop.f32.mrf.mxu0
  %3659 = vmatmul.bf16.gmra.mxu0 %v2479
  %v3660 = vpop.f32.mrf.mxu0
  %v3661 = vadd.f32 %v535, %v3660
  %v3662 = vpop.f32.mrf.mxu0
  %v3663 = vadd.f32 %v535, %v3662
  %3664 = vmatmul.bf16.gmra.mxu0 %v2482
  %v3665 = vpop.f32.mrf.mxu0
  %v3666 = vadd.f32 %v535, %v3665
  %v3667 = vpop.f32.mrf.mxu0
  %v3668 = vadd.f32 %v535, %v3667
  %3669 = vmatmul.bf16.gmra.mxu0 %v2485
  %v3670 = vpop.f32.mrf.mxu0
  %v3671 = vadd.f32 %v535, %v3670
  %v3672 = vpop.f32.mrf.mxu0
  %v3673 = vadd.f32 %v535, %v3672
  %3674 = vmatmul.bf16.gmra.mxu0 %v2488
  %v3675 = vpop.f32.mrf.mxu0
  %v3676 = vadd.f32 %v535, %v3675
  %v3677 = vpop.f32.mrf.mxu0
  %v3678 = vadd.f32 %v535, %v3677
  %3679 = vmatmul.bf16.gmra.mxu0 %v2491
  %v3680 = vpop.f32.mrf.mxu0
  %v3681 = vadd.f32 %v535, %v3680
  %v3682 = vpop.f32.mrf.mxu0
  %v3683 = vadd.f32 %v535, %v3682
  %3684 = vmatmul.bf16.gmra.mxu0 %v2494
  %v3685 = vpop.f32.mrf.mxu0
  %v3686 = vadd.f32 %v535, %v3685
  %v3687 = vpop.f32.mrf.mxu0
  %v3688 = vadd.f32 %v535, %v3687
  %3689 = vmatmul.bf16.gmra.mxu0 %v2497
  %v3690 = vpop.f32.mrf.mxu0
  %v3691 = vadd.f32 %v535, %v3690
  %v3692 = vpop.f32.mrf.mxu0
  %v3693 = vadd.f32 %v535, %v3692
  %3694 = vmatmul.bf16.gmra.mxu0 %v2500
  %v3695 = vpop.f32.mrf.mxu0
  %v3696 = vadd.f32 %v535, %v3695
  %v3697 = vpop.f32.mrf.mxu0
  %v3698 = vadd.f32 %v535, %v3697
  %3699 = vmatmul.bf16.gmra.mxu0 %v2503
  %v3700 = vpop.f32.mrf.mxu0
  %v3701 = vpop.f32.mrf.mxu0
  %3702 = vmatmul.bf16.gmra.mxu0 %v2506
  %v3703 = vpop.f32.mrf.mxu0
  %v3704 = vadd.f32 %v535, %v3703
  %v3705 = vpop.f32.mrf.mxu0
  %v3706 = vadd.f32 %v535, %v3705
  %3707 = vmatmul.bf16.gmra.mxu0 %v2509
  %v3708 = vpop.f32.mrf.mxu0
  %v3709 = vadd.f32 %v535, %v3708
  %v3710 = vpop.f32.mrf.mxu0
  %v3711 = vadd.f32 %v535, %v3710
  %3712 = vmatmul.bf16.gmra.mxu0 %v2512
  %v3713 = vpop.f32.mrf.mxu0
  %v3714 = vadd.f32 %v535, %v3713
  %v3715 = vpop.f32.mrf.mxu0
  %v3716 = vadd.f32 %v535, %v3715
  %3717 = vmatmul.bf16.gmra.mxu0 %v2515
  %v3718 = vpop.f32.mrf.mxu0
  %v3719 = vadd.f32 %v535, %v3718
  %v3720 = vpop.f32.mrf.mxu0
  %v3721 = vadd.f32 %v535, %v3720
  %3722 = vmatmul.bf16.gmra.mxu0 %v2518
  %v3723 = vpop.f32.mrf.mxu0
  %v3724 = vadd.f32 %v535, %v3723
  %v3725 = vpop.f32.mrf.mxu0
  %v3726 = vadd.f32 %v535, %v3725
  %3727 = vmatmul.bf16.gmra.mxu0 %v2521
  %v3728 = vpop.f32.mrf.mxu0
  %v3729 = vadd.f32 %v535, %v3728
  %v3730 = vpop.f32.mrf.mxu0
  %v3731 = vadd.f32 %v535, %v3730
  %3732 = vmatmul.bf16.gmra.mxu0 %v2524
  %v3733 = vpop.f32.mrf.mxu0
  %v3734 = vadd.f32 %v535, %v3733
  %v3735 = vpop.f32.mrf.mxu0
  %v3736 = vadd.f32 %v535, %v3735
  %3737 = vmatmul.bf16.gmra.mxu0 %v2527
  %v3738 = vpop.f32.mrf.mxu0
  %v3739 = vadd.f32 %v535, %v3738
  %v3740 = vpop.f32.mrf.mxu0
  %v3741 = vadd.f32 %v535, %v3740
  %3742 = vmatmul.bf16.gmra.mxu0 %v2530
  %v3743 = vpop.f32.mrf.mxu0
  %v3744 = vpop.f32.mrf.mxu0
  %3745 = vmatmul.bf16.gmra.mxu0 %v2533
  %v3746 = vpop.f32.mrf.mxu0
  %v3747 = vpop.f32.mrf.mxu0
  %3748 = vmatmul.bf16.gmra.mxu0 %v2536
  %v3749 = vpop.f32.mrf.mxu0
  %v3750 = vpop.f32.mrf.mxu0
  %3751 = vmatmul.bf16.gmra.mxu0 %v2539
  %v3752 = vpop.f32.mrf.mxu0
  %v3753 = vpop.f32.mrf.mxu0
  %3754 = vmatmul.bf16.gmra.mxu0 %v2542
  %v3755 = vpop.f32.mrf.mxu0
  %v3756 = vpop.f32.mrf.mxu0
  %3757 = vmatmul.bf16.gmra.mxu0 %v2545
  %v3758 = vpop.f32.mrf.mxu0
  %v3759 = vpop.f32.mrf.mxu0
  %3760 = vmatmul.bf16.gmra.mxu0 %v2548
  %v3761 = vpop.f32.mrf.mxu0
  %v3762 = vpop.f32.mrf.mxu0
  %3763 = vmatmul.bf16.gmra.mxu0 %v2551
  %v3764 = vpop.f32.mrf.mxu0
  %v3765 = vpop.f32.mrf.mxu0
  %3766 = vmatmul.bf16.gmra.mxu0 %v2554
  %v3767 = vpop.f32.mrf.mxu0
  %v3768 = vpop.f32.mrf.mxu0
  %3769 = vmatmul.bf16.gmra.mxu0 %v2557
  %v3770 = vpop.f32.mrf.mxu0
  %v3771 = vpop.f32.mrf.mxu0
  %3772 = vdwg.mxu0
  %v3773 = vmax.f32 %v2576, 0.0
  %v3774 = vmax.f32 %v2578, 0.0
  %v3775 = vmax.f32 %v2581, 0.0
  %v3776 = vmax.f32 %v2583, 0.0
  %v3777 = vmax.f32 %v2586, 0.0
  %v3778 = vmax.f32 %v2588, 0.0
  %v3779 = vmax.f32 %v2591, 0.0
  %v3780 = vmax.f32 %v2593, 0.0
  %v3781 = vmax.f32 %v2596, 0.0
  %v3782 = vmax.f32 %v2598, 0.0
  %v3783 = vmax.f32 %v2601, 0.0
  %v3784 = vmax.f32 %v2603, 0.0
  %v3785 = vmax.f32 %v2606, 0.0
  %v3786 = vmax.f32 %v2608, 0.0
  %v3787 = vmax.f32 %v2611, 0.0
  %v3788 = vmax.f32 %v2613, 0.0
  %v3789 = vmax.f32 %v2616, 0.0
  %v3790 = vmax.f32 %v2618, 0.0
  %v3791 = vmax.f32 %v2621, 0.0
  %v3792 = vmax.f32 %v2623, 0.0
  %v3793 = vmax.f32 %v2626, 0.0
  %v3794 = vmax.f32 %v2628, 0.0
  %v3795 = vmax.f32 %v2631, 0.0
  %v3796 = vmax.f32 %v2633, 0.0
  %v3797 = vmax.f32 %v2636, 0.0
  %v3798 = vmax.f32 %v2638, 0.0
  %v3799 = vmax.f32 %v2641, 0.0
  %v3800 = vmax.f32 %v2643, 0.0
  %v3801 = vmax.f32 %v2646, 0.0
  %v3802 = vmax.f32 %v2648, 0.0
  %v3803 = vmax.f32 %v2651, 0.0
  %v3804 = vmax.f32 %v2653, 0.0
  %v3805 = vmax.f32 %v2656, 0.0
  %v3806 = vmax.f32 %v2658, 0.0
  %v3807 = vmax.f32 %v2661, 0.0
  %v3808 = vmax.f32 %v2663, 0.0
  %v3809 = vmax.f32 %v2666, 0.0
  %v3810 = vmax.f32 %v2668, 0.0
  %v3811 = vmax.f32 %v2671, 0.0
  %v3812 = vmax.f32 %v2673, 0.0
  %v3813 = vmax.f32 %v2676, 0.0
  %v3814 = vmax.f32 %v2678, 0.0
  %v3815 = vmax.f32 %v2681, 0.0
  %v3816 = vmax.f32 %v2683, 0.0
  %v3817 = vmax.f32 %v2686, 0.0
  %v3818 = vmax.f32 %v2688, 0.0
  %v3819 = vmax.f32 %v2691, 0.0
  %v3820 = vmax.f32 %v2693, 0.0
  %v3821 = vmax.f32 %v2696, 0.0
  %v3822 = vmax.f32 %v2698, 0.0
  %v3823 = vmax.f32 %v2701, 0.0
  %v3824 = vmax.f32 %v2703, 0.0
  %v3825 = vmax.f32 %v2706, 0.0
  %v3826 = vmax.f32 %v2708, 0.0
  %v3827 = vmax.f32 %v2711, 0.0
  %v3828 = vmax.f32 %v2713, 0.0
  %v3829 = vmax.f32 %v2716, 0.0
  %v3830 = vmax.f32 %v2718, 0.0
  %v3831 = vmax.f32 %v2721, 0.0
  %v3832 = vmax.f32 %v2723, 0.0
  %v3833 = vmax.f32 %v2726, 0.0
  %v3834 = vmax.f32 %v2728, 0.0
  %v3835 = vmax.f32 %v2731, 0.0
  %v3836 = vmax.f32 %v2733, 0.0
  %v3837 = vmax.f32 %v2736, 0.0
  %v3838 = vmax.f32 %v2738, 0.0
  %v3839 = vmax.f32 %v2741, 0.0
  %v3840 = vmax.f32 %v2743, 0.0
  %v3841 = vmax.f32 %v2746, 0.0
  %v3842 = vmax.f32 %v2748, 0.0
  %v3843 = vmax.f32 %v2751, 0.0
  %v3844 = vmax.f32 %v2753, 0.0
  %v3845 = vmax.f32 %v2756, 0.0
  %v3846 = vmax.f32 %v2758, 0.0
  %v3847 = vmax.f32 %v2761, 0.0
  %v3848 = vmax.f32 %v2763, 0.0
  %v3849 = vmax.f32 %v2766, 0.0
  %v3850 = vmax.f32 %v2768, 0.0
  %v3851 = vmax.f32 %v2771, 0.0
  %v3852 = vmax.f32 %v2773, 0.0
  %v3853 = vmax.f32 %v2776, 0.0
  %v3854 = vmax.f32 %v2778, 0.0
  %v3855 = vmax.f32 %v2781, 0.0
  %v3856 = vmax.f32 %v2783, 0.0
  %v3857 = vmax.f32 %v2786, 0.0
  %v3858 = vmax.f32 %v2788, 0.0
  %v3859 = vmax.f32 %v2791, 0.0
  %v3860 = vmax.f32 %v2793, 0.0
  %v3861 = vmax.f32 %v2796, 0.0
  %v3862 = vmax.f32 %v2798, 0.0
  %v3863 = vmax.f32 %v2801, 0.0
  %v3864 = vmax.f32 %v2803, 0.0
  %v3865 = vmax.f32 %v2806, 0.0
  %v3866 = vmax.f32 %v2808, 0.0
  %v3867 = vmax.f32 %v2811, 0.0
  %v3868 = vmax.f32 %v2813, 0.0
  %v3869 = vmax.f32 %v2816, 0.0
  %v3870 = vmax.f32 %v2818, 0.0
  %v3871 = vmax.f32 %v2821, 0.0
  %v3872 = vmax.f32 %v2823, 0.0
  %v3873 = vmax.f32 %v2826, 0.0
  %v3874 = vmax.f32 %v2828, 0.0
  %v3875 = vmax.f32 %v2831, 0.0
  %v3876 = vmax.f32 %v2833, 0.0
  %v3877 = vmax.f32 %v2836, 0.0
  %v3878 = vmax.f32 %v2838, 0.0
  %v3879 = vmax.f32 %v2841, 0.0
  %v3880 = vmax.f32 %v2843, 0.0
  %v3881 = vmax.f32 %v2846, 0.0
  %v3882 = vmax.f32 %v2848, 0.0
  %v3883 = vmax.f32 %v2851, 0.0
  %v3884 = vmax.f32 %v2853, 0.0
  %v3885 = vmax.f32 %v2856, 0.0
  %v3886 = vmax.f32 %v2858, 0.0
  %v3887 = vmax.f32 %v2861, 0.0
  %v3888 = vmax.f32 %v2863, 0.0
  %v3889 = vmax.f32 %v2866, 0.0
  %v3890 = vmax.f32 %v2868, 0.0
  %v3891 = vmax.f32 %v2871, 0.0
  %v3892 = vmax.f32 %v2873, 0.0
  %v3893 = vmax.f32 %v2876, 0.0
  %v3894 = vmax.f32 %v2878, 0.0
  %v3895 = vmax.f32 %v2881, 0.0
  %v3896 = vmax.f32 %v2883, 0.0
  %v3897 = vmax.f32 %v2886, 0.0
  %v3898 = vmax.f32 %v2888, 0.0
  %v3899 = vmax.f32 %v2891, 0.0
  %v3900 = vmax.f32 %v2893, 0.0
  %v3901 = vmax.f32 %v2896, 0.0
  %v3902 = vmax.f32 %v2898, 0.0
  %v3903 = vmax.f32 %v2901, 0.0
  %v3904 = vmax.f32 %v2903, 0.0
  %v3905 = vmax.f32 %v2906, 0.0
  %v3906 = vmax.f32 %v2908, 0.0
  %v3907 = vmax.f32 %v2911, 0.0
  %v3908 = vmax.f32 %v2913, 0.0
  %v3909 = vmax.f32 %v2916, 0.0
  %v3910 = vmax.f32 %v2918, 0.0
  %v3911 = vmax.f32 %v2921, 0.0
  %v3912 = vmax.f32 %v2923, 0.0
  %v3913 = vmax.f32 %v2926, 0.0
  %v3914 = vmax.f32 %v2928, 0.0
  %v3915 = vmax.f32 %v2934, 0.0
  %v3916 = vmax.f32 %v2936, 0.0
  %v3917 = vmax.f32 %v2939, 0.0
  %v3918 = vmax.f32 %v2941, 0.0
  %v3919 = vmax.f32 %v2944, 0.0
  %v3920 = vmax.f32 %v2946, 0.0
  %v3921 = vmax.f32 %v2949, 0.0
  %v3922 = vmax.f32 %v2951, 0.0
  %v3923 = vmax.f32 %v2954, 0.0
  %v3924 = vmax.f32 %v2956, 0.0
  %v3925 = vmax.f32 %v2959, 0.0
  %v3926 = vmax.f32 %v2961, 0.0
  %v3927 = vmax.f32 %v2964, 0.0
  %v3928 = vmax.f32 %v2966, 0.0
  %v3929 = vmax.f32 %v2969, 0.0
  %v3930 = vmax.f32 %v2971, 0.0
  %v3931 = vmax.f32 %v2977, 0.0
  %v3932 = vmax.f32 %v2979, 0.0
  %v3933 = vmax.f32 %v2982, 0.0
  %v3934 = vmax.f32 %v2984, 0.0
  %v3935 = vmax.f32 %v2987, 0.0
  %v3936 = vmax.f32 %v2989, 0.0
  %v3937 = vmax.f32 %v2992, 0.0
  %v3938 = vmax.f32 %v2994, 0.0
  %v3939 = vmax.f32 %v2997, 0.0
  %v3940 = vmax.f32 %v2999, 0.0
  %v3941 = vmax.f32 %v3002, 0.0
  %v3942 = vmax.f32 %v3004, 0.0
  %v3943 = vmax.f32 %v3007, 0.0
  %v3944 = vmax.f32 %v3009, 0.0
  %v3945 = vmax.f32 %v3012, 0.0
  %v3946 = vmax.f32 %v3014, 0.0
  %v3947 = vmax.f32 %v3020, 0.0
  %v3948 = vmax.f32 %v3022, 0.0
  %v3949 = vmax.f32 %v3025, 0.0
  %v3950 = vmax.f32 %v3027, 0.0
  %v3951 = vmax.f32 %v3030, 0.0
  %v3952 = vmax.f32 %v3032, 0.0
  %v3953 = vmax.f32 %v3035, 0.0
  %v3954 = vmax.f32 %v3037, 0.0
  %v3955 = vmax.f32 %v3040, 0.0
  %v3956 = vmax.f32 %v3042, 0.0
  %v3957 = vmax.f32 %v3045, 0.0
  %v3958 = vmax.f32 %v3047, 0.0
  %v3959 = vmax.f32 %v3050, 0.0
  %v3960 = vmax.f32 %v3052, 0.0
  %v3961 = vmax.f32 %v3055, 0.0
  %v3962 = vmax.f32 %v3057, 0.0
  %v3963 = vmax.f32 %v3063, 0.0
  %v3964 = vmax.f32 %v3065, 0.0
  %v3965 = vmax.f32 %v3068, 0.0
  %v3966 = vmax.f32 %v3070, 0.0
  %v3967 = vmax.f32 %v3073, 0.0
  %v3968 = vmax.f32 %v3075, 0.0
  %v3969 = vmax.f32 %v3078, 0.0
  %v3970 = vmax.f32 %v3080, 0.0
  %v3971 = vmax.f32 %v3083, 0.0
  %v3972 = vmax.f32 %v3085, 0.0
  %v3973 = vmax.f32 %v3088, 0.0
  %v3974 = vmax.f32 %v3090, 0.0
  %v3975 = vmax.f32 %v3093, 0.0
  %v3976 = vmax.f32 %v3095, 0.0
  %v3977 = vmax.f32 %v3098, 0.0
  %v3978 = vmax.f32 %v3100, 0.0
  %v3979 = vmax.f32 %v3106, 0.0
  %v3980 = vmax.f32 %v3108, 0.0
  %v3981 = vmax.f32 %v3111, 0.0
  %v3982 = vmax.f32 %v3113, 0.0
  %v3983 = vmax.f32 %v3116, 0.0
  %v3984 = vmax.f32 %v3118, 0.0
  %v3985 = vmax.f32 %v3121, 0.0
  %v3986 = vmax.f32 %v3123, 0.0
  %v3987 = vmax.f32 %v3126, 0.0
  %v3988 = vmax.f32 %v3128, 0.0
  %v3989 = vmax.f32 %v3131, 0.0
  %v3990 = vmax.f32 %v3133, 0.0
  %v3991 = vmax.f32 %v3136, 0.0
  %v3992 = vmax.f32 %v3138, 0.0
  %v3993 = vmax.f32 %v3141, 0.0
  %v3994 = vmax.f32 %v3143, 0.0
  %v3995 = vmax.f32 %v3149, 0.0
  %v3996 = vmax.f32 %v3151, 0.0
  %v3997 = vmax.f32 %v3154, 0.0
  %v3998 = vmax.f32 %v3156, 0.0
  %v3999 = vmax.f32 %v3159, 0.0
  %v4000 = vmax.f32 %v3161, 0.0
  %v4001 = vmax.f32 %v3164, 0.0
  %v4002 = vmax.f32 %v3166, 0.0
  %v4003 = vmax.f32 %v3169, 0.0
  %v4004 = vmax.f32 %v3171, 0.0
  %v4005 = vmax.f32 %v3174, 0.0
  %v4006 = vmax.f32 %v3176, 0.0
  %v4007 = vmax.f32 %v3179, 0.0
  %v4008 = vmax.f32 %v3181, 0.0
  %v4009 = vmax.f32 %v3184, 0.0
  %v4010 = vmax.f32 %v3186, 0.0
  %v4011 = vmax.f32 %v3192, 0.0
  %v4012 = vmax.f32 %v3194, 0.0
  %v4013 = vmax.f32 %v3197, 0.0
  %v4014 = vmax.f32 %v3199, 0.0
  %v4015 = vmax.f32 %v3202, 0.0
  %v4016 = vmax.f32 %v3204, 0.0
  %v4017 = vmax.f32 %v3207, 0.0
  %v4018 = vmax.f32 %v3209, 0.0
  %v4019 = vmax.f32 %v3212, 0.0
  %v4020 = vmax.f32 %v3214, 0.0
  %v4021 = vmax.f32 %v3217, 0.0
  %v4022 = vmax.f32 %v3219, 0.0
  %v4023 = vmax.f32 %v3222, 0.0
  %v4024 = vmax.f32 %v3224, 0.0
  %v4025 = vmax.f32 %v3227, 0.0
  %v4026 = vmax.f32 %v3229, 0.0
  %v4027 = vmax.f32 %v3232, 0.0
  %v4028 = vmax.f32 %v3234, 0.0
  %v4029 = vmax.f32 %v3237, 0.0
  %v4030 = vmax.f32 %v3239, 0.0
  %v4031 = vmax.f32 %v3242, 0.0
  %v4032 = vmax.f32 %v3244, 0.0
  %v4033 = vmax.f32 %v3247, 0.0
  %v4034 = vmax.f32 %v3249, 0.0
  %v4035 = vmax.f32 %v3252, 0.0
  %v4036 = vmax.f32 %v3254, 0.0
  %v4037 = vmax.f32 %v3257, 0.0
  %v4038 = vmax.f32 %v3259, 0.0
  %v4039 = vmax.f32 %v3262, 0.0
  %v4040 = vmax.f32 %v3264, 0.0
  %v4041 = vmax.f32 %v3267, 0.0
  %v4042 = vmax.f32 %v3269, 0.0
  %v4043 = vmax.f32 %v3272, 0.0
  %v4044 = vmax.f32 %v3274, 0.0
  %v4045 = vmax.f32 %v3277, 0.0
  %v4046 = vmax.f32 %v3279, 0.0
  %v4047 = vmax.f32 %v3282, 0.0
  %v4048 = vmax.f32 %v3284, 0.0
  %v4049 = vmax.f32 %v3287, 0.0
  %v4050 = vmax.f32 %v3289, 0.0
  %v4051 = vmax.f32 %v3292, 0.0
  %v4052 = vmax.f32 %v3294, 0.0
  %v4053 = vmax.f32 %v3297, 0.0
  %v4054 = vmax.f32 %v3299, 0.0
  %v4055 = vmax.f32 %v3302, 0.0
  %v4056 = vmax.f32 %v3304, 0.0
  %v4057 = vmax.f32 %v3307, 0.0
  %v4058 = vmax.f32 %v3309, 0.0
  %v4059 = vmax.f32 %v3312, 0.0
  %v4060 = vmax.f32 %v3314, 0.0
  %v4061 = vmax.f32 %v3317, 0.0
  %v4062 = vmax.f32 %v3319, 0.0
  %v4063 = vmax.f32 %v3322, 0.0
  %v4064 = vmax.f32 %v3324, 0.0
  %v4065 = vmax.f32 %v3327, 0.0
  %v4066 = vmax.f32 %v3329, 0.0
  %v4067 = vmax.f32 %v3332, 0.0
  %v4068 = vmax.f32 %v3334, 0.0
  %v4069 = vmax.f32 %v3337, 0.0
  %v4070 = vmax.f32 %v3339, 0.0
  %v4071 = vmax.f32 %v3342, 0.0
  %v4072 = vmax.f32 %v3344, 0.0
  %v4073 = vmax.f32 %v3347, 0.0
  %v4074 = vmax.f32 %v3349, 0.0
  %v4075 = vmax.f32 %v3352, 0.0
  %v4076 = vmax.f32 %v3354, 0.0
  %v4077 = vmax.f32 %v3357, 0.0
  %v4078 = vmax.f32 %v3359, 0.0
  %v4079 = vmax.f32 %v3362, 0.0
  %v4080 = vmax.f32 %v3364, 0.0
  %v4081 = vmax.f32 %v3367, 0.0
  %v4082 = vmax.f32 %v3369, 0.0
  %v4083 = vmax.f32 %v3372, 0.0
  %v4084 = vmax.f32 %v3374, 0.0
  %v4085 = vmax.f32 %v3377, 0.0
  %v4086 = vmax.f32 %v3379, 0.0
  %v4087 = vmax.f32 %v3382, 0.0
  %v4088 = vmax.f32 %v3384, 0.0
  %v4089 = vmax.f32 %v3387, 0.0
  %v4090 = vmax.f32 %v3389, 0.0
  %v4091 = vmax.f32 %v3392, 0.0
  %v4092 = vmax.f32 %v3394, 0.0
  %v4093 = vmax.f32 %v3397, 0.0
  %v4094 = vmax.f32 %v3399, 0.0
  %v4095 = vmax.f32 %v3402, 0.0
  %v4096 = vmax.f32 %v3404, 0.0
  %v4097 = vmax.f32 %v3407, 0.0
  %v4098 = vmax.f32 %v3409, 0.0
  %v4099 = vmax.f32 %v3412, 0.0
  %v4100 = vmax.f32 %v3414, 0.0
  %v4101 = vmax.f32 %v3417, 0.0
  %v4102 = vmax.f32 %v3419, 0.0
  %v4103 = vmax.f32 %v3422, 0.0
  %v4104 = vmax.f32 %v3424, 0.0
  %v4105 = vmax.f32 %v3427, 0.0
  %v4106 = vmax.f32 %v3429, 0.0
  %v4107 = vmax.f32 %v3432, 0.0
  %v4108 = vmax.f32 %v3434, 0.0
  %v4109 = vmax.f32 %v3437, 0.0
  %v4110 = vmax.f32 %v3439, 0.0
  %v4111 = vmax.f32 %v3442, 0.0
  %v4112 = vmax.f32 %v3444, 0.0
  %v4113 = vmax.f32 %v3447, 0.0
  %v4114 = vmax.f32 %v3449, 0.0
  %v4115 = vmax.f32 %v3452, 0.0
  %v4116 = vmax.f32 %v3454, 0.0
  %v4117 = vmax.f32 %v3457, 0.0
  %v4118 = vmax.f32 %v3459, 0.0
  %v4119 = vmax.f32 %v3489, 0.0
  %v4120 = vmax.f32 %v3491, 0.0
  %v4121 = vmax.f32 %v3494, 0.0
  %v4122 = vmax.f32 %v3496, 0.0
  %v4123 = vmax.f32 %v3499, 0.0
  %v4124 = vmax.f32 %v3501, 0.0
  %v4125 = vmax.f32 %v3504, 0.0
  %v4126 = vmax.f32 %v3506, 0.0
  %v4127 = vmax.f32 %v3509, 0.0
  %v4128 = vmax.f32 %v3511, 0.0
  %v4129 = vmax.f32 %v3514, 0.0
  %v4130 = vmax.f32 %v3516, 0.0
  %v4131 = vmax.f32 %v3519, 0.0
  %v4132 = vmax.f32 %v3521, 0.0
  %v4133 = vmax.f32 %v3524, 0.0
  %v4134 = vmax.f32 %v3526, 0.0
  %v4135 = vmax.f32 %v3532, 0.0
  %v4136 = vmax.f32 %v3534, 0.0
  %v4137 = vmax.f32 %v3537, 0.0
  %v4138 = vmax.f32 %v3539, 0.0
  %v4139 = vmax.f32 %v3542, 0.0
  %v4140 = vmax.f32 %v3544, 0.0
  %v4141 = vmax.f32 %v3547, 0.0
  %v4142 = vmax.f32 %v3549, 0.0
  %v4143 = vmax.f32 %v3552, 0.0
  %v4144 = vmax.f32 %v3554, 0.0
  %v4145 = vmax.f32 %v3557, 0.0
  %v4146 = vmax.f32 %v3559, 0.0
  %v4147 = vmax.f32 %v3562, 0.0
  %v4148 = vmax.f32 %v3564, 0.0
  %v4149 = vmax.f32 %v3567, 0.0
  %v4150 = vmax.f32 %v3569, 0.0
  %v4151 = vmax.f32 %v3575, 0.0
  %v4152 = vmax.f32 %v3577, 0.0
  %v4153 = vmax.f32 %v3580, 0.0
  %v4154 = vmax.f32 %v3582, 0.0
  %v4155 = vmax.f32 %v3585, 0.0
  %v4156 = vmax.f32 %v3587, 0.0
  %v4157 = vmax.f32 %v3590, 0.0
  %v4158 = vmax.f32 %v3592, 0.0
  %v4159 = vmax.f32 %v3595, 0.0
  %v4160 = vmax.f32 %v3597, 0.0
  %v4161 = vmax.f32 %v3600, 0.0
  %v4162 = vmax.f32 %v3602, 0.0
  %v4163 = vmax.f32 %v3605, 0.0
  %v4164 = vmax.f32 %v3607, 0.0
  %v4165 = vmax.f32 %v3610, 0.0
  %v4166 = vmax.f32 %v3612, 0.0
  %v4167 = vmax.f32 %v3618, 0.0
  %v4168 = vmax.f32 %v3620, 0.0
  %v4169 = vmax.f32 %v3623, 0.0
  %v4170 = vmax.f32 %v3625, 0.0
  %v4171 = vmax.f32 %v3628, 0.0
  %v4172 = vmax.f32 %v3630, 0.0
  %v4173 = vmax.f32 %v3633, 0.0
  %v4174 = vmax.f32 %v3635, 0.0
  %v4175 = vmax.f32 %v3638, 0.0
  %v4176 = vmax.f32 %v3640, 0.0
  %v4177 = vmax.f32 %v3643, 0.0
  %v4178 = vmax.f32 %v3645, 0.0
  %v4179 = vmax.f32 %v3648, 0.0
  %v4180 = vmax.f32 %v3650, 0.0
  %v4181 = vmax.f32 %v3653, 0.0
  %v4182 = vmax.f32 %v3655, 0.0
  %v4183 = vmax.f32 %v3661, 0.0
  %v4184 = vmax.f32 %v3663, 0.0
  %v4185 = vmax.f32 %v3666, 0.0
  %v4186 = vmax.f32 %v3668, 0.0
  %v4187 = vmax.f32 %v3671, 0.0
  %v4188 = vmax.f32 %v3673, 0.0
  %v4189 = vmax.f32 %v3676, 0.0
  %v4190 = vmax.f32 %v3678, 0.0
  %v4191 = vmax.f32 %v3681, 0.0
  %v4192 = vmax.f32 %v3683, 0.0
  %v4193 = vmax.f32 %v3686, 0.0
  %v4194 = vmax.f32 %v3688, 0.0
  %v4195 = vmax.f32 %v3691, 0.0
  %v4196 = vmax.f32 %v3693, 0.0
  %v4197 = vmax.f32 %v3696, 0.0
  %v4198 = vmax.f32 %v3698, 0.0
  %v4199 = vmax.f32 %v3704, 0.0
  %v4200 = vmax.f32 %v3706, 0.0
  %v4201 = vmax.f32 %v3709, 0.0
  %v4202 = vmax.f32 %v3711, 0.0
  %v4203 = vmax.f32 %v3714, 0.0
  %v4204 = vmax.f32 %v3716, 0.0
  %v4205 = vmax.f32 %v3719, 0.0
  %v4206 = vmax.f32 %v3721, 0.0
  %v4207 = vmax.f32 %v3724, 0.0
  %v4208 = vmax.f32 %v3726, 0.0
  %v4209 = vmax.f32 %v3729, 0.0
  %v4210 = vmax.f32 %v3731, 0.0
  %v4211 = vmax.f32 %v3734, 0.0
  %v4212 = vmax.f32 %v3736, 0.0
  %v4213 = vmax.f32 %v3739, 0.0
  %v4214 = vmax.f32 %v3741, 0.0
  %v4215 = vpack.c.bf16 %v3773, %v3773
  %v4216 = vpack.c.bf16 %v3774, %v3774
  %v4217 = vpack.c.bf16 %v3775, %v3775
  %v4218 = vpack.c.bf16 %v3776, %v3776
  %v4219 = vpack.c.bf16 %v3777, %v3777
  %v4220 = vpack.c.bf16 %v3778, %v3778
  %v4221 = vpack.c.bf16 %v3779, %v3779
  %v4222 = vpack.c.bf16 %v3780, %v3780
  %v4223 = vpack.c.bf16 %v3781, %v3781
  %v4224 = vpack.c.bf16 %v3782, %v3782
  %v4225 = vpack.c.bf16 %v3783, %v3783
  %v4226 = vpack.c.bf16 %v3784, %v3784
  %v4227 = vpack.c.bf16 %v3785, %v3785
  %v4228 = vpack.c.bf16 %v3786, %v3786
  %v4229 = vpack.c.bf16 %v3787, %v3787
  %v4230 = vpack.c.bf16 %v3788, %v3788
  %v4231 = vpack.c.bf16 %v3789, %v3789
  %v4232 = vpack.c.bf16 %v3790, %v3790
  %v4233 = vpack.c.bf16 %v3791, %v3791
  %v4234 = vpack.c.bf16 %v3792, %v3792
  %v4235 = vpack.c.bf16 %v3793, %v3793
  %v4236 = vpack.c.bf16 %v3794, %v3794
  %v4237 = vpack.c.bf16 %v3795, %v3795
  %v4238 = vpack.c.bf16 %v3796, %v3796
  %v4239 = vpack.c.bf16 %v3797, %v3797
  %v4240 = vpack.c.bf16 %v3798, %v3798
  %v4241 = vpack.c.bf16 %v3799, %v3799
  %v4242 = vpack.c.bf16 %v3800, %v3800
  %v4243 = vpack.c.bf16 %v3801, %v3801
  %v4244 = vpack.c.bf16 %v3802, %v3802
  %v4245 = vpack.c.bf16 %v3803, %v3803
  %v4246 = vpack.c.bf16 %v3804, %v3804
  %v4247 = vpack.c.bf16 %v3805, %v3805
  %v4248 = vpack.c.bf16 %v3806, %v3806
  %v4249 = vpack.c.bf16 %v3807, %v3807
  %v4250 = vpack.c.bf16 %v3808, %v3808
  %v4251 = vpack.c.bf16 %v3809, %v3809
  %v4252 = vpack.c.bf16 %v3810, %v3810
  %v4253 = vpack.c.bf16 %v3811, %v3811
  %v4254 = vpack.c.bf16 %v3812, %v3812
  %v4255 = vpack.c.bf16 %v3813, %v3813
  %v4256 = vpack.c.bf16 %v3814, %v3814
  %v4257 = vpack.c.bf16 %v3815, %v3815
  %v4258 = vpack.c.bf16 %v3816, %v3816
  %v4259 = vpack.c.bf16 %v3817, %v3817
  %v4260 = vpack.c.bf16 %v3818, %v3818
  %v4261 = vpack.c.bf16 %v3819, %v3819
  %v4262 = vpack.c.bf16 %v3820, %v3820
  %v4263 = vpack.c.bf16 %v3821, %v3821
  %v4264 = vpack.c.bf16 %v3822, %v3822
  %v4265 = vpack.c.bf16 %v3823, %v3823
  %v4266 = vpack.c.bf16 %v3824, %v3824
  %v4267 = vpack.c.bf16 %v3825, %v3825
  %v4268 = vpack.c.bf16 %v3826, %v3826
  %v4269 = vpack.c.bf16 %v3827, %v3827
  %v4270 = vpack.c.bf16 %v3828, %v3828
  %v4271 = vpack.c.bf16 %v3829, %v3829
  %v4272 = vpack.c.bf16 %v3830, %v3830
  %v4273 = vpack.c.bf16 %v3831, %v3831
  %v4274 = vpack.c.bf16 %v3832, %v3832
  %v4275 = vpack.c.bf16 %v3833, %v3833
  %v4276 = vpack.c.bf16 %v3834, %v3834
  %v4277 = vpack.c.bf16 %v3835, %v3835
  %v4278 = vpack.c.bf16 %v3836, %v3836
  %v4279 = vpack.c.bf16 %v3837, %v3837
  %v4280 = vpack.c.bf16 %v3838, %v3838
  %v4281 = vpack.c.bf16 %v3839, %v3839
  %v4282 = vpack.c.bf16 %v3840, %v3840
  %v4283 = vpack.c.bf16 %v3841, %v3841
  %v4284 = vpack.c.bf16 %v3842, %v3842
  %v4285 = vpack.c.bf16 %v3843, %v3843
  %v4286 = vpack.c.bf16 %v3844, %v3844
  %v4287 = vpack.c.bf16 %v3845, %v3845
  %v4288 = vpack.c.bf16 %v3846, %v3846
  %v4289 = vpack.c.bf16 %v3847, %v3847
  %v4290 = vpack.c.bf16 %v3848, %v3848
  %v4291 = vpack.c.bf16 %v3849, %v3849
  %v4292 = vpack.c.bf16 %v3850, %v3850
  %v4293 = vpack.c.bf16 %v3851, %v3851
  %v4294 = vpack.c.bf16 %v3852, %v3852
  %v4295 = vpack.c.bf16 %v3853, %v3853
  %v4296 = vpack.c.bf16 %v3854, %v3854
  %v4297 = vpack.c.bf16 %v3855, %v3855
  %v4298 = vpack.c.bf16 %v3856, %v3856
  %v4299 = vpack.c.bf16 %v3857, %v3857
  %v4300 = vpack.c.bf16 %v3858, %v3858
  %v4301 = vpack.c.bf16 %v3859, %v3859
  %v4302 = vpack.c.bf16 %v3860, %v3860
  %v4303 = vpack.c.bf16 %v3861, %v3861
  %v4304 = vpack.c.bf16 %v3862, %v3862
  %v4305 = vpack.c.bf16 %v3863, %v3863
  %v4306 = vpack.c.bf16 %v3864, %v3864
  %v4307 = vpack.c.bf16 %v3865, %v3865
  %v4308 = vpack.c.bf16 %v3866, %v3866
  %v4309 = vpack.c.bf16 %v3867, %v3867
  %v4310 = vpack.c.bf16 %v3868, %v3868
  %v4311 = vpack.c.bf16 %v3869, %v3869
  %v4312 = vpack.c.bf16 %v3870, %v3870
  %v4313 = vpack.c.bf16 %v3871, %v3871
  %v4314 = vpack.c.bf16 %v3872, %v3872
  %v4315 = vpack.c.bf16 %v3873, %v3873
  %v4316 = vpack.c.bf16 %v3874, %v3874
  %v4317 = vpack.c.bf16 %v3875, %v3875
  %v4318 = vpack.c.bf16 %v3876, %v3876
  %v4319 = vpack.c.bf16 %v3877, %v3877
  %v4320 = vpack.c.bf16 %v3878, %v3878
  %v4321 = vpack.c.bf16 %v3879, %v3879
  %v4322 = vpack.c.bf16 %v3880, %v3880
  %v4323 = vpack.c.bf16 %v3881, %v3881
  %v4324 = vpack.c.bf16 %v3882, %v3882
  %v4325 = vpack.c.bf16 %v3883, %v3883
  %v4326 = vpack.c.bf16 %v3884, %v3884
  %v4327 = vpack.c.bf16 %v3885, %v3885
  %v4328 = vpack.c.bf16 %v3886, %v3886
  %v4329 = vpack.c.bf16 %v3887, %v3887
  %v4330 = vpack.c.bf16 %v3888, %v3888
  %v4331 = vpack.c.bf16 %v3889, %v3889
  %v4332 = vpack.c.bf16 %v3890, %v3890
  %v4333 = vpack.c.bf16 %v3891, %v3891
  %v4334 = vpack.c.bf16 %v3892, %v3892
  %v4335 = vpack.c.bf16 %v3893, %v3893
  %v4336 = vpack.c.bf16 %v3894, %v3894
  %v4337 = vpack.c.bf16 %v3895, %v3895
  %v4338 = vpack.c.bf16 %v3896, %v3896
  %v4339 = vpack.c.bf16 %v3897, %v3897
  %v4340 = vpack.c.bf16 %v3898, %v3898
  %v4341 = vpack.c.bf16 %v3899, %v3899
  %v4342 = vpack.c.bf16 %v3900, %v3900
  %v4343 = vpack.c.bf16 %v3901, %v3901
  %v4344 = vpack.c.bf16 %v3902, %v3902
  %v4345 = vpack.c.bf16 %v3903, %v3903
  %v4346 = vpack.c.bf16 %v3904, %v3904
  %v4347 = vpack.c.bf16 %v3905, %v3905
  %v4348 = vpack.c.bf16 %v3906, %v3906
  %v4349 = vpack.c.bf16 %v3907, %v3907
  %v4350 = vpack.c.bf16 %v3908, %v3908
  %v4351 = vpack.c.bf16 %v3909, %v3909
  %v4352 = vpack.c.bf16 %v3910, %v3910
  %v4353 = vpack.c.bf16 %v3911, %v3911
  %v4354 = vpack.c.bf16 %v3912, %v3912
  %v4355 = vpack.c.bf16 %v3913, %v3913
  %v4356 = vpack.c.bf16 %v3914, %v3914
  %v4357 = vpack.c.bf16 %v3915, %v3915
  %v4358 = vpack.c.bf16 %v3916, %v3916
  %v4359 = vpack.c.bf16 %v3917, %v3917
  %v4360 = vpack.c.bf16 %v3918, %v3918
  %v4361 = vpack.c.bf16 %v3919, %v3919
  %v4362 = vpack.c.bf16 %v3920, %v3920
  %v4363 = vpack.c.bf16 %v3921, %v3921
  %v4364 = vpack.c.bf16 %v3922, %v3922
  %v4365 = vpack.c.bf16 %v3923, %v3923
  %v4366 = vpack.c.bf16 %v3924, %v3924
  %v4367 = vpack.c.bf16 %v3925, %v3925
  %v4368 = vpack.c.bf16 %v3926, %v3926
  %v4369 = vpack.c.bf16 %v3927, %v3927
  %v4370 = vpack.c.bf16 %v3928, %v3928
  %v4371 = vpack.c.bf16 %v3929, %v3929
  %v4372 = vpack.c.bf16 %v3930, %v3930
  %v4373 = vpack.c.bf16 %v3931, %v3931
  %v4374 = vpack.c.bf16 %v3932, %v3932
  %v4375 = vpack.c.bf16 %v3933, %v3933
  %v4376 = vpack.c.bf16 %v3934, %v3934
  %v4377 = vpack.c.bf16 %v3935, %v3935
  %v4378 = vpack.c.bf16 %v3936, %v3936
  %v4379 = vpack.c.bf16 %v3937, %v3937
  %v4380 = vpack.c.bf16 %v3938, %v3938
  %v4381 = vpack.c.bf16 %v3939, %v3939
  %v4382 = vpack.c.bf16 %v3940, %v3940
  %v4383 = vpack.c.bf16 %v3941, %v3941
  %v4384 = vpack.c.bf16 %v3942, %v3942
  %v4385 = vpack.c.bf16 %v3943, %v3943
  %v4386 = vpack.c.bf16 %v3944, %v3944
  %v4387 = vpack.c.bf16 %v3945, %v3945
  %v4388 = vpack.c.bf16 %v3946, %v3946
  %v4389 = vpack.c.bf16 %v3947, %v3947
  %v4390 = vpack.c.bf16 %v3948, %v3948
  %v4391 = vpack.c.bf16 %v3949, %v3949
  %v4392 = vpack.c.bf16 %v3950, %v3950
  %v4393 = vpack.c.bf16 %v3951, %v3951
  %v4394 = vpack.c.bf16 %v3952, %v3952
  %v4395 = vpack.c.bf16 %v3953, %v3953
  %v4396 = vpack.c.bf16 %v3954, %v3954
  %v4397 = vpack.c.bf16 %v3955, %v3955
  %v4398 = vpack.c.bf16 %v3956, %v3956
  %v4399 = vpack.c.bf16 %v3957, %v3957
  %v4400 = vpack.c.bf16 %v3958, %v3958
  %v4401 = vpack.c.bf16 %v3959, %v3959
  %v4402 = vpack.c.bf16 %v3960, %v3960
  %v4403 = vpack.c.bf16 %v3961, %v3961
  %v4404 = vpack.c.bf16 %v3962, %v3962
  %v4405 = vpack.c.bf16 %v3963, %v3963
  %v4406 = vpack.c.bf16 %v3964, %v3964
  %v4407 = vpack.c.bf16 %v3965, %v3965
  %v4408 = vpack.c.bf16 %v3966, %v3966
  %v4409 = vpack.c.bf16 %v3967, %v3967
  %v4410 = vpack.c.bf16 %v3968, %v3968
  %v4411 = vpack.c.bf16 %v3969, %v3969
  %v4412 = vpack.c.bf16 %v3970, %v3970
  %v4413 = vpack.c.bf16 %v3971, %v3971
  %v4414 = vpack.c.bf16 %v3972, %v3972
  %v4415 = vpack.c.bf16 %v3973, %v3973
  %v4416 = vpack.c.bf16 %v3974, %v3974
  %v4417 = vpack.c.bf16 %v3975, %v3975
  %v4418 = vpack.c.bf16 %v3976, %v3976
  %v4419 = vpack.c.bf16 %v3977, %v3977
  %v4420 = vpack.c.bf16 %v3978, %v3978
  %v4421 = vpack.c.bf16 %v3979, %v3979
  %v4422 = vpack.c.bf16 %v3980, %v3980
  %v4423 = vpack.c.bf16 %v3981, %v3981
  %v4424 = vpack.c.bf16 %v3982, %v3982
  %v4425 = vpack.c.bf16 %v3983, %v3983
  %v4426 = vpack.c.bf16 %v3984, %v3984
  %v4427 = vpack.c.bf16 %v3985, %v3985
  %v4428 = vpack.c.bf16 %v3986, %v3986
  %v4429 = vpack.c.bf16 %v3987, %v3987
  %v4430 = vpack.c.bf16 %v3988, %v3988
  %v4431 = vpack.c.bf16 %v3989, %v3989
  %v4432 = vpack.c.bf16 %v3990, %v3990
  %v4433 = vpack.c.bf16 %v3991, %v3991
  %v4434 = vpack.c.bf16 %v3992, %v3992
  %v4435 = vpack.c.bf16 %v3993, %v3993
  %v4436 = vpack.c.bf16 %v3994, %v3994
  %v4437 = vpack.c.bf16 %v3995, %v3995
  %v4438 = vpack.c.bf16 %v3996, %v3996
  %v4439 = vpack.c.bf16 %v3997, %v3997
  %v4440 = vpack.c.bf16 %v3998, %v3998
  %v4441 = vpack.c.bf16 %v3999, %v3999
  %v4442 = vpack.c.bf16 %v4000, %v4000
  %v4443 = vpack.c.bf16 %v4001, %v4001
  %v4444 = vpack.c.bf16 %v4002, %v4002
  %v4445 = vpack.c.bf16 %v4003, %v4003
  %v4446 = vpack.c.bf16 %v4004, %v4004
  %v4447 = vpack.c.bf16 %v4005, %v4005
  %v4448 = vpack.c.bf16 %v4006, %v4006
  %v4449 = vpack.c.bf16 %v4007, %v4007
  %v4450 = vpack.c.bf16 %v4008, %v4008
  %v4451 = vpack.c.bf16 %v4009, %v4009
  %v4452 = vpack.c.bf16 %v4010, %v4010
  %v4453 = vpack.c.bf16 %v4011, %v4011
  %v4454 = vpack.c.bf16 %v4012, %v4012
  %v4455 = vpack.c.bf16 %v4013, %v4013
  %v4456 = vpack.c.bf16 %v4014, %v4014
  %v4457 = vpack.c.bf16 %v4015, %v4015
  %v4458 = vpack.c.bf16 %v4016, %v4016
  %v4459 = vpack.c.bf16 %v4017, %v4017
  %v4460 = vpack.c.bf16 %v4018, %v4018
  %v4461 = vpack.c.bf16 %v4019, %v4019
  %v4462 = vpack.c.bf16 %v4020, %v4020
  %v4463 = vpack.c.bf16 %v4021, %v4021
  %v4464 = vpack.c.bf16 %v4022, %v4022
  %v4465 = vpack.c.bf16 %v4023, %v4023
  %v4466 = vpack.c.bf16 %v4024, %v4024
  %v4467 = vpack.c.bf16 %v4025, %v4025
  %v4468 = vpack.c.bf16 %v4026, %v4026
  %v4469 = vpack.c.bf16 %v4027, %v4027
  %v4470 = vpack.c.bf16 %v4028, %v4028
  %v4471 = vpack.c.bf16 %v4029, %v4029
  %v4472 = vpack.c.bf16 %v4030, %v4030
  %v4473 = vpack.c.bf16 %v4031, %v4031
  %v4474 = vpack.c.bf16 %v4032, %v4032
  %v4475 = vpack.c.bf16 %v4033, %v4033
  %v4476 = vpack.c.bf16 %v4034, %v4034
  %v4477 = vpack.c.bf16 %v4035, %v4035
  %v4478 = vpack.c.bf16 %v4036, %v4036
  %v4479 = vpack.c.bf16 %v4037, %v4037
  %v4480 = vpack.c.bf16 %v4038, %v4038
  %v4481 = vpack.c.bf16 %v4039, %v4039
  %v4482 = vpack.c.bf16 %v4040, %v4040
  %v4483 = vpack.c.bf16 %v4041, %v4041
  %v4484 = vpack.c.bf16 %v4042, %v4042
  %v4485 = vpack.c.bf16 %v4043, %v4043
  %v4486 = vpack.c.bf16 %v4044, %v4044
  %v4487 = vpack.c.bf16 %v4045, %v4045
  %v4488 = vpack.c.bf16 %v4046, %v4046
  %v4489 = vpack.c.bf16 %v4047, %v4047
  %v4490 = vpack.c.bf16 %v4048, %v4048
  %v4491 = vpack.c.bf16 %v4049, %v4049
  %v4492 = vpack.c.bf16 %v4050, %v4050
  %v4493 = vpack.c.bf16 %v4051, %v4051
  %v4494 = vpack.c.bf16 %v4052, %v4052
  %v4495 = vpack.c.bf16 %v4053, %v4053
  %v4496 = vpack.c.bf16 %v4054, %v4054
  %v4497 = vpack.c.bf16 %v4055, %v4055
  %v4498 = vpack.c.bf16 %v4056, %v4056
  %v4499 = vpack.c.bf16 %v4057, %v4057
  %v4500 = vpack.c.bf16 %v4058, %v4058
  %v4501 = vpack.c.bf16 %v4059, %v4059
  %v4502 = vpack.c.bf16 %v4060, %v4060
  %v4503 = vpack.c.bf16 %v4061, %v4061
  %v4504 = vpack.c.bf16 %v4062, %v4062
  %v4505 = vpack.c.bf16 %v4063, %v4063
  %v4506 = vpack.c.bf16 %v4064, %v4064
  %v4507 = vpack.c.bf16 %v4065, %v4065
  %v4508 = vpack.c.bf16 %v4066, %v4066
  %v4509 = vpack.c.bf16 %v4067, %v4067
  %v4510 = vpack.c.bf16 %v4068, %v4068
  %v4511 = vpack.c.bf16 %v4069, %v4069
  %v4512 = vpack.c.bf16 %v4070, %v4070
  %v4513 = vpack.c.bf16 %v4071, %v4071
  %v4514 = vpack.c.bf16 %v4072, %v4072
  %v4515 = vpack.c.bf16 %v4073, %v4073
  %v4516 = vpack.c.bf16 %v4074, %v4074
  %v4517 = vpack.c.bf16 %v4075, %v4075
  %v4518 = vpack.c.bf16 %v4076, %v4076
  %v4519 = vpack.c.bf16 %v4077, %v4077
  %v4520 = vpack.c.bf16 %v4078, %v4078
  %v4521 = vpack.c.bf16 %v4079, %v4079
  %v4522 = vpack.c.bf16 %v4080, %v4080
  %v4523 = vpack.c.bf16 %v4081, %v4081
  %v4524 = vpack.c.bf16 %v4082, %v4082
  %v4525 = vpack.c.bf16 %v4083, %v4083
  %v4526 = vpack.c.bf16 %v4084, %v4084
  %v4527 = vpack.c.bf16 %v4085, %v4085
  %v4528 = vpack.c.bf16 %v4086, %v4086
  %v4529 = vpack.c.bf16 %v4087, %v4087
  %v4530 = vpack.c.bf16 %v4088, %v4088
  %v4531 = vpack.c.bf16 %v4089, %v4089
  %v4532 = vpack.c.bf16 %v4090, %v4090
  %v4533 = vpack.c.bf16 %v4091, %v4091
  %v4534 = vpack.c.bf16 %v4092, %v4092
  %v4535 = vpack.c.bf16 %v4093, %v4093
  %v4536 = vpack.c.bf16 %v4094, %v4094
  %v4537 = vpack.c.bf16 %v4095, %v4095
  %v4538 = vpack.c.bf16 %v4096, %v4096
  %v4539 = vpack.c.bf16 %v4097, %v4097
  %v4540 = vpack.c.bf16 %v4098, %v4098
  %v4541 = vpack.c.bf16 %v4099, %v4099
  %v4542 = vpack.c.bf16 %v4100, %v4100
  %v4543 = vpack.c.bf16 %v4101, %v4101
  %v4544 = vpack.c.bf16 %v4102, %v4102
  %v4545 = vpack.c.bf16 %v4103, %v4103
  %v4546 = vpack.c.bf16 %v4104, %v4104
  %v4547 = vpack.c.bf16 %v4105, %v4105
  %v4548 = vpack.c.bf16 %v4106, %v4106
  %v4549 = vpack.c.bf16 %v4107, %v4107
  %v4550 = vpack.c.bf16 %v4108, %v4108
  %v4551 = vpack.c.bf16 %v4109, %v4109
  %v4552 = vpack.c.bf16 %v4110, %v4110
  %v4553 = vpack.c.bf16 %v4111, %v4111
  %v4554 = vpack.c.bf16 %v4112, %v4112
  %v4555 = vpack.c.bf16 %v4113, %v4113
  %v4556 = vpack.c.bf16 %v4114, %v4114
  %v4557 = vpack.c.bf16 %v4115, %v4115
  %v4558 = vpack.c.bf16 %v4116, %v4116
  %v4559 = vpack.c.bf16 %v4117, %v4117
  %v4560 = vpack.c.bf16 %v4118, %v4118
  %v4561 = vpack.c.bf16 %v4119, %v4119
  %v4562 = vpack.c.bf16 %v4120, %v4120
  %v4563 = vpack.c.bf16 %v4121, %v4121
  %v4564 = vpack.c.bf16 %v4122, %v4122
  %v4565 = vpack.c.bf16 %v4123, %v4123
  %v4566 = vpack.c.bf16 %v4124, %v4124
  %v4567 = vpack.c.bf16 %v4125, %v4125
  %v4568 = vpack.c.bf16 %v4126, %v4126
  %v4569 = vpack.c.bf16 %v4127, %v4127
  %v4570 = vpack.c.bf16 %v4128, %v4128
  %v4571 = vpack.c.bf16 %v4129, %v4129
  %v4572 = vpack.c.bf16 %v4130, %v4130
  %v4573 = vpack.c.bf16 %v4131, %v4131
  %v4574 = vpack.c.bf16 %v4132, %v4132
  %v4575 = vpack.c.bf16 %v4133, %v4133
  %v4576 = vpack.c.bf16 %v4134, %v4134
  %v4577 = vpack.c.bf16 %v4135, %v4135
  %v4578 = vpack.c.bf16 %v4136, %v4136
  %v4579 = vpack.c.bf16 %v4137, %v4137
  %v4580 = vpack.c.bf16 %v4138, %v4138
  %v4581 = vpack.c.bf16 %v4139, %v4139
  %v4582 = vpack.c.bf16 %v4140, %v4140
  %v4583 = vpack.c.bf16 %v4141, %v4141
  %v4584 = vpack.c.bf16 %v4142, %v4142
  %v4585 = vpack.c.bf16 %v4143, %v4143
  %v4586 = vpack.c.bf16 %v4144, %v4144
  %v4587 = vpack.c.bf16 %v4145, %v4145
  %v4588 = vpack.c.bf16 %v4146, %v4146
  %v4589 = vpack.c.bf16 %v4147, %v4147
  %v4590 = vpack.c.bf16 %v4148, %v4148
  %v4591 = vpack.c.bf16 %v4149, %v4149
  %v4592 = vpack.c.bf16 %v4150, %v4150
  %v4593 = vpack.c.bf16 %v4151, %v4151
  %v4594 = vpack.c.bf16 %v4152, %v4152
  %v4595 = vpack.c.bf16 %v4153, %v4153
  %v4596 = vpack.c.bf16 %v4154, %v4154
  %v4597 = vpack.c.bf16 %v4155, %v4155
  %v4598 = vpack.c.bf16 %v4156, %v4156
  %v4599 = vpack.c.bf16 %v4157, %v4157
  %v4600 = vpack.c.bf16 %v4158, %v4158
  %v4601 = vpack.c.bf16 %v4159, %v4159
  %v4602 = vpack.c.bf16 %v4160, %v4160
  %v4603 = vpack.c.bf16 %v4161, %v4161
  %v4604 = vpack.c.bf16 %v4162, %v4162
  %v4605 = vpack.c.bf16 %v4163, %v4163
  %v4606 = vpack.c.bf16 %v4164, %v4164
  %v4607 = vpack.c.bf16 %v4165, %v4165
  %v4608 = vpack.c.bf16 %v4166, %v4166
  %v4609 = vpack.c.bf16 %v4167, %v4167
  %v4610 = vpack.c.bf16 %v4168, %v4168
  %v4611 = vpack.c.bf16 %v4169, %v4169
  %v4612 = vpack.c.bf16 %v4170, %v4170
  %v4613 = vpack.c.bf16 %v4171, %v4171
  %v4614 = vpack.c.bf16 %v4172, %v4172
  %v4615 = vpack.c.bf16 %v4173, %v4173
  %v4616 = vpack.c.bf16 %v4174, %v4174
  %v4617 = vpack.c.bf16 %v4175, %v4175
  %v4618 = vpack.c.bf16 %v4176, %v4176
  %v4619 = vpack.c.bf16 %v4177, %v4177
  %v4620 = vpack.c.bf16 %v4178, %v4178
  %v4621 = vpack.c.bf16 %v4179, %v4179
  %v4622 = vpack.c.bf16 %v4180, %v4180
  %v4623 = vpack.c.bf16 %v4181, %v4181
  %v4624 = vpack.c.bf16 %v4182, %v4182
  %v4625 = vpack.c.bf16 %v4183, %v4183
  %v4626 = vpack.c.bf16 %v4184, %v4184
  %v4627 = vpack.c.bf16 %v4185, %v4185
  %v4628 = vpack.c.bf16 %v4186, %v4186
  %v4629 = vpack.c.bf16 %v4187, %v4187
  %v4630 = vpack.c.bf16 %v4188, %v4188
  %v4631 = vpack.c.bf16 %v4189, %v4189
  %v4632 = vpack.c.bf16 %v4190, %v4190
  %v4633 = vpack.c.bf16 %v4191, %v4191
  %v4634 = vpack.c.bf16 %v4192, %v4192
  %v4635 = vpack.c.bf16 %v4193, %v4193
  %v4636 = vpack.c.bf16 %v4194, %v4194
  %v4637 = vpack.c.bf16 %v4195, %v4195
  %v4638 = vpack.c.bf16 %v4196, %v4196
  %v4639 = vpack.c.bf16 %v4197, %v4197
  %v4640 = vpack.c.bf16 %v4198, %v4198
  %v4641 = vpack.c.bf16 %v4199, %v4199
  %v4642 = vpack.c.bf16 %v4200, %v4200
  %v4643 = vpack.c.bf16 %v4201, %v4201
  %v4644 = vpack.c.bf16 %v4202, %v4202
  %v4645 = vpack.c.bf16 %v4203, %v4203
  %v4646 = vpack.c.bf16 %v4204, %v4204
  %v4647 = vpack.c.bf16 %v4205, %v4205
  %v4648 = vpack.c.bf16 %v4206, %v4206
  %v4649 = vpack.c.bf16 %v4207, %v4207
  %v4650 = vpack.c.bf16 %v4208, %v4208
  %v4651 = vpack.c.bf16 %v4209, %v4209
  %v4652 = vpack.c.bf16 %v4210, %v4210
  %v4653 = vpack.c.bf16 %v4211, %v4211
  %v4654 = vpack.c.bf16 %v4212, %v4212
  %v4655 = vpack.c.bf16 %v4213, %v4213
  %v4656 = vpack.c.bf16 %v4214, %v4214
  %v4657 = vld [vmem:[%s3] sm:$0xf]
  %v4658 = vld [vmem:[%s3 + $0x4] sm:$0x1]
  %s4659 = scalar_lea.vmem %s3, 8
  %v4660 = vld [vmem:[%s4659] sm:$0xf]
  %v4661 = vld [vmem:[%s4659 + $0x4] sm:$0x1]
  %v4758 = vunpack.c.l.b16 %v4341
  %v4759 = vunpack.c.l.b16 %v4342
  %v4760 = vunpack.c.l.b16 %v4343
  %v4761 = vunpack.c.l.b16 %v4344
  %v4762 = vunpack.c.l.b16 %v4345
  %v4763 = vunpack.c.l.b16 %v4346
  %v4764 = vunpack.c.l.b16 %v4347
  %v4765 = vunpack.c.l.b16 %v4348
  %v4766 = vunpack.c.l.b16 %v4349
  %v4767 = vunpack.c.l.b16 %v4350
  %v4768 = vunpack.c.l.b16 %v4351
  %v4769 = vunpack.c.l.b16 %v4352
  %v4770 = vunpack.c.l.b16 %v4353
  %v4771 = vunpack.c.l.b16 %v4354
  %v4772 = vunpack.c.l.b16 %v4355
  %v4773 = vunpack.c.l.b16 %v4356
  %v4774 = vunpack.c.l.b16 %v4357
  %v4775 = vunpack.c.l.b16 %v4358
  %v4776 = vunpack.c.l.b16 %v4359
  %v4777 = vunpack.c.l.b16 %v4360
  %v4778 = vunpack.c.l.b16 %v4361
  %v4779 = vunpack.c.l.b16 %v4362
  %v4780 = vunpack.c.l.b16 %v4363
  %v4781 = vunpack.c.l.b16 %v4364
  %v4782 = vunpack.c.l.b16 %v4365
  %v4783 = vunpack.c.l.b16 %v4366
  %v4784 = vunpack.c.l.b16 %v4367
  %v4785 = vunpack.c.l.b16 %v4368
  %v4786 = vunpack.c.l.b16 %v4369
  %v4787 = vunpack.c.l.b16 %v4370
  %v4788 = vunpack.c.l.b16 %v4371
  %v4789 = vunpack.c.l.b16 %v4372
  %v4790 = vunpack.c.l.b16 %v4373
  %v4791 = vunpack.c.l.b16 %v4374
  %v4792 = vunpack.c.l.b16 %v4375
  %v4793 = vunpack.c.l.b16 %v4376
  %v4794 = vunpack.c.l.b16 %v4377
  %v4795 = vunpack.c.l.b16 %v4378
  %v4796 = vunpack.c.l.b16 %v4379
  %v4797 = vunpack.c.l.b16 %v4380
  %v4798 = vunpack.c.l.b16 %v4381
  %v4799 = vunpack.c.l.b16 %v4382
  %v4800 = vunpack.c.l.b16 %v4383
  %v4801 = vunpack.c.l.b16 %v4384
  %v4802 = vunpack.c.l.b16 %v4385
  %v4803 = vunpack.c.l.b16 %v4386
  %v4804 = vunpack.c.l.b16 %v4387
  %v4805 = vunpack.c.l.b16 %v4388
  %v4806 = vunpack.c.l.b16 %v4389
  %v4807 = vunpack.c.l.b16 %v4390
  %v4808 = vunpack.c.l.b16 %v4391
  %v4809 = vunpack.c.l.b16 %v4392
  %v4810 = vunpack.c.l.b16 %v4393
  %v4811 = vunpack.c.l.b16 %v4394
  %v4812 = vunpack.c.l.b16 %v4395
  %v4813 = vunpack.c.l.b16 %v4396
  %v4814 = vunpack.c.l.b16 %v4397
  %v4815 = vunpack.c.l.b16 %v4398
  %v4816 = vunpack.c.l.b16 %v4399
  %v4817 = vunpack.c.l.b16 %v4400
  %v4818 = vunpack.c.l.b16 %v4401
  %v4819 = vunpack.c.l.b16 %v4402
  %v4820 = vunpack.c.l.b16 %v4403
  %v4821 = vunpack.c.l.b16 %v4404
  %v4822 = vunpack.c.l.b16 %v4405
  %v4823 = vunpack.c.l.b16 %v4406
  %v4824 = vunpack.c.l.b16 %v4407
  %v4825 = vunpack.c.l.b16 %v4408
  %v4826 = vunpack.c.l.b16 %v4409
  %v4827 = vunpack.c.l.b16 %v4410
  %v4828 = vunpack.c.l.b16 %v4411
  %v4829 = vunpack.c.l.b16 %v4412
  %v4830 = vunpack.c.l.b16 %v4413
  %v4831 = vunpack.c.l.b16 %v4414
  %v4832 = vunpack.c.l.b16 %v4415
  %v4833 = vunpack.c.l.b16 %v4416
  %v4834 = vunpack.c.l.b16 %v4417
  %v4835 = vunpack.c.l.b16 %v4418
  %v4836 = vunpack.c.l.b16 %v4419
  %v4837 = vunpack.c.l.b16 %v4420
  %v4838 = vunpack.c.l.b16 %v4421
  %v4839 = vunpack.c.l.b16 %v4422
  %v4840 = vunpack.c.l.b16 %v4423
  %v4841 = vunpack.c.l.b16 %v4424
  %v4842 = vunpack.c.l.b16 %v4425
  %v4843 = vunpack.c.l.b16 %v4426
  %v4844 = vunpack.c.l.b16 %v4427
  %v4845 = vunpack.c.l.b16 %v4428
  %v4846 = vunpack.c.l.b16 %v4429
  %v4847 = vunpack.c.l.b16 %v4430
  %v4848 = vunpack.c.l.b16 %v4431
  %v4849 = vunpack.c.l.b16 %v4432
  %v4850 = vunpack.c.l.b16 %v4433
  %v4851 = vunpack.c.l.b16 %v4434
  %v4852 = vunpack.c.l.b16 %v4435
  %v4853 = vunpack.c.l.b16 %v4436
  %v4854 = vpack.c.b16 %v4759, %v4758
  %v4855 = vpack.c.b16 %v4761, %v4760
  %v4856 = vpack.c.b16 %v4763, %v4762
  %v4857 = vpack.c.b16 %v4765, %v4764
  %v4858 = vpack.c.b16 %v4767, %v4766
  %v4859 = vpack.c.b16 %v4769, %v4768
  %v4860 = vpack.c.b16 %v4771, %v4770
  %v4861 = vpack.c.b16 %v4773, %v4772
  %v4862 = vpack.c.b16 %v4775, %v4774
  %v4863 = vpack.c.b16 %v4777, %v4776
  %v4864 = vpack.c.b16 %v4779, %v4778
  %v4865 = vpack.c.b16 %v4781, %v4780
  %v4866 = vpack.c.b16 %v4783, %v4782
  %v4867 = vpack.c.b16 %v4785, %v4784
  %v4868 = vpack.c.b16 %v4787, %v4786
  %v4869 = vpack.c.b16 %v4789, %v4788
  %v4870 = vpack.c.b16 %v4791, %v4790
  %v4871 = vpack.c.b16 %v4793, %v4792
  %v4872 = vpack.c.b16 %v4795, %v4794
  %v4873 = vpack.c.b16 %v4797, %v4796
  %v4874 = vpack.c.b16 %v4799, %v4798
  %v4875 = vpack.c.b16 %v4801, %v4800
  %v4876 = vpack.c.b16 %v4803, %v4802
  %v4877 = vpack.c.b16 %v4805, %v4804
  %v4878 = vpack.c.b16 %v4807, %v4806
  %v4879 = vpack.c.b16 %v4809, %v4808
  %v4880 = vpack.c.b16 %v4811, %v4810
  %v4881 = vpack.c.b16 %v4813, %v4812
  %v4882 = vpack.c.b16 %v4815, %v4814
  %v4883 = vpack.c.b16 %v4817, %v4816
  %v4884 = vpack.c.b16 %v4819, %v4818
  %v4885 = vpack.c.b16 %v4821, %v4820
  %v4886 = vpack.c.b16 %v4823, %v4822
  %v4887 = vpack.c.b16 %v4825, %v4824
  %v4888 = vpack.c.b16 %v4827, %v4826
  %v4889 = vpack.c.b16 %v4829, %v4828
  %v4890 = vpack.c.b16 %v4831, %v4830
  %v4891 = vpack.c.b16 %v4833, %v4832
  %v4892 = vpack.c.b16 %v4835, %v4834
  %v4893 = vpack.c.b16 %v4837, %v4836
  %v4894 = vpack.c.b16 %v4839, %v4838
  %v4895 = vpack.c.b16 %v4841, %v4840
  %v4896 = vpack.c.b16 %v4843, %v4842
  %v4897 = vpack.c.b16 %v4845, %v4844
  %v4898 = vpack.c.b16 %v4847, %v4846
  %v4899 = vpack.c.b16 %v4849, %v4848
  %v4900 = vpack.c.b16 %v4851, %v4850
  %v4901 = vpack.c.b16 %v4853, %v4852
  %v4904 = vunpack.c.l.b16 %v4660
  %v4905 = vunpack.c.l.b16 %v4661
  %v4906 = vpack.c.b16 %v4905, %v4904
  %vm4907 = vcmask 80896
  %v4909 = vsel %vm4907, %v4854, 0
  %v4912 = vsel %vm4907, %v4855, 0
  %v4915 = vsel %vm4907, %v4856, 0
  %v4918 = vsel %vm4907, %v4857, 0
  %v4921 = vsel %vm4907, %v4858, 0
  %v4924 = vsel %vm4907, %v4859, 0
  %v4927 = vsel %vm4907, %v4860, 0
  %v4930 = vsel %vm4907, %v4861, 0
  %v4933 = vsel %vm4907, %v4862, 0
  %v4936 = vsel %vm4907, %v4863, 0
  %v4939 = vsel %vm4907, %v4864, 0
  %v4942 = vsel %vm4907, %v4865, 0
  %v4945 = vsel %vm4907, %v4866, 0
  %v4948 = vsel %vm4907, %v4867, 0
  %v4951 = vsel %vm4907, %v4868, 0
  %v4954 = vsel %vm4907, %v4869, 0
  %v4957 = vsel %vm4907, %v4870, 0
  %v4960 = vsel %vm4907, %v4871, 0
  %v4963 = vsel %vm4907, %v4872, 0
  %v4966 = vsel %vm4907, %v4873, 0
  %v4969 = vsel %vm4907, %v4874, 0
  %v4972 = vsel %vm4907, %v4875, 0
  %v4975 = vsel %vm4907, %v4876, 0
  %v4978 = vsel %vm4907, %v4877, 0
  %v4981 = vsel %vm4907, %v4878, 0
  %v4984 = vsel %vm4907, %v4879, 0
  %v4987 = vsel %vm4907, %v4880, 0
  %v4990 = vsel %vm4907, %v4881, 0
  %v4993 = vsel %vm4907, %v4882, 0
  %v4996 = vsel %vm4907, %v4883, 0
  %v4999 = vsel %vm4907, %v4884, 0
  %v5002 = vsel %vm4907, %v4885, 0
  %v5005 = vsel %vm4907, %v4886, 0
  %v5008 = vsel %vm4907, %v4887, 0
  %v5011 = vsel %vm4907, %v4888, 0
  %v5014 = vsel %vm4907, %v4889, 0
  %v5017 = vsel %vm4907, %v4890, 0
  %v5020 = vsel %vm4907, %v4891, 0
  %v5023 = vsel %vm4907, %v4892, 0
  %v5026 = vsel %vm4907, %v4893, 0
  %v5029 = vsel %vm4907, %v4894, 0
  %v5032 = vsel %vm4907, %v4895, 0
  %v5035 = vsel %vm4907, %v4896, 0
  %v5038 = vsel %vm4907, %v4897, 0
  %v5041 = vsel %vm4907, %v4898, 0
  %v5044 = vsel %vm4907, %v4899, 0
  %v5047 = vsel %vm4907, %v4900, 0
  %v5050 = vsel %vm4907, %v4901, 0
  %v5053 = vsel %vm2560, %v4906, 0
  %5055 = vmatpush.bf16.msra.mxu0 0
  %5056 = vmatpush.bf16.msra.mxu0 0
  %5057 = vmatpush.bf16.msra.mxu0 0
  %5058 = vmatpush.bf16.msra.mxu0 0
  %5059 = vmatpush.bf16.msra.mxu0 0
  %5060 = vmatpush.bf16.msra.mxu0 0
  %5061 = vmatpush.bf16.msra.mxu0 0
  %5062 = vmatpush.bf16.msra.mxu0 %v5053
  %5063 = vmatmul.bf16.gmra.mxu0 %v4909
  %v5064 = vpop.f32.mrf.mxu0
  %v5065 = vadd.f32 0.0, %v5064
  %v5066 = vpop.f32.mrf.mxu0
  %v5067 = vadd.f32 0.0, %v5066
  %5068 = vmatmul.bf16.gmra.mxu0 %v4912
  %v5069 = vpop.f32.mrf.mxu0
  %v5070 = vadd.f32 0.0, %v5069
  %v5071 = vpop.f32.mrf.mxu0
  %v5072 = vadd.f32 0.0, %v5071
  %5073 = vmatmul.bf16.gmra.mxu0 %v4915
  %v5074 = vpop.f32.mrf.mxu0
  %v5075 = vadd.f32 0.0, %v5074
  %v5076 = vpop.f32.mrf.mxu0
  %v5077 = vadd.f32 0.0, %v5076
  %5078 = vmatmul.bf16.gmra.mxu0 %v4918
  %v5079 = vpop.f32.mrf.mxu0
  %v5080 = vadd.f32 0.0, %v5079
  %v5081 = vpop.f32.mrf.mxu0
  %v5082 = vadd.f32 0.0, %v5081
  %5083 = vmatmul.bf16.gmra.mxu0 %v4921
  %v5084 = vpop.f32.mrf.mxu0
  %v5085 = vadd.f32 0.0, %v5084
  %v5086 = vpop.f32.mrf.mxu0
  %v5087 = vadd.f32 0.0, %v5086
  %5088 = vmatmul.bf16.gmra.mxu0 %v4924
  %v5089 = vpop.f32.mrf.mxu0
  %v5090 = vadd.f32 0.0, %v5089
  %v5091 = vpop.f32.mrf.mxu0
  %v5092 = vadd.f32 0.0, %v5091
  %5093 = vmatmul.bf16.gmra.mxu0 %v4927
  %v5094 = vpop.f32.mrf.mxu0
  %v5095 = vpop.f32.mrf.mxu0
  %5096 = vmatmul.bf16.gmra.mxu0 %v4930
  %v5097 = vpop.f32.mrf.mxu0
  %v5098 = vpop.f32.mrf.mxu0
  %5099 = vmatmul.bf16.gmra.mxu0 %v4933
  %v5100 = vpop.f32.mrf.mxu0
  %v5101 = vadd.f32 0.0, %v5100
  %v5102 = vpop.f32.mrf.mxu0
  %v5103 = vadd.f32 0.0, %v5102
  %5104 = vmatmul.bf16.gmra.mxu0 %v4936
  %v5105 = vpop.f32.mrf.mxu0
  %v5106 = vadd.f32 0.0, %v5105
  %v5107 = vpop.f32.mrf.mxu0
  %v5108 = vadd.f32 0.0, %v5107
  %5109 = vmatmul.bf16.gmra.mxu0 %v4939
  %v5110 = vpop.f32.mrf.mxu0
  %v5111 = vadd.f32 0.0, %v5110
  %v5112 = vpop.f32.mrf.mxu0
  %v5113 = vadd.f32 0.0, %v5112
  %5114 = vmatmul.bf16.gmra.mxu0 %v4942
  %v5115 = vpop.f32.mrf.mxu0
  %v5116 = vadd.f32 0.0, %v5115
  %v5117 = vpop.f32.mrf.mxu0
  %v5118 = vadd.f32 0.0, %v5117
  %5119 = vmatmul.bf16.gmra.mxu0 %v4945
  %v5120 = vpop.f32.mrf.mxu0
  %v5121 = vadd.f32 0.0, %v5120
  %v5122 = vpop.f32.mrf.mxu0
  %v5123 = vadd.f32 0.0, %v5122
  %5124 = vmatmul.bf16.gmra.mxu0 %v4948
  %v5125 = vpop.f32.mrf.mxu0
  %v5126 = vadd.f32 0.0, %v5125
  %v5127 = vpop.f32.mrf.mxu0
  %v5128 = vadd.f32 0.0, %v5127
  %5129 = vmatmul.bf16.gmra.mxu0 %v4951
  %v5130 = vpop.f32.mrf.mxu0
  %v5131 = vpop.f32.mrf.mxu0
  %5132 = vmatmul.bf16.gmra.mxu0 %v4954
  %v5133 = vpop.f32.mrf.mxu0
  %v5134 = vpop.f32.mrf.mxu0
  %5135 = vmatmul.bf16.gmra.mxu0 %v4957
  %v5136 = vpop.f32.mrf.mxu0
  %v5137 = vadd.f32 0.0, %v5136
  %v5138 = vpop.f32.mrf.mxu0
  %v5139 = vadd.f32 0.0, %v5138
  %5140 = vmatmul.bf16.gmra.mxu0 %v4960
  %v5141 = vpop.f32.mrf.mxu0
  %v5142 = vadd.f32 0.0, %v5141
  %v5143 = vpop.f32.mrf.mxu0
  %v5144 = vadd.f32 0.0, %v5143
  %5145 = vmatmul.bf16.gmra.mxu0 %v4963
  %v5146 = vpop.f32.mrf.mxu0
  %v5147 = vadd.f32 0.0, %v5146
  %v5148 = vpop.f32.mrf.mxu0
  %v5149 = vadd.f32 0.0, %v5148
  %5150 = vmatmul.bf16.gmra.mxu0 %v4966
  %v5151 = vpop.f32.mrf.mxu0
  %v5152 = vadd.f32 0.0, %v5151
  %v5153 = vpop.f32.mrf.mxu0
  %v5154 = vadd.f32 0.0, %v5153
  %5155 = vmatmul.bf16.gmra.mxu0 %v4969
  %v5156 = vpop.f32.mrf.mxu0
  %v5157 = vadd.f32 0.0, %v5156
  %v5158 = vpop.f32.mrf.mxu0
  %v5159 = vadd.f32 0.0, %v5158
  %5160 = vmatmul.bf16.gmra.mxu0 %v4972
  %v5161 = vpop.f32.mrf.mxu0
  %v5162 = vadd.f32 0.0, %v5161
  %v5163 = vpop.f32.mrf.mxu0
  %v5164 = vadd.f32 0.0, %v5163
  %5165 = vmatmul.bf16.gmra.mxu0 %v4975
  %v5166 = vpop.f32.mrf.mxu0
  %v5167 = vpop.f32.mrf.mxu0
  %5168 = vmatmul.bf16.gmra.mxu0 %v4978
  %v5169 = vpop.f32.mrf.mxu0
  %v5170 = vpop.f32.mrf.mxu0
  %5171 = vmatmul.bf16.gmra.mxu0 %v4981
  %v5172 = vpop.f32.mrf.mxu0
  %v5173 = vadd.f32 0.0, %v5172
  %v5174 = vpop.f32.mrf.mxu0
  %v5175 = vadd.f32 0.0, %v5174
  %5176 = vmatmul.bf16.gmra.mxu0 %v4984
  %v5177 = vpop.f32.mrf.mxu0
  %v5178 = vadd.f32 0.0, %v5177
  %v5179 = vpop.f32.mrf.mxu0
  %v5180 = vadd.f32 0.0, %v5179
  %5181 = vmatmul.bf16.gmra.mxu0 %v4987
  %v5182 = vpop.f32.mrf.mxu0
  %v5183 = vadd.f32 0.0, %v5182
  %v5184 = vpop.f32.mrf.mxu0
  %v5185 = vadd.f32 0.0, %v5184
  %5186 = vmatmul.bf16.gmra.mxu0 %v4990
  %v5187 = vpop.f32.mrf.mxu0
  %v5188 = vadd.f32 0.0, %v5187
  %v5189 = vpop.f32.mrf.mxu0
  %v5190 = vadd.f32 0.0, %v5189
  %5191 = vmatmul.bf16.gmra.mxu0 %v4993
  %v5192 = vpop.f32.mrf.mxu0
  %v5193 = vadd.f32 0.0, %v5192
  %v5194 = vpop.f32.mrf.mxu0
  %v5195 = vadd.f32 0.0, %v5194
  %5196 = vmatmul.bf16.gmra.mxu0 %v4996
  %v5197 = vpop.f32.mrf.mxu0
  %v5198 = vadd.f32 0.0, %v5197
  %v5199 = vpop.f32.mrf.mxu0
  %v5200 = vadd.f32 0.0, %v5199
  %5201 = vmatmul.bf16.gmra.mxu0 %v4999
  %v5202 = vpop.f32.mrf.mxu0
  %v5203 = vpop.f32.mrf.mxu0
  %5204 = vmatmul.bf16.gmra.mxu0 %v5002
  %v5205 = vpop.f32.mrf.mxu0
  %v5206 = vpop.f32.mrf.mxu0
  %5207 = vmatmul.bf16.gmra.mxu0 %v5005
  %v5208 = vpop.f32.mrf.mxu0
  %v5209 = vadd.f32 0.0, %v5208
  %v5210 = vpop.f32.mrf.mxu0
  %v5211 = vadd.f32 0.0, %v5210
  %5212 = vmatmul.bf16.gmra.mxu0 %v5008
  %v5213 = vpop.f32.mrf.mxu0
  %v5214 = vadd.f32 0.0, %v5213
  %v5215 = vpop.f32.mrf.mxu0
  %v5216 = vadd.f32 0.0, %v5215
  %5217 = vmatmul.bf16.gmra.mxu0 %v5011
  %v5218 = vpop.f32.mrf.mxu0
  %v5219 = vadd.f32 0.0, %v5218
  %v5220 = vpop.f32.mrf.mxu0
  %v5221 = vadd.f32 0.0, %v5220
  %5222 = vmatmul.bf16.gmra.mxu0 %v5014
  %v5223 = vpop.f32.mrf.mxu0
  %v5224 = vadd.f32 0.0, %v5223
  %v5225 = vpop.f32.mrf.mxu0
  %v5226 = vadd.f32 0.0, %v5225
  %5227 = vmatmul.bf16.gmra.mxu0 %v5017
  %v5228 = vpop.f32.mrf.mxu0
  %v5229 = vadd.f32 0.0, %v5228
  %v5230 = vpop.f32.mrf.mxu0
  %v5231 = vadd.f32 0.0, %v5230
  %5232 = vmatmul.bf16.gmra.mxu0 %v5020
  %v5233 = vpop.f32.mrf.mxu0
  %v5234 = vadd.f32 0.0, %v5233
  %v5235 = vpop.f32.mrf.mxu0
  %v5236 = vadd.f32 0.0, %v5235
  %5237 = vmatmul.bf16.gmra.mxu0 %v5023
  %v5238 = vpop.f32.mrf.mxu0
  %v5239 = vpop.f32.mrf.mxu0
  %5240 = vmatmul.bf16.gmra.mxu0 %v5026
  %v5241 = vpop.f32.mrf.mxu0
  %v5242 = vpop.f32.mrf.mxu0
  %5243 = vmatmul.bf16.gmra.mxu0 %v5029
  %v5244 = vpop.f32.mrf.mxu0
  %v5245 = vadd.f32 0.0, %v5244
  %v5246 = vpop.f32.mrf.mxu0
  %v5247 = vadd.f32 0.0, %v5246
  %5248 = vmatmul.bf16.gmra.mxu0 %v5032
  %v5249 = vpop.f32.mrf.mxu0
  %v5250 = vadd.f32 0.0, %v5249
  %v5251 = vpop.f32.mrf.mxu0
  %v5252 = vadd.f32 0.0, %v5251
  %5253 = vmatmul.bf16.gmra.mxu0 %v5035
  %v5254 = vpop.f32.mrf.mxu0
  %v5255 = vadd.f32 0.0, %v5254
  %v5256 = vpop.f32.mrf.mxu0
  %v5257 = vadd.f32 0.0, %v5256
  %5258 = vmatmul.bf16.gmra.mxu0 %v5038
  %v5259 = vpop.f32.mrf.mxu0
  %v5260 = vadd.f32 0.0, %v5259
  %v5261 = vpop.f32.mrf.mxu0
  %v5262 = vadd.f32 0.0, %v5261
  %5263 = vmatmul.bf16.gmra.mxu0 %v5041
  %v5264 = vpop.f32.mrf.mxu0
  %v5265 = vadd.f32 0.0, %v5264
  %v5266 = vpop.f32.mrf.mxu0
  %v5267 = vadd.f32 0.0, %v5266
  %5268 = vmatmul.bf16.gmra.mxu0 %v5044
  %v5269 = vpop.f32.mrf.mxu0
  %v5270 = vadd.f32 0.0, %v5269
  %v5271 = vpop.f32.mrf.mxu0
  %v5272 = vadd.f32 0.0, %v5271
  %5273 = vmatmul.bf16.gmra.mxu0 %v5047
  %v5274 = vpop.f32.mrf.mxu0
  %v5275 = vpop.f32.mrf.mxu0
  %5276 = vmatmul.bf16.gmra.mxu0 %v5050
  %v5277 = vpop.f32.mrf.mxu0
  %v5278 = vpop.f32.mrf.mxu0
  %5279 = vdwg.mxu0
  %v5376 = vunpack.c.l.b16 %v4215
  %v5377 = vunpack.c.l.b16 %v4216
  %v5378 = vunpack.c.l.b16 %v4217
  %v5379 = vunpack.c.l.b16 %v4218
  %v5380 = vunpack.c.l.b16 %v4219
  %v5381 = vunpack.c.l.b16 %v4220
  %v5382 = vunpack.c.l.b16 %v4221
  %v5383 = vunpack.c.l.b16 %v4222
  %v5384 = vunpack.c.l.b16 %v4223
  %v5385 = vunpack.c.l.b16 %v4224
  %v5386 = vunpack.c.l.b16 %v4225
  %v5387 = vunpack.c.l.b16 %v4226
  %v5388 = vunpack.c.l.b16 %v4227
  %v5389 = vunpack.c.l.b16 %v4228
  %v5390 = vunpack.c.l.b16 %v4229
  %v5391 = vunpack.c.l.b16 %v4230
  %v5392 = vunpack.c.l.b16 %v4233
  %v5393 = vunpack.c.l.b16 %v4234
  %v5394 = vunpack.c.l.b16 %v4235
  %v5395 = vunpack.c.l.b16 %v4236
  %v5396 = vunpack.c.l.b16 %v4237
  %v5397 = vunpack.c.l.b16 %v4238
  %v5398 = vunpack.c.l.b16 %v4239
  %v5399 = vunpack.c.l.b16 %v4240
  %v5400 = vunpack.c.l.b16 %v4241
  %v5401 = vunpack.c.l.b16 %v4242
  %v5402 = vunpack.c.l.b16 %v4243
  %v5403 = vunpack.c.l.b16 %v4244
  %v5404 = vunpack.c.l.b16 %v4245
  %v5405 = vunpack.c.l.b16 %v4246
  %v5406 = vunpack.c.l.b16 %v4247
  %v5407 = vunpack.c.l.b16 %v4248
  %v5408 = vunpack.c.l.b16 %v4251
  %v5409 = vunpack.c.l.b16 %v4252
  %v5410 = vunpack.c.l.b16 %v4253
  %v5411 = vunpack.c.l.b16 %v4254
  %v5412 = vunpack.c.l.b16 %v4255
  %v5413 = vunpack.c.l.b16 %v4256
  %v5414 = vunpack.c.l.b16 %v4257
  %v5415 = vunpack.c.l.b16 %v4258
  %v5416 = vunpack.c.l.b16 %v4259
  %v5417 = vunpack.c.l.b16 %v4260
  %v5418 = vunpack.c.l.b16 %v4261
  %v5419 = vunpack.c.l.b16 %v4262
  %v5420 = vunpack.c.l.b16 %v4263
  %v5421 = vunpack.c.l.b16 %v4264
  %v5422 = vunpack.c.l.b16 %v4265
  %v5423 = vunpack.c.l.b16 %v4266
  %v5424 = vunpack.c.l.b16 %v4269
  %v5425 = vunpack.c.l.b16 %v4270
  %v5426 = vunpack.c.l.b16 %v4271
  %v5427 = vunpack.c.l.b16 %v4272
  %v5428 = vunpack.c.l.b16 %v4273
  %v5429 = vunpack.c.l.b16 %v4274
  %v5430 = vunpack.c.l.b16 %v4275
  %v5431 = vunpack.c.l.b16 %v4276
  %v5432 = vunpack.c.l.b16 %v4277
  %v5433 = vunpack.c.l.b16 %v4278
  %v5434 = vunpack.c.l.b16 %v4279
  %v5435 = vunpack.c.l.b16 %v4280
  %v5436 = vunpack.c.l.b16 %v4281
  %v5437 = vunpack.c.l.b16 %v4282
  %v5438 = vunpack.c.l.b16 %v4283
  %v5439 = vunpack.c.l.b16 %v4284
  %v5440 = vunpack.c.l.b16 %v4287
  %v5441 = vunpack.c.l.b16 %v4288
  %v5442 = vunpack.c.l.b16 %v4289
  %v5443 = vunpack.c.l.b16 %v4290
  %v5444 = vunpack.c.l.b16 %v4291
  %v5445 = vunpack.c.l.b16 %v4292
  %v5446 = vunpack.c.l.b16 %v4293
  %v5447 = vunpack.c.l.b16 %v4294
  %v5448 = vunpack.c.l.b16 %v4295
  %v5449 = vunpack.c.l.b16 %v4296
  %v5450 = vunpack.c.l.b16 %v4297
  %v5451 = vunpack.c.l.b16 %v4298
  %v5452 = vunpack.c.l.b16 %v4299
  %v5453 = vunpack.c.l.b16 %v4300
  %v5454 = vunpack.c.l.b16 %v4301
  %v5455 = vunpack.c.l.b16 %v4302
  %v5456 = vunpack.c.l.b16 %v4305
  %v5457 = vunpack.c.l.b16 %v4306
  %v5458 = vunpack.c.l.b16 %v4307
  %v5459 = vunpack.c.l.b16 %v4308
  %v5460 = vunpack.c.l.b16 %v4309
  %v5461 = vunpack.c.l.b16 %v4310
  %v5462 = vunpack.c.l.b16 %v4311
  %v5463 = vunpack.c.l.b16 %v4312
  %v5464 = vunpack.c.l.b16 %v4313
  %v5465 = vunpack.c.l.b16 %v4314
  %v5466 = vunpack.c.l.b16 %v4315
  %v5467 = vunpack.c.l.b16 %v4316
  %v5468 = vunpack.c.l.b16 %v4317
  %v5469 = vunpack.c.l.b16 %v4318
  %v5470 = vunpack.c.l.b16 %v4319
  %v5471 = vunpack.c.l.b16 %v4320
  %v5472 = vpack.c.b16 %v5377, %v5376
  %v5473 = vpack.c.b16 %v5379, %v5378
  %v5474 = vpack.c.b16 %v5381, %v5380
  %v5475 = vpack.c.b16 %v5383, %v5382
  %v5476 = vpack.c.b16 %v5385, %v5384
  %v5477 = vpack.c.b16 %v5387, %v5386
  %v5478 = vpack.c.b16 %v5389, %v5388
  %v5479 = vpack.c.b16 %v5391, %v5390
  %v5480 = vpack.c.b16 %v5393, %v5392
  %v5481 = vpack.c.b16 %v5395, %v5394
  %v5482 = vpack.c.b16 %v5397, %v5396
  %v5483 = vpack.c.b16 %v5399, %v5398
  %v5484 = vpack.c.b16 %v5401, %v5400
  %v5485 = vpack.c.b16 %v5403, %v5402
  %v5486 = vpack.c.b16 %v5405, %v5404
  %v5487 = vpack.c.b16 %v5407, %v5406
  %v5488 = vpack.c.b16 %v5409, %v5408
  %v5489 = vpack.c.b16 %v5411, %v5410
  %v5490 = vpack.c.b16 %v5413, %v5412
  %v5491 = vpack.c.b16 %v5415, %v5414
  %v5492 = vpack.c.b16 %v5417, %v5416
  %v5493 = vpack.c.b16 %v5419, %v5418
  %v5494 = vpack.c.b16 %v5421, %v5420
  %v5495 = vpack.c.b16 %v5423, %v5422
  %v5496 = vpack.c.b16 %v5425, %v5424
  %v5497 = vpack.c.b16 %v5427, %v5426
  %v5498 = vpack.c.b16 %v5429, %v5428
  %v5499 = vpack.c.b16 %v5431, %v5430
  %v5500 = vpack.c.b16 %v5433, %v5432
  %v5501 = vpack.c.b16 %v5435, %v5434
  %v5502 = vpack.c.b16 %v5437, %v5436
  %v5503 = vpack.c.b16 %v5439, %v5438
  %v5504 = vpack.c.b16 %v5441, %v5440
  %v5505 = vpack.c.b16 %v5443, %v5442
  %v5506 = vpack.c.b16 %v5445, %v5444
  %v5507 = vpack.c.b16 %v5447, %v5446
  %v5508 = vpack.c.b16 %v5449, %v5448
  %v5509 = vpack.c.b16 %v5451, %v5450
  %v5510 = vpack.c.b16 %v5453, %v5452
  %v5511 = vpack.c.b16 %v5455, %v5454
  %v5512 = vpack.c.b16 %v5457, %v5456
  %v5513 = vpack.c.b16 %v5459, %v5458
  %v5514 = vpack.c.b16 %v5461, %v5460
  %v5515 = vpack.c.b16 %v5463, %v5462
  %v5516 = vpack.c.b16 %v5465, %v5464
  %v5517 = vpack.c.b16 %v5467, %v5466
  %v5518 = vpack.c.b16 %v5469, %v5468
  %v5519 = vpack.c.b16 %v5471, %v5470
  %v5522 = vunpack.c.l.b16 %v4657
  %v5523 = vunpack.c.l.b16 %v4658
  %v5524 = vpack.c.b16 %v5523, %v5522
  %v5526 = vsel %vm4907, %v5472, 0
  %v5529 = vsel %vm4907, %v5473, 0
  %v5532 = vsel %vm4907, %v5474, 0
  %v5535 = vsel %vm4907, %v5475, 0
  %v5538 = vsel %vm4907, %v5476, 0
  %v5541 = vsel %vm4907, %v5477, 0
  %v5544 = vsel %vm4907, %v5478, 0
  %v5547 = vsel %vm4907, %v5479, 0
  %v5550 = vsel %vm4907, %v5480, 0
  %v5553 = vsel %vm4907, %v5481, 0
  %v5556 = vsel %vm4907, %v5482, 0
  %v5559 = vsel %vm4907, %v5483, 0
  %v5562 = vsel %vm4907, %v5484, 0
  %v5565 = vsel %vm4907, %v5485, 0
  %v5568 = vsel %vm4907, %v5486, 0
  %v5571 = vsel %vm4907, %v5487, 0
  %v5574 = vsel %vm4907, %v5488, 0
  %v5577 = vsel %vm4907, %v5489, 0
  %v5580 = vsel %vm4907, %v5490, 0
  %v5583 = vsel %vm4907, %v5491, 0
  %v5586 = vsel %vm4907, %v5492, 0
  %v5589 = vsel %vm4907, %v5493, 0
  %v5592 = vsel %vm4907, %v5494, 0
  %v5595 = vsel %vm4907, %v5495, 0
  %v5598 = vsel %vm4907, %v5496, 0
  %v5601 = vsel %vm4907, %v5497, 0
  %v5604 = vsel %vm4907, %v5498, 0
  %v5607 = vsel %vm4907, %v5499, 0
  %v5610 = vsel %vm4907, %v5500, 0
  %v5613 = vsel %vm4907, %v5501, 0
  %v5616 = vsel %vm4907, %v5502, 0
  %v5619 = vsel %vm4907, %v5503, 0
  %v5622 = vsel %vm4907, %v5504, 0
  %v5625 = vsel %vm4907, %v5505, 0
  %v5628 = vsel %vm4907, %v5506, 0
  %v5631 = vsel %vm4907, %v5507, 0
  %v5634 = vsel %vm4907, %v5508, 0
  %v5637 = vsel %vm4907, %v5509, 0
  %v5640 = vsel %vm4907, %v5510, 0
  %v5643 = vsel %vm4907, %v5511, 0
  %v5646 = vsel %vm4907, %v5512, 0
  %v5649 = vsel %vm4907, %v5513, 0
  %v5652 = vsel %vm4907, %v5514, 0
  %v5655 = vsel %vm4907, %v5515, 0
  %v5658 = vsel %vm4907, %v5516, 0
  %v5661 = vsel %vm4907, %v5517, 0
  %v5664 = vsel %vm4907, %v5518, 0
  %v5667 = vsel %vm4907, %v5519, 0
  %v5670 = vsel %vm2560, %v5524, 0
  %5672 = vmatpush.bf16.msra.mxu0 0
  %5673 = vmatpush.bf16.msra.mxu0 0
  %5674 = vmatpush.bf16.msra.mxu0 0
  %5675 = vmatpush.bf16.msra.mxu0 0
  %5676 = vmatpush.bf16.msra.mxu0 0
  %5677 = vmatpush.bf16.msra.mxu0 0
  %5678 = vmatpush.bf16.msra.mxu0 0
  %5679 = vmatpush.bf16.msra.mxu0 %v5670
  %5680 = vmatmul.bf16.gmra.mxu0 %v5526
  %v5681 = vpop.f32.mrf.mxu0
  %v5682 = vadd.f32 %v5065, %v5681
  %v5683 = vpop.f32.mrf.mxu0
  %v5684 = vadd.f32 %v5067, %v5683
  %5685 = vmatmul.bf16.gmra.mxu0 %v5529
  %v5686 = vpop.f32.mrf.mxu0
  %v5687 = vadd.f32 %v5070, %v5686
  %v5688 = vpop.f32.mrf.mxu0
  %v5689 = vadd.f32 %v5072, %v5688
  %5690 = vmatmul.bf16.gmra.mxu0 %v5532
  %v5691 = vpop.f32.mrf.mxu0
  %v5692 = vadd.f32 %v5075, %v5691
  %v5693 = vpop.f32.mrf.mxu0
  %v5694 = vadd.f32 %v5077, %v5693
  %5695 = vmatmul.bf16.gmra.mxu0 %v5535
  %v5696 = vpop.f32.mrf.mxu0
  %v5697 = vadd.f32 %v5080, %v5696
  %v5698 = vpop.f32.mrf.mxu0
  %v5699 = vadd.f32 %v5082, %v5698
  %5700 = vmatmul.bf16.gmra.mxu0 %v5538
  %v5701 = vpop.f32.mrf.mxu0
  %v5702 = vadd.f32 %v5085, %v5701
  %v5703 = vpop.f32.mrf.mxu0
  %v5704 = vadd.f32 %v5087, %v5703
  %5705 = vmatmul.bf16.gmra.mxu0 %v5541
  %v5706 = vpop.f32.mrf.mxu0
  %v5707 = vadd.f32 %v5090, %v5706
  %v5708 = vpop.f32.mrf.mxu0
  %v5709 = vadd.f32 %v5092, %v5708
  %5710 = vmatmul.bf16.gmra.mxu0 %v5544
  %v5711 = vpop.f32.mrf.mxu0
  %v5712 = vpop.f32.mrf.mxu0
  %5713 = vmatmul.bf16.gmra.mxu0 %v5547
  %v5714 = vpop.f32.mrf.mxu0
  %v5715 = vpop.f32.mrf.mxu0
  %5716 = vmatmul.bf16.gmra.mxu0 %v5550
  %v5717 = vpop.f32.mrf.mxu0
  %v5718 = vadd.f32 %v5101, %v5717
  %v5719 = vpop.f32.mrf.mxu0
  %v5720 = vadd.f32 %v5103, %v5719
  %5721 = vmatmul.bf16.gmra.mxu0 %v5553
  %v5722 = vpop.f32.mrf.mxu0
  %v5723 = vadd.f32 %v5106, %v5722
  %v5724 = vpop.f32.mrf.mxu0
  %v5725 = vadd.f32 %v5108, %v5724
  %5726 = vmatmul.bf16.gmra.mxu0 %v5556
  %v5727 = vpop.f32.mrf.mxu0
  %v5728 = vadd.f32 %v5111, %v5727
  %v5729 = vpop.f32.mrf.mxu0
  %v5730 = vadd.f32 %v5113, %v5729
  %5731 = vmatmul.bf16.gmra.mxu0 %v5559
  %v5732 = vpop.f32.mrf.mxu0
  %v5733 = vadd.f32 %v5116, %v5732
  %v5734 = vpop.f32.mrf.mxu0
  %v5735 = vadd.f32 %v5118, %v5734
  %5736 = vmatmul.bf16.gmra.mxu0 %v5562
  %v5737 = vpop.f32.mrf.mxu0
  %v5738 = vadd.f32 %v5121, %v5737
  %v5739 = vpop.f32.mrf.mxu0
  %v5740 = vadd.f32 %v5123, %v5739
  %5741 = vmatmul.bf16.gmra.mxu0 %v5565
  %v5742 = vpop.f32.mrf.mxu0
  %v5743 = vadd.f32 %v5126, %v5742
  %v5744 = vpop.f32.mrf.mxu0
  %v5745 = vadd.f32 %v5128, %v5744
  %5746 = vmatmul.bf16.gmra.mxu0 %v5568
  %v5747 = vpop.f32.mrf.mxu0
  %v5748 = vpop.f32.mrf.mxu0
  %5749 = vmatmul.bf16.gmra.mxu0 %v5571
  %v5750 = vpop.f32.mrf.mxu0
  %v5751 = vpop.f32.mrf.mxu0
  %5752 = vmatmul.bf16.gmra.mxu0 %v5574
  %v5753 = vpop.f32.mrf.mxu0
  %v5754 = vadd.f32 %v5137, %v5753
  %v5755 = vpop.f32.mrf.mxu0
  %v5756 = vadd.f32 %v5139, %v5755
  %5757 = vmatmul.bf16.gmra.mxu0 %v5577
  %v5758 = vpop.f32.mrf.mxu0
  %v5759 = vadd.f32 %v5142, %v5758
  %v5760 = vpop.f32.mrf.mxu0
  %v5761 = vadd.f32 %v5144, %v5760
  %5762 = vmatmul.bf16.gmra.mxu0 %v5580
  %v5763 = vpop.f32.mrf.mxu0
  %v5764 = vadd.f32 %v5147, %v5763
  %v5765 = vpop.f32.mrf.mxu0
  %v5766 = vadd.f32 %v5149, %v5765
  %5767 = vmatmul.bf16.gmra.mxu0 %v5583
  %v5768 = vpop.f32.mrf.mxu0
  %v5769 = vadd.f32 %v5152, %v5768
  %v5770 = vpop.f32.mrf.mxu0
  %v5771 = vadd.f32 %v5154, %v5770
  %5772 = vmatmul.bf16.gmra.mxu0 %v5586
  %v5773 = vpop.f32.mrf.mxu0
  %v5774 = vadd.f32 %v5157, %v5773
  %v5775 = vpop.f32.mrf.mxu0
  %v5776 = vadd.f32 %v5159, %v5775
  %5777 = vmatmul.bf16.gmra.mxu0 %v5589
  %v5778 = vpop.f32.mrf.mxu0
  %v5779 = vadd.f32 %v5162, %v5778
  %v5780 = vpop.f32.mrf.mxu0
  %v5781 = vadd.f32 %v5164, %v5780
  %5782 = vmatmul.bf16.gmra.mxu0 %v5592
  %v5783 = vpop.f32.mrf.mxu0
  %v5784 = vpop.f32.mrf.mxu0
  %5785 = vmatmul.bf16.gmra.mxu0 %v5595
  %v5786 = vpop.f32.mrf.mxu0
  %v5787 = vpop.f32.mrf.mxu0
  %5788 = vmatmul.bf16.gmra.mxu0 %v5598
  %v5789 = vpop.f32.mrf.mxu0
  %v5790 = vadd.f32 %v5173, %v5789
  %v5791 = vpop.f32.mrf.mxu0
  %v5792 = vadd.f32 %v5175, %v5791
  %5793 = vmatmul.bf16.gmra.mxu0 %v5601
  %v5794 = vpop.f32.mrf.mxu0
  %v5795 = vadd.f32 %v5178, %v5794
  %v5796 = vpop.f32.mrf.mxu0
  %v5797 = vadd.f32 %v5180, %v5796
  %5798 = vmatmul.bf16.gmra.mxu0 %v5604
  %v5799 = vpop.f32.mrf.mxu0
  %v5800 = vadd.f32 %v5183, %v5799
  %v5801 = vpop.f32.mrf.mxu0
  %v5802 = vadd.f32 %v5185, %v5801
  %5803 = vmatmul.bf16.gmra.mxu0 %v5607
  %v5804 = vpop.f32.mrf.mxu0
  %v5805 = vadd.f32 %v5188, %v5804
  %v5806 = vpop.f32.mrf.mxu0
  %v5807 = vadd.f32 %v5190, %v5806
  %5808 = vmatmul.bf16.gmra.mxu0 %v5610
  %v5809 = vpop.f32.mrf.mxu0
  %v5810 = vadd.f32 %v5193, %v5809
  %v5811 = vpop.f32.mrf.mxu0
  %v5812 = vadd.f32 %v5195, %v5811
  %5813 = vmatmul.bf16.gmra.mxu0 %v5613
  %v5814 = vpop.f32.mrf.mxu0
  %v5815 = vadd.f32 %v5198, %v5814
  %v5816 = vpop.f32.mrf.mxu0
  %v5817 = vadd.f32 %v5200, %v5816
  %5818 = vmatmul.bf16.gmra.mxu0 %v5616
  %v5819 = vpop.f32.mrf.mxu0
  %v5820 = vpop.f32.mrf.mxu0
  %5821 = vmatmul.bf16.gmra.mxu0 %v5619
  %v5822 = vpop.f32.mrf.mxu0
  %v5823 = vpop.f32.mrf.mxu0
  %5824 = vmatmul.bf16.gmra.mxu0 %v5622
  %v5825 = vpop.f32.mrf.mxu0
  %v5826 = vadd.f32 %v5209, %v5825
  %v5827 = vpop.f32.mrf.mxu0
  %v5828 = vadd.f32 %v5211, %v5827
  %5829 = vmatmul.bf16.gmra.mxu0 %v5625
  %v5830 = vpop.f32.mrf.mxu0
  %v5831 = vadd.f32 %v5214, %v5830
  %v5832 = vpop.f32.mrf.mxu0
  %v5833 = vadd.f32 %v5216, %v5832
  %5834 = vmatmul.bf16.gmra.mxu0 %v5628
  %v5835 = vpop.f32.mrf.mxu0
  %v5836 = vadd.f32 %v5219, %v5835
  %v5837 = vpop.f32.mrf.mxu0
  %v5838 = vadd.f32 %v5221, %v5837
  %5839 = vmatmul.bf16.gmra.mxu0 %v5631
  %v5840 = vpop.f32.mrf.mxu0
  %v5841 = vadd.f32 %v5224, %v5840
  %v5842 = vpop.f32.mrf.mxu0
  %v5843 = vadd.f32 %v5226, %v5842
  %5844 = vmatmul.bf16.gmra.mxu0 %v5634
  %v5845 = vpop.f32.mrf.mxu0
  %v5846 = vadd.f32 %v5229, %v5845
  %v5847 = vpop.f32.mrf.mxu0
  %v5848 = vadd.f32 %v5231, %v5847
  %5849 = vmatmul.bf16.gmra.mxu0 %v5637
  %v5850 = vpop.f32.mrf.mxu0
  %v5851 = vadd.f32 %v5234, %v5850
  %v5852 = vpop.f32.mrf.mxu0
  %v5853 = vadd.f32 %v5236, %v5852
  %5854 = vmatmul.bf16.gmra.mxu0 %v5640
  %v5855 = vpop.f32.mrf.mxu0
  %v5856 = vpop.f32.mrf.mxu0
  %5857 = vmatmul.bf16.gmra.mxu0 %v5643
  %v5858 = vpop.f32.mrf.mxu0
  %v5859 = vpop.f32.mrf.mxu0
  %5860 = vmatmul.bf16.gmra.mxu0 %v5646
  %v5861 = vpop.f32.mrf.mxu0
  %v5862 = vadd.f32 %v5245, %v5861
  %v5863 = vpop.f32.mrf.mxu0
  %v5864 = vadd.f32 %v5247, %v5863
  %5865 = vmatmul.bf16.gmra.mxu0 %v5649
  %v5866 = vpop.f32.mrf.mxu0
  %v5867 = vadd.f32 %v5250, %v5866
  %v5868 = vpop.f32.mrf.mxu0
  %v5869 = vadd.f32 %v5252, %v5868
  %5870 = vmatmul.bf16.gmra.mxu0 %v5652
  %v5871 = vpop.f32.mrf.mxu0
  %v5872 = vadd.f32 %v5255, %v5871
  %v5873 = vpop.f32.mrf.mxu0
  %v5874 = vadd.f32 %v5257, %v5873
  %5875 = vmatmul.bf16.gmra.mxu0 %v5655
  %v5876 = vpop.f32.mrf.mxu0
  %v5877 = vadd.f32 %v5260, %v5876
  %v5878 = vpop.f32.mrf.mxu0
  %v5879 = vadd.f32 %v5262, %v5878
  %5880 = vmatmul.bf16.gmra.mxu0 %v5658
  %v5881 = vpop.f32.mrf.mxu0
  %v5882 = vadd.f32 %v5265, %v5881
  %v5883 = vpop.f32.mrf.mxu0
  %v5884 = vadd.f32 %v5267, %v5883
  %5885 = vmatmul.bf16.gmra.mxu0 %v5661
  %v5886 = vpop.f32.mrf.mxu0
  %v5887 = vadd.f32 %v5270, %v5886
  %v5888 = vpop.f32.mrf.mxu0
  %v5889 = vadd.f32 %v5272, %v5888
  %5890 = vmatmul.bf16.gmra.mxu0 %v5664
  %v5891 = vpop.f32.mrf.mxu0
  %v5892 = vpop.f32.mrf.mxu0
  %5893 = vmatmul.bf16.gmra.mxu0 %v5667
  %v5894 = vpop.f32.mrf.mxu0
  %v5895 = vpop.f32.mrf.mxu0
  %5896 = vdwg.mxu0
  %s5897 = scalar_lea.vmem %s3, 16
  %v5898 = vld [vmem:[%s5897] sm:$0xf]
  %v5899 = vld [vmem:[%s5897 + $0x4] sm:$0x1]
  %v5912 = vunpack.c.l.b16 %v4231
  %v5913 = vunpack.c.l.b16 %v4232
  %v5914 = vunpack.c.l.b16 %v4249
  %v5915 = vunpack.c.l.b16 %v4250
  %v5916 = vunpack.c.l.b16 %v4267
  %v5917 = vunpack.c.l.b16 %v4268
  %v5918 = vunpack.c.l.b16 %v4285
  %v5919 = vunpack.c.l.b16 %v4286
  %v5920 = vunpack.c.l.b16 %v4303
  %v5921 = vunpack.c.l.b16 %v4304
  %v5922 = vunpack.c.l.b16 %v4321
  %v5923 = vunpack.c.l.b16 %v4322
  %v5924 = vpack.c.b16 %v5913, %v5912
  %v5925 = vpack.c.b16 %v5915, %v5914
  %v5926 = vpack.c.b16 %v5917, %v5916
  %v5927 = vpack.c.b16 %v5919, %v5918
  %v5928 = vpack.c.b16 %v5921, %v5920
  %v5929 = vpack.c.b16 %v5923, %v5922
  %v5932 = vunpack.c.l.b16 %v5898
  %v5933 = vunpack.c.l.b16 %v5899
  %v5934 = vpack.c.b16 %v5933, %v5932
  %v5936 = vsel %vm4907, %v5924, 0
  %v5939 = vsel %vm4907, %v5925, 0
  %v5942 = vsel %vm4907, %v5926, 0
  %v5945 = vsel %vm4907, %v5927, 0
  %v5948 = vsel %vm4907, %v5928, 0
  %v5951 = vsel %vm4907, %v5929, 0
  %v5954 = vsel %vm2560, %v5934, 0
  %5956 = vmatpush.bf16.msra.mxu0 0
  %5957 = vmatpush.bf16.msra.mxu0 0
  %5958 = vmatpush.bf16.msra.mxu0 0
  %5959 = vmatpush.bf16.msra.mxu0 0
  %5960 = vmatpush.bf16.msra.mxu0 0
  %5961 = vmatpush.bf16.msra.mxu0 0
  %5962 = vmatpush.bf16.msra.mxu0 0
  %5963 = vmatpush.bf16.msra.mxu0 %v5954
  %5964 = vmatmul.bf16.gmra.mxu0 %v5529
  %v5965 = vpop.f32.mrf.mxu0
  %v5966 = vadd.f32 0.0, %v5965
  %v5967 = vpop.f32.mrf.mxu0
  %v5968 = vadd.f32 0.0, %v5967
  %5969 = vmatmul.bf16.gmra.mxu0 %v5532
  %v5970 = vpop.f32.mrf.mxu0
  %v5971 = vadd.f32 0.0, %v5970
  %v5972 = vpop.f32.mrf.mxu0
  %v5973 = vadd.f32 0.0, %v5972
  %5974 = vmatmul.bf16.gmra.mxu0 %v5535
  %v5975 = vpop.f32.mrf.mxu0
  %v5976 = vadd.f32 0.0, %v5975
  %v5977 = vpop.f32.mrf.mxu0
  %v5978 = vadd.f32 0.0, %v5977
  %5979 = vmatmul.bf16.gmra.mxu0 %v5538
  %v5980 = vpop.f32.mrf.mxu0
  %v5981 = vadd.f32 0.0, %v5980
  %v5982 = vpop.f32.mrf.mxu0
  %v5983 = vadd.f32 0.0, %v5982
  %5984 = vmatmul.bf16.gmra.mxu0 %v5541
  %v5985 = vpop.f32.mrf.mxu0
  %v5986 = vadd.f32 0.0, %v5985
  %v5987 = vpop.f32.mrf.mxu0
  %v5988 = vadd.f32 0.0, %v5987
  %5989 = vmatmul.bf16.gmra.mxu0 %v5544
  %v5990 = vpop.f32.mrf.mxu0
  %v5991 = vadd.f32 0.0, %v5990
  %v5992 = vpop.f32.mrf.mxu0
  %v5993 = vadd.f32 0.0, %v5992
  %5994 = vmatmul.bf16.gmra.mxu0 %v5547
  %v5995 = vpop.f32.mrf.mxu0
  %v5996 = vpop.f32.mrf.mxu0
  %5997 = vmatmul.bf16.gmra.mxu0 %v5936
  %v5998 = vpop.f32.mrf.mxu0
  %v5999 = vpop.f32.mrf.mxu0
  %6000 = vmatmul.bf16.gmra.mxu0 %v5553
  %v6001 = vpop.f32.mrf.mxu0
  %v6002 = vadd.f32 0.0, %v6001
  %v6003 = vpop.f32.mrf.mxu0
  %v6004 = vadd.f32 0.0, %v6003
  %6005 = vmatmul.bf16.gmra.mxu0 %v5556
  %v6006 = vpop.f32.mrf.mxu0
  %v6007 = vadd.f32 0.0, %v6006
  %v6008 = vpop.f32.mrf.mxu0
  %v6009 = vadd.f32 0.0, %v6008
  %6010 = vmatmul.bf16.gmra.mxu0 %v5559
  %v6011 = vpop.f32.mrf.mxu0
  %v6012 = vadd.f32 0.0, %v6011
  %v6013 = vpop.f32.mrf.mxu0
  %v6014 = vadd.f32 0.0, %v6013
  %6015 = vmatmul.bf16.gmra.mxu0 %v5562
  %v6016 = vpop.f32.mrf.mxu0
  %v6017 = vadd.f32 0.0, %v6016
  %v6018 = vpop.f32.mrf.mxu0
  %v6019 = vadd.f32 0.0, %v6018
  %6020 = vmatmul.bf16.gmra.mxu0 %v5565
  %v6021 = vpop.f32.mrf.mxu0
  %v6022 = vadd.f32 0.0, %v6021
  %v6023 = vpop.f32.mrf.mxu0
  %v6024 = vadd.f32 0.0, %v6023
  %6025 = vmatmul.bf16.gmra.mxu0 %v5568
  %v6026 = vpop.f32.mrf.mxu0
  %v6027 = vadd.f32 0.0, %v6026
  %v6028 = vpop.f32.mrf.mxu0
  %v6029 = vadd.f32 0.0, %v6028
  %6030 = vmatmul.bf16.gmra.mxu0 %v5571
  %v6031 = vpop.f32.mrf.mxu0
  %v6032 = vpop.f32.mrf.mxu0
  %6033 = vmatmul.bf16.gmra.mxu0 %v5939
  %v6034 = vpop.f32.mrf.mxu0
  %v6035 = vpop.f32.mrf.mxu0
  %6036 = vmatmul.bf16.gmra.mxu0 %v5577
  %v6037 = vpop.f32.mrf.mxu0
  %v6038 = vadd.f32 0.0, %v6037
  %v6039 = vpop.f32.mrf.mxu0
  %v6040 = vadd.f32 0.0, %v6039
  %6041 = vmatmul.bf16.gmra.mxu0 %v5580
  %v6042 = vpop.f32.mrf.mxu0
  %v6043 = vadd.f32 0.0, %v6042
  %v6044 = vpop.f32.mrf.mxu0
  %v6045 = vadd.f32 0.0, %v6044
  %6046 = vmatmul.bf16.gmra.mxu0 %v5583
  %v6047 = vpop.f32.mrf.mxu0
  %v6048 = vadd.f32 0.0, %v6047
  %v6049 = vpop.f32.mrf.mxu0
  %v6050 = vadd.f32 0.0, %v6049
  %6051 = vmatmul.bf16.gmra.mxu0 %v5586
  %v6052 = vpop.f32.mrf.mxu0
  %v6053 = vadd.f32 0.0, %v6052
  %v6054 = vpop.f32.mrf.mxu0
  %v6055 = vadd.f32 0.0, %v6054
  %6056 = vmatmul.bf16.gmra.mxu0 %v5589
  %v6057 = vpop.f32.mrf.mxu0
  %v6058 = vadd.f32 0.0, %v6057
  %v6059 = vpop.f32.mrf.mxu0
  %v6060 = vadd.f32 0.0, %v6059
  %6061 = vmatmul.bf16.gmra.mxu0 %v5592
  %v6062 = vpop.f32.mrf.mxu0
  %v6063 = vadd.f32 0.0, %v6062
  %v6064 = vpop.f32.mrf.mxu0
  %v6065 = vadd.f32 0.0, %v6064
  %6066 = vmatmul.bf16.gmra.mxu0 %v5595
  %v6067 = vpop.f32.mrf.mxu0
  %v6068 = vpop.f32.mrf.mxu0
  %6069 = vmatmul.bf16.gmra.mxu0 %v5942
  %v6070 = vpop.f32.mrf.mxu0
  %v6071 = vpop.f32.mrf.mxu0
  %6072 = vmatmul.bf16.gmra.mxu0 %v5601
  %v6073 = vpop.f32.mrf.mxu0
  %v6074 = vadd.f32 0.0, %v6073
  %v6075 = vpop.f32.mrf.mxu0
  %v6076 = vadd.f32 0.0, %v6075
  %6077 = vmatmul.bf16.gmra.mxu0 %v5604
  %v6078 = vpop.f32.mrf.mxu0
  %v6079 = vadd.f32 0.0, %v6078
  %v6080 = vpop.f32.mrf.mxu0
  %v6081 = vadd.f32 0.0, %v6080
  %6082 = vmatmul.bf16.gmra.mxu0 %v5607
  %v6083 = vpop.f32.mrf.mxu0
  %v6084 = vadd.f32 0.0, %v6083
  %v6085 = vpop.f32.mrf.mxu0
  %v6086 = vadd.f32 0.0, %v6085
  %6087 = vmatmul.bf16.gmra.mxu0 %v5610
  %v6088 = vpop.f32.mrf.mxu0
  %v6089 = vadd.f32 0.0, %v6088
  %v6090 = vpop.f32.mrf.mxu0
  %v6091 = vadd.f32 0.0, %v6090
  %6092 = vmatmul.bf16.gmra.mxu0 %v5613
  %v6093 = vpop.f32.mrf.mxu0
  %v6094 = vadd.f32 0.0, %v6093
  %v6095 = vpop.f32.mrf.mxu0
  %v6096 = vadd.f32 0.0, %v6095
  %6097 = vmatmul.bf16.gmra.mxu0 %v5616
  %v6098 = vpop.f32.mrf.mxu0
  %v6099 = vadd.f32 0.0, %v6098
  %v6100 = vpop.f32.mrf.mxu0
  %v6101 = vadd.f32 0.0, %v6100
  %6102 = vmatmul.bf16.gmra.mxu0 %v5619
  %v6103 = vpop.f32.mrf.mxu0
  %v6104 = vpop.f32.mrf.mxu0
  %6105 = vmatmul.bf16.gmra.mxu0 %v5945
  %v6106 = vpop.f32.mrf.mxu0
  %v6107 = vpop.f32.mrf.mxu0
  %6108 = vmatmul.bf16.gmra.mxu0 %v5625
  %v6109 = vpop.f32.mrf.mxu0
  %v6110 = vadd.f32 0.0, %v6109
  %v6111 = vpop.f32.mrf.mxu0
  %v6112 = vadd.f32 0.0, %v6111
  %6113 = vmatmul.bf16.gmra.mxu0 %v5628
  %v6114 = vpop.f32.mrf.mxu0
  %v6115 = vadd.f32 0.0, %v6114
  %v6116 = vpop.f32.mrf.mxu0
  %v6117 = vadd.f32 0.0, %v6116
  %6118 = vmatmul.bf16.gmra.mxu0 %v5631
  %v6119 = vpop.f32.mrf.mxu0
  %v6120 = vadd.f32 0.0, %v6119
  %v6121 = vpop.f32.mrf.mxu0
  %v6122 = vadd.f32 0.0, %v6121
  %6123 = vmatmul.bf16.gmra.mxu0 %v5634
  %v6124 = vpop.f32.mrf.mxu0
  %v6125 = vadd.f32 0.0, %v6124
  %v6126 = vpop.f32.mrf.mxu0
  %v6127 = vadd.f32 0.0, %v6126
  %6128 = vmatmul.bf16.gmra.mxu0 %v5637
  %v6129 = vpop.f32.mrf.mxu0
  %v6130 = vadd.f32 0.0, %v6129
  %v6131 = vpop.f32.mrf.mxu0
  %v6132 = vadd.f32 0.0, %v6131
  %6133 = vmatmul.bf16.gmra.mxu0 %v5640
  %v6134 = vpop.f32.mrf.mxu0
  %v6135 = vadd.f32 0.0, %v6134
  %v6136 = vpop.f32.mrf.mxu0
  %v6137 = vadd.f32 0.0, %v6136
  %6138 = vmatmul.bf16.gmra.mxu0 %v5643
  %v6139 = vpop.f32.mrf.mxu0
  %v6140 = vpop.f32.mrf.mxu0
  %6141 = vmatmul.bf16.gmra.mxu0 %v5948
  %v6142 = vpop.f32.mrf.mxu0
  %v6143 = vpop.f32.mrf.mxu0
  %6144 = vmatmul.bf16.gmra.mxu0 %v5649
  %v6145 = vpop.f32.mrf.mxu0
  %v6146 = vadd.f32 0.0, %v6145
  %v6147 = vpop.f32.mrf.mxu0
  %v6148 = vadd.f32 0.0, %v6147
  %6149 = vmatmul.bf16.gmra.mxu0 %v5652
  %v6150 = vpop.f32.mrf.mxu0
  %v6151 = vadd.f32 0.0, %v6150
  %v6152 = vpop.f32.mrf.mxu0
  %v6153 = vadd.f32 0.0, %v6152
  %6154 = vmatmul.bf16.gmra.mxu0 %v5655
  %v6155 = vpop.f32.mrf.mxu0
  %v6156 = vadd.f32 0.0, %v6155
  %v6157 = vpop.f32.mrf.mxu0
  %v6158 = vadd.f32 0.0, %v6157
  %6159 = vmatmul.bf16.gmra.mxu0 %v5658
  %v6160 = vpop.f32.mrf.mxu0
  %v6161 = vadd.f32 0.0, %v6160
  %v6162 = vpop.f32.mrf.mxu0
  %v6163 = vadd.f32 0.0, %v6162
  %6164 = vmatmul.bf16.gmra.mxu0 %v5661
  %v6165 = vpop.f32.mrf.mxu0
  %v6166 = vadd.f32 0.0, %v6165
  %v6167 = vpop.f32.mrf.mxu0
  %v6168 = vadd.f32 0.0, %v6167
  %6169 = vmatmul.bf16.gmra.mxu0 %v5664
  %v6170 = vpop.f32.mrf.mxu0
  %v6171 = vadd.f32 0.0, %v6170
  %v6172 = vpop.f32.mrf.mxu0
  %v6173 = vadd.f32 0.0, %v6172
  %6174 = vmatmul.bf16.gmra.mxu0 %v5667
  %v6175 = vpop.f32.mrf.mxu0
  %v6176 = vpop.f32.mrf.mxu0
  %6177 = vmatmul.bf16.gmra.mxu0 %v5951
  %v6178 = vpop.f32.mrf.mxu0
  %v6179 = vpop.f32.mrf.mxu0
  %6180 = vdwg.mxu0
  %v6181 = vadd.f32 %v5682, %v5966
  %v6182 = vadd.f32 %v5684, %v5968
  %v6183 = vadd.f32 %v5687, %v5971
  %v6184 = vadd.f32 %v5689, %v5973
  %v6185 = vadd.f32 %v5692, %v5976
  %v6186 = vadd.f32 %v5694, %v5978
  %v6187 = vadd.f32 %v5697, %v5981
  %v6188 = vadd.f32 %v5699, %v5983
  %v6189 = vadd.f32 %v5702, %v5986
  %v6190 = vadd.f32 %v5704, %v5988
  %v6191 = vadd.f32 %v5707, %v5991
  %v6192 = vadd.f32 %v5709, %v5993
  %v6193 = vadd.f32 %v5718, %v6002
  %v6194 = vadd.f32 %v5720, %v6004
  %v6195 = vadd.f32 %v5723, %v6007
  %v6196 = vadd.f32 %v5725, %v6009
  %v6197 = vadd.f32 %v5728, %v6012
  %v6198 = vadd.f32 %v5730, %v6014
  %v6199 = vadd.f32 %v5733, %v6017
  %v6200 = vadd.f32 %v5735, %v6019
  %v6201 = vadd.f32 %v5738, %v6022
  %v6202 = vadd.f32 %v5740, %v6024
  %v6203 = vadd.f32 %v5743, %v6027
  %v6204 = vadd.f32 %v5745, %v6029
  %v6205 = vadd.f32 %v5754, %v6038
  %v6206 = vadd.f32 %v5756, %v6040
  %v6207 = vadd.f32 %v5759, %v6043
  %v6208 = vadd.f32 %v5761, %v6045
  %v6209 = vadd.f32 %v5764, %v6048
  %v6210 = vadd.f32 %v5766, %v6050
  %v6211 = vadd.f32 %v5769, %v6053
  %v6212 = vadd.f32 %v5771, %v6055
  %v6213 = vadd.f32 %v5774, %v6058
  %v6214 = vadd.f32 %v5776, %v6060
  %v6215 = vadd.f32 %v5779, %v6063
  %v6216 = vadd.f32 %v5781, %v6065
  %v6217 = vadd.f32 %v5790, %v6074
  %v6218 = vadd.f32 %v5792, %v6076
  %v6219 = vadd.f32 %v5795, %v6079
  %v6220 = vadd.f32 %v5797, %v6081
  %v6221 = vadd.f32 %v5800, %v6084
  %v6222 = vadd.f32 %v5802, %v6086
  %v6223 = vadd.f32 %v5805, %v6089
  %v6224 = vadd.f32 %v5807, %v6091
  %v6225 = vadd.f32 %v5810, %v6094
  %v6226 = vadd.f32 %v5812, %v6096
  %v6227 = vadd.f32 %v5815, %v6099
  %v6228 = vadd.f32 %v5817, %v6101
  %v6229 = vadd.f32 %v5826, %v6110
  %v6230 = vadd.f32 %v5828, %v6112
  %v6231 = vadd.f32 %v5831, %v6115
  %v6232 = vadd.f32 %v5833, %v6117
  %v6233 = vadd.f32 %v5836, %v6120
  %v6234 = vadd.f32 %v5838, %v6122
  %v6235 = vadd.f32 %v5841, %v6125
  %v6236 = vadd.f32 %v5843, %v6127
  %v6237 = vadd.f32 %v5846, %v6130
  %v6238 = vadd.f32 %v5848, %v6132
  %v6239 = vadd.f32 %v5851, %v6135
  %v6240 = vadd.f32 %v5853, %v6137
  %v6241 = vadd.f32 %v5862, %v6146
  %v6242 = vadd.f32 %v5864, %v6148
  %v6243 = vadd.f32 %v5867, %v6151
  %v6244 = vadd.f32 %v5869, %v6153
  %v6245 = vadd.f32 %v5872, %v6156
  %v6246 = vadd.f32 %v5874, %v6158
  %v6247 = vadd.f32 %v5877, %v6161
  %v6248 = vadd.f32 %v5879, %v6163
  %v6249 = vadd.f32 %v5882, %v6166
  %v6250 = vadd.f32 %v5884, %v6168
  %v6251 = vadd.f32 %v5887, %v6171
  %v6252 = vadd.f32 %v5889, %v6173
  %s6253 = scalar_lea.vmem %s3, 24
  %v6254 = vld [vmem:[%s6253] sm:$0xf]
  %v6255 = vld [vmem:[%s6253 + $0x4] sm:$0x1]
  %v6352 = vunpack.c.l.b16 %v4453
  %v6353 = vunpack.c.l.b16 %v4454
  %v6354 = vunpack.c.l.b16 %v4455
  %v6355 = vunpack.c.l.b16 %v4456
  %v6356 = vunpack.c.l.b16 %v4457
  %v6357 = vunpack.c.l.b16 %v4458
  %v6358 = vunpack.c.l.b16 %v4459
  %v6359 = vunpack.c.l.b16 %v4460
  %v6360 = vunpack.c.l.b16 %v4461
  %v6361 = vunpack.c.l.b16 %v4462
  %v6362 = vunpack.c.l.b16 %v4463
  %v6363 = vunpack.c.l.b16 %v4464
  %v6364 = vunpack.c.l.b16 %v4465
  %v6365 = vunpack.c.l.b16 %v4466
  %v6366 = vunpack.c.l.b16 %v4467
  %v6367 = vunpack.c.l.b16 %v4468
  %v6368 = vunpack.c.l.b16 %v4471
  %v6369 = vunpack.c.l.b16 %v4472
  %v6370 = vunpack.c.l.b16 %v4473
  %v6371 = vunpack.c.l.b16 %v4474
  %v6372 = vunpack.c.l.b16 %v4475
  %v6373 = vunpack.c.l.b16 %v4476
  %v6374 = vunpack.c.l.b16 %v4477
  %v6375 = vunpack.c.l.b16 %v4478
  %v6376 = vunpack.c.l.b16 %v4479
  %v6377 = vunpack.c.l.b16 %v4480
  %v6378 = vunpack.c.l.b16 %v4481
  %v6379 = vunpack.c.l.b16 %v4482
  %v6380 = vunpack.c.l.b16 %v4483
  %v6381 = vunpack.c.l.b16 %v4484
  %v6382 = vunpack.c.l.b16 %v4485
  %v6383 = vunpack.c.l.b16 %v4486
  %v6384 = vunpack.c.l.b16 %v4489
  %v6385 = vunpack.c.l.b16 %v4490
  %v6386 = vunpack.c.l.b16 %v4491
  %v6387 = vunpack.c.l.b16 %v4492
  %v6388 = vunpack.c.l.b16 %v4493
  %v6389 = vunpack.c.l.b16 %v4494
  %v6390 = vunpack.c.l.b16 %v4495
  %v6391 = vunpack.c.l.b16 %v4496
  %v6392 = vunpack.c.l.b16 %v4497
  %v6393 = vunpack.c.l.b16 %v4498
  %v6394 = vunpack.c.l.b16 %v4499
  %v6395 = vunpack.c.l.b16 %v4500
  %v6396 = vunpack.c.l.b16 %v4501
  %v6397 = vunpack.c.l.b16 %v4502
  %v6398 = vunpack.c.l.b16 %v4503
  %v6399 = vunpack.c.l.b16 %v4504
  %v6400 = vunpack.c.l.b16 %v4507
  %v6401 = vunpack.c.l.b16 %v4508
  %v6402 = vunpack.c.l.b16 %v4509
  %v6403 = vunpack.c.l.b16 %v4510
  %v6404 = vunpack.c.l.b16 %v4511
  %v6405 = vunpack.c.l.b16 %v4512
  %v6406 = vunpack.c.l.b16 %v4513
  %v6407 = vunpack.c.l.b16 %v4514
  %v6408 = vunpack.c.l.b16 %v4515
  %v6409 = vunpack.c.l.b16 %v4516
  %v6410 = vunpack.c.l.b16 %v4517
  %v6411 = vunpack.c.l.b16 %v4518
  %v6412 = vunpack.c.l.b16 %v4519
  %v6413 = vunpack.c.l.b16 %v4520
  %v6414 = vunpack.c.l.b16 %v4521
  %v6415 = vunpack.c.l.b16 %v4522
  %v6416 = vunpack.c.l.b16 %v4525
  %v6417 = vunpack.c.l.b16 %v4526
  %v6418 = vunpack.c.l.b16 %v4527
  %v6419 = vunpack.c.l.b16 %v4528
  %v6420 = vunpack.c.l.b16 %v4529
  %v6421 = vunpack.c.l.b16 %v4530
  %v6422 = vunpack.c.l.b16 %v4531
  %v6423 = vunpack.c.l.b16 %v4532
  %v6424 = vunpack.c.l.b16 %v4533
  %v6425 = vunpack.c.l.b16 %v4534
  %v6426 = vunpack.c.l.b16 %v4535
  %v6427 = vunpack.c.l.b16 %v4536
  %v6428 = vunpack.c.l.b16 %v4537
  %v6429 = vunpack.c.l.b16 %v4538
  %v6430 = vunpack.c.l.b16 %v4539
  %v6431 = vunpack.c.l.b16 %v4540
  %v6432 = vunpack.c.l.b16 %v4543
  %v6433 = vunpack.c.l.b16 %v4544
  %v6434 = vunpack.c.l.b16 %v4545
  %v6435 = vunpack.c.l.b16 %v4546
  %v6436 = vunpack.c.l.b16 %v4547
  %v6437 = vunpack.c.l.b16 %v4548
  %v6438 = vunpack.c.l.b16 %v4549
  %v6439 = vunpack.c.l.b16 %v4550
  %v6440 = vunpack.c.l.b16 %v4551
  %v6441 = vunpack.c.l.b16 %v4552
  %v6442 = vunpack.c.l.b16 %v4553
  %v6443 = vunpack.c.l.b16 %v4554
  %v6444 = vunpack.c.l.b16 %v4555
  %v6445 = vunpack.c.l.b16 %v4556
  %v6446 = vunpack.c.l.b16 %v4557
  %v6447 = vunpack.c.l.b16 %v4558
  %v6448 = vpack.c.b16 %v6353, %v6352
  %v6449 = vpack.c.b16 %v6355, %v6354
  %v6450 = vpack.c.b16 %v6357, %v6356
  %v6451 = vpack.c.b16 %v6359, %v6358
  %v6452 = vpack.c.b16 %v6361, %v6360
  %v6453 = vpack.c.b16 %v6363, %v6362
  %v6454 = vpack.c.b16 %v6365, %v6364
  %v6455 = vpack.c.b16 %v6367, %v6366
  %v6456 = vpack.c.b16 %v6369, %v6368
  %v6457 = vpack.c.b16 %v6371, %v6370
  %v6458 = vpack.c.b16 %v6373, %v6372
  %v6459 = vpack.c.b16 %v6375, %v6374
  %v6460 = vpack.c.b16 %v6377, %v6376
  %v6461 = vpack.c.b16 %v6379, %v6378
  %v6462 = vpack.c.b16 %v6381, %v6380
  %v6463 = vpack.c.b16 %v6383, %v6382
  %v6464 = vpack.c.b16 %v6385, %v6384
  %v6465 = vpack.c.b16 %v6387, %v6386
  %v6466 = vpack.c.b16 %v6389, %v6388
  %v6467 = vpack.c.b16 %v6391, %v6390
  %v6468 = vpack.c.b16 %v6393, %v6392
  %v6469 = vpack.c.b16 %v6395, %v6394
  %v6470 = vpack.c.b16 %v6397, %v6396
  %v6471 = vpack.c.b16 %v6399, %v6398
  %v6472 = vpack.c.b16 %v6401, %v6400
  %v6473 = vpack.c.b16 %v6403, %v6402
  %v6474 = vpack.c.b16 %v6405, %v6404
  %v6475 = vpack.c.b16 %v6407, %v6406
  %v6476 = vpack.c.b16 %v6409, %v6408
  %v6477 = vpack.c.b16 %v6411, %v6410
  %v6478 = vpack.c.b16 %v6413, %v6412
  %v6479 = vpack.c.b16 %v6415, %v6414
  %v6480 = vpack.c.b16 %v6417, %v6416
  %v6481 = vpack.c.b16 %v6419, %v6418
  %v6482 = vpack.c.b16 %v6421, %v6420
  %v6483 = vpack.c.b16 %v6423, %v6422
  %v6484 = vpack.c.b16 %v6425, %v6424
  %v6485 = vpack.c.b16 %v6427, %v6426
  %v6486 = vpack.c.b16 %v6429, %v6428
  %v6487 = vpack.c.b16 %v6431, %v6430
  %v6488 = vpack.c.b16 %v6433, %v6432
  %v6489 = vpack.c.b16 %v6435, %v6434
  %v6490 = vpack.c.b16 %v6437, %v6436
  %v6491 = vpack.c.b16 %v6439, %v6438
  %v6492 = vpack.c.b16 %v6441, %v6440
  %v6493 = vpack.c.b16 %v6443, %v6442
  %v6494 = vpack.c.b16 %v6445, %v6444
  %v6495 = vpack.c.b16 %v6447, %v6446
  %v6498 = vunpack.c.l.b16 %v6254
  %v6499 = vunpack.c.l.b16 %v6255
  %v6500 = vpack.c.b16 %v6499, %v6498
  %v6502 = vsel %vm4907, %v6448, 0
  %v6505 = vsel %vm4907, %v6449, 0
  %v6508 = vsel %vm4907, %v6450, 0
  %v6511 = vsel %vm4907, %v6451, 0
  %v6514 = vsel %vm4907, %v6452, 0
  %v6517 = vsel %vm4907, %v6453, 0
  %v6520 = vsel %vm4907, %v6454, 0
  %v6523 = vsel %vm4907, %v6455, 0
  %v6526 = vsel %vm4907, %v6456, 0
  %v6529 = vsel %vm4907, %v6457, 0
  %v6532 = vsel %vm4907, %v6458, 0
  %v6535 = vsel %vm4907, %v6459, 0
  %v6538 = vsel %vm4907, %v6460, 0
  %v6541 = vsel %vm4907, %v6461, 0
  %v6544 = vsel %vm4907, %v6462, 0
  %v6547 = vsel %vm4907, %v6463, 0
  %v6550 = vsel %vm4907, %v6464, 0
  %v6553 = vsel %vm4907, %v6465, 0
  %v6556 = vsel %vm4907, %v6466, 0
  %v6559 = vsel %vm4907, %v6467, 0
  %v6562 = vsel %vm4907, %v6468, 0
  %v6565 = vsel %vm4907, %v6469, 0
  %v6568 = vsel %vm4907, %v6470, 0
  %v6571 = vsel %vm4907, %v6471, 0
  %v6574 = vsel %vm4907, %v6472, 0
  %v6577 = vsel %vm4907, %v6473, 0
  %v6580 = vsel %vm4907, %v6474, 0
  %v6583 = vsel %vm4907, %v6475, 0
  %v6586 = vsel %vm4907, %v6476, 0
  %v6589 = vsel %vm4907, %v6477, 0
  %v6592 = vsel %vm4907, %v6478, 0
  %v6595 = vsel %vm4907, %v6479, 0
  %v6598 = vsel %vm4907, %v6480, 0
  %v6601 = vsel %vm4907, %v6481, 0
  %v6604 = vsel %vm4907, %v6482, 0
  %v6607 = vsel %vm4907, %v6483, 0
  %v6610 = vsel %vm4907, %v6484, 0
  %v6613 = vsel %vm4907, %v6485, 0
  %v6616 = vsel %vm4907, %v6486, 0
  %v6619 = vsel %vm4907, %v6487, 0
  %v6622 = vsel %vm4907, %v6488, 0
  %v6625 = vsel %vm4907, %v6489, 0
  %v6628 = vsel %vm4907, %v6490, 0
  %v6631 = vsel %vm4907, %v6491, 0
  %v6634 = vsel %vm4907, %v6492, 0
  %v6637 = vsel %vm4907, %v6493, 0
  %v6640 = vsel %vm4907, %v6494, 0
  %v6643 = vsel %vm4907, %v6495, 0
  %v6646 = vsel %vm2560, %v6500, 0
  %6648 = vmatpush.bf16.msra.mxu0 0
  %6649 = vmatpush.bf16.msra.mxu0 0
  %6650 = vmatpush.bf16.msra.mxu0 0
  %6651 = vmatpush.bf16.msra.mxu0 0
  %6652 = vmatpush.bf16.msra.mxu0 0
  %6653 = vmatpush.bf16.msra.mxu0 0
  %6654 = vmatpush.bf16.msra.mxu0 0
  %6655 = vmatpush.bf16.msra.mxu0 %v6646
  %6656 = vmatmul.bf16.gmra.mxu0 %v6502
  %v6657 = vpop.f32.mrf.mxu0
  %v6658 = vadd.f32 0.0, %v6657
  %v6659 = vpop.f32.mrf.mxu0
  %v6660 = vadd.f32 0.0, %v6659
  %6661 = vmatmul.bf16.gmra.mxu0 %v6505
  %v6662 = vpop.f32.mrf.mxu0
  %v6663 = vadd.f32 0.0, %v6662
  %v6664 = vpop.f32.mrf.mxu0
  %v6665 = vadd.f32 0.0, %v6664
  %6666 = vmatmul.bf16.gmra.mxu0 %v6508
  %v6667 = vpop.f32.mrf.mxu0
  %v6668 = vadd.f32 0.0, %v6667
  %v6669 = vpop.f32.mrf.mxu0
  %v6670 = vadd.f32 0.0, %v6669
  %6671 = vmatmul.bf16.gmra.mxu0 %v6511
  %v6672 = vpop.f32.mrf.mxu0
  %v6673 = vadd.f32 0.0, %v6672
  %v6674 = vpop.f32.mrf.mxu0
  %v6675 = vadd.f32 0.0, %v6674
  %6676 = vmatmul.bf16.gmra.mxu0 %v6514
  %v6677 = vpop.f32.mrf.mxu0
  %v6678 = vadd.f32 0.0, %v6677
  %v6679 = vpop.f32.mrf.mxu0
  %v6680 = vadd.f32 0.0, %v6679
  %6681 = vmatmul.bf16.gmra.mxu0 %v6517
  %v6682 = vpop.f32.mrf.mxu0
  %v6683 = vadd.f32 0.0, %v6682
  %v6684 = vpop.f32.mrf.mxu0
  %v6685 = vadd.f32 0.0, %v6684
  %6686 = vmatmul.bf16.gmra.mxu0 %v6520
  %v6687 = vpop.f32.mrf.mxu0
  %v6688 = vpop.f32.mrf.mxu0
  %6689 = vmatmul.bf16.gmra.mxu0 %v6523
  %v6690 = vpop.f32.mrf.mxu0
  %v6691 = vpop.f32.mrf.mxu0
  %6692 = vmatmul.bf16.gmra.mxu0 %v6526
  %v6693 = vpop.f32.mrf.mxu0
  %v6694 = vadd.f32 0.0, %v6693
  %v6695 = vpop.f32.mrf.mxu0
  %v6696 = vadd.f32 0.0, %v6695
  %6697 = vmatmul.bf16.gmra.mxu0 %v6529
  %v6698 = vpop.f32.mrf.mxu0
  %v6699 = vadd.f32 0.0, %v6698
  %v6700 = vpop.f32.mrf.mxu0
  %v6701 = vadd.f32 0.0, %v6700
  %6702 = vmatmul.bf16.gmra.mxu0 %v6532
  %v6703 = vpop.f32.mrf.mxu0
  %v6704 = vadd.f32 0.0, %v6703
  %v6705 = vpop.f32.mrf.mxu0
  %v6706 = vadd.f32 0.0, %v6705
  %6707 = vmatmul.bf16.gmra.mxu0 %v6535
  %v6708 = vpop.f32.mrf.mxu0
  %v6709 = vadd.f32 0.0, %v6708
  %v6710 = vpop.f32.mrf.mxu0
  %v6711 = vadd.f32 0.0, %v6710
  %6712 = vmatmul.bf16.gmra.mxu0 %v6538
  %v6713 = vpop.f32.mrf.mxu0
  %v6714 = vadd.f32 0.0, %v6713
  %v6715 = vpop.f32.mrf.mxu0
  %v6716 = vadd.f32 0.0, %v6715
  %6717 = vmatmul.bf16.gmra.mxu0 %v6541
  %v6718 = vpop.f32.mrf.mxu0
  %v6719 = vadd.f32 0.0, %v6718
  %v6720 = vpop.f32.mrf.mxu0
  %v6721 = vadd.f32 0.0, %v6720
  %6722 = vmatmul.bf16.gmra.mxu0 %v6544
  %v6723 = vpop.f32.mrf.mxu0
  %v6724 = vpop.f32.mrf.mxu0
  %6725 = vmatmul.bf16.gmra.mxu0 %v6547
  %v6726 = vpop.f32.mrf.mxu0
  %v6727 = vpop.f32.mrf.mxu0
  %6728 = vmatmul.bf16.gmra.mxu0 %v6550
  %v6729 = vpop.f32.mrf.mxu0
  %v6730 = vadd.f32 0.0, %v6729
  %v6731 = vpop.f32.mrf.mxu0
  %v6732 = vadd.f32 0.0, %v6731
  %6733 = vmatmul.bf16.gmra.mxu0 %v6553
  %v6734 = vpop.f32.mrf.mxu0
  %v6735 = vadd.f32 0.0, %v6734
  %v6736 = vpop.f32.mrf.mxu0
  %v6737 = vadd.f32 0.0, %v6736
  %6738 = vmatmul.bf16.gmra.mxu0 %v6556
  %v6739 = vpop.f32.mrf.mxu0
  %v6740 = vadd.f32 0.0, %v6739
  %v6741 = vpop.f32.mrf.mxu0
  %v6742 = vadd.f32 0.0, %v6741
  %6743 = vmatmul.bf16.gmra.mxu0 %v6559
  %v6744 = vpop.f32.mrf.mxu0
  %v6745 = vadd.f32 0.0, %v6744
  %v6746 = vpop.f32.mrf.mxu0
  %v6747 = vadd.f32 0.0, %v6746
  %6748 = vmatmul.bf16.gmra.mxu0 %v6562
  %v6749 = vpop.f32.mrf.mxu0
  %v6750 = vadd.f32 0.0, %v6749
  %v6751 = vpop.f32.mrf.mxu0
  %v6752 = vadd.f32 0.0, %v6751
  %6753 = vmatmul.bf16.gmra.mxu0 %v6565
  %v6754 = vpop.f32.mrf.mxu0
  %v6755 = vadd.f32 0.0, %v6754
  %v6756 = vpop.f32.mrf.mxu0
  %v6757 = vadd.f32 0.0, %v6756
  %6758 = vmatmul.bf16.gmra.mxu0 %v6568
  %v6759 = vpop.f32.mrf.mxu0
  %v6760 = vpop.f32.mrf.mxu0
  %6761 = vmatmul.bf16.gmra.mxu0 %v6571
  %v6762 = vpop.f32.mrf.mxu0
  %v6763 = vpop.f32.mrf.mxu0
  %6764 = vmatmul.bf16.gmra.mxu0 %v6574
  %v6765 = vpop.f32.mrf.mxu0
  %v6766 = vadd.f32 0.0, %v6765
  %v6767 = vpop.f32.mrf.mxu0
  %v6768 = vadd.f32 0.0, %v6767
  %6769 = vmatmul.bf16.gmra.mxu0 %v6577
  %v6770 = vpop.f32.mrf.mxu0
  %v6771 = vadd.f32 0.0, %v6770
  %v6772 = vpop.f32.mrf.mxu0
  %v6773 = vadd.f32 0.0, %v6772
  %6774 = vmatmul.bf16.gmra.mxu0 %v6580
  %v6775 = vpop.f32.mrf.mxu0
  %v6776 = vadd.f32 0.0, %v6775
  %v6777 = vpop.f32.mrf.mxu0
  %v6778 = vadd.f32 0.0, %v6777
  %6779 = vmatmul.bf16.gmra.mxu0 %v6583
  %v6780 = vpop.f32.mrf.mxu0
  %v6781 = vadd.f32 0.0, %v6780
  %v6782 = vpop.f32.mrf.mxu0
  %v6783 = vadd.f32 0.0, %v6782
  %6784 = vmatmul.bf16.gmra.mxu0 %v6586
  %v6785 = vpop.f32.mrf.mxu0
  %v6786 = vadd.f32 0.0, %v6785
  %v6787 = vpop.f32.mrf.mxu0
  %v6788 = vadd.f32 0.0, %v6787
  %6789 = vmatmul.bf16.gmra.mxu0 %v6589
  %v6790 = vpop.f32.mrf.mxu0
  %v6791 = vadd.f32 0.0, %v6790
  %v6792 = vpop.f32.mrf.mxu0
  %v6793 = vadd.f32 0.0, %v6792
  %6794 = vmatmul.bf16.gmra.mxu0 %v6592
  %v6795 = vpop.f32.mrf.mxu0
  %v6796 = vpop.f32.mrf.mxu0
  %6797 = vmatmul.bf16.gmra.mxu0 %v6595
  %v6798 = vpop.f32.mrf.mxu0
  %v6799 = vpop.f32.mrf.mxu0
  %6800 = vmatmul.bf16.gmra.mxu0 %v6598
  %v6801 = vpop.f32.mrf.mxu0
  %v6802 = vadd.f32 0.0, %v6801
  %v6803 = vpop.f32.mrf.mxu0
  %v6804 = vadd.f32 0.0, %v6803
  %6805 = vmatmul.bf16.gmra.mxu0 %v6601
  %v6806 = vpop.f32.mrf.mxu0
  %v6807 = vadd.f32 0.0, %v6806
  %v6808 = vpop.f32.mrf.mxu0
  %v6809 = vadd.f32 0.0, %v6808
  %6810 = vmatmul.bf16.gmra.mxu0 %v6604
  %v6811 = vpop.f32.mrf.mxu0
  %v6812 = vadd.f32 0.0, %v6811
  %v6813 = vpop.f32.mrf.mxu0
  %v6814 = vadd.f32 0.0, %v6813
  %6815 = vmatmul.bf16.gmra.mxu0 %v6607
  %v6816 = vpop.f32.mrf.mxu0
  %v6817 = vadd.f32 0.0, %v6816
  %v6818 = vpop.f32.mrf.mxu0
  %v6819 = vadd.f32 0.0, %v6818
  %6820 = vmatmul.bf16.gmra.mxu0 %v6610
  %v6821 = vpop.f32.mrf.mxu0
  %v6822 = vadd.f32 0.0, %v6821
  %v6823 = vpop.f32.mrf.mxu0
  %v6824 = vadd.f32 0.0, %v6823
  %6825 = vmatmul.bf16.gmra.mxu0 %v6613
  %v6826 = vpop.f32.mrf.mxu0
  %v6827 = vadd.f32 0.0, %v6826
  %v6828 = vpop.f32.mrf.mxu0
  %v6829 = vadd.f32 0.0, %v6828
  %6830 = vmatmul.bf16.gmra.mxu0 %v6616
  %v6831 = vpop.f32.mrf.mxu0
  %v6832 = vpop.f32.mrf.mxu0
  %6833 = vmatmul.bf16.gmra.mxu0 %v6619
  %v6834 = vpop.f32.mrf.mxu0
  %v6835 = vpop.f32.mrf.mxu0
  %6836 = vmatmul.bf16.gmra.mxu0 %v6622
  %v6837 = vpop.f32.mrf.mxu0
  %v6838 = vadd.f32 0.0, %v6837
  %v6839 = vpop.f32.mrf.mxu0
  %v6840 = vadd.f32 0.0, %v6839
  %6841 = vmatmul.bf16.gmra.mxu0 %v6625
  %v6842 = vpop.f32.mrf.mxu0
  %v6843 = vadd.f32 0.0, %v6842
  %v6844 = vpop.f32.mrf.mxu0
  %v6845 = vadd.f32 0.0, %v6844
  %6846 = vmatmul.bf16.gmra.mxu0 %v6628
  %v6847 = vpop.f32.mrf.mxu0
  %v6848 = vadd.f32 0.0, %v6847
  %v6849 = vpop.f32.mrf.mxu0
  %v6850 = vadd.f32 0.0, %v6849
  %6851 = vmatmul.bf16.gmra.mxu0 %v6631
  %v6852 = vpop.f32.mrf.mxu0
  %v6853 = vadd.f32 0.0, %v6852
  %v6854 = vpop.f32.mrf.mxu0
  %v6855 = vadd.f32 0.0, %v6854
  %6856 = vmatmul.bf16.gmra.mxu0 %v6634
  %v6857 = vpop.f32.mrf.mxu0
  %v6858 = vadd.f32 0.0, %v6857
  %v6859 = vpop.f32.mrf.mxu0
  %v6860 = vadd.f32 0.0, %v6859
  %6861 = vmatmul.bf16.gmra.mxu0 %v6637
  %v6862 = vpop.f32.mrf.mxu0
  %v6863 = vadd.f32 0.0, %v6862
  %v6864 = vpop.f32.mrf.mxu0
  %v6865 = vadd.f32 0.0, %v6864
  %6866 = vmatmul.bf16.gmra.mxu0 %v6640
  %v6867 = vpop.f32.mrf.mxu0
  %v6868 = vpop.f32.mrf.mxu0
  %6869 = vmatmul.bf16.gmra.mxu0 %v6643
  %v6870 = vpop.f32.mrf.mxu0
  %v6871 = vpop.f32.mrf.mxu0
  %6872 = vdwg.mxu0
  %v6873 = vadd.f32 %v6181, %v6658
  %v6874 = vadd.f32 %v6182, %v6660
  %v6875 = vadd.f32 %v6183, %v6663
  %v6876 = vadd.f32 %v6184, %v6665
  %v6877 = vadd.f32 %v6185, %v6668
  %v6878 = vadd.f32 %v6186, %v6670
  %v6879 = vadd.f32 %v6187, %v6673
  %v6880 = vadd.f32 %v6188, %v6675
  %v6881 = vadd.f32 %v6189, %v6678
  %v6882 = vadd.f32 %v6190, %v6680
  %v6883 = vadd.f32 %v6191, %v6683
  %v6884 = vadd.f32 %v6192, %v6685
  %v6885 = vadd.f32 %v6193, %v6694
  %v6886 = vadd.f32 %v6194, %v6696
  %v6887 = vadd.f32 %v6195, %v6699
  %v6888 = vadd.f32 %v6196, %v6701
  %v6889 = vadd.f32 %v6197, %v6704
  %v6890 = vadd.f32 %v6198, %v6706
  %v6891 = vadd.f32 %v6199, %v6709
  %v6892 = vadd.f32 %v6200, %v6711
  %v6893 = vadd.f32 %v6201, %v6714
  %v6894 = vadd.f32 %v6202, %v6716
  %v6895 = vadd.f32 %v6203, %v6719
  %v6896 = vadd.f32 %v6204, %v6721
  %v6897 = vadd.f32 %v6205, %v6730
  %v6898 = vadd.f32 %v6206, %v6732
  %v6899 = vadd.f32 %v6207, %v6735
  %v6900 = vadd.f32 %v6208, %v6737
  %v6901 = vadd.f32 %v6209, %v6740
  %v6902 = vadd.f32 %v6210, %v6742
  %v6903 = vadd.f32 %v6211, %v6745
  %v6904 = vadd.f32 %v6212, %v6747
  %v6905 = vadd.f32 %v6213, %v6750
  %v6906 = vadd.f32 %v6214, %v6752
  %v6907 = vadd.f32 %v6215, %v6755
  %v6908 = vadd.f32 %v6216, %v6757
  %v6909 = vadd.f32 %v6217, %v6766
  %v6910 = vadd.f32 %v6218, %v6768
  %v6911 = vadd.f32 %v6219, %v6771
  %v6912 = vadd.f32 %v6220, %v6773
  %v6913 = vadd.f32 %v6221, %v6776
  %v6914 = vadd.f32 %v6222, %v6778
  %v6915 = vadd.f32 %v6223, %v6781
  %v6916 = vadd.f32 %v6224, %v6783
  %v6917 = vadd.f32 %v6225, %v6786
  %v6918 = vadd.f32 %v6226, %v6788
  %v6919 = vadd.f32 %v6227, %v6791
  %v6920 = vadd.f32 %v6228, %v6793
  %v6921 = vadd.f32 %v6229, %v6802
  %v6922 = vadd.f32 %v6230, %v6804
  %v6923 = vadd.f32 %v6231, %v6807
  %v6924 = vadd.f32 %v6232, %v6809
  %v6925 = vadd.f32 %v6233, %v6812
  %v6926 = vadd.f32 %v6234, %v6814
  %v6927 = vadd.f32 %v6235, %v6817
  %v6928 = vadd.f32 %v6236, %v6819
  %v6929 = vadd.f32 %v6237, %v6822
  %v6930 = vadd.f32 %v6238, %v6824
  %v6931 = vadd.f32 %v6239, %v6827
  %v6932 = vadd.f32 %v6240, %v6829
  %v6933 = vadd.f32 %v6241, %v6838
  %v6934 = vadd.f32 %v6242, %v6840
  %v6935 = vadd.f32 %v6243, %v6843
  %v6936 = vadd.f32 %v6244, %v6845
  %v6937 = vadd.f32 %v6245, %v6848
  %v6938 = vadd.f32 %v6246, %v6850
  %v6939 = vadd.f32 %v6247, %v6853
  %v6940 = vadd.f32 %v6248, %v6855
  %v6941 = vadd.f32 %v6249, %v6858
  %v6942 = vadd.f32 %v6250, %v6860
  %v6943 = vadd.f32 %v6251, %v6863
  %v6944 = vadd.f32 %v6252, %v6865
  %s6945 = scalar_lea.vmem %s3, 32
  %v6946 = vld [vmem:[%s6945] sm:$0xf]
  %v6947 = vld [vmem:[%s6945 + $0x4] sm:$0x1]
  %v7044 = vunpack.c.l.b16 %v4561
  %v7045 = vunpack.c.l.b16 %v4562
  %v7046 = vunpack.c.l.b16 %v4563
  %v7047 = vunpack.c.l.b16 %v4564
  %v7048 = vunpack.c.l.b16 %v4565
  %v7049 = vunpack.c.l.b16 %v4566
  %v7050 = vunpack.c.l.b16 %v4567
  %v7051 = vunpack.c.l.b16 %v4568
  %v7052 = vunpack.c.l.b16 %v4569
  %v7053 = vunpack.c.l.b16 %v4570
  %v7054 = vunpack.c.l.b16 %v4571
  %v7055 = vunpack.c.l.b16 %v4572
  %v7056 = vunpack.c.l.b16 %v4573
  %v7057 = vunpack.c.l.b16 %v4574
  %v7058 = vunpack.c.l.b16 %v4575
  %v7059 = vunpack.c.l.b16 %v4576
  %v7060 = vunpack.c.l.b16 %v4577
  %v7061 = vunpack.c.l.b16 %v4578
  %v7062 = vunpack.c.l.b16 %v4579
  %v7063 = vunpack.c.l.b16 %v4580
  %v7064 = vunpack.c.l.b16 %v4581
  %v7065 = vunpack.c.l.b16 %v4582
  %v7066 = vunpack.c.l.b16 %v4583
  %v7067 = vunpack.c.l.b16 %v4584
  %v7068 = vunpack.c.l.b16 %v4585
  %v7069 = vunpack.c.l.b16 %v4586
  %v7070 = vunpack.c.l.b16 %v4587
  %v7071 = vunpack.c.l.b16 %v4588
  %v7072 = vunpack.c.l.b16 %v4589
  %v7073 = vunpack.c.l.b16 %v4590
  %v7074 = vunpack.c.l.b16 %v4591
  %v7075 = vunpack.c.l.b16 %v4592
  %v7076 = vunpack.c.l.b16 %v4593
  %v7077 = vunpack.c.l.b16 %v4594
  %v7078 = vunpack.c.l.b16 %v4595
  %v7079 = vunpack.c.l.b16 %v4596
  %v7080 = vunpack.c.l.b16 %v4597
  %v7081 = vunpack.c.l.b16 %v4598
  %v7082 = vunpack.c.l.b16 %v4599
  %v7083 = vunpack.c.l.b16 %v4600
  %v7084 = vunpack.c.l.b16 %v4601
  %v7085 = vunpack.c.l.b16 %v4602
  %v7086 = vunpack.c.l.b16 %v4603
  %v7087 = vunpack.c.l.b16 %v4604
  %v7088 = vunpack.c.l.b16 %v4605
  %v7089 = vunpack.c.l.b16 %v4606
  %v7090 = vunpack.c.l.b16 %v4607
  %v7091 = vunpack.c.l.b16 %v4608
  %v7092 = vunpack.c.l.b16 %v4609
  %v7093 = vunpack.c.l.b16 %v4610
  %v7094 = vunpack.c.l.b16 %v4611
  %v7095 = vunpack.c.l.b16 %v4612
  %v7096 = vunpack.c.l.b16 %v4613
  %v7097 = vunpack.c.l.b16 %v4614
  %v7098 = vunpack.c.l.b16 %v4615
  %v7099 = vunpack.c.l.b16 %v4616
  %v7100 = vunpack.c.l.b16 %v4617
  %v7101 = vunpack.c.l.b16 %v4618
  %v7102 = vunpack.c.l.b16 %v4619
  %v7103 = vunpack.c.l.b16 %v4620
  %v7104 = vunpack.c.l.b16 %v4621
  %v7105 = vunpack.c.l.b16 %v4622
  %v7106 = vunpack.c.l.b16 %v4623
  %v7107 = vunpack.c.l.b16 %v4624
  %v7108 = vunpack.c.l.b16 %v4625
  %v7109 = vunpack.c.l.b16 %v4626
  %v7110 = vunpack.c.l.b16 %v4627
  %v7111 = vunpack.c.l.b16 %v4628
  %v7112 = vunpack.c.l.b16 %v4629
  %v7113 = vunpack.c.l.b16 %v4630
  %v7114 = vunpack.c.l.b16 %v4631
  %v7115 = vunpack.c.l.b16 %v4632
  %v7116 = vunpack.c.l.b16 %v4633
  %v7117 = vunpack.c.l.b16 %v4634
  %v7118 = vunpack.c.l.b16 %v4635
  %v7119 = vunpack.c.l.b16 %v4636
  %v7120 = vunpack.c.l.b16 %v4637
  %v7121 = vunpack.c.l.b16 %v4638
  %v7122 = vunpack.c.l.b16 %v4639
  %v7123 = vunpack.c.l.b16 %v4640
  %v7124 = vunpack.c.l.b16 %v4641
  %v7125 = vunpack.c.l.b16 %v4642
  %v7126 = vunpack.c.l.b16 %v4643
  %v7127 = vunpack.c.l.b16 %v4644
  %v7128 = vunpack.c.l.b16 %v4645
  %v7129 = vunpack.c.l.b16 %v4646
  %v7130 = vunpack.c.l.b16 %v4647
  %v7131 = vunpack.c.l.b16 %v4648
  %v7132 = vunpack.c.l.b16 %v4649
  %v7133 = vunpack.c.l.b16 %v4650
  %v7134 = vunpack.c.l.b16 %v4651
  %v7135 = vunpack.c.l.b16 %v4652
  %v7136 = vunpack.c.l.b16 %v4653
  %v7137 = vunpack.c.l.b16 %v4654
  %v7138 = vunpack.c.l.b16 %v4655
  %v7139 = vunpack.c.l.b16 %v4656
  %v7140 = vpack.c.b16 %v7045, %v7044
  %v7141 = vpack.c.b16 %v7047, %v7046
  %v7142 = vpack.c.b16 %v7049, %v7048
  %v7143 = vpack.c.b16 %v7051, %v7050
  %v7144 = vpack.c.b16 %v7053, %v7052
  %v7145 = vpack.c.b16 %v7055, %v7054
  %v7146 = vpack.c.b16 %v7057, %v7056
  %v7147 = vpack.c.b16 %v7059, %v7058
  %v7148 = vpack.c.b16 %v7061, %v7060
  %v7149 = vpack.c.b16 %v7063, %v7062
  %v7150 = vpack.c.b16 %v7065, %v7064
  %v7151 = vpack.c.b16 %v7067, %v7066
  %v7152 = vpack.c.b16 %v7069, %v7068
  %v7153 = vpack.c.b16 %v7071, %v7070
  %v7154 = vpack.c.b16 %v7073, %v7072
  %v7155 = vpack.c.b16 %v7075, %v7074
  %v7156 = vpack.c.b16 %v7077, %v7076
  %v7157 = vpack.c.b16 %v7079, %v7078
  %v7158 = vpack.c.b16 %v7081, %v7080
  %v7159 = vpack.c.b16 %v7083, %v7082
  %v7160 = vpack.c.b16 %v7085, %v7084
  %v7161 = vpack.c.b16 %v7087, %v7086
  %v7162 = vpack.c.b16 %v7089, %v7088
  %v7163 = vpack.c.b16 %v7091, %v7090
  %v7164 = vpack.c.b16 %v7093, %v7092
  %v7165 = vpack.c.b16 %v7095, %v7094
  %v7166 = vpack.c.b16 %v7097, %v7096
  %v7167 = vpack.c.b16 %v7099, %v7098
  %v7168 = vpack.c.b16 %v7101, %v7100
  %v7169 = vpack.c.b16 %v7103, %v7102
  %v7170 = vpack.c.b16 %v7105, %v7104
  %v7171 = vpack.c.b16 %v7107, %v7106
  %v7172 = vpack.c.b16 %v7109, %v7108
  %v7173 = vpack.c.b16 %v7111, %v7110
  %v7174 = vpack.c.b16 %v7113, %v7112
  %v7175 = vpack.c.b16 %v7115, %v7114
  %v7176 = vpack.c.b16 %v7117, %v7116
  %v7177 = vpack.c.b16 %v7119, %v7118
  %v7178 = vpack.c.b16 %v7121, %v7120
  %v7179 = vpack.c.b16 %v7123, %v7122
  %v7180 = vpack.c.b16 %v7125, %v7124
  %v7181 = vpack.c.b16 %v7127, %v7126
  %v7182 = vpack.c.b16 %v7129, %v7128
  %v7183 = vpack.c.b16 %v7131, %v7130
  %v7184 = vpack.c.b16 %v7133, %v7132
  %v7185 = vpack.c.b16 %v7135, %v7134
  %v7186 = vpack.c.b16 %v7137, %v7136
  %v7187 = vpack.c.b16 %v7139, %v7138
  %v7190 = vunpack.c.l.b16 %v6946
  %v7191 = vunpack.c.l.b16 %v6947
  %v7192 = vpack.c.b16 %v7191, %v7190
  %v7194 = vsel %vm4907, %v7140, 0
  %v7197 = vsel %vm4907, %v7141, 0
  %v7200 = vsel %vm4907, %v7142, 0
  %v7203 = vsel %vm4907, %v7143, 0
  %v7206 = vsel %vm4907, %v7144, 0
  %v7209 = vsel %vm4907, %v7145, 0
  %v7212 = vsel %vm4907, %v7146, 0
  %v7215 = vsel %vm4907, %v7147, 0
  %v7218 = vsel %vm4907, %v7148, 0
  %v7221 = vsel %vm4907, %v7149, 0
  %v7224 = vsel %vm4907, %v7150, 0
  %v7227 = vsel %vm4907, %v7151, 0
  %v7230 = vsel %vm4907, %v7152, 0
  %v7233 = vsel %vm4907, %v7153, 0
  %v7236 = vsel %vm4907, %v7154, 0
  %v7239 = vsel %vm4907, %v7155, 0
  %v7242 = vsel %vm4907, %v7156, 0
  %v7245 = vsel %vm4907, %v7157, 0
  %v7248 = vsel %vm4907, %v7158, 0
  %v7251 = vsel %vm4907, %v7159, 0
  %v7254 = vsel %vm4907, %v7160, 0
  %v7257 = vsel %vm4907, %v7161, 0
  %v7260 = vsel %vm4907, %v7162, 0
  %v7263 = vsel %vm4907, %v7163, 0
  %v7266 = vsel %vm4907, %v7164, 0
  %v7269 = vsel %vm4907, %v7165, 0
  %v7272 = vsel %vm4907, %v7166, 0
  %v7275 = vsel %vm4907, %v7167, 0
  %v7278 = vsel %vm4907, %v7168, 0
  %v7281 = vsel %vm4907, %v7169, 0
  %v7284 = vsel %vm4907, %v7170, 0
  %v7287 = vsel %vm4907, %v7171, 0
  %v7290 = vsel %vm4907, %v7172, 0
  %v7293 = vsel %vm4907, %v7173, 0
  %v7296 = vsel %vm4907, %v7174, 0
  %v7299 = vsel %vm4907, %v7175, 0
  %v7302 = vsel %vm4907, %v7176, 0
  %v7305 = vsel %vm4907, %v7177, 0
  %v7308 = vsel %vm4907, %v7178, 0
  %v7311 = vsel %vm4907, %v7179, 0
  %v7314 = vsel %vm4907, %v7180, 0
  %v7317 = vsel %vm4907, %v7181, 0
  %v7320 = vsel %vm4907, %v7182, 0
  %v7323 = vsel %vm4907, %v7183, 0
  %v7326 = vsel %vm4907, %v7184, 0
  %v7329 = vsel %vm4907, %v7185, 0
  %v7332 = vsel %vm4907, %v7186, 0
  %v7335 = vsel %vm4907, %v7187, 0
  %v7338 = vsel %vm2560, %v7192, 0
  %7340 = vmatpush.bf16.msra.mxu0 0
  %7341 = vmatpush.bf16.msra.mxu0 0
  %7342 = vmatpush.bf16.msra.mxu0 0
  %7343 = vmatpush.bf16.msra.mxu0 0
  %7344 = vmatpush.bf16.msra.mxu0 0
  %7345 = vmatpush.bf16.msra.mxu0 0
  %7346 = vmatpush.bf16.msra.mxu0 0
  %7347 = vmatpush.bf16.msra.mxu0 %v7338
  %7348 = vmatmul.bf16.gmra.mxu0 %v7194
  %v7349 = vpop.f32.mrf.mxu0
  %v7350 = vadd.f32 0.0, %v7349
  %v7351 = vpop.f32.mrf.mxu0
  %v7352 = vadd.f32 0.0, %v7351
  %7353 = vmatmul.bf16.gmra.mxu0 %v7197
  %v7354 = vpop.f32.mrf.mxu0
  %v7355 = vadd.f32 0.0, %v7354
  %v7356 = vpop.f32.mrf.mxu0
  %v7357 = vadd.f32 0.0, %v7356
  %7358 = vmatmul.bf16.gmra.mxu0 %v7200
  %v7359 = vpop.f32.mrf.mxu0
  %v7360 = vadd.f32 0.0, %v7359
  %v7361 = vpop.f32.mrf.mxu0
  %v7362 = vadd.f32 0.0, %v7361
  %7363 = vmatmul.bf16.gmra.mxu0 %v7203
  %v7364 = vpop.f32.mrf.mxu0
  %v7365 = vadd.f32 0.0, %v7364
  %v7366 = vpop.f32.mrf.mxu0
  %v7367 = vadd.f32 0.0, %v7366
  %7368 = vmatmul.bf16.gmra.mxu0 %v7206
  %v7369 = vpop.f32.mrf.mxu0
  %v7370 = vadd.f32 0.0, %v7369
  %v7371 = vpop.f32.mrf.mxu0
  %v7372 = vadd.f32 0.0, %v7371
  %7373 = vmatmul.bf16.gmra.mxu0 %v7209
  %v7374 = vpop.f32.mrf.mxu0
  %v7375 = vadd.f32 0.0, %v7374
  %v7376 = vpop.f32.mrf.mxu0
  %v7377 = vadd.f32 0.0, %v7376
  %7378 = vmatmul.bf16.gmra.mxu0 %v7212
  %v7379 = vpop.f32.mrf.mxu0
  %v7380 = vpop.f32.mrf.mxu0
  %7381 = vmatmul.bf16.gmra.mxu0 %v7215
  %v7382 = vpop.f32.mrf.mxu0
  %v7383 = vpop.f32.mrf.mxu0
  %7384 = vmatmul.bf16.gmra.mxu0 %v7218
  %v7385 = vpop.f32.mrf.mxu0
  %v7386 = vadd.f32 0.0, %v7385
  %v7387 = vpop.f32.mrf.mxu0
  %v7388 = vadd.f32 0.0, %v7387
  %7389 = vmatmul.bf16.gmra.mxu0 %v7221
  %v7390 = vpop.f32.mrf.mxu0
  %v7391 = vadd.f32 0.0, %v7390
  %v7392 = vpop.f32.mrf.mxu0
  %v7393 = vadd.f32 0.0, %v7392
  %7394 = vmatmul.bf16.gmra.mxu0 %v7224
  %v7395 = vpop.f32.mrf.mxu0
  %v7396 = vadd.f32 0.0, %v7395
  %v7397 = vpop.f32.mrf.mxu0
  %v7398 = vadd.f32 0.0, %v7397
  %7399 = vmatmul.bf16.gmra.mxu0 %v7227
  %v7400 = vpop.f32.mrf.mxu0
  %v7401 = vadd.f32 0.0, %v7400
  %v7402 = vpop.f32.mrf.mxu0
  %v7403 = vadd.f32 0.0, %v7402
  %7404 = vmatmul.bf16.gmra.mxu0 %v7230
  %v7405 = vpop.f32.mrf.mxu0
  %v7406 = vadd.f32 0.0, %v7405
  %v7407 = vpop.f32.mrf.mxu0
  %v7408 = vadd.f32 0.0, %v7407
  %7409 = vmatmul.bf16.gmra.mxu0 %v7233
  %v7410 = vpop.f32.mrf.mxu0
  %v7411 = vadd.f32 0.0, %v7410
  %v7412 = vpop.f32.mrf.mxu0
  %v7413 = vadd.f32 0.0, %v7412
  %7414 = vmatmul.bf16.gmra.mxu0 %v7236
  %v7415 = vpop.f32.mrf.mxu0
  %v7416 = vpop.f32.mrf.mxu0
  %7417 = vmatmul.bf16.gmra.mxu0 %v7239
  %v7418 = vpop.f32.mrf.mxu0
  %v7419 = vpop.f32.mrf.mxu0
  %7420 = vmatmul.bf16.gmra.mxu0 %v7242
  %v7421 = vpop.f32.mrf.mxu0
  %v7422 = vadd.f32 0.0, %v7421
  %v7423 = vpop.f32.mrf.mxu0
  %v7424 = vadd.f32 0.0, %v7423
  %7425 = vmatmul.bf16.gmra.mxu0 %v7245
  %v7426 = vpop.f32.mrf.mxu0
  %v7427 = vadd.f32 0.0, %v7426
  %v7428 = vpop.f32.mrf.mxu0
  %v7429 = vadd.f32 0.0, %v7428
  %7430 = vmatmul.bf16.gmra.mxu0 %v7248
  %v7431 = vpop.f32.mrf.mxu0
  %v7432 = vadd.f32 0.0, %v7431
  %v7433 = vpop.f32.mrf.mxu0
  %v7434 = vadd.f32 0.0, %v7433
  %7435 = vmatmul.bf16.gmra.mxu0 %v7251
  %v7436 = vpop.f32.mrf.mxu0
  %v7437 = vadd.f32 0.0, %v7436
  %v7438 = vpop.f32.mrf.mxu0
  %v7439 = vadd.f32 0.0, %v7438
  %7440 = vmatmul.bf16.gmra.mxu0 %v7254
  %v7441 = vpop.f32.mrf.mxu0
  %v7442 = vadd.f32 0.0, %v7441
  %v7443 = vpop.f32.mrf.mxu0
  %v7444 = vadd.f32 0.0, %v7443
  %7445 = vmatmul.bf16.gmra.mxu0 %v7257
  %v7446 = vpop.f32.mrf.mxu0
  %v7447 = vadd.f32 0.0, %v7446
  %v7448 = vpop.f32.mrf.mxu0
  %v7449 = vadd.f32 0.0, %v7448
  %7450 = vmatmul.bf16.gmra.mxu0 %v7260
  %v7451 = vpop.f32.mrf.mxu0
  %v7452 = vpop.f32.mrf.mxu0
  %7453 = vmatmul.bf16.gmra.mxu0 %v7263
  %v7454 = vpop.f32.mrf.mxu0
  %v7455 = vpop.f32.mrf.mxu0
  %7456 = vmatmul.bf16.gmra.mxu0 %v7266
  %v7457 = vpop.f32.mrf.mxu0
  %v7458 = vadd.f32 0.0, %v7457
  %v7459 = vpop.f32.mrf.mxu0
  %v7460 = vadd.f32 0.0, %v7459
  %7461 = vmatmul.bf16.gmra.mxu0 %v7269
  %v7462 = vpop.f32.mrf.mxu0
  %v7463 = vadd.f32 0.0, %v7462
  %v7464 = vpop.f32.mrf.mxu0
  %v7465 = vadd.f32 0.0, %v7464
  %7466 = vmatmul.bf16.gmra.mxu0 %v7272
  %v7467 = vpop.f32.mrf.mxu0
  %v7468 = vadd.f32 0.0, %v7467
  %v7469 = vpop.f32.mrf.mxu0
  %v7470 = vadd.f32 0.0, %v7469
  %7471 = vmatmul.bf16.gmra.mxu0 %v7275
  %v7472 = vpop.f32.mrf.mxu0
  %v7473 = vadd.f32 0.0, %v7472
  %v7474 = vpop.f32.mrf.mxu0
  %v7475 = vadd.f32 0.0, %v7474
  %7476 = vmatmul.bf16.gmra.mxu0 %v7278
  %v7477 = vpop.f32.mrf.mxu0
  %v7478 = vadd.f32 0.0, %v7477
  %v7479 = vpop.f32.mrf.mxu0
  %v7480 = vadd.f32 0.0, %v7479
  %7481 = vmatmul.bf16.gmra.mxu0 %v7281
  %v7482 = vpop.f32.mrf.mxu0
  %v7483 = vadd.f32 0.0, %v7482
  %v7484 = vpop.f32.mrf.mxu0
  %v7485 = vadd.f32 0.0, %v7484
  %7486 = vmatmul.bf16.gmra.mxu0 %v7284
  %v7487 = vpop.f32.mrf.mxu0
  %v7488 = vpop.f32.mrf.mxu0
  %7489 = vmatmul.bf16.gmra.mxu0 %v7287
  %v7490 = vpop.f32.mrf.mxu0
  %v7491 = vpop.f32.mrf.mxu0
  %7492 = vmatmul.bf16.gmra.mxu0 %v7290
  %v7493 = vpop.f32.mrf.mxu0
  %v7494 = vadd.f32 0.0, %v7493
  %v7495 = vpop.f32.mrf.mxu0
  %v7496 = vadd.f32 0.0, %v7495
  %7497 = vmatmul.bf16.gmra.mxu0 %v7293
  %v7498 = vpop.f32.mrf.mxu0
  %v7499 = vadd.f32 0.0, %v7498
  %v7500 = vpop.f32.mrf.mxu0
  %v7501 = vadd.f32 0.0, %v7500
  %7502 = vmatmul.bf16.gmra.mxu0 %v7296
  %v7503 = vpop.f32.mrf.mxu0
  %v7504 = vadd.f32 0.0, %v7503
  %v7505 = vpop.f32.mrf.mxu0
  %v7506 = vadd.f32 0.0, %v7505
  %7507 = vmatmul.bf16.gmra.mxu0 %v7299
  %v7508 = vpop.f32.mrf.mxu0
  %v7509 = vadd.f32 0.0, %v7508
  %v7510 = vpop.f32.mrf.mxu0
  %v7511 = vadd.f32 0.0, %v7510
  %7512 = vmatmul.bf16.gmra.mxu0 %v7302
  %v7513 = vpop.f32.mrf.mxu0
  %v7514 = vadd.f32 0.0, %v7513
  %v7515 = vpop.f32.mrf.mxu0
  %v7516 = vadd.f32 0.0, %v7515
  %7517 = vmatmul.bf16.gmra.mxu0 %v7305
  %v7518 = vpop.f32.mrf.mxu0
  %v7519 = vadd.f32 0.0, %v7518
  %v7520 = vpop.f32.mrf.mxu0
  %v7521 = vadd.f32 0.0, %v7520
  %7522 = vmatmul.bf16.gmra.mxu0 %v7308
  %v7523 = vpop.f32.mrf.mxu0
  %v7524 = vpop.f32.mrf.mxu0
  %7525 = vmatmul.bf16.gmra.mxu0 %v7311
  %v7526 = vpop.f32.mrf.mxu0
  %v7527 = vpop.f32.mrf.mxu0
  %7528 = vmatmul.bf16.gmra.mxu0 %v7314
  %v7529 = vpop.f32.mrf.mxu0
  %v7530 = vadd.f32 0.0, %v7529
  %v7531 = vpop.f32.mrf.mxu0
  %v7532 = vadd.f32 0.0, %v7531
  %7533 = vmatmul.bf16.gmra.mxu0 %v7317
  %v7534 = vpop.f32.mrf.mxu0
  %v7535 = vadd.f32 0.0, %v7534
  %v7536 = vpop.f32.mrf.mxu0
  %v7537 = vadd.f32 0.0, %v7536
  %7538 = vmatmul.bf16.gmra.mxu0 %v7320
  %v7539 = vpop.f32.mrf.mxu0
  %v7540 = vadd.f32 0.0, %v7539
  %v7541 = vpop.f32.mrf.mxu0
  %v7542 = vadd.f32 0.0, %v7541
  %7543 = vmatmul.bf16.gmra.mxu0 %v7323
  %v7544 = vpop.f32.mrf.mxu0
  %v7545 = vadd.f32 0.0, %v7544
  %v7546 = vpop.f32.mrf.mxu0
  %v7547 = vadd.f32 0.0, %v7546
  %7548 = vmatmul.bf16.gmra.mxu0 %v7326
  %v7549 = vpop.f32.mrf.mxu0
  %v7550 = vadd.f32 0.0, %v7549
  %v7551 = vpop.f32.mrf.mxu0
  %v7552 = vadd.f32 0.0, %v7551
  %7553 = vmatmul.bf16.gmra.mxu0 %v7329
  %v7554 = vpop.f32.mrf.mxu0
  %v7555 = vadd.f32 0.0, %v7554
  %v7556 = vpop.f32.mrf.mxu0
  %v7557 = vadd.f32 0.0, %v7556
  %7558 = vmatmul.bf16.gmra.mxu0 %v7332
  %v7559 = vpop.f32.mrf.mxu0
  %v7560 = vpop.f32.mrf.mxu0
  %7561 = vmatmul.bf16.gmra.mxu0 %v7335
  %v7562 = vpop.f32.mrf.mxu0
  %v7563 = vpop.f32.mrf.mxu0
  %7564 = vdwg.mxu0
  %v7565 = vadd.f32 %v6873, %v7350
  %v7566 = vadd.f32 %v6874, %v7352
  %v7567 = vadd.f32 %v6875, %v7355
  %v7568 = vadd.f32 %v6876, %v7357
  %v7569 = vadd.f32 %v6877, %v7360
  %v7570 = vadd.f32 %v6878, %v7362
  %v7571 = vadd.f32 %v6879, %v7365
  %v7572 = vadd.f32 %v6880, %v7367
  %v7573 = vadd.f32 %v6881, %v7370
  %v7574 = vadd.f32 %v6882, %v7372
  %v7575 = vadd.f32 %v6883, %v7375
  %v7576 = vadd.f32 %v6884, %v7377
  %v7577 = vadd.f32 %v6885, %v7386
  %v7578 = vadd.f32 %v6886, %v7388
  %v7579 = vadd.f32 %v6887, %v7391
  %v7580 = vadd.f32 %v6888, %v7393
  %v7581 = vadd.f32 %v6889, %v7396
  %v7582 = vadd.f32 %v6890, %v7398
  %v7583 = vadd.f32 %v6891, %v7401
  %v7584 = vadd.f32 %v6892, %v7403
  %v7585 = vadd.f32 %v6893, %v7406
  %v7586 = vadd.f32 %v6894, %v7408
  %v7587 = vadd.f32 %v6895, %v7411
  %v7588 = vadd.f32 %v6896, %v7413
  %v7589 = vadd.f32 %v6897, %v7422
  %v7590 = vadd.f32 %v6898, %v7424
  %v7591 = vadd.f32 %v6899, %v7427
  %v7592 = vadd.f32 %v6900, %v7429
  %v7593 = vadd.f32 %v6901, %v7432
  %v7594 = vadd.f32 %v6902, %v7434
  %v7595 = vadd.f32 %v6903, %v7437
  %v7596 = vadd.f32 %v6904, %v7439
  %v7597 = vadd.f32 %v6905, %v7442
  %v7598 = vadd.f32 %v6906, %v7444
  %v7599 = vadd.f32 %v6907, %v7447
  %v7600 = vadd.f32 %v6908, %v7449
  %v7601 = vadd.f32 %v6909, %v7458
  %v7602 = vadd.f32 %v6910, %v7460
  %v7603 = vadd.f32 %v6911, %v7463
  %v7604 = vadd.f32 %v6912, %v7465
  %v7605 = vadd.f32 %v6913, %v7468
  %v7606 = vadd.f32 %v6914, %v7470
  %v7607 = vadd.f32 %v6915, %v7473
  %v7608 = vadd.f32 %v6916, %v7475
  %v7609 = vadd.f32 %v6917, %v7478
  %v7610 = vadd.f32 %v6918, %v7480
  %v7611 = vadd.f32 %v6919, %v7483
  %v7612 = vadd.f32 %v6920, %v7485
  %v7613 = vadd.f32 %v6921, %v7494
  %v7614 = vadd.f32 %v6922, %v7496
  %v7615 = vadd.f32 %v6923, %v7499
  %v7616 = vadd.f32 %v6924, %v7501
  %v7617 = vadd.f32 %v6925, %v7504
  %v7618 = vadd.f32 %v6926, %v7506
  %v7619 = vadd.f32 %v6927, %v7509
  %v7620 = vadd.f32 %v6928, %v7511
  %v7621 = vadd.f32 %v6929, %v7514
  %v7622 = vadd.f32 %v6930, %v7516
  %v7623 = vadd.f32 %v6931, %v7519
  %v7624 = vadd.f32 %v6932, %v7521
  %v7625 = vadd.f32 %v6933, %v7530
  %v7626 = vadd.f32 %v6934, %v7532
  %v7627 = vadd.f32 %v6935, %v7535
  %v7628 = vadd.f32 %v6936, %v7537
  %v7629 = vadd.f32 %v6937, %v7540
  %v7630 = vadd.f32 %v6938, %v7542
  %v7631 = vadd.f32 %v6939, %v7545
  %v7632 = vadd.f32 %v6940, %v7547
  %v7633 = vadd.f32 %v6941, %v7550
  %v7634 = vadd.f32 %v6942, %v7552
  %v7635 = vadd.f32 %v6943, %v7555
  %v7636 = vadd.f32 %v6944, %v7557
  %s7637 = scalar_lea.vmem %s3, 40
  %v7638 = vld [vmem:[%s7637] sm:$0xf]
  %v7639 = vld [vmem:[%s7637 + $0x4] sm:$0x1]
  %v7652 = vunpack.c.l.b16 %v4469
  %v7653 = vunpack.c.l.b16 %v4470
  %v7654 = vunpack.c.l.b16 %v4487
  %v7655 = vunpack.c.l.b16 %v4488
  %v7656 = vunpack.c.l.b16 %v4505
  %v7657 = vunpack.c.l.b16 %v4506
  %v7658 = vunpack.c.l.b16 %v4523
  %v7659 = vunpack.c.l.b16 %v4524
  %v7660 = vunpack.c.l.b16 %v4541
  %v7661 = vunpack.c.l.b16 %v4542
  %v7662 = vunpack.c.l.b16 %v4559
  %v7663 = vunpack.c.l.b16 %v4560
  %v7664 = vpack.c.b16 %v7653, %v7652
  %v7665 = vpack.c.b16 %v7655, %v7654
  %v7666 = vpack.c.b16 %v7657, %v7656
  %v7667 = vpack.c.b16 %v7659, %v7658
  %v7668 = vpack.c.b16 %v7661, %v7660
  %v7669 = vpack.c.b16 %v7663, %v7662
  %v7672 = vunpack.c.l.b16 %v7638
  %v7673 = vunpack.c.l.b16 %v7639
  %v7674 = vpack.c.b16 %v7673, %v7672
  %v7676 = vsel %vm4907, %v7664, 0
  %v7679 = vsel %vm4907, %v7665, 0
  %v7682 = vsel %vm4907, %v7666, 0
  %v7685 = vsel %vm4907, %v7667, 0
  %v7688 = vsel %vm4907, %v7668, 0
  %v7691 = vsel %vm4907, %v7669, 0
  %v7694 = vsel %vm2560, %v7674, 0
  %7696 = vmatpush.bf16.msra.mxu0 0
  %7697 = vmatpush.bf16.msra.mxu0 0
  %7698 = vmatpush.bf16.msra.mxu0 0
  %7699 = vmatpush.bf16.msra.mxu0 0
  %7700 = vmatpush.bf16.msra.mxu0 0
  %7701 = vmatpush.bf16.msra.mxu0 0
  %7702 = vmatpush.bf16.msra.mxu0 0
  %7703 = vmatpush.bf16.msra.mxu0 %v7694
  %7704 = vmatmul.bf16.gmra.mxu0 %v6505
  %v7705 = vpop.f32.mrf.mxu0
  %v7706 = vadd.f32 0.0, %v7705
  %v7707 = vpop.f32.mrf.mxu0
  %v7708 = vadd.f32 0.0, %v7707
  %7709 = vmatmul.bf16.gmra.mxu0 %v6508
  %v7710 = vpop.f32.mrf.mxu0
  %v7711 = vadd.f32 0.0, %v7710
  %v7712 = vpop.f32.mrf.mxu0
  %v7713 = vadd.f32 0.0, %v7712
  %7714 = vmatmul.bf16.gmra.mxu0 %v6511
  %v7715 = vpop.f32.mrf.mxu0
  %v7716 = vadd.f32 0.0, %v7715
  %v7717 = vpop.f32.mrf.mxu0
  %v7718 = vadd.f32 0.0, %v7717
  %7719 = vmatmul.bf16.gmra.mxu0 %v6514
  %v7720 = vpop.f32.mrf.mxu0
  %v7721 = vadd.f32 0.0, %v7720
  %v7722 = vpop.f32.mrf.mxu0
  %v7723 = vadd.f32 0.0, %v7722
  %7724 = vmatmul.bf16.gmra.mxu0 %v6517
  %v7725 = vpop.f32.mrf.mxu0
  %v7726 = vadd.f32 0.0, %v7725
  %v7727 = vpop.f32.mrf.mxu0
  %v7728 = vadd.f32 0.0, %v7727
  %7729 = vmatmul.bf16.gmra.mxu0 %v6520
  %v7730 = vpop.f32.mrf.mxu0
  %v7731 = vadd.f32 0.0, %v7730
  %v7732 = vpop.f32.mrf.mxu0
  %v7733 = vadd.f32 0.0, %v7732
  %7734 = vmatmul.bf16.gmra.mxu0 %v6523
  %v7735 = vpop.f32.mrf.mxu0
  %v7736 = vpop.f32.mrf.mxu0
  %7737 = vmatmul.bf16.gmra.mxu0 %v7676
  %v7738 = vpop.f32.mrf.mxu0
  %v7739 = vpop.f32.mrf.mxu0
  %7740 = vmatmul.bf16.gmra.mxu0 %v6529
  %v7741 = vpop.f32.mrf.mxu0
  %v7742 = vadd.f32 0.0, %v7741
  %v7743 = vpop.f32.mrf.mxu0
  %v7744 = vadd.f32 0.0, %v7743
  %7745 = vmatmul.bf16.gmra.mxu0 %v6532
  %v7746 = vpop.f32.mrf.mxu0
  %v7747 = vadd.f32 0.0, %v7746
  %v7748 = vpop.f32.mrf.mxu0
  %v7749 = vadd.f32 0.0, %v7748
  %7750 = vmatmul.bf16.gmra.mxu0 %v6535
  %v7751 = vpop.f32.mrf.mxu0
  %v7752 = vadd.f32 0.0, %v7751
  %v7753 = vpop.f32.mrf.mxu0
  %v7754 = vadd.f32 0.0, %v7753
  %7755 = vmatmul.bf16.gmra.mxu0 %v6538
  %v7756 = vpop.f32.mrf.mxu0
  %v7757 = vadd.f32 0.0, %v7756
  %v7758 = vpop.f32.mrf.mxu0
  %v7759 = vadd.f32 0.0, %v7758
  %7760 = vmatmul.bf16.gmra.mxu0 %v6541
  %v7761 = vpop.f32.mrf.mxu0
  %v7762 = vadd.f32 0.0, %v7761
  %v7763 = vpop.f32.mrf.mxu0
  %v7764 = vadd.f32 0.0, %v7763
  %7765 = vmatmul.bf16.gmra.mxu0 %v6544
  %v7766 = vpop.f32.mrf.mxu0
  %v7767 = vadd.f32 0.0, %v7766
  %v7768 = vpop.f32.mrf.mxu0
  %v7769 = vadd.f32 0.0, %v7768
  %7770 = vmatmul.bf16.gmra.mxu0 %v6547
  %v7771 = vpop.f32.mrf.mxu0
  %v7772 = vpop.f32.mrf.mxu0
  %7773 = vmatmul.bf16.gmra.mxu0 %v7679
  %v7774 = vpop.f32.mrf.mxu0
  %v7775 = vpop.f32.mrf.mxu0
  %7776 = vmatmul.bf16.gmra.mxu0 %v6553
  %v7777 = vpop.f32.mrf.mxu0
  %v7778 = vadd.f32 0.0, %v7777
  %v7779 = vpop.f32.mrf.mxu0
  %v7780 = vadd.f32 0.0, %v7779
  %7781 = vmatmul.bf16.gmra.mxu0 %v6556
  %v7782 = vpop.f32.mrf.mxu0
  %v7783 = vadd.f32 0.0, %v7782
  %v7784 = vpop.f32.mrf.mxu0
  %v7785 = vadd.f32 0.0, %v7784
  %7786 = vmatmul.bf16.gmra.mxu0 %v6559
  %v7787 = vpop.f32.mrf.mxu0
  %v7788 = vadd.f32 0.0, %v7787
  %v7789 = vpop.f32.mrf.mxu0
  %v7790 = vadd.f32 0.0, %v7789
  %7791 = vmatmul.bf16.gmra.mxu0 %v6562
  %v7792 = vpop.f32.mrf.mxu0
  %v7793 = vadd.f32 0.0, %v7792
  %v7794 = vpop.f32.mrf.mxu0
  %v7795 = vadd.f32 0.0, %v7794
  %7796 = vmatmul.bf16.gmra.mxu0 %v6565
  %v7797 = vpop.f32.mrf.mxu0
  %v7798 = vadd.f32 0.0, %v7797
  %v7799 = vpop.f32.mrf.mxu0
  %v7800 = vadd.f32 0.0, %v7799
  %7801 = vmatmul.bf16.gmra.mxu0 %v6568
  %v7802 = vpop.f32.mrf.mxu0
  %v7803 = vadd.f32 0.0, %v7802
  %v7804 = vpop.f32.mrf.mxu0
  %v7805 = vadd.f32 0.0, %v7804
  %7806 = vmatmul.bf16.gmra.mxu0 %v6571
  %v7807 = vpop.f32.mrf.mxu0
  %v7808 = vpop.f32.mrf.mxu0
  %7809 = vmatmul.bf16.gmra.mxu0 %v7682
  %v7810 = vpop.f32.mrf.mxu0
  %v7811 = vpop.f32.mrf.mxu0
  %7812 = vmatmul.bf16.gmra.mxu0 %v6577
  %v7813 = vpop.f32.mrf.mxu0
  %v7814 = vadd.f32 0.0, %v7813
  %v7815 = vpop.f32.mrf.mxu0
  %v7816 = vadd.f32 0.0, %v7815
  %7817 = vmatmul.bf16.gmra.mxu0 %v6580
  %v7818 = vpop.f32.mrf.mxu0
  %v7819 = vadd.f32 0.0, %v7818
  %v7820 = vpop.f32.mrf.mxu0
  %v7821 = vadd.f32 0.0, %v7820
  %7822 = vmatmul.bf16.gmra.mxu0 %v6583
  %v7823 = vpop.f32.mrf.mxu0
  %v7824 = vadd.f32 0.0, %v7823
  %v7825 = vpop.f32.mrf.mxu0
  %v7826 = vadd.f32 0.0, %v7825
  %7827 = vmatmul.bf16.gmra.mxu0 %v6586
  %v7828 = vpop.f32.mrf.mxu0
  %v7829 = vadd.f32 0.0, %v7828
  %v7830 = vpop.f32.mrf.mxu0
  %v7831 = vadd.f32 0.0, %v7830
  %7832 = vmatmul.bf16.gmra.mxu0 %v6589
  %v7833 = vpop.f32.mrf.mxu0
  %v7834 = vadd.f32 0.0, %v7833
  %v7835 = vpop.f32.mrf.mxu0
  %v7836 = vadd.f32 0.0, %v7835
  %7837 = vmatmul.bf16.gmra.mxu0 %v6592
  %v7838 = vpop.f32.mrf.mxu0
  %v7839 = vadd.f32 0.0, %v7838
  %v7840 = vpop.f32.mrf.mxu0
  %v7841 = vadd.f32 0.0, %v7840
  %7842 = vmatmul.bf16.gmra.mxu0 %v6595
  %v7843 = vpop.f32.mrf.mxu0
  %v7844 = vpop.f32.mrf.mxu0
  %7845 = vmatmul.bf16.gmra.mxu0 %v7685
  %v7846 = vpop.f32.mrf.mxu0
  %v7847 = vpop.f32.mrf.mxu0
  %7848 = vmatmul.bf16.gmra.mxu0 %v6601
  %v7849 = vpop.f32.mrf.mxu0
  %v7850 = vadd.f32 0.0, %v7849
  %v7851 = vpop.f32.mrf.mxu0
  %v7852 = vadd.f32 0.0, %v7851
  %7853 = vmatmul.bf16.gmra.mxu0 %v6604
  %v7854 = vpop.f32.mrf.mxu0
  %v7855 = vadd.f32 0.0, %v7854
  %v7856 = vpop.f32.mrf.mxu0
  %v7857 = vadd.f32 0.0, %v7856
  %7858 = vmatmul.bf16.gmra.mxu0 %v6607
  %v7859 = vpop.f32.mrf.mxu0
  %v7860 = vadd.f32 0.0, %v7859
  %v7861 = vpop.f32.mrf.mxu0
  %v7862 = vadd.f32 0.0, %v7861
  %7863 = vmatmul.bf16.gmra.mxu0 %v6610
  %v7864 = vpop.f32.mrf.mxu0
  %v7865 = vadd.f32 0.0, %v7864
  %v7866 = vpop.f32.mrf.mxu0
  %v7867 = vadd.f32 0.0, %v7866
  %7868 = vmatmul.bf16.gmra.mxu0 %v6613
  %v7869 = vpop.f32.mrf.mxu0
  %v7870 = vadd.f32 0.0, %v7869
  %v7871 = vpop.f32.mrf.mxu0
  %v7872 = vadd.f32 0.0, %v7871
  %7873 = vmatmul.bf16.gmra.mxu0 %v6616
  %v7874 = vpop.f32.mrf.mxu0
  %v7875 = vadd.f32 0.0, %v7874
  %v7876 = vpop.f32.mrf.mxu0
  %v7877 = vadd.f32 0.0, %v7876
  %7878 = vmatmul.bf16.gmra.mxu0 %v6619
  %v7879 = vpop.f32.mrf.mxu0
  %v7880 = vpop.f32.mrf.mxu0
  %7881 = vmatmul.bf16.gmra.mxu0 %v7688
  %v7882 = vpop.f32.mrf.mxu0
  %v7883 = vpop.f32.mrf.mxu0
  %7884 = vmatmul.bf16.gmra.mxu0 %v6625
  %v7885 = vpop.f32.mrf.mxu0
  %v7886 = vadd.f32 0.0, %v7885
  %v7887 = vpop.f32.mrf.mxu0
  %v7888 = vadd.f32 0.0, %v7887
  %7889 = vmatmul.bf16.gmra.mxu0 %v6628
  %v7890 = vpop.f32.mrf.mxu0
  %v7891 = vadd.f32 0.0, %v7890
  %v7892 = vpop.f32.mrf.mxu0
  %v7893 = vadd.f32 0.0, %v7892
  %7894 = vmatmul.bf16.gmra.mxu0 %v6631
  %v7895 = vpop.f32.mrf.mxu0
  %v7896 = vadd.f32 0.0, %v7895
  %v7897 = vpop.f32.mrf.mxu0
  %v7898 = vadd.f32 0.0, %v7897
  %7899 = vmatmul.bf16.gmra.mxu0 %v6634
  %v7900 = vpop.f32.mrf.mxu0
  %v7901 = vadd.f32 0.0, %v7900
  %v7902 = vpop.f32.mrf.mxu0
  %v7903 = vadd.f32 0.0, %v7902
  %7904 = vmatmul.bf16.gmra.mxu0 %v6637
  %v7905 = vpop.f32.mrf.mxu0
  %v7906 = vadd.f32 0.0, %v7905
  %v7907 = vpop.f32.mrf.mxu0
  %v7908 = vadd.f32 0.0, %v7907
  %7909 = vmatmul.bf16.gmra.mxu0 %v6640
  %v7910 = vpop.f32.mrf.mxu0
  %v7911 = vadd.f32 0.0, %v7910
  %v7912 = vpop.f32.mrf.mxu0
  %v7913 = vadd.f32 0.0, %v7912
  %7914 = vmatmul.bf16.gmra.mxu0 %v6643
  %v7915 = vpop.f32.mrf.mxu0
  %v7916 = vpop.f32.mrf.mxu0
  %7917 = vmatmul.bf16.gmra.mxu0 %v7691
  %v7918 = vpop.f32.mrf.mxu0
  %v7919 = vpop.f32.mrf.mxu0
  %7920 = vdwg.mxu0
  %v7921 = vadd.f32 %v7565, %v7706
  %v7922 = vadd.f32 %v7566, %v7708
  %v7923 = vadd.f32 %v7567, %v7711
  %v7924 = vadd.f32 %v7568, %v7713
  %v7925 = vadd.f32 %v7569, %v7716
  %v7926 = vadd.f32 %v7570, %v7718
  %v7927 = vadd.f32 %v7571, %v7721
  %v7928 = vadd.f32 %v7572, %v7723
  %v7929 = vadd.f32 %v7573, %v7726
  %v7930 = vadd.f32 %v7574, %v7728
  %v7931 = vadd.f32 %v7575, %v7731
  %v7932 = vadd.f32 %v7576, %v7733
  %v7933 = vadd.f32 %v7577, %v7742
  %v7934 = vadd.f32 %v7578, %v7744
  %v7935 = vadd.f32 %v7579, %v7747
  %v7936 = vadd.f32 %v7580, %v7749
  %v7937 = vadd.f32 %v7581, %v7752
  %v7938 = vadd.f32 %v7582, %v7754
  %v7939 = vadd.f32 %v7583, %v7757
  %v7940 = vadd.f32 %v7584, %v7759
  %v7941 = vadd.f32 %v7585, %v7762
  %v7942 = vadd.f32 %v7586, %v7764
  %v7943 = vadd.f32 %v7587, %v7767
  %v7944 = vadd.f32 %v7588, %v7769
  %v7945 = vadd.f32 %v7589, %v7778
  %v7946 = vadd.f32 %v7590, %v7780
  %v7947 = vadd.f32 %v7591, %v7783
  %v7948 = vadd.f32 %v7592, %v7785
  %v7949 = vadd.f32 %v7593, %v7788
  %v7950 = vadd.f32 %v7594, %v7790
  %v7951 = vadd.f32 %v7595, %v7793
  %v7952 = vadd.f32 %v7596, %v7795
  %v7953 = vadd.f32 %v7597, %v7798
  %v7954 = vadd.f32 %v7598, %v7800
  %v7955 = vadd.f32 %v7599, %v7803
  %v7956 = vadd.f32 %v7600, %v7805
  %v7957 = vadd.f32 %v7601, %v7814
  %v7958 = vadd.f32 %v7602, %v7816
  %v7959 = vadd.f32 %v7603, %v7819
  %v7960 = vadd.f32 %v7604, %v7821
  %v7961 = vadd.f32 %v7605, %v7824
  %v7962 = vadd.f32 %v7606, %v7826
  %v7963 = vadd.f32 %v7607, %v7829
  %v7964 = vadd.f32 %v7608, %v7831
  %v7965 = vadd.f32 %v7609, %v7834
  %v7966 = vadd.f32 %v7610, %v7836
  %v7967 = vadd.f32 %v7611, %v7839
  %v7968 = vadd.f32 %v7612, %v7841
  %v7969 = vadd.f32 %v7613, %v7850
  %v7970 = vadd.f32 %v7614, %v7852
  %v7971 = vadd.f32 %v7615, %v7855
  %v7972 = vadd.f32 %v7616, %v7857
  %v7973 = vadd.f32 %v7617, %v7860
  %v7974 = vadd.f32 %v7618, %v7862
  %v7975 = vadd.f32 %v7619, %v7865
  %v7976 = vadd.f32 %v7620, %v7867
  %v7977 = vadd.f32 %v7621, %v7870
  %v7978 = vadd.f32 %v7622, %v7872
  %v7979 = vadd.f32 %v7623, %v7875
  %v7980 = vadd.f32 %v7624, %v7877
  %v7981 = vadd.f32 %v7625, %v7886
  %v7982 = vadd.f32 %v7626, %v7888
  %v7983 = vadd.f32 %v7627, %v7891
  %v7984 = vadd.f32 %v7628, %v7893
  %v7985 = vadd.f32 %v7629, %v7896
  %v7986 = vadd.f32 %v7630, %v7898
  %v7987 = vadd.f32 %v7631, %v7901
  %v7988 = vadd.f32 %v7632, %v7903
  %v7989 = vadd.f32 %v7633, %v7906
  %v7990 = vadd.f32 %v7634, %v7908
  %v7991 = vadd.f32 %v7635, %v7911
  %v7992 = vadd.f32 %v7636, %v7913
  %s7993 = scalar_lea.vmem %s3, 48
  %v7994 = vld [vmem:[%s7993] sm:$0xf]
  %v7995 = vld [vmem:[%s7993 + $0x4] sm:$0x1]
  %v8012 = vunpack.c.l.b16 %v4323
  %v8013 = vunpack.c.l.b16 %v4324
  %v8014 = vunpack.c.l.b16 %v4325
  %v8015 = vunpack.c.l.b16 %v4326
  %v8016 = vunpack.c.l.b16 %v4327
  %v8017 = vunpack.c.l.b16 %v4328
  %v8018 = vunpack.c.l.b16 %v4329
  %v8019 = vunpack.c.l.b16 %v4330
  %v8020 = vunpack.c.l.b16 %v4331
  %v8021 = vunpack.c.l.b16 %v4332
  %v8022 = vunpack.c.l.b16 %v4333
  %v8023 = vunpack.c.l.b16 %v4334
  %v8024 = vunpack.c.l.b16 %v4335
  %v8025 = vunpack.c.l.b16 %v4336
  %v8026 = vunpack.c.l.b16 %v4337
  %v8027 = vunpack.c.l.b16 %v4338
  %v8028 = vpack.c.b16 %v8013, %v8012
  %v8029 = vpack.c.b16 %v8015, %v8014
  %v8030 = vpack.c.b16 %v8017, %v8016
  %v8031 = vpack.c.b16 %v8019, %v8018
  %v8032 = vpack.c.b16 %v8021, %v8020
  %v8033 = vpack.c.b16 %v8023, %v8022
  %v8034 = vpack.c.b16 %v8025, %v8024
  %v8035 = vpack.c.b16 %v8027, %v8026
  %v8038 = vunpack.c.l.b16 %v7994
  %v8039 = vunpack.c.l.b16 %v7995
  %v8040 = vpack.c.b16 %v8039, %v8038
  %v8042 = vsel %vm4907, %v8028, 0
  %v8045 = vsel %vm4907, %v8029, 0
  %v8048 = vsel %vm4907, %v8030, 0
  %v8051 = vsel %vm4907, %v8031, 0
  %v8054 = vsel %vm4907, %v8032, 0
  %v8057 = vsel %vm4907, %v8033, 0
  %v8060 = vsel %vm4907, %v8034, 0
  %v8063 = vsel %vm4907, %v8035, 0
  %v8066 = vsel %vm2560, %v8040, 0
  %8068 = vmatpush.bf16.msra.mxu0 0
  %8069 = vmatpush.bf16.msra.mxu0 0
  %8070 = vmatpush.bf16.msra.mxu0 0
  %8071 = vmatpush.bf16.msra.mxu0 0
  %8072 = vmatpush.bf16.msra.mxu0 0
  %8073 = vmatpush.bf16.msra.mxu0 0
  %8074 = vmatpush.bf16.msra.mxu0 0
  %8075 = vmatpush.bf16.msra.mxu0 %v8066
  %8076 = vmatmul.bf16.gmra.mxu0 %v5550
  %v8077 = vpop.f32.mrf.mxu0
  %v8078 = vadd.f32 0.0, %v8077
  %v8079 = vpop.f32.mrf.mxu0
  %v8080 = vadd.f32 0.0, %v8079
  %8081 = vmatmul.bf16.gmra.mxu0 %v5553
  %v8082 = vpop.f32.mrf.mxu0
  %v8083 = vadd.f32 0.0, %v8082
  %v8084 = vpop.f32.mrf.mxu0
  %v8085 = vadd.f32 0.0, %v8084
  %8086 = vmatmul.bf16.gmra.mxu0 %v5556
  %v8087 = vpop.f32.mrf.mxu0
  %v8088 = vadd.f32 0.0, %v8087
  %v8089 = vpop.f32.mrf.mxu0
  %v8090 = vadd.f32 0.0, %v8089
  %8091 = vmatmul.bf16.gmra.mxu0 %v5559
  %v8092 = vpop.f32.mrf.mxu0
  %v8093 = vadd.f32 0.0, %v8092
  %v8094 = vpop.f32.mrf.mxu0
  %v8095 = vadd.f32 0.0, %v8094
  %8096 = vmatmul.bf16.gmra.mxu0 %v5562
  %v8097 = vpop.f32.mrf.mxu0
  %v8098 = vadd.f32 0.0, %v8097
  %v8099 = vpop.f32.mrf.mxu0
  %v8100 = vadd.f32 0.0, %v8099
  %8101 = vmatmul.bf16.gmra.mxu0 %v5565
  %v8102 = vpop.f32.mrf.mxu0
  %v8103 = vadd.f32 0.0, %v8102
  %v8104 = vpop.f32.mrf.mxu0
  %v8105 = vadd.f32 0.0, %v8104
  %8106 = vmatmul.bf16.gmra.mxu0 %v5568
  %v8107 = vpop.f32.mrf.mxu0
  %v8108 = vpop.f32.mrf.mxu0
  %8109 = vmatmul.bf16.gmra.mxu0 %v5571
  %v8110 = vpop.f32.mrf.mxu0
  %v8111 = vpop.f32.mrf.mxu0
  %8112 = vmatmul.bf16.gmra.mxu0 %v5574
  %v8113 = vpop.f32.mrf.mxu0
  %v8114 = vadd.f32 0.0, %v8113
  %v8115 = vpop.f32.mrf.mxu0
  %v8116 = vadd.f32 0.0, %v8115
  %8117 = vmatmul.bf16.gmra.mxu0 %v5577
  %v8118 = vpop.f32.mrf.mxu0
  %v8119 = vadd.f32 0.0, %v8118
  %v8120 = vpop.f32.mrf.mxu0
  %v8121 = vadd.f32 0.0, %v8120
  %8122 = vmatmul.bf16.gmra.mxu0 %v5580
  %v8123 = vpop.f32.mrf.mxu0
  %v8124 = vadd.f32 0.0, %v8123
  %v8125 = vpop.f32.mrf.mxu0
  %v8126 = vadd.f32 0.0, %v8125
  %8127 = vmatmul.bf16.gmra.mxu0 %v5583
  %v8128 = vpop.f32.mrf.mxu0
  %v8129 = vadd.f32 0.0, %v8128
  %v8130 = vpop.f32.mrf.mxu0
  %v8131 = vadd.f32 0.0, %v8130
  %8132 = vmatmul.bf16.gmra.mxu0 %v5586
  %v8133 = vpop.f32.mrf.mxu0
  %v8134 = vadd.f32 0.0, %v8133
  %v8135 = vpop.f32.mrf.mxu0
  %v8136 = vadd.f32 0.0, %v8135
  %8137 = vmatmul.bf16.gmra.mxu0 %v5589
  %v8138 = vpop.f32.mrf.mxu0
  %v8139 = vadd.f32 0.0, %v8138
  %v8140 = vpop.f32.mrf.mxu0
  %v8141 = vadd.f32 0.0, %v8140
  %8142 = vmatmul.bf16.gmra.mxu0 %v5592
  %v8143 = vpop.f32.mrf.mxu0
  %v8144 = vpop.f32.mrf.mxu0
  %8145 = vmatmul.bf16.gmra.mxu0 %v5595
  %v8146 = vpop.f32.mrf.mxu0
  %v8147 = vpop.f32.mrf.mxu0
  %8148 = vmatmul.bf16.gmra.mxu0 %v5598
  %v8149 = vpop.f32.mrf.mxu0
  %v8150 = vadd.f32 0.0, %v8149
  %v8151 = vpop.f32.mrf.mxu0
  %v8152 = vadd.f32 0.0, %v8151
  %8153 = vmatmul.bf16.gmra.mxu0 %v5601
  %v8154 = vpop.f32.mrf.mxu0
  %v8155 = vadd.f32 0.0, %v8154
  %v8156 = vpop.f32.mrf.mxu0
  %v8157 = vadd.f32 0.0, %v8156
  %8158 = vmatmul.bf16.gmra.mxu0 %v5604
  %v8159 = vpop.f32.mrf.mxu0
  %v8160 = vadd.f32 0.0, %v8159
  %v8161 = vpop.f32.mrf.mxu0
  %v8162 = vadd.f32 0.0, %v8161
  %8163 = vmatmul.bf16.gmra.mxu0 %v5607
  %v8164 = vpop.f32.mrf.mxu0
  %v8165 = vadd.f32 0.0, %v8164
  %v8166 = vpop.f32.mrf.mxu0
  %v8167 = vadd.f32 0.0, %v8166
  %8168 = vmatmul.bf16.gmra.mxu0 %v5610
  %v8169 = vpop.f32.mrf.mxu0
  %v8170 = vadd.f32 0.0, %v8169
  %v8171 = vpop.f32.mrf.mxu0
  %v8172 = vadd.f32 0.0, %v8171
  %8173 = vmatmul.bf16.gmra.mxu0 %v5613
  %v8174 = vpop.f32.mrf.mxu0
  %v8175 = vadd.f32 0.0, %v8174
  %v8176 = vpop.f32.mrf.mxu0
  %v8177 = vadd.f32 0.0, %v8176
  %8178 = vmatmul.bf16.gmra.mxu0 %v5616
  %v8179 = vpop.f32.mrf.mxu0
  %v8180 = vpop.f32.mrf.mxu0
  %8181 = vmatmul.bf16.gmra.mxu0 %v5619
  %v8182 = vpop.f32.mrf.mxu0
  %v8183 = vpop.f32.mrf.mxu0
  %8184 = vmatmul.bf16.gmra.mxu0 %v5622
  %v8185 = vpop.f32.mrf.mxu0
  %v8186 = vadd.f32 0.0, %v8185
  %v8187 = vpop.f32.mrf.mxu0
  %v8188 = vadd.f32 0.0, %v8187
  %8189 = vmatmul.bf16.gmra.mxu0 %v5625
  %v8190 = vpop.f32.mrf.mxu0
  %v8191 = vadd.f32 0.0, %v8190
  %v8192 = vpop.f32.mrf.mxu0
  %v8193 = vadd.f32 0.0, %v8192
  %8194 = vmatmul.bf16.gmra.mxu0 %v5628
  %v8195 = vpop.f32.mrf.mxu0
  %v8196 = vadd.f32 0.0, %v8195
  %v8197 = vpop.f32.mrf.mxu0
  %v8198 = vadd.f32 0.0, %v8197
  %8199 = vmatmul.bf16.gmra.mxu0 %v5631
  %v8200 = vpop.f32.mrf.mxu0
  %v8201 = vadd.f32 0.0, %v8200
  %v8202 = vpop.f32.mrf.mxu0
  %v8203 = vadd.f32 0.0, %v8202
  %8204 = vmatmul.bf16.gmra.mxu0 %v5634
  %v8205 = vpop.f32.mrf.mxu0
  %v8206 = vadd.f32 0.0, %v8205
  %v8207 = vpop.f32.mrf.mxu0
  %v8208 = vadd.f32 0.0, %v8207
  %8209 = vmatmul.bf16.gmra.mxu0 %v5637
  %v8210 = vpop.f32.mrf.mxu0
  %v8211 = vadd.f32 0.0, %v8210
  %v8212 = vpop.f32.mrf.mxu0
  %v8213 = vadd.f32 0.0, %v8212
  %8214 = vmatmul.bf16.gmra.mxu0 %v5640
  %v8215 = vpop.f32.mrf.mxu0
  %v8216 = vpop.f32.mrf.mxu0
  %8217 = vmatmul.bf16.gmra.mxu0 %v5643
  %v8218 = vpop.f32.mrf.mxu0
  %v8219 = vpop.f32.mrf.mxu0
  %8220 = vmatmul.bf16.gmra.mxu0 %v5646
  %v8221 = vpop.f32.mrf.mxu0
  %v8222 = vadd.f32 0.0, %v8221
  %v8223 = vpop.f32.mrf.mxu0
  %v8224 = vadd.f32 0.0, %v8223
  %8225 = vmatmul.bf16.gmra.mxu0 %v5649
  %v8226 = vpop.f32.mrf.mxu0
  %v8227 = vadd.f32 0.0, %v8226
  %v8228 = vpop.f32.mrf.mxu0
  %v8229 = vadd.f32 0.0, %v8228
  %8230 = vmatmul.bf16.gmra.mxu0 %v5652
  %v8231 = vpop.f32.mrf.mxu0
  %v8232 = vadd.f32 0.0, %v8231
  %v8233 = vpop.f32.mrf.mxu0
  %v8234 = vadd.f32 0.0, %v8233
  %8235 = vmatmul.bf16.gmra.mxu0 %v5655
  %v8236 = vpop.f32.mrf.mxu0
  %v8237 = vadd.f32 0.0, %v8236
  %v8238 = vpop.f32.mrf.mxu0
  %v8239 = vadd.f32 0.0, %v8238
  %8240 = vmatmul.bf16.gmra.mxu0 %v5658
  %v8241 = vpop.f32.mrf.mxu0
  %v8242 = vadd.f32 0.0, %v8241
  %v8243 = vpop.f32.mrf.mxu0
  %v8244 = vadd.f32 0.0, %v8243
  %8245 = vmatmul.bf16.gmra.mxu0 %v5661
  %v8246 = vpop.f32.mrf.mxu0
  %v8247 = vadd.f32 0.0, %v8246
  %v8248 = vpop.f32.mrf.mxu0
  %v8249 = vadd.f32 0.0, %v8248
  %8250 = vmatmul.bf16.gmra.mxu0 %v5664
  %v8251 = vpop.f32.mrf.mxu0
  %v8252 = vpop.f32.mrf.mxu0
  %8253 = vmatmul.bf16.gmra.mxu0 %v5667
  %v8254 = vpop.f32.mrf.mxu0
  %v8255 = vpop.f32.mrf.mxu0
  %8256 = vmatmul.bf16.gmra.mxu0 %v8042
  %v8257 = vpop.f32.mrf.mxu0
  %v8258 = vadd.f32 0.0, %v8257
  %v8259 = vpop.f32.mrf.mxu0
  %v8260 = vadd.f32 0.0, %v8259
  %8261 = vmatmul.bf16.gmra.mxu0 %v8045
  %v8262 = vpop.f32.mrf.mxu0
  %v8263 = vadd.f32 0.0, %v8262
  %v8264 = vpop.f32.mrf.mxu0
  %v8265 = vadd.f32 0.0, %v8264
  %8266 = vmatmul.bf16.gmra.mxu0 %v8048
  %v8267 = vpop.f32.mrf.mxu0
  %v8268 = vadd.f32 0.0, %v8267
  %v8269 = vpop.f32.mrf.mxu0
  %v8270 = vadd.f32 0.0, %v8269
  %8271 = vmatmul.bf16.gmra.mxu0 %v8051
  %v8272 = vpop.f32.mrf.mxu0
  %v8273 = vadd.f32 0.0, %v8272
  %v8274 = vpop.f32.mrf.mxu0
  %v8275 = vadd.f32 0.0, %v8274
  %8276 = vmatmul.bf16.gmra.mxu0 %v8054
  %v8277 = vpop.f32.mrf.mxu0
  %v8278 = vadd.f32 0.0, %v8277
  %v8279 = vpop.f32.mrf.mxu0
  %v8280 = vadd.f32 0.0, %v8279
  %8281 = vmatmul.bf16.gmra.mxu0 %v8057
  %v8282 = vpop.f32.mrf.mxu0
  %v8283 = vadd.f32 0.0, %v8282
  %v8284 = vpop.f32.mrf.mxu0
  %v8285 = vadd.f32 0.0, %v8284
  %8286 = vmatmul.bf16.gmra.mxu0 %v8060
  %v8287 = vpop.f32.mrf.mxu0
  %v8288 = vpop.f32.mrf.mxu0
  %8289 = vmatmul.bf16.gmra.mxu0 %v8063
  %v8290 = vpop.f32.mrf.mxu0
  %v8291 = vpop.f32.mrf.mxu0
  %8292 = vdwg.mxu0
  %v8293 = vadd.f32 %v7921, %v8078
  %v8294 = vadd.f32 %v7922, %v8080
  %v8295 = vadd.f32 %v7923, %v8083
  %v8296 = vadd.f32 %v7924, %v8085
  %v8297 = vadd.f32 %v7925, %v8088
  %v8298 = vadd.f32 %v7926, %v8090
  %v8299 = vadd.f32 %v7927, %v8093
  %v8300 = vadd.f32 %v7928, %v8095
  %v8301 = vadd.f32 %v7929, %v8098
  %v8302 = vadd.f32 %v7930, %v8100
  %v8303 = vadd.f32 %v7931, %v8103
  %v8304 = vadd.f32 %v7932, %v8105
  %v8305 = vadd.f32 %v7933, %v8114
  %v8306 = vadd.f32 %v7934, %v8116
  %v8307 = vadd.f32 %v7935, %v8119
  %v8308 = vadd.f32 %v7936, %v8121
  %v8309 = vadd.f32 %v7937, %v8124
  %v8310 = vadd.f32 %v7938, %v8126
  %v8311 = vadd.f32 %v7939, %v8129
  %v8312 = vadd.f32 %v7940, %v8131
  %v8313 = vadd.f32 %v7941, %v8134
  %v8314 = vadd.f32 %v7942, %v8136
  %v8315 = vadd.f32 %v7943, %v8139
  %v8316 = vadd.f32 %v7944, %v8141
  %v8317 = vadd.f32 %v7945, %v8150
  %v8318 = vadd.f32 %v7946, %v8152
  %v8319 = vadd.f32 %v7947, %v8155
  %v8320 = vadd.f32 %v7948, %v8157
  %v8321 = vadd.f32 %v7949, %v8160
  %v8322 = vadd.f32 %v7950, %v8162
  %v8323 = vadd.f32 %v7951, %v8165
  %v8324 = vadd.f32 %v7952, %v8167
  %v8325 = vadd.f32 %v7953, %v8170
  %v8326 = vadd.f32 %v7954, %v8172
  %v8327 = vadd.f32 %v7955, %v8175
  %v8328 = vadd.f32 %v7956, %v8177
  %v8329 = vadd.f32 %v7957, %v8186
  %v8330 = vadd.f32 %v7958, %v8188
  %v8331 = vadd.f32 %v7959, %v8191
  %v8332 = vadd.f32 %v7960, %v8193
  %v8333 = vadd.f32 %v7961, %v8196
  %v8334 = vadd.f32 %v7962, %v8198
  %v8335 = vadd.f32 %v7963, %v8201
  %v8336 = vadd.f32 %v7964, %v8203
  %v8337 = vadd.f32 %v7965, %v8206
  %v8338 = vadd.f32 %v7966, %v8208
  %v8339 = vadd.f32 %v7967, %v8211
  %v8340 = vadd.f32 %v7968, %v8213
  %v8341 = vadd.f32 %v7969, %v8222
  %v8342 = vadd.f32 %v7970, %v8224
  %v8343 = vadd.f32 %v7971, %v8227
  %v8344 = vadd.f32 %v7972, %v8229
  %v8345 = vadd.f32 %v7973, %v8232
  %v8346 = vadd.f32 %v7974, %v8234
  %v8347 = vadd.f32 %v7975, %v8237
  %v8348 = vadd.f32 %v7976, %v8239
  %v8349 = vadd.f32 %v7977, %v8242
  %v8350 = vadd.f32 %v7978, %v8244
  %v8351 = vadd.f32 %v7979, %v8247
  %v8352 = vadd.f32 %v7980, %v8249
  %v8353 = vadd.f32 %v7981, %v8258
  %v8354 = vadd.f32 %v7982, %v8260
  %v8355 = vadd.f32 %v7983, %v8263
  %v8356 = vadd.f32 %v7984, %v8265
  %v8357 = vadd.f32 %v7985, %v8268
  %v8358 = vadd.f32 %v7986, %v8270
  %v8359 = vadd.f32 %v7987, %v8273
  %v8360 = vadd.f32 %v7988, %v8275
  %v8361 = vadd.f32 %v7989, %v8278
  %v8362 = vadd.f32 %v7990, %v8280
  %v8363 = vadd.f32 %v7991, %v8283
  %v8364 = vadd.f32 %v7992, %v8285
  %s8365 = scalar_lea.vmem %s3, 56
  %v8366 = vld [vmem:[%s8365] sm:$0xf]
  %v8367 = vld [vmem:[%s8365 + $0x4] sm:$0x1]
  %v8384 = vunpack.c.l.b16 %v4437
  %v8385 = vunpack.c.l.b16 %v4438
  %v8386 = vunpack.c.l.b16 %v4439
  %v8387 = vunpack.c.l.b16 %v4440
  %v8388 = vunpack.c.l.b16 %v4441
  %v8389 = vunpack.c.l.b16 %v4442
  %v8390 = vunpack.c.l.b16 %v4443
  %v8391 = vunpack.c.l.b16 %v4444
  %v8392 = vunpack.c.l.b16 %v4445
  %v8393 = vunpack.c.l.b16 %v4446
  %v8394 = vunpack.c.l.b16 %v4447
  %v8395 = vunpack.c.l.b16 %v4448
  %v8396 = vunpack.c.l.b16 %v4449
  %v8397 = vunpack.c.l.b16 %v4450
  %v8398 = vunpack.c.l.b16 %v4451
  %v8399 = vunpack.c.l.b16 %v4452
  %v8400 = vpack.c.b16 %v8385, %v8384
  %v8401 = vpack.c.b16 %v8387, %v8386
  %v8402 = vpack.c.b16 %v8389, %v8388
  %v8403 = vpack.c.b16 %v8391, %v8390
  %v8404 = vpack.c.b16 %v8393, %v8392
  %v8405 = vpack.c.b16 %v8395, %v8394
  %v8406 = vpack.c.b16 %v8397, %v8396
  %v8407 = vpack.c.b16 %v8399, %v8398
  %v8410 = vunpack.c.l.b16 %v8366
  %v8411 = vunpack.c.l.b16 %v8367
  %v8412 = vpack.c.b16 %v8411, %v8410
  %v8414 = vsel %vm4907, %v8400, 0
  %v8417 = vsel %vm4907, %v8401, 0
  %v8420 = vsel %vm4907, %v8402, 0
  %v8423 = vsel %vm4907, %v8403, 0
  %v8426 = vsel %vm4907, %v8404, 0
  %v8429 = vsel %vm4907, %v8405, 0
  %v8432 = vsel %vm4907, %v8406, 0
  %v8435 = vsel %vm4907, %v8407, 0
  %v8438 = vsel %vm2560, %v8412, 0
  %8440 = vmatpush.bf16.msra.mxu0 0
  %8441 = vmatpush.bf16.msra.mxu0 0
  %8442 = vmatpush.bf16.msra.mxu0 0
  %8443 = vmatpush.bf16.msra.mxu0 0
  %8444 = vmatpush.bf16.msra.mxu0 0
  %8445 = vmatpush.bf16.msra.mxu0 0
  %8446 = vmatpush.bf16.msra.mxu0 0
  %8447 = vmatpush.bf16.msra.mxu0 %v8438
  %8448 = vmatmul.bf16.gmra.mxu0 %v4933
  %v8449 = vpop.f32.mrf.mxu0
  %v8450 = vadd.f32 0.0, %v8449
  %v8451 = vpop.f32.mrf.mxu0
  %v8452 = vadd.f32 0.0, %v8451
  %8453 = vmatmul.bf16.gmra.mxu0 %v4936
  %v8454 = vpop.f32.mrf.mxu0
  %v8455 = vadd.f32 0.0, %v8454
  %v8456 = vpop.f32.mrf.mxu0
  %v8457 = vadd.f32 0.0, %v8456
  %8458 = vmatmul.bf16.gmra.mxu0 %v4939
  %v8459 = vpop.f32.mrf.mxu0
  %v8460 = vadd.f32 0.0, %v8459
  %v8461 = vpop.f32.mrf.mxu0
  %v8462 = vadd.f32 0.0, %v8461
  %8463 = vmatmul.bf16.gmra.mxu0 %v4942
  %v8464 = vpop.f32.mrf.mxu0
  %v8465 = vadd.f32 0.0, %v8464
  %v8466 = vpop.f32.mrf.mxu0
  %v8467 = vadd.f32 0.0, %v8466
  %8468 = vmatmul.bf16.gmra.mxu0 %v4945
  %v8469 = vpop.f32.mrf.mxu0
  %v8470 = vadd.f32 0.0, %v8469
  %v8471 = vpop.f32.mrf.mxu0
  %v8472 = vadd.f32 0.0, %v8471
  %8473 = vmatmul.bf16.gmra.mxu0 %v4948
  %v8474 = vpop.f32.mrf.mxu0
  %v8475 = vadd.f32 0.0, %v8474
  %v8476 = vpop.f32.mrf.mxu0
  %v8477 = vadd.f32 0.0, %v8476
  %8478 = vmatmul.bf16.gmra.mxu0 %v4951
  %v8479 = vpop.f32.mrf.mxu0
  %v8480 = vpop.f32.mrf.mxu0
  %8481 = vmatmul.bf16.gmra.mxu0 %v4954
  %v8482 = vpop.f32.mrf.mxu0
  %v8483 = vpop.f32.mrf.mxu0
  %8484 = vmatmul.bf16.gmra.mxu0 %v4957
  %v8485 = vpop.f32.mrf.mxu0
  %v8486 = vadd.f32 0.0, %v8485
  %v8487 = vpop.f32.mrf.mxu0
  %v8488 = vadd.f32 0.0, %v8487
  %8489 = vmatmul.bf16.gmra.mxu0 %v4960
  %v8490 = vpop.f32.mrf.mxu0
  %v8491 = vadd.f32 0.0, %v8490
  %v8492 = vpop.f32.mrf.mxu0
  %v8493 = vadd.f32 0.0, %v8492
  %8494 = vmatmul.bf16.gmra.mxu0 %v4963
  %v8495 = vpop.f32.mrf.mxu0
  %v8496 = vadd.f32 0.0, %v8495
  %v8497 = vpop.f32.mrf.mxu0
  %v8498 = vadd.f32 0.0, %v8497
  %8499 = vmatmul.bf16.gmra.mxu0 %v4966
  %v8500 = vpop.f32.mrf.mxu0
  %v8501 = vadd.f32 0.0, %v8500
  %v8502 = vpop.f32.mrf.mxu0
  %v8503 = vadd.f32 0.0, %v8502
  %8504 = vmatmul.bf16.gmra.mxu0 %v4969
  %v8505 = vpop.f32.mrf.mxu0
  %v8506 = vadd.f32 0.0, %v8505
  %v8507 = vpop.f32.mrf.mxu0
  %v8508 = vadd.f32 0.0, %v8507
  %8509 = vmatmul.bf16.gmra.mxu0 %v4972
  %v8510 = vpop.f32.mrf.mxu0
  %v8511 = vadd.f32 0.0, %v8510
  %v8512 = vpop.f32.mrf.mxu0
  %v8513 = vadd.f32 0.0, %v8512
  %8514 = vmatmul.bf16.gmra.mxu0 %v4975
  %v8515 = vpop.f32.mrf.mxu0
  %v8516 = vpop.f32.mrf.mxu0
  %8517 = vmatmul.bf16.gmra.mxu0 %v4978
  %v8518 = vpop.f32.mrf.mxu0
  %v8519 = vpop.f32.mrf.mxu0
  %8520 = vmatmul.bf16.gmra.mxu0 %v4981
  %v8521 = vpop.f32.mrf.mxu0
  %v8522 = vadd.f32 0.0, %v8521
  %v8523 = vpop.f32.mrf.mxu0
  %v8524 = vadd.f32 0.0, %v8523
  %8525 = vmatmul.bf16.gmra.mxu0 %v4984
  %v8526 = vpop.f32.mrf.mxu0
  %v8527 = vadd.f32 0.0, %v8526
  %v8528 = vpop.f32.mrf.mxu0
  %v8529 = vadd.f32 0.0, %v8528
  %8530 = vmatmul.bf16.gmra.mxu0 %v4987
  %v8531 = vpop.f32.mrf.mxu0
  %v8532 = vadd.f32 0.0, %v8531
  %v8533 = vpop.f32.mrf.mxu0
  %v8534 = vadd.f32 0.0, %v8533
  %8535 = vmatmul.bf16.gmra.mxu0 %v4990
  %v8536 = vpop.f32.mrf.mxu0
  %v8537 = vadd.f32 0.0, %v8536
  %v8538 = vpop.f32.mrf.mxu0
  %v8539 = vadd.f32 0.0, %v8538
  %8540 = vmatmul.bf16.gmra.mxu0 %v4993
  %v8541 = vpop.f32.mrf.mxu0
  %v8542 = vadd.f32 0.0, %v8541
  %v8543 = vpop.f32.mrf.mxu0
  %v8544 = vadd.f32 0.0, %v8543
  %8545 = vmatmul.bf16.gmra.mxu0 %v4996
  %v8546 = vpop.f32.mrf.mxu0
  %v8547 = vadd.f32 0.0, %v8546
  %v8548 = vpop.f32.mrf.mxu0
  %v8549 = vadd.f32 0.0, %v8548
  %8550 = vmatmul.bf16.gmra.mxu0 %v4999
  %v8551 = vpop.f32.mrf.mxu0
  %v8552 = vpop.f32.mrf.mxu0
  %8553 = vmatmul.bf16.gmra.mxu0 %v5002
  %v8554 = vpop.f32.mrf.mxu0
  %v8555 = vpop.f32.mrf.mxu0
  %8556 = vmatmul.bf16.gmra.mxu0 %v5005
  %v8557 = vpop.f32.mrf.mxu0
  %v8558 = vadd.f32 0.0, %v8557
  %v8559 = vpop.f32.mrf.mxu0
  %v8560 = vadd.f32 0.0, %v8559
  %8561 = vmatmul.bf16.gmra.mxu0 %v5008
  %v8562 = vpop.f32.mrf.mxu0
  %v8563 = vadd.f32 0.0, %v8562
  %v8564 = vpop.f32.mrf.mxu0
  %v8565 = vadd.f32 0.0, %v8564
  %8566 = vmatmul.bf16.gmra.mxu0 %v5011
  %v8567 = vpop.f32.mrf.mxu0
  %v8568 = vadd.f32 0.0, %v8567
  %v8569 = vpop.f32.mrf.mxu0
  %v8570 = vadd.f32 0.0, %v8569
  %8571 = vmatmul.bf16.gmra.mxu0 %v5014
  %v8572 = vpop.f32.mrf.mxu0
  %v8573 = vadd.f32 0.0, %v8572
  %v8574 = vpop.f32.mrf.mxu0
  %v8575 = vadd.f32 0.0, %v8574
  %8576 = vmatmul.bf16.gmra.mxu0 %v5017
  %v8577 = vpop.f32.mrf.mxu0
  %v8578 = vadd.f32 0.0, %v8577
  %v8579 = vpop.f32.mrf.mxu0
  %v8580 = vadd.f32 0.0, %v8579
  %8581 = vmatmul.bf16.gmra.mxu0 %v5020
  %v8582 = vpop.f32.mrf.mxu0
  %v8583 = vadd.f32 0.0, %v8582
  %v8584 = vpop.f32.mrf.mxu0
  %v8585 = vadd.f32 0.0, %v8584
  %8586 = vmatmul.bf16.gmra.mxu0 %v5023
  %v8587 = vpop.f32.mrf.mxu0
  %v8588 = vpop.f32.mrf.mxu0
  %8589 = vmatmul.bf16.gmra.mxu0 %v5026
  %v8590 = vpop.f32.mrf.mxu0
  %v8591 = vpop.f32.mrf.mxu0
  %8592 = vmatmul.bf16.gmra.mxu0 %v5029
  %v8593 = vpop.f32.mrf.mxu0
  %v8594 = vadd.f32 0.0, %v8593
  %v8595 = vpop.f32.mrf.mxu0
  %v8596 = vadd.f32 0.0, %v8595
  %8597 = vmatmul.bf16.gmra.mxu0 %v5032
  %v8598 = vpop.f32.mrf.mxu0
  %v8599 = vadd.f32 0.0, %v8598
  %v8600 = vpop.f32.mrf.mxu0
  %v8601 = vadd.f32 0.0, %v8600
  %8602 = vmatmul.bf16.gmra.mxu0 %v5035
  %v8603 = vpop.f32.mrf.mxu0
  %v8604 = vadd.f32 0.0, %v8603
  %v8605 = vpop.f32.mrf.mxu0
  %v8606 = vadd.f32 0.0, %v8605
  %8607 = vmatmul.bf16.gmra.mxu0 %v5038
  %v8608 = vpop.f32.mrf.mxu0
  %v8609 = vadd.f32 0.0, %v8608
  %v8610 = vpop.f32.mrf.mxu0
  %v8611 = vadd.f32 0.0, %v8610
  %8612 = vmatmul.bf16.gmra.mxu0 %v5041
  %v8613 = vpop.f32.mrf.mxu0
  %v8614 = vadd.f32 0.0, %v8613
  %v8615 = vpop.f32.mrf.mxu0
  %v8616 = vadd.f32 0.0, %v8615
  %8617 = vmatmul.bf16.gmra.mxu0 %v5044
  %v8618 = vpop.f32.mrf.mxu0
  %v8619 = vadd.f32 0.0, %v8618
  %v8620 = vpop.f32.mrf.mxu0
  %v8621 = vadd.f32 0.0, %v8620
  %8622 = vmatmul.bf16.gmra.mxu0 %v5047
  %v8623 = vpop.f32.mrf.mxu0
  %v8624 = vpop.f32.mrf.mxu0
  %8625 = vmatmul.bf16.gmra.mxu0 %v5050
  %v8626 = vpop.f32.mrf.mxu0
  %v8627 = vpop.f32.mrf.mxu0
  %8628 = vmatmul.bf16.gmra.mxu0 %v8414
  %v8629 = vpop.f32.mrf.mxu0
  %v8630 = vadd.f32 0.0, %v8629
  %v8631 = vpop.f32.mrf.mxu0
  %v8632 = vadd.f32 0.0, %v8631
  %8633 = vmatmul.bf16.gmra.mxu0 %v8417
  %v8634 = vpop.f32.mrf.mxu0
  %v8635 = vadd.f32 0.0, %v8634
  %v8636 = vpop.f32.mrf.mxu0
  %v8637 = vadd.f32 0.0, %v8636
  %8638 = vmatmul.bf16.gmra.mxu0 %v8420
  %v8639 = vpop.f32.mrf.mxu0
  %v8640 = vadd.f32 0.0, %v8639
  %v8641 = vpop.f32.mrf.mxu0
  %v8642 = vadd.f32 0.0, %v8641
  %8643 = vmatmul.bf16.gmra.mxu0 %v8423
  %v8644 = vpop.f32.mrf.mxu0
  %v8645 = vadd.f32 0.0, %v8644
  %v8646 = vpop.f32.mrf.mxu0
  %v8647 = vadd.f32 0.0, %v8646
  %8648 = vmatmul.bf16.gmra.mxu0 %v8426
  %v8649 = vpop.f32.mrf.mxu0
  %v8650 = vadd.f32 0.0, %v8649
  %v8651 = vpop.f32.mrf.mxu0
  %v8652 = vadd.f32 0.0, %v8651
  %8653 = vmatmul.bf16.gmra.mxu0 %v8429
  %v8654 = vpop.f32.mrf.mxu0
  %v8655 = vadd.f32 0.0, %v8654
  %v8656 = vpop.f32.mrf.mxu0
  %v8657 = vadd.f32 0.0, %v8656
  %8658 = vmatmul.bf16.gmra.mxu0 %v8432
  %v8659 = vpop.f32.mrf.mxu0
  %v8660 = vpop.f32.mrf.mxu0
  %8661 = vmatmul.bf16.gmra.mxu0 %v8435
  %v8662 = vpop.f32.mrf.mxu0
  %v8663 = vpop.f32.mrf.mxu0
  %8664 = vdwg.mxu0
  %v8665 = vadd.f32 %v8293, %v8450
  %v8666 = vadd.f32 %v8294, %v8452
  %v8667 = vadd.f32 %v8295, %v8455
  %v8668 = vadd.f32 %v8296, %v8457
  %v8669 = vadd.f32 %v8297, %v8460
  %v8670 = vadd.f32 %v8298, %v8462
  %v8671 = vadd.f32 %v8299, %v8465
  %v8672 = vadd.f32 %v8300, %v8467
  %v8673 = vadd.f32 %v8301, %v8470
  %v8674 = vadd.f32 %v8302, %v8472
  %v8675 = vadd.f32 %v8303, %v8475
  %v8676 = vadd.f32 %v8304, %v8477
  %v8677 = vadd.f32 %v8305, %v8486
  %v8678 = vadd.f32 %v8306, %v8488
  %v8679 = vadd.f32 %v8307, %v8491
  %v8680 = vadd.f32 %v8308, %v8493
  %v8681 = vadd.f32 %v8309, %v8496
  %v8682 = vadd.f32 %v8310, %v8498
  %v8683 = vadd.f32 %v8311, %v8501
  %v8684 = vadd.f32 %v8312, %v8503
  %v8685 = vadd.f32 %v8313, %v8506
  %v8686 = vadd.f32 %v8314, %v8508
  %v8687 = vadd.f32 %v8315, %v8511
  %v8688 = vadd.f32 %v8316, %v8513
  %v8689 = vadd.f32 %v8317, %v8522
  %v8690 = vadd.f32 %v8318, %v8524
  %v8691 = vadd.f32 %v8319, %v8527
  %v8692 = vadd.f32 %v8320, %v8529
  %v8693 = vadd.f32 %v8321, %v8532
  %v8694 = vadd.f32 %v8322, %v8534
  %v8695 = vadd.f32 %v8323, %v8537
  %v8696 = vadd.f32 %v8324, %v8539
  %v8697 = vadd.f32 %v8325, %v8542
  %v8698 = vadd.f32 %v8326, %v8544
  %v8699 = vadd.f32 %v8327, %v8547
  %v8700 = vadd.f32 %v8328, %v8549
  %v8701 = vadd.f32 %v8329, %v8558
  %v8702 = vadd.f32 %v8330, %v8560
  %v8703 = vadd.f32 %v8331, %v8563
  %v8704 = vadd.f32 %v8332, %v8565
  %v8705 = vadd.f32 %v8333, %v8568
  %v8706 = vadd.f32 %v8334, %v8570
  %v8707 = vadd.f32 %v8335, %v8573
  %v8708 = vadd.f32 %v8336, %v8575
  %v8709 = vadd.f32 %v8337, %v8578
  %v8710 = vadd.f32 %v8338, %v8580
  %v8711 = vadd.f32 %v8339, %v8583
  %v8712 = vadd.f32 %v8340, %v8585
  %v8713 = vadd.f32 %v8341, %v8594
  %v8714 = vadd.f32 %v8342, %v8596
  %v8715 = vadd.f32 %v8343, %v8599
  %v8716 = vadd.f32 %v8344, %v8601
  %v8717 = vadd.f32 %v8345, %v8604
  %v8718 = vadd.f32 %v8346, %v8606
  %v8719 = vadd.f32 %v8347, %v8609
  %v8720 = vadd.f32 %v8348, %v8611
  %v8721 = vadd.f32 %v8349, %v8614
  %v8722 = vadd.f32 %v8350, %v8616
  %v8723 = vadd.f32 %v8351, %v8619
  %v8724 = vadd.f32 %v8352, %v8621
  %v8725 = vadd.f32 %v8353, %v8630
  %v8726 = vadd.f32 %v8354, %v8632
  %v8727 = vadd.f32 %v8355, %v8635
  %v8728 = vadd.f32 %v8356, %v8637
  %v8729 = vadd.f32 %v8357, %v8640
  %v8730 = vadd.f32 %v8358, %v8642
  %v8731 = vadd.f32 %v8359, %v8645
  %v8732 = vadd.f32 %v8360, %v8647
  %v8733 = vadd.f32 %v8361, %v8650
  %v8734 = vadd.f32 %v8362, %v8652
  %v8735 = vadd.f32 %v8363, %v8655
  %v8736 = vadd.f32 %v8364, %v8657
  %s8737 = scalar_lea.vmem %s3, 64
  %v8738 = vld [vmem:[%s8737] sm:$0xf]
  %v8739 = vld [vmem:[%s8737 + $0x4] sm:$0x1]
  %v8742 = vunpack.c.l.b16 %v4339
  %v8743 = vunpack.c.l.b16 %v4340
  %v8744 = vpack.c.b16 %v8743, %v8742
  %v8747 = vunpack.c.l.b16 %v8738
  %v8748 = vunpack.c.l.b16 %v8739
  %v8749 = vpack.c.b16 %v8748, %v8747
  %v8751 = vsel %vm4907, %v8744, 0
  %v8754 = vsel %vm2560, %v8749, 0
  %8756 = vmatpush.bf16.msra.mxu0 0
  %8757 = vmatpush.bf16.msra.mxu0 0
  %8758 = vmatpush.bf16.msra.mxu0 0
  %8759 = vmatpush.bf16.msra.mxu0 0
  %8760 = vmatpush.bf16.msra.mxu0 0
  %8761 = vmatpush.bf16.msra.mxu0 0
  %8762 = vmatpush.bf16.msra.mxu0 0
  %8763 = vmatpush.bf16.msra.mxu0 %v8754
  %8764 = vmatmul.bf16.gmra.mxu0 %v5553
  %v8765 = vpop.f32.mrf.mxu0
  %v8766 = vadd.f32 0.0, %v8765
  %v8767 = vpop.f32.mrf.mxu0
  %v8768 = vadd.f32 0.0, %v8767
  %8769 = vmatmul.bf16.gmra.mxu0 %v5556
  %v8770 = vpop.f32.mrf.mxu0
  %v8771 = vadd.f32 0.0, %v8770
  %v8772 = vpop.f32.mrf.mxu0
  %v8773 = vadd.f32 0.0, %v8772
  %8774 = vmatmul.bf16.gmra.mxu0 %v5559
  %v8775 = vpop.f32.mrf.mxu0
  %v8776 = vadd.f32 0.0, %v8775
  %v8777 = vpop.f32.mrf.mxu0
  %v8778 = vadd.f32 0.0, %v8777
  %8779 = vmatmul.bf16.gmra.mxu0 %v5562
  %v8780 = vpop.f32.mrf.mxu0
  %v8781 = vadd.f32 0.0, %v8780
  %v8782 = vpop.f32.mrf.mxu0
  %v8783 = vadd.f32 0.0, %v8782
  %8784 = vmatmul.bf16.gmra.mxu0 %v5565
  %v8785 = vpop.f32.mrf.mxu0
  %v8786 = vadd.f32 0.0, %v8785
  %v8787 = vpop.f32.mrf.mxu0
  %v8788 = vadd.f32 0.0, %v8787
  %8789 = vmatmul.bf16.gmra.mxu0 %v5568
  %v8790 = vpop.f32.mrf.mxu0
  %v8791 = vadd.f32 0.0, %v8790
  %v8792 = vpop.f32.mrf.mxu0
  %v8793 = vadd.f32 0.0, %v8792
  %8794 = vmatmul.bf16.gmra.mxu0 %v5571
  %v8795 = vpop.f32.mrf.mxu0
  %v8796 = vpop.f32.mrf.mxu0
  %8797 = vmatmul.bf16.gmra.mxu0 %v5939
  %v8798 = vpop.f32.mrf.mxu0
  %v8799 = vpop.f32.mrf.mxu0
  %8800 = vmatmul.bf16.gmra.mxu0 %v5577
  %v8801 = vpop.f32.mrf.mxu0
  %v8802 = vadd.f32 0.0, %v8801
  %v8803 = vpop.f32.mrf.mxu0
  %v8804 = vadd.f32 0.0, %v8803
  %8805 = vmatmul.bf16.gmra.mxu0 %v5580
  %v8806 = vpop.f32.mrf.mxu0
  %v8807 = vadd.f32 0.0, %v8806
  %v8808 = vpop.f32.mrf.mxu0
  %v8809 = vadd.f32 0.0, %v8808
  %8810 = vmatmul.bf16.gmra.mxu0 %v5583
  %v8811 = vpop.f32.mrf.mxu0
  %v8812 = vadd.f32 0.0, %v8811
  %v8813 = vpop.f32.mrf.mxu0
  %v8814 = vadd.f32 0.0, %v8813
  %8815 = vmatmul.bf16.gmra.mxu0 %v5586
  %v8816 = vpop.f32.mrf.mxu0
  %v8817 = vadd.f32 0.0, %v8816
  %v8818 = vpop.f32.mrf.mxu0
  %v8819 = vadd.f32 0.0, %v8818
  %8820 = vmatmul.bf16.gmra.mxu0 %v5589
  %v8821 = vpop.f32.mrf.mxu0
  %v8822 = vadd.f32 0.0, %v8821
  %v8823 = vpop.f32.mrf.mxu0
  %v8824 = vadd.f32 0.0, %v8823
  %8825 = vmatmul.bf16.gmra.mxu0 %v5592
  %v8826 = vpop.f32.mrf.mxu0
  %v8827 = vadd.f32 0.0, %v8826
  %v8828 = vpop.f32.mrf.mxu0
  %v8829 = vadd.f32 0.0, %v8828
  %8830 = vmatmul.bf16.gmra.mxu0 %v5595
  %v8831 = vpop.f32.mrf.mxu0
  %v8832 = vpop.f32.mrf.mxu0
  %8833 = vmatmul.bf16.gmra.mxu0 %v5942
  %v8834 = vpop.f32.mrf.mxu0
  %v8835 = vpop.f32.mrf.mxu0
  %8836 = vmatmul.bf16.gmra.mxu0 %v5601
  %v8837 = vpop.f32.mrf.mxu0
  %v8838 = vadd.f32 0.0, %v8837
  %v8839 = vpop.f32.mrf.mxu0
  %v8840 = vadd.f32 0.0, %v8839
  %8841 = vmatmul.bf16.gmra.mxu0 %v5604
  %v8842 = vpop.f32.mrf.mxu0
  %v8843 = vadd.f32 0.0, %v8842
  %v8844 = vpop.f32.mrf.mxu0
  %v8845 = vadd.f32 0.0, %v8844
  %8846 = vmatmul.bf16.gmra.mxu0 %v5607
  %v8847 = vpop.f32.mrf.mxu0
  %v8848 = vadd.f32 0.0, %v8847
  %v8849 = vpop.f32.mrf.mxu0
  %v8850 = vadd.f32 0.0, %v8849
  %8851 = vmatmul.bf16.gmra.mxu0 %v5610
  %v8852 = vpop.f32.mrf.mxu0
  %v8853 = vadd.f32 0.0, %v8852
  %v8854 = vpop.f32.mrf.mxu0
  %v8855 = vadd.f32 0.0, %v8854
  %8856 = vmatmul.bf16.gmra.mxu0 %v5613
  %v8857 = vpop.f32.mrf.mxu0
  %v8858 = vadd.f32 0.0, %v8857
  %v8859 = vpop.f32.mrf.mxu0
  %v8860 = vadd.f32 0.0, %v8859
  %8861 = vmatmul.bf16.gmra.mxu0 %v5616
  %v8862 = vpop.f32.mrf.mxu0
  %v8863 = vadd.f32 0.0, %v8862
  %v8864 = vpop.f32.mrf.mxu0
  %v8865 = vadd.f32 0.0, %v8864
  %8866 = vmatmul.bf16.gmra.mxu0 %v5619
  %v8867 = vpop.f32.mrf.mxu0
  %v8868 = vpop.f32.mrf.mxu0
  %8869 = vmatmul.bf16.gmra.mxu0 %v5945
  %v8870 = vpop.f32.mrf.mxu0
  %v8871 = vpop.f32.mrf.mxu0
  %8872 = vmatmul.bf16.gmra.mxu0 %v5625
  %v8873 = vpop.f32.mrf.mxu0
  %v8874 = vadd.f32 0.0, %v8873
  %v8875 = vpop.f32.mrf.mxu0
  %v8876 = vadd.f32 0.0, %v8875
  %8877 = vmatmul.bf16.gmra.mxu0 %v5628
  %v8878 = vpop.f32.mrf.mxu0
  %v8879 = vadd.f32 0.0, %v8878
  %v8880 = vpop.f32.mrf.mxu0
  %v8881 = vadd.f32 0.0, %v8880
  %8882 = vmatmul.bf16.gmra.mxu0 %v5631
  %v8883 = vpop.f32.mrf.mxu0
  %v8884 = vadd.f32 0.0, %v8883
  %v8885 = vpop.f32.mrf.mxu0
  %v8886 = vadd.f32 0.0, %v8885
  %8887 = vmatmul.bf16.gmra.mxu0 %v5634
  %v8888 = vpop.f32.mrf.mxu0
  %v8889 = vadd.f32 0.0, %v8888
  %v8890 = vpop.f32.mrf.mxu0
  %v8891 = vadd.f32 0.0, %v8890
  %8892 = vmatmul.bf16.gmra.mxu0 %v5637
  %v8893 = vpop.f32.mrf.mxu0
  %v8894 = vadd.f32 0.0, %v8893
  %v8895 = vpop.f32.mrf.mxu0
  %v8896 = vadd.f32 0.0, %v8895
  %8897 = vmatmul.bf16.gmra.mxu0 %v5640
  %v8898 = vpop.f32.mrf.mxu0
  %v8899 = vadd.f32 0.0, %v8898
  %v8900 = vpop.f32.mrf.mxu0
  %v8901 = vadd.f32 0.0, %v8900
  %8902 = vmatmul.bf16.gmra.mxu0 %v5643
  %v8903 = vpop.f32.mrf.mxu0
  %v8904 = vpop.f32.mrf.mxu0
  %8905 = vmatmul.bf16.gmra.mxu0 %v5948
  %v8906 = vpop.f32.mrf.mxu0
  %v8907 = vpop.f32.mrf.mxu0
  %8908 = vmatmul.bf16.gmra.mxu0 %v5649
  %v8909 = vpop.f32.mrf.mxu0
  %v8910 = vadd.f32 0.0, %v8909
  %v8911 = vpop.f32.mrf.mxu0
  %v8912 = vadd.f32 0.0, %v8911
  %8913 = vmatmul.bf16.gmra.mxu0 %v5652
  %v8914 = vpop.f32.mrf.mxu0
  %v8915 = vadd.f32 0.0, %v8914
  %v8916 = vpop.f32.mrf.mxu0
  %v8917 = vadd.f32 0.0, %v8916
  %8918 = vmatmul.bf16.gmra.mxu0 %v5655
  %v8919 = vpop.f32.mrf.mxu0
  %v8920 = vadd.f32 0.0, %v8919
  %v8921 = vpop.f32.mrf.mxu0
  %v8922 = vadd.f32 0.0, %v8921
  %8923 = vmatmul.bf16.gmra.mxu0 %v5658
  %v8924 = vpop.f32.mrf.mxu0
  %v8925 = vadd.f32 0.0, %v8924
  %v8926 = vpop.f32.mrf.mxu0
  %v8927 = vadd.f32 0.0, %v8926
  %8928 = vmatmul.bf16.gmra.mxu0 %v5661
  %v8929 = vpop.f32.mrf.mxu0
  %v8930 = vadd.f32 0.0, %v8929
  %v8931 = vpop.f32.mrf.mxu0
  %v8932 = vadd.f32 0.0, %v8931
  %8933 = vmatmul.bf16.gmra.mxu0 %v5664
  %v8934 = vpop.f32.mrf.mxu0
  %v8935 = vadd.f32 0.0, %v8934
  %v8936 = vpop.f32.mrf.mxu0
  %v8937 = vadd.f32 0.0, %v8936
  %8938 = vmatmul.bf16.gmra.mxu0 %v5667
  %v8939 = vpop.f32.mrf.mxu0
  %v8940 = vpop.f32.mrf.mxu0
  %8941 = vmatmul.bf16.gmra.mxu0 %v5951
  %v8942 = vpop.f32.mrf.mxu0
  %v8943 = vpop.f32.mrf.mxu0
  %8944 = vmatmul.bf16.gmra.mxu0 %v8045
  %v8945 = vpop.f32.mrf.mxu0
  %v8946 = vadd.f32 0.0, %v8945
  %v8947 = vpop.f32.mrf.mxu0
  %v8948 = vadd.f32 0.0, %v8947
  %8949 = vmatmul.bf16.gmra.mxu0 %v8048
  %v8950 = vpop.f32.mrf.mxu0
  %v8951 = vadd.f32 0.0, %v8950
  %v8952 = vpop.f32.mrf.mxu0
  %v8953 = vadd.f32 0.0, %v8952
  %8954 = vmatmul.bf16.gmra.mxu0 %v8051
  %v8955 = vpop.f32.mrf.mxu0
  %v8956 = vadd.f32 0.0, %v8955
  %v8957 = vpop.f32.mrf.mxu0
  %v8958 = vadd.f32 0.0, %v8957
  %8959 = vmatmul.bf16.gmra.mxu0 %v8054
  %v8960 = vpop.f32.mrf.mxu0
  %v8961 = vadd.f32 0.0, %v8960
  %v8962 = vpop.f32.mrf.mxu0
  %v8963 = vadd.f32 0.0, %v8962
  %8964 = vmatmul.bf16.gmra.mxu0 %v8057
  %v8965 = vpop.f32.mrf.mxu0
  %v8966 = vadd.f32 0.0, %v8965
  %v8967 = vpop.f32.mrf.mxu0
  %v8968 = vadd.f32 0.0, %v8967
  %8969 = vmatmul.bf16.gmra.mxu0 %v8060
  %v8970 = vpop.f32.mrf.mxu0
  %v8971 = vadd.f32 0.0, %v8970
  %v8972 = vpop.f32.mrf.mxu0
  %v8973 = vadd.f32 0.0, %v8972
  %8974 = vmatmul.bf16.gmra.mxu0 %v8063
  %v8975 = vpop.f32.mrf.mxu0
  %v8976 = vpop.f32.mrf.mxu0
  %8977 = vmatmul.bf16.gmra.mxu0 %v8751
  %v8978 = vpop.f32.mrf.mxu0
  %v8979 = vpop.f32.mrf.mxu0
  %8980 = vdwg.mxu0
  %v8981 = vadd.f32 %v8665, %v8766
  %v8982 = vadd.f32 %v8666, %v8768
  %v8983 = vadd.f32 %v8667, %v8771
  %v8984 = vadd.f32 %v8668, %v8773
  %v8985 = vadd.f32 %v8669, %v8776
  %v8986 = vadd.f32 %v8670, %v8778
  %v8987 = vadd.f32 %v8671, %v8781
  %v8988 = vadd.f32 %v8672, %v8783
  %v8989 = vadd.f32 %v8673, %v8786
  %v8990 = vadd.f32 %v8674, %v8788
  %v8991 = vadd.f32 %v8675, %v8791
  %v8992 = vadd.f32 %v8676, %v8793
  %v8993 = vadd.f32 %v8677, %v8802
  %v8994 = vadd.f32 %v8678, %v8804
  %v8995 = vadd.f32 %v8679, %v8807
  %v8996 = vadd.f32 %v8680, %v8809
  %v8997 = vadd.f32 %v8681, %v8812
  %v8998 = vadd.f32 %v8682, %v8814
  %v8999 = vadd.f32 %v8683, %v8817
  %v9000 = vadd.f32 %v8684, %v8819
  %v9001 = vadd.f32 %v8685, %v8822
  %v9002 = vadd.f32 %v8686, %v8824
  %v9003 = vadd.f32 %v8687, %v8827
  %v9004 = vadd.f32 %v8688, %v8829
  %v9005 = vadd.f32 %v8689, %v8838
  %v9006 = vadd.f32 %v8690, %v8840
  %v9007 = vadd.f32 %v8691, %v8843
  %v9008 = vadd.f32 %v8692, %v8845
  %v9009 = vadd.f32 %v8693, %v8848
  %v9010 = vadd.f32 %v8694, %v8850
  %v9011 = vadd.f32 %v8695, %v8853
  %v9012 = vadd.f32 %v8696, %v8855
  %v9013 = vadd.f32 %v8697, %v8858
  %v9014 = vadd.f32 %v8698, %v8860
  %v9015 = vadd.f32 %v8699, %v8863
  %v9016 = vadd.f32 %v8700, %v8865
  %v9017 = vadd.f32 %v8701, %v8874
  %v9018 = vadd.f32 %v8702, %v8876
  %v9019 = vadd.f32 %v8703, %v8879
  %v9020 = vadd.f32 %v8704, %v8881
  %v9021 = vadd.f32 %v8705, %v8884
  %v9022 = vadd.f32 %v8706, %v8886
  %v9023 = vadd.f32 %v8707, %v8889
  %v9024 = vadd.f32 %v8708, %v8891
  %v9025 = vadd.f32 %v8709, %v8894
  %v9026 = vadd.f32 %v8710, %v8896
  %v9027 = vadd.f32 %v8711, %v8899
  %v9028 = vadd.f32 %v8712, %v8901
  %v9029 = vadd.f32 %v8713, %v8910
  %v9030 = vadd.f32 %v8714, %v8912
  %v9031 = vadd.f32 %v8715, %v8915
  %v9032 = vadd.f32 %v8716, %v8917
  %v9033 = vadd.f32 %v8717, %v8920
  %v9034 = vadd.f32 %v8718, %v8922
  %v9035 = vadd.f32 %v8719, %v8925
  %v9036 = vadd.f32 %v8720, %v8927
  %v9037 = vadd.f32 %v8721, %v8930
  %v9038 = vadd.f32 %v8722, %v8932
  %v9039 = vadd.f32 %v8723, %v8935
  %v9040 = vadd.f32 %v8724, %v8937
  %v9041 = vadd.f32 %v8725, %v8946
  %v9042 = vadd.f32 %v8726, %v8948
  %v9043 = vadd.f32 %v8727, %v8951
  %v9044 = vadd.f32 %v8728, %v8953
  %v9045 = vadd.f32 %v8729, %v8956
  %v9046 = vadd.f32 %v8730, %v8958
  %v9047 = vadd.f32 %v8731, %v8961
  %v9048 = vadd.f32 %v8732, %v8963
  %v9049 = vadd.f32 %v8733, %v8966
  %v9050 = vadd.f32 %v8734, %v8968
  %v9051 = vadd.f32 %v8735, %v8971
  %v9052 = vadd.f32 %v8736, %v8973
  %v9053 = vld [vmem:[%s4] sm:$0x1]
  %v9055 = vperm.slane %v9053, 0
  %v9057 = vadd.f32 %v8981, %v9055
  %v9058 = vadd.f32 %v8982, %v9055
  %v9059 = vadd.f32 %v8983, %v9055
  %v9060 = vadd.f32 %v8984, %v9055
  %v9061 = vadd.f32 %v8985, %v9055
  %v9062 = vadd.f32 %v8986, %v9055
  %v9063 = vadd.f32 %v8987, %v9055
  %v9064 = vadd.f32 %v8988, %v9055
  %v9065 = vadd.f32 %v8989, %v9055
  %v9066 = vadd.f32 %v8990, %v9055
  %v9067 = vadd.f32 %v8991, %v9055
  %v9068 = vadd.f32 %v8992, %v9055
  %v9069 = vadd.f32 %v8993, %v9055
  %v9070 = vadd.f32 %v8994, %v9055
  %v9071 = vadd.f32 %v8995, %v9055
  %v9072 = vadd.f32 %v8996, %v9055
  %v9073 = vadd.f32 %v8997, %v9055
  %v9074 = vadd.f32 %v8998, %v9055
  %v9075 = vadd.f32 %v8999, %v9055
  %v9076 = vadd.f32 %v9000, %v9055
  %v9077 = vadd.f32 %v9001, %v9055
  %v9078 = vadd.f32 %v9002, %v9055
  %v9079 = vadd.f32 %v9003, %v9055
  %v9080 = vadd.f32 %v9004, %v9055
  %v9081 = vadd.f32 %v9005, %v9055
  %v9082 = vadd.f32 %v9006, %v9055
  %v9083 = vadd.f32 %v9007, %v9055
  %v9084 = vadd.f32 %v9008, %v9055
  %v9085 = vadd.f32 %v9009, %v9055
  %v9086 = vadd.f32 %v9010, %v9055
  %v9087 = vadd.f32 %v9011, %v9055
  %v9088 = vadd.f32 %v9012, %v9055
  %v9089 = vadd.f32 %v9013, %v9055
  %v9090 = vadd.f32 %v9014, %v9055
  %v9091 = vadd.f32 %v9015, %v9055
  %v9092 = vadd.f32 %v9016, %v9055
  %v9093 = vadd.f32 %v9017, %v9055
  %v9094 = vadd.f32 %v9018, %v9055
  %v9095 = vadd.f32 %v9019, %v9055
  %v9096 = vadd.f32 %v9020, %v9055
  %v9097 = vadd.f32 %v9021, %v9055
  %v9098 = vadd.f32 %v9022, %v9055
  %v9099 = vadd.f32 %v9023, %v9055
  %v9100 = vadd.f32 %v9024, %v9055
  %v9101 = vadd.f32 %v9025, %v9055
  %v9102 = vadd.f32 %v9026, %v9055
  %v9103 = vadd.f32 %v9027, %v9055
  %v9104 = vadd.f32 %v9028, %v9055
  %v9105 = vadd.f32 %v9029, %v9055
  %v9106 = vadd.f32 %v9030, %v9055
  %v9107 = vadd.f32 %v9031, %v9055
  %v9108 = vadd.f32 %v9032, %v9055
  %v9109 = vadd.f32 %v9033, %v9055
  %v9110 = vadd.f32 %v9034, %v9055
  %v9111 = vadd.f32 %v9035, %v9055
  %v9112 = vadd.f32 %v9036, %v9055
  %v9113 = vadd.f32 %v9037, %v9055
  %v9114 = vadd.f32 %v9038, %v9055
  %v9115 = vadd.f32 %v9039, %v9055
  %v9116 = vadd.f32 %v9040, %v9055
  %v9117 = vadd.f32 %v9041, %v9055
  %v9118 = vadd.f32 %v9042, %v9055
  %v9119 = vadd.f32 %v9043, %v9055
  %v9120 = vadd.f32 %v9044, %v9055
  %v9121 = vadd.f32 %v9045, %v9055
  %v9122 = vadd.f32 %v9046, %v9055
  %v9123 = vadd.f32 %v9047, %v9055
  %v9124 = vadd.f32 %v9048, %v9055
  %v9125 = vadd.f32 %v9049, %v9055
  %v9126 = vadd.f32 %v9050, %v9055
  %v9127 = vadd.f32 %v9051, %v9055
  %v9128 = vadd.f32 %v9052, %v9055
  %v9129 = vmax.f32 %v9057, 0.0
  %v9130 = vmax.f32 %v9058, 0.0
  %v9131 = vmax.f32 %v9059, 0.0
  %v9132 = vmax.f32 %v9060, 0.0
  %v9133 = vmax.f32 %v9061, 0.0
  %v9134 = vmax.f32 %v9062, 0.0
  %v9135 = vmax.f32 %v9063, 0.0
  %v9136 = vmax.f32 %v9064, 0.0
  %v9137 = vmax.f32 %v9065, 0.0
  %v9138 = vmax.f32 %v9066, 0.0
  %v9139 = vmax.f32 %v9067, 0.0
  %v9140 = vmax.f32 %v9068, 0.0
  %v9141 = vmax.f32 %v9069, 0.0
  %v9142 = vmax.f32 %v9070, 0.0
  %v9143 = vmax.f32 %v9071, 0.0
  %v9144 = vmax.f32 %v9072, 0.0
  %v9145 = vmax.f32 %v9073, 0.0
  %v9146 = vmax.f32 %v9074, 0.0
  %v9147 = vmax.f32 %v9075, 0.0
  %v9148 = vmax.f32 %v9076, 0.0
  %v9149 = vmax.f32 %v9077, 0.0
  %v9150 = vmax.f32 %v9078, 0.0
  %v9151 = vmax.f32 %v9079, 0.0
  %v9152 = vmax.f32 %v9080, 0.0
  %v9153 = vmax.f32 %v9081, 0.0
  %v9154 = vmax.f32 %v9082, 0.0
  %v9155 = vmax.f32 %v9083, 0.0
  %v9156 = vmax.f32 %v9084, 0.0
  %v9157 = vmax.f32 %v9085, 0.0
  %v9158 = vmax.f32 %v9086, 0.0
  %v9159 = vmax.f32 %v9087, 0.0
  %v9160 = vmax.f32 %v9088, 0.0
  %v9161 = vmax.f32 %v9089, 0.0
  %v9162 = vmax.f32 %v9090, 0.0
  %v9163 = vmax.f32 %v9091, 0.0
  %v9164 = vmax.f32 %v9092, 0.0
  %v9165 = vmax.f32 %v9093, 0.0
  %v9166 = vmax.f32 %v9094, 0.0
  %v9167 = vmax.f32 %v9095, 0.0
  %v9168 = vmax.f32 %v9096, 0.0
  %v9169 = vmax.f32 %v9097, 0.0
  %v9170 = vmax.f32 %v9098, 0.0
  %v9171 = vmax.f32 %v9099, 0.0
  %v9172 = vmax.f32 %v9100, 0.0
  %v9173 = vmax.f32 %v9101, 0.0
  %v9174 = vmax.f32 %v9102, 0.0
  %v9175 = vmax.f32 %v9103, 0.0
  %v9176 = vmax.f32 %v9104, 0.0
  %v9177 = vmax.f32 %v9105, 0.0
  %v9178 = vmax.f32 %v9106, 0.0
  %v9179 = vmax.f32 %v9107, 0.0
  %v9180 = vmax.f32 %v9108, 0.0
  %v9181 = vmax.f32 %v9109, 0.0
  %v9182 = vmax.f32 %v9110, 0.0
  %v9183 = vmax.f32 %v9111, 0.0
  %v9184 = vmax.f32 %v9112, 0.0
  %v9185 = vmax.f32 %v9113, 0.0
  %v9186 = vmax.f32 %v9114, 0.0
  %v9187 = vmax.f32 %v9115, 0.0
  %v9188 = vmax.f32 %v9116, 0.0
  %v9189 = vmax.f32 %v9117, 0.0
  %v9190 = vmax.f32 %v9118, 0.0
  %v9191 = vmax.f32 %v9119, 0.0
  %v9192 = vmax.f32 %v9120, 0.0
  %v9193 = vmax.f32 %v9121, 0.0
  %v9194 = vmax.f32 %v9122, 0.0
  %v9195 = vmax.f32 %v9123, 0.0
  %v9196 = vmax.f32 %v9124, 0.0
  %v9197 = vmax.f32 %v9125, 0.0
  %v9198 = vmax.f32 %v9126, 0.0
  %v9199 = vmax.f32 %v9127, 0.0
  %v9200 = vmax.f32 %v9128, 0.0
  %v9201 = vpack.c.bf16 %v9129, %v9129
  %v9202 = vpack.c.bf16 %v9130, %v9130
  %v9203 = vpack.c.bf16 %v9131, %v9131
  %v9204 = vpack.c.bf16 %v9132, %v9132
  %v9205 = vpack.c.bf16 %v9133, %v9133
  %v9206 = vpack.c.bf16 %v9134, %v9134
  %v9207 = vpack.c.bf16 %v9135, %v9135
  %v9208 = vpack.c.bf16 %v9136, %v9136
  %v9209 = vpack.c.bf16 %v9137, %v9137
  %v9210 = vpack.c.bf16 %v9138, %v9138
  %v9211 = vpack.c.bf16 %v9139, %v9139
  %v9212 = vpack.c.bf16 %v9140, %v9140
  %v9213 = vpack.c.bf16 %v9141, %v9141
  %v9214 = vpack.c.bf16 %v9142, %v9142
  %v9215 = vpack.c.bf16 %v9143, %v9143
  %v9216 = vpack.c.bf16 %v9144, %v9144
  %v9217 = vpack.c.bf16 %v9145, %v9145
  %v9218 = vpack.c.bf16 %v9146, %v9146
  %v9219 = vpack.c.bf16 %v9147, %v9147
  %v9220 = vpack.c.bf16 %v9148, %v9148
  %v9221 = vpack.c.bf16 %v9149, %v9149
  %v9222 = vpack.c.bf16 %v9150, %v9150
  %v9223 = vpack.c.bf16 %v9151, %v9151
  %v9224 = vpack.c.bf16 %v9152, %v9152
  %v9225 = vpack.c.bf16 %v9153, %v9153
  %v9226 = vpack.c.bf16 %v9154, %v9154
  %v9227 = vpack.c.bf16 %v9155, %v9155
  %v9228 = vpack.c.bf16 %v9156, %v9156
  %v9229 = vpack.c.bf16 %v9157, %v9157
  %v9230 = vpack.c.bf16 %v9158, %v9158
  %v9231 = vpack.c.bf16 %v9159, %v9159
  %v9232 = vpack.c.bf16 %v9160, %v9160
  %v9233 = vpack.c.bf16 %v9161, %v9161
  %v9234 = vpack.c.bf16 %v9162, %v9162
  %v9235 = vpack.c.bf16 %v9163, %v9163
  %v9236 = vpack.c.bf16 %v9164, %v9164
  %v9237 = vpack.c.bf16 %v9165, %v9165
  %v9238 = vpack.c.bf16 %v9166, %v9166
  %v9239 = vpack.c.bf16 %v9167, %v9167
  %v9240 = vpack.c.bf16 %v9168, %v9168
  %v9241 = vpack.c.bf16 %v9169, %v9169
  %v9242 = vpack.c.bf16 %v9170, %v9170
  %v9243 = vpack.c.bf16 %v9171, %v9171
  %v9244 = vpack.c.bf16 %v9172, %v9172
  %v9245 = vpack.c.bf16 %v9173, %v9173
  %v9246 = vpack.c.bf16 %v9174, %v9174
  %v9247 = vpack.c.bf16 %v9175, %v9175
  %v9248 = vpack.c.bf16 %v9176, %v9176
  %v9249 = vpack.c.bf16 %v9177, %v9177
  %v9250 = vpack.c.bf16 %v9178, %v9178
  %v9251 = vpack.c.bf16 %v9179, %v9179
  %v9252 = vpack.c.bf16 %v9180, %v9180
  %v9253 = vpack.c.bf16 %v9181, %v9181
  %v9254 = vpack.c.bf16 %v9182, %v9182
  %v9255 = vpack.c.bf16 %v9183, %v9183
  %v9256 = vpack.c.bf16 %v9184, %v9184
  %v9257 = vpack.c.bf16 %v9185, %v9185
  %v9258 = vpack.c.bf16 %v9186, %v9186
  %v9259 = vpack.c.bf16 %v9187, %v9187
  %v9260 = vpack.c.bf16 %v9188, %v9188
  %v9261 = vpack.c.bf16 %v9189, %v9189
  %v9262 = vpack.c.bf16 %v9190, %v9190
  %v9263 = vpack.c.bf16 %v9191, %v9191
  %v9264 = vpack.c.bf16 %v9192, %v9192
  %v9265 = vpack.c.bf16 %v9193, %v9193
  %v9266 = vpack.c.bf16 %v9194, %v9194
  %v9267 = vpack.c.bf16 %v9195, %v9195
  %v9268 = vpack.c.bf16 %v9196, %v9196
  %v9269 = vpack.c.bf16 %v9197, %v9197
  %v9270 = vpack.c.bf16 %v9198, %v9198
  %v9271 = vpack.c.bf16 %v9199, %v9199
  %v9272 = vpack.c.bf16 %v9200, %v9200
  %v9273 = vld [vmem:[%s5] sm:$0xff]
  %v9274 = vld [vmem:[%s5 + $0x8] sm:$0xff]
  %v9275 = vld [vmem:[%s5 + $0x10] sm:$0x33]
  %s9276 = scalar_lea.vmem %s5, 24
  %v9277 = vld [vmem:[%s9276] sm:$0xff]
  %v9278 = vld [vmem:[%s9276 + $0x8] sm:$0xff]
  %v9279 = vld [vmem:[%s9276 + $0x10] sm:$0x33]
  %v9282 = vunpack.c.l.b16 %v9203
  %v9283 = vunpack.c.l.b16 %v9204
  %v9284 = vpack.c.b16 %v9283, %v9282
  %v9288 = vunpack.c.l.b16 %v9277
  %v9289 = vunpack.c.h.b16 %v9277
  %v9290 = vunpack.c.l.b16 %v9278
  %v9291 = vunpack.c.h.b16 %v9278
  %v9292 = vunpack.c.l.b16 %v9279
  %v9293 = vunpack.c.h.b16 %v9279
  %v9294 = vpack.c.b16 %v9290, %v9288
  %v9295 = vpack.c.b16 %v9291, %v9289
  %v9296 = vpack.c.b16 %v9292, %v9292
  %v9297 = vpack.c.b16 %v9293, %v9293
  %vm9300 = vcmask 162816
  %v9302 = vsel %vm9300, %v9284, 0
  %vm9304 = vcmask 1041408
  %v9306 = vsel %vm9304, %v9296, 0
  %v9309 = vsel %vm9304, %v9297, 0
  %9311 = vmatpush.bf16.msra.mxu0 0
  %9312 = vmatpush.bf16.msra.mxu0 0
  %9313 = vmatpush.bf16.msra.mxu0 0
  %9314 = vmatpush.bf16.msra.mxu0 0
  %9315 = vmatpush.bf16.msra.mxu0 0
  %9316 = vmatpush.bf16.msra.mxu0 0
  %9317 = vmatpush.bf16.msra.mxu0 %v9306
  %9318 = vmatpush.bf16.msra.mxu0 %v9294
  %9319 = vmatmul.bf16.gmra.mxu0 %v9302
  %v9320 = vpop.f32.mrf.mxu0
  %v9321 = vadd.f32 0.0, %v9320
  %v9322 = vpop.f32.mrf.mxu0
  %v9323 = vadd.f32 0.0, %v9322
  %9324 = vdwg.mxu0
  %9325 = vmatpush.bf16.msra.mxu0 0
  %9326 = vmatpush.bf16.msra.mxu0 0
  %9327 = vmatpush.bf16.msra.mxu0 0
  %9328 = vmatpush.bf16.msra.mxu0 0
  %9329 = vmatpush.bf16.msra.mxu0 0
  %9330 = vmatpush.bf16.msra.mxu0 0
  %9331 = vmatpush.bf16.msra.mxu0 %v9309
  %9332 = vmatpush.bf16.msra.mxu0 %v9295
  %9333 = vmatmul.bf16.gmra.mxu0 %v9302
  %v9334 = vpop.f32.mrf.mxu0
  %v9335 = vadd.f32 0.0, %v9334
  %v9336 = vpop.f32.mrf.mxu0
  %v9337 = vadd.f32 0.0, %v9336
  %9338 = vdwg.mxu0
  %v9341 = vunpack.c.l.b16 %v9201
  %v9342 = vunpack.c.l.b16 %v9202
  %v9343 = vpack.c.b16 %v9342, %v9341
  %v9347 = vunpack.c.l.b16 %v9273
  %v9348 = vunpack.c.h.b16 %v9273
  %v9349 = vunpack.c.l.b16 %v9274
  %v9350 = vunpack.c.h.b16 %v9274
  %v9351 = vunpack.c.l.b16 %v9275
  %v9352 = vunpack.c.h.b16 %v9275
  %v9353 = vpack.c.b16 %v9349, %v9347
  %v9354 = vpack.c.b16 %v9350, %v9348
  %v9355 = vpack.c.b16 %v9351, %v9351
  %v9356 = vpack.c.b16 %v9352, %v9352
  %v9360 = vsel %vm9300, %v9343, 0
  %v9363 = vsel %vm9304, %v9355, 0
  %v9366 = vsel %vm9304, %v9356, 0
  %9368 = vmatpush.bf16.msra.mxu0 0
  %9369 = vmatpush.bf16.msra.mxu0 0
  %9370 = vmatpush.bf16.msra.mxu0 0
  %9371 = vmatpush.bf16.msra.mxu0 0
  %9372 = vmatpush.bf16.msra.mxu0 0
  %9373 = vmatpush.bf16.msra.mxu0 0
  %9374 = vmatpush.bf16.msra.mxu0 %v9363
  %9375 = vmatpush.bf16.msra.mxu0 %v9353
  %9376 = vmatmul.bf16.gmra.mxu0 %v9360
  %v9377 = vpop.f32.mrf.mxu0
  %v9378 = vadd.f32 %v9321, %v9377
  %v9379 = vpop.f32.mrf.mxu0
  %v9380 = vadd.f32 %v9323, %v9379
  %9381 = vdwg.mxu0
  %9382 = vmatpush.bf16.msra.mxu0 0
  %9383 = vmatpush.bf16.msra.mxu0 0
  %9384 = vmatpush.bf16.msra.mxu0 0
  %9385 = vmatpush.bf16.msra.mxu0 0
  %9386 = vmatpush.bf16.msra.mxu0 0
  %9387 = vmatpush.bf16.msra.mxu0 0
  %9388 = vmatpush.bf16.msra.mxu0 %v9366
  %9389 = vmatpush.bf16.msra.mxu0 %v9354
  %9390 = vmatmul.bf16.gmra.mxu0 %v9360
  %v9391 = vpop.f32.mrf.mxu0
  %v9392 = vadd.f32 %v9335, %v9391
  %v9393 = vpop.f32.mrf.mxu0
  %v9394 = vadd.f32 %v9337, %v9393
  %9395 = vdwg.mxu0
  %s9396 = scalar_lea.vmem %s5, 48
  %v9397 = vld [vmem:[%s9396] sm:$0xff]
  %v9398 = vld [vmem:[%s9396 + $0x8] sm:$0xff]
  %v9399 = vld [vmem:[%s9396 + $0x10] sm:$0x33]
  %v9402 = vunpack.c.l.b16 %v9205
  %v9403 = vunpack.c.l.b16 %v9206
  %v9404 = vpack.c.b16 %v9403, %v9402
  %v9408 = vunpack.c.l.b16 %v9397
  %v9409 = vunpack.c.h.b16 %v9397
  %v9410 = vunpack.c.l.b16 %v9398
  %v9411 = vunpack.c.h.b16 %v9398
  %v9412 = vunpack.c.l.b16 %v9399
  %v9413 = vunpack.c.h.b16 %v9399
  %v9414 = vpack.c.b16 %v9410, %v9408
  %v9415 = vpack.c.b16 %v9411, %v9409
  %v9416 = vpack.c.b16 %v9412, %v9412
  %v9417 = vpack.c.b16 %v9413, %v9413
  %v9421 = vsel %vm9300, %v9404, 0
  %v9424 = vsel %vm9304, %v9416, 0
  %v9427 = vsel %vm9304, %v9417, 0
  %9429 = vmatpush.bf16.msra.mxu0 0
  %9430 = vmatpush.bf16.msra.mxu0 0
  %9431 = vmatpush.bf16.msra.mxu0 0
  %9432 = vmatpush.bf16.msra.mxu0 0
  %9433 = vmatpush.bf16.msra.mxu0 0
  %9434 = vmatpush.bf16.msra.mxu0 0
  %9435 = vmatpush.bf16.msra.mxu0 %v9424
  %9436 = vmatpush.bf16.msra.mxu0 %v9414
  %9437 = vmatmul.bf16.gmra.mxu0 %v9421
  %v9438 = vpop.f32.mrf.mxu0
  %v9439 = vadd.f32 0.0, %v9438
  %v9440 = vpop.f32.mrf.mxu0
  %v9441 = vadd.f32 0.0, %v9440
  %9442 = vdwg.mxu0
  %9443 = vmatpush.bf16.msra.mxu0 0
  %9444 = vmatpush.bf16.msra.mxu0 0
  %9445 = vmatpush.bf16.msra.mxu0 0
  %9446 = vmatpush.bf16.msra.mxu0 0
  %9447 = vmatpush.bf16.msra.mxu0 0
  %9448 = vmatpush.bf16.msra.mxu0 0
  %9449 = vmatpush.bf16.msra.mxu0 %v9427
  %9450 = vmatpush.bf16.msra.mxu0 %v9415
  %9451 = vmatmul.bf16.gmra.mxu0 %v9421
  %v9452 = vpop.f32.mrf.mxu0
  %v9453 = vadd.f32 0.0, %v9452
  %v9454 = vpop.f32.mrf.mxu0
  %v9455 = vadd.f32 0.0, %v9454
  %9456 = vdwg.mxu0
  %v9457 = vadd.f32 %v9378, %v9439
  %v9458 = vadd.f32 %v9392, %v9453
  %v9459 = vadd.f32 %v9380, %v9441
  %v9460 = vadd.f32 %v9394, %v9455
  %s9461 = scalar_lea.vmem %s5, 72
  %v9462 = vld [vmem:[%s9461] sm:$0xff]
  %v9463 = vld [vmem:[%s9461 + $0x8] sm:$0xff]
  %v9464 = vld [vmem:[%s9461 + $0x10] sm:$0x33]
  %v9467 = vunpack.c.l.b16 %v9207
  %v9468 = vunpack.c.l.b16 %v9208
  %v9469 = vpack.c.b16 %v9468, %v9467
  %v9473 = vunpack.c.l.b16 %v9462
  %v9474 = vunpack.c.h.b16 %v9462
  %v9475 = vunpack.c.l.b16 %v9463
  %v9476 = vunpack.c.h.b16 %v9463
  %v9477 = vunpack.c.l.b16 %v9464
  %v9478 = vunpack.c.h.b16 %v9464
  %v9479 = vpack.c.b16 %v9475, %v9473
  %v9480 = vpack.c.b16 %v9476, %v9474
  %v9481 = vpack.c.b16 %v9477, %v9477
  %v9482 = vpack.c.b16 %v9478, %v9478
  %v9486 = vsel %vm9300, %v9469, 0
  %v9489 = vsel %vm9304, %v9481, 0
  %v9492 = vsel %vm9304, %v9482, 0
  %9494 = vmatpush.bf16.msra.mxu0 0
  %9495 = vmatpush.bf16.msra.mxu0 0
  %9496 = vmatpush.bf16.msra.mxu0 0
  %9497 = vmatpush.bf16.msra.mxu0 0
  %9498 = vmatpush.bf16.msra.mxu0 0
  %9499 = vmatpush.bf16.msra.mxu0 0
  %9500 = vmatpush.bf16.msra.mxu0 %v9489
  %9501 = vmatpush.bf16.msra.mxu0 %v9479
  %9502 = vmatmul.bf16.gmra.mxu0 %v9486
  %v9503 = vpop.f32.mrf.mxu0
  %v9504 = vadd.f32 0.0, %v9503
  %v9505 = vpop.f32.mrf.mxu0
  %v9506 = vadd.f32 0.0, %v9505
  %9507 = vdwg.mxu0
  %9508 = vmatpush.bf16.msra.mxu0 0
  %9509 = vmatpush.bf16.msra.mxu0 0
  %9510 = vmatpush.bf16.msra.mxu0 0
  %9511 = vmatpush.bf16.msra.mxu0 0
  %9512 = vmatpush.bf16.msra.mxu0 0
  %9513 = vmatpush.bf16.msra.mxu0 0
  %9514 = vmatpush.bf16.msra.mxu0 %v9492
  %9515 = vmatpush.bf16.msra.mxu0 %v9480
  %9516 = vmatmul.bf16.gmra.mxu0 %v9486
  %v9517 = vpop.f32.mrf.mxu0
  %v9518 = vadd.f32 0.0, %v9517
  %v9519 = vpop.f32.mrf.mxu0
  %v9520 = vadd.f32 0.0, %v9519
  %9521 = vdwg.mxu0
  %v9522 = vadd.f32 %v9457, %v9504
  %v9523 = vadd.f32 %v9458, %v9518
  %v9524 = vadd.f32 %v9459, %v9506
  %v9525 = vadd.f32 %v9460, %v9520
  %s9526 = scalar_lea.vmem %s5, 96
  %v9527 = vld [vmem:[%s9526] sm:$0xff]
  %v9528 = vld [vmem:[%s9526 + $0x8] sm:$0xff]
  %v9529 = vld [vmem:[%s9526 + $0x10] sm:$0x33]
  %v9532 = vunpack.c.l.b16 %v9209
  %v9533 = vunpack.c.l.b16 %v9210
  %v9534 = vpack.c.b16 %v9533, %v9532
  %v9538 = vunpack.c.l.b16 %v9527
  %v9539 = vunpack.c.h.b16 %v9527
  %v9540 = vunpack.c.l.b16 %v9528
  %v9541 = vunpack.c.h.b16 %v9528
  %v9542 = vunpack.c.l.b16 %v9529
  %v9543 = vunpack.c.h.b16 %v9529
  %v9544 = vpack.c.b16 %v9540, %v9538
  %v9545 = vpack.c.b16 %v9541, %v9539
  %v9546 = vpack.c.b16 %v9542, %v9542
  %v9547 = vpack.c.b16 %v9543, %v9543
  %v9551 = vsel %vm9300, %v9534, 0
  %v9554 = vsel %vm9304, %v9546, 0
  %v9557 = vsel %vm9304, %v9547, 0
  %9559 = vmatpush.bf16.msra.mxu0 0
  %9560 = vmatpush.bf16.msra.mxu0 0
  %9561 = vmatpush.bf16.msra.mxu0 0
  %9562 = vmatpush.bf16.msra.mxu0 0
  %9563 = vmatpush.bf16.msra.mxu0 0
  %9564 = vmatpush.bf16.msra.mxu0 0
  %9565 = vmatpush.bf16.msra.mxu0 %v9554
  %9566 = vmatpush.bf16.msra.mxu0 %v9544
  %9567 = vmatmul.bf16.gmra.mxu0 %v9551
  %v9568 = vpop.f32.mrf.mxu0
  %v9569 = vadd.f32 0.0, %v9568
  %v9570 = vpop.f32.mrf.mxu0
  %v9571 = vadd.f32 0.0, %v9570
  %9572 = vdwg.mxu0
  %9573 = vmatpush.bf16.msra.mxu0 0
  %9574 = vmatpush.bf16.msra.mxu0 0
  %9575 = vmatpush.bf16.msra.mxu0 0
  %9576 = vmatpush.bf16.msra.mxu0 0
  %9577 = vmatpush.bf16.msra.mxu0 0
  %9578 = vmatpush.bf16.msra.mxu0 0
  %9579 = vmatpush.bf16.msra.mxu0 %v9557
  %9580 = vmatpush.bf16.msra.mxu0 %v9545
  %9581 = vmatmul.bf16.gmra.mxu0 %v9551
  %v9582 = vpop.f32.mrf.mxu0
  %v9583 = vadd.f32 0.0, %v9582
  %v9584 = vpop.f32.mrf.mxu0
  %v9585 = vadd.f32 0.0, %v9584
  %9586 = vdwg.mxu0
  %v9587 = vadd.f32 %v9522, %v9569
  %v9588 = vadd.f32 %v9523, %v9583
  %v9589 = vadd.f32 %v9524, %v9571
  %v9590 = vadd.f32 %v9525, %v9585
  %s9591 = scalar_lea.vmem %s5, 120
  %v9592 = vld [vmem:[%s9591] sm:$0xff]
  %v9593 = vld [vmem:[%s9591 + $0x8] sm:$0xff]
  %v9594 = vld [vmem:[%s9591 + $0x10] sm:$0x33]
  %v9597 = vunpack.c.l.b16 %v9211
  %v9598 = vunpack.c.l.b16 %v9212
  %v9599 = vpack.c.b16 %v9598, %v9597
  %v9603 = vunpack.c.l.b16 %v9592
  %v9604 = vunpack.c.h.b16 %v9592
  %v9605 = vunpack.c.l.b16 %v9593
  %v9606 = vunpack.c.h.b16 %v9593
  %v9607 = vunpack.c.l.b16 %v9594
  %v9608 = vunpack.c.h.b16 %v9594
  %v9609 = vpack.c.b16 %v9605, %v9603
  %v9610 = vpack.c.b16 %v9606, %v9604
  %v9611 = vpack.c.b16 %v9607, %v9607
  %v9612 = vpack.c.b16 %v9608, %v9608
  %v9616 = vsel %vm9300, %v9599, 0
  %v9619 = vsel %vm9304, %v9611, 0
  %v9622 = vsel %vm9304, %v9612, 0
  %9624 = vmatpush.bf16.msra.mxu0 0
  %9625 = vmatpush.bf16.msra.mxu0 0
  %9626 = vmatpush.bf16.msra.mxu0 0
  %9627 = vmatpush.bf16.msra.mxu0 0
  %9628 = vmatpush.bf16.msra.mxu0 0
  %9629 = vmatpush.bf16.msra.mxu0 0
  %9630 = vmatpush.bf16.msra.mxu0 %v9619
  %9631 = vmatpush.bf16.msra.mxu0 %v9609
  %9632 = vmatmul.bf16.gmra.mxu0 %v9616
  %v9633 = vpop.f32.mrf.mxu0
  %v9634 = vadd.f32 0.0, %v9633
  %v9635 = vpop.f32.mrf.mxu0
  %v9636 = vadd.f32 0.0, %v9635
  %9637 = vdwg.mxu0
  %9638 = vmatpush.bf16.msra.mxu0 0
  %9639 = vmatpush.bf16.msra.mxu0 0
  %9640 = vmatpush.bf16.msra.mxu0 0
  %9641 = vmatpush.bf16.msra.mxu0 0
  %9642 = vmatpush.bf16.msra.mxu0 0
  %9643 = vmatpush.bf16.msra.mxu0 0
  %9644 = vmatpush.bf16.msra.mxu0 %v9622
  %9645 = vmatpush.bf16.msra.mxu0 %v9610
  %9646 = vmatmul.bf16.gmra.mxu0 %v9616
  %v9647 = vpop.f32.mrf.mxu0
  %v9648 = vadd.f32 0.0, %v9647
  %v9649 = vpop.f32.mrf.mxu0
  %v9650 = vadd.f32 0.0, %v9649
  %9651 = vdwg.mxu0
  %v9652 = vadd.f32 %v9587, %v9634
  %v9653 = vadd.f32 %v9588, %v9648
  %v9654 = vadd.f32 %v9589, %v9636
  %v9655 = vadd.f32 %v9590, %v9650
  %s9656 = scalar_lea.vmem %s5, 144
  %v9657 = vld [vmem:[%s9656] sm:$0xff]
  %v9658 = vld [vmem:[%s9656 + $0x8] sm:$0xff]
  %v9659 = vld [vmem:[%s9656 + $0x10] sm:$0x33]
  %v9662 = vunpack.c.l.b16 %v9213
  %v9663 = vunpack.c.l.b16 %v9214
  %v9664 = vpack.c.b16 %v9663, %v9662
  %v9668 = vunpack.c.l.b16 %v9657
  %v9669 = vunpack.c.h.b16 %v9657
  %v9670 = vunpack.c.l.b16 %v9658
  %v9671 = vunpack.c.h.b16 %v9658
  %v9672 = vunpack.c.l.b16 %v9659
  %v9673 = vunpack.c.h.b16 %v9659
  %v9674 = vpack.c.b16 %v9670, %v9668
  %v9675 = vpack.c.b16 %v9671, %v9669
  %v9676 = vpack.c.b16 %v9672, %v9672
  %v9677 = vpack.c.b16 %v9673, %v9673
  %v9681 = vsel %vm9300, %v9664, 0
  %v9684 = vsel %vm9304, %v9676, 0
  %v9687 = vsel %vm9304, %v9677, 0
  %9689 = vmatpush.bf16.msra.mxu0 0
  %9690 = vmatpush.bf16.msra.mxu0 0
  %9691 = vmatpush.bf16.msra.mxu0 0
  %9692 = vmatpush.bf16.msra.mxu0 0
  %9693 = vmatpush.bf16.msra.mxu0 0
  %9694 = vmatpush.bf16.msra.mxu0 0
  %9695 = vmatpush.bf16.msra.mxu0 %v9684
  %9696 = vmatpush.bf16.msra.mxu0 %v9674
  %9697 = vmatmul.bf16.gmra.mxu0 %v9681
  %v9698 = vpop.f32.mrf.mxu0
  %v9699 = vadd.f32 0.0, %v9698
  %v9700 = vpop.f32.mrf.mxu0
  %v9701 = vadd.f32 0.0, %v9700
  %9702 = vdwg.mxu0
  %9703 = vmatpush.bf16.msra.mxu0 0
  %9704 = vmatpush.bf16.msra.mxu0 0
  %9705 = vmatpush.bf16.msra.mxu0 0
  %9706 = vmatpush.bf16.msra.mxu0 0
  %9707 = vmatpush.bf16.msra.mxu0 0
  %9708 = vmatpush.bf16.msra.mxu0 0
  %9709 = vmatpush.bf16.msra.mxu0 %v9687
  %9710 = vmatpush.bf16.msra.mxu0 %v9675
  %9711 = vmatmul.bf16.gmra.mxu0 %v9681
  %v9712 = vpop.f32.mrf.mxu0
  %v9713 = vadd.f32 0.0, %v9712
  %v9714 = vpop.f32.mrf.mxu0
  %v9715 = vadd.f32 0.0, %v9714
  %9716 = vdwg.mxu0
  %v9717 = vadd.f32 %v9652, %v9699
  %v9718 = vadd.f32 %v9653, %v9713
  %v9719 = vadd.f32 %v9654, %v9701
  %v9720 = vadd.f32 %v9655, %v9715
  %s9721 = scalar_lea.vmem %s5, 168
  %v9722 = vld [vmem:[%s9721] sm:$0xff]
  %v9723 = vld [vmem:[%s9721 + $0x8] sm:$0xff]
  %v9724 = vld [vmem:[%s9721 + $0x10] sm:$0x33]
  %v9727 = vunpack.c.l.b16 %v9215
  %v9728 = vunpack.c.l.b16 %v9216
  %v9729 = vpack.c.b16 %v9728, %v9727
  %v9733 = vunpack.c.l.b16 %v9722
  %v9734 = vunpack.c.h.b16 %v9722
  %v9735 = vunpack.c.l.b16 %v9723
  %v9736 = vunpack.c.h.b16 %v9723
  %v9737 = vunpack.c.l.b16 %v9724
  %v9738 = vunpack.c.h.b16 %v9724
  %v9739 = vpack.c.b16 %v9735, %v9733
  %v9740 = vpack.c.b16 %v9736, %v9734
  %v9741 = vpack.c.b16 %v9737, %v9737
  %v9742 = vpack.c.b16 %v9738, %v9738
  %v9746 = vsel %vm9300, %v9729, 0
  %v9749 = vsel %vm9304, %v9741, 0
  %v9752 = vsel %vm9304, %v9742, 0
  %9754 = vmatpush.bf16.msra.mxu0 0
  %9755 = vmatpush.bf16.msra.mxu0 0
  %9756 = vmatpush.bf16.msra.mxu0 0
  %9757 = vmatpush.bf16.msra.mxu0 0
  %9758 = vmatpush.bf16.msra.mxu0 0
  %9759 = vmatpush.bf16.msra.mxu0 0
  %9760 = vmatpush.bf16.msra.mxu0 %v9749
  %9761 = vmatpush.bf16.msra.mxu0 %v9739
  %9762 = vmatmul.bf16.gmra.mxu0 %v9746
  %v9763 = vpop.f32.mrf.mxu0
  %v9764 = vadd.f32 0.0, %v9763
  %v9765 = vpop.f32.mrf.mxu0
  %v9766 = vadd.f32 0.0, %v9765
  %9767 = vdwg.mxu0
  %9768 = vmatpush.bf16.msra.mxu0 0
  %9769 = vmatpush.bf16.msra.mxu0 0
  %9770 = vmatpush.bf16.msra.mxu0 0
  %9771 = vmatpush.bf16.msra.mxu0 0
  %9772 = vmatpush.bf16.msra.mxu0 0
  %9773 = vmatpush.bf16.msra.mxu0 0
  %9774 = vmatpush.bf16.msra.mxu0 %v9752
  %9775 = vmatpush.bf16.msra.mxu0 %v9740
  %9776 = vmatmul.bf16.gmra.mxu0 %v9746
  %v9777 = vpop.f32.mrf.mxu0
  %v9778 = vadd.f32 0.0, %v9777
  %v9779 = vpop.f32.mrf.mxu0
  %v9780 = vadd.f32 0.0, %v9779
  %9781 = vdwg.mxu0
  %v9782 = vadd.f32 %v9717, %v9764
  %v9783 = vadd.f32 %v9718, %v9778
  %v9784 = vadd.f32 %v9719, %v9766
  %v9785 = vadd.f32 %v9720, %v9780
  %s9786 = scalar_lea.vmem %s5, 192
  %v9787 = vld [vmem:[%s9786] sm:$0xff]
  %v9788 = vld [vmem:[%s9786 + $0x8] sm:$0xff]
  %v9789 = vld [vmem:[%s9786 + $0x10] sm:$0x33]
  %v9792 = vunpack.c.l.b16 %v9217
  %v9793 = vunpack.c.l.b16 %v9218
  %v9794 = vpack.c.b16 %v9793, %v9792
  %v9798 = vunpack.c.l.b16 %v9787
  %v9799 = vunpack.c.h.b16 %v9787
  %v9800 = vunpack.c.l.b16 %v9788
  %v9801 = vunpack.c.h.b16 %v9788
  %v9802 = vunpack.c.l.b16 %v9789
  %v9803 = vunpack.c.h.b16 %v9789
  %v9804 = vpack.c.b16 %v9800, %v9798
  %v9805 = vpack.c.b16 %v9801, %v9799
  %v9806 = vpack.c.b16 %v9802, %v9802
  %v9807 = vpack.c.b16 %v9803, %v9803
  %v9811 = vsel %vm9300, %v9794, 0
  %v9814 = vsel %vm9304, %v9806, 0
  %v9817 = vsel %vm9304, %v9807, 0
  %9819 = vmatpush.bf16.msra.mxu0 0
  %9820 = vmatpush.bf16.msra.mxu0 0
  %9821 = vmatpush.bf16.msra.mxu0 0
  %9822 = vmatpush.bf16.msra.mxu0 0
  %9823 = vmatpush.bf16.msra.mxu0 0
  %9824 = vmatpush.bf16.msra.mxu0 0
  %9825 = vmatpush.bf16.msra.mxu0 %v9814
  %9826 = vmatpush.bf16.msra.mxu0 %v9804
  %9827 = vmatmul.bf16.gmra.mxu0 %v9811
  %v9828 = vpop.f32.mrf.mxu0
  %v9829 = vadd.f32 0.0, %v9828
  %v9830 = vpop.f32.mrf.mxu0
  %v9831 = vadd.f32 0.0, %v9830
  %9832 = vdwg.mxu0
  %9833 = vmatpush.bf16.msra.mxu0 0
  %9834 = vmatpush.bf16.msra.mxu0 0
  %9835 = vmatpush.bf16.msra.mxu0 0
  %9836 = vmatpush.bf16.msra.mxu0 0
  %9837 = vmatpush.bf16.msra.mxu0 0
  %9838 = vmatpush.bf16.msra.mxu0 0
  %9839 = vmatpush.bf16.msra.mxu0 %v9817
  %9840 = vmatpush.bf16.msra.mxu0 %v9805
  %9841 = vmatmul.bf16.gmra.mxu0 %v9811
  %v9842 = vpop.f32.mrf.mxu0
  %v9843 = vadd.f32 0.0, %v9842
  %v9844 = vpop.f32.mrf.mxu0
  %v9845 = vadd.f32 0.0, %v9844
  %9846 = vdwg.mxu0
  %v9847 = vadd.f32 %v9782, %v9829
  %v9848 = vadd.f32 %v9783, %v9843
  %v9849 = vadd.f32 %v9784, %v9831
  %v9850 = vadd.f32 %v9785, %v9845
  %s9851 = scalar_lea.vmem %s5, 216
  %v9852 = vld [vmem:[%s9851] sm:$0xff]
  %v9853 = vld [vmem:[%s9851 + $0x8] sm:$0xff]
  %v9854 = vld [vmem:[%s9851 + $0x10] sm:$0x33]
  %v9857 = vunpack.c.l.b16 %v9219
  %v9858 = vunpack.c.l.b16 %v9220
  %v9859 = vpack.c.b16 %v9858, %v9857
  %v9863 = vunpack.c.l.b16 %v9852
  %v9864 = vunpack.c.h.b16 %v9852
  %v9865 = vunpack.c.l.b16 %v9853
  %v9866 = vunpack.c.h.b16 %v9853
  %v9867 = vunpack.c.l.b16 %v9854
  %v9868 = vunpack.c.h.b16 %v9854
  %v9869 = vpack.c.b16 %v9865, %v9863
  %v9870 = vpack.c.b16 %v9866, %v9864
  %v9871 = vpack.c.b16 %v9867, %v9867
  %v9872 = vpack.c.b16 %v9868, %v9868
  %v9876 = vsel %vm9300, %v9859, 0
  %v9879 = vsel %vm9304, %v9871, 0
  %v9882 = vsel %vm9304, %v9872, 0
  %9884 = vmatpush.bf16.msra.mxu0 0
  %9885 = vmatpush.bf16.msra.mxu0 0
  %9886 = vmatpush.bf16.msra.mxu0 0
  %9887 = vmatpush.bf16.msra.mxu0 0
  %9888 = vmatpush.bf16.msra.mxu0 0
  %9889 = vmatpush.bf16.msra.mxu0 0
  %9890 = vmatpush.bf16.msra.mxu0 %v9879
  %9891 = vmatpush.bf16.msra.mxu0 %v9869
  %9892 = vmatmul.bf16.gmra.mxu0 %v9876
  %v9893 = vpop.f32.mrf.mxu0
  %v9894 = vadd.f32 0.0, %v9893
  %v9895 = vpop.f32.mrf.mxu0
  %v9896 = vadd.f32 0.0, %v9895
  %9897 = vdwg.mxu0
  %9898 = vmatpush.bf16.msra.mxu0 0
  %9899 = vmatpush.bf16.msra.mxu0 0
  %9900 = vmatpush.bf16.msra.mxu0 0
  %9901 = vmatpush.bf16.msra.mxu0 0
  %9902 = vmatpush.bf16.msra.mxu0 0
  %9903 = vmatpush.bf16.msra.mxu0 0
  %9904 = vmatpush.bf16.msra.mxu0 %v9882
  %9905 = vmatpush.bf16.msra.mxu0 %v9870
  %9906 = vmatmul.bf16.gmra.mxu0 %v9876
  %v9907 = vpop.f32.mrf.mxu0
  %v9908 = vadd.f32 0.0, %v9907
  %v9909 = vpop.f32.mrf.mxu0
  %v9910 = vadd.f32 0.0, %v9909
  %9911 = vdwg.mxu0
  %v9912 = vadd.f32 %v9847, %v9894
  %v9913 = vadd.f32 %v9848, %v9908
  %v9914 = vadd.f32 %v9849, %v9896
  %v9915 = vadd.f32 %v9850, %v9910
  %s9916 = scalar_lea.vmem %s5, 240
  %v9917 = vld [vmem:[%s9916] sm:$0xff]
  %v9918 = vld [vmem:[%s9916 + $0x8] sm:$0xff]
  %v9919 = vld [vmem:[%s9916 + $0x10] sm:$0x33]
  %v9922 = vunpack.c.l.b16 %v9221
  %v9923 = vunpack.c.l.b16 %v9222
  %v9924 = vpack.c.b16 %v9923, %v9922
  %v9928 = vunpack.c.l.b16 %v9917
  %v9929 = vunpack.c.h.b16 %v9917
  %v9930 = vunpack.c.l.b16 %v9918
  %v9931 = vunpack.c.h.b16 %v9918
  %v9932 = vunpack.c.l.b16 %v9919
  %v9933 = vunpack.c.h.b16 %v9919
  %v9934 = vpack.c.b16 %v9930, %v9928
  %v9935 = vpack.c.b16 %v9931, %v9929
  %v9936 = vpack.c.b16 %v9932, %v9932
  %v9937 = vpack.c.b16 %v9933, %v9933
  %v9941 = vsel %vm9300, %v9924, 0
  %v9944 = vsel %vm9304, %v9936, 0
  %v9947 = vsel %vm9304, %v9937, 0
  %9949 = vmatpush.bf16.msra.mxu0 0
  %9950 = vmatpush.bf16.msra.mxu0 0
  %9951 = vmatpush.bf16.msra.mxu0 0
  %9952 = vmatpush.bf16.msra.mxu0 0
  %9953 = vmatpush.bf16.msra.mxu0 0
  %9954 = vmatpush.bf16.msra.mxu0 0
  %9955 = vmatpush.bf16.msra.mxu0 %v9944
  %9956 = vmatpush.bf16.msra.mxu0 %v9934
  %9957 = vmatmul.bf16.gmra.mxu0 %v9941
  %v9958 = vpop.f32.mrf.mxu0
  %v9959 = vadd.f32 0.0, %v9958
  %v9960 = vpop.f32.mrf.mxu0
  %v9961 = vadd.f32 0.0, %v9960
  %9962 = vdwg.mxu0
  %9963 = vmatpush.bf16.msra.mxu0 0
  %9964 = vmatpush.bf16.msra.mxu0 0
  %9965 = vmatpush.bf16.msra.mxu0 0
  %9966 = vmatpush.bf16.msra.mxu0 0
  %9967 = vmatpush.bf16.msra.mxu0 0
  %9968 = vmatpush.bf16.msra.mxu0 0
  %9969 = vmatpush.bf16.msra.mxu0 %v9947
  %9970 = vmatpush.bf16.msra.mxu0 %v9935
  %9971 = vmatmul.bf16.gmra.mxu0 %v9941
  %v9972 = vpop.f32.mrf.mxu0
  %v9973 = vadd.f32 0.0, %v9972
  %v9974 = vpop.f32.mrf.mxu0
  %v9975 = vadd.f32 0.0, %v9974
  %9976 = vdwg.mxu0
  %v9977 = vadd.f32 %v9912, %v9959
  %v9978 = vadd.f32 %v9913, %v9973
  %v9979 = vadd.f32 %v9914, %v9961
  %v9980 = vadd.f32 %v9915, %v9975
  %s9981 = scalar_lea.vmem %s5, 264
  %v9982 = vld [vmem:[%s9981] sm:$0xff]
  %v9983 = vld [vmem:[%s9981 + $0x8] sm:$0xff]
  %v9984 = vld [vmem:[%s9981 + $0x10] sm:$0x33]
  %v9987 = vunpack.c.l.b16 %v9223
  %v9988 = vunpack.c.l.b16 %v9224
  %v9989 = vpack.c.b16 %v9988, %v9987
  %v9993 = vunpack.c.l.b16 %v9982
  %v9994 = vunpack.c.h.b16 %v9982
  %v9995 = vunpack.c.l.b16 %v9983
  %v9996 = vunpack.c.h.b16 %v9983
  %v9997 = vunpack.c.l.b16 %v9984
  %v9998 = vunpack.c.h.b16 %v9984
  %v9999 = vpack.c.b16 %v9995, %v9993
  %v10000 = vpack.c.b16 %v9996, %v9994
  %v10001 = vpack.c.b16 %v9997, %v9997
  %v10002 = vpack.c.b16 %v9998, %v9998
  %v10006 = vsel %vm9300, %v9989, 0
  %v10009 = vsel %vm9304, %v10001, 0
  %v10012 = vsel %vm9304, %v10002, 0
  %10014 = vmatpush.bf16.msra.mxu0 0
  %10015 = vmatpush.bf16.msra.mxu0 0
  %10016 = vmatpush.bf16.msra.mxu0 0
  %10017 = vmatpush.bf16.msra.mxu0 0
  %10018 = vmatpush.bf16.msra.mxu0 0
  %10019 = vmatpush.bf16.msra.mxu0 0
  %10020 = vmatpush.bf16.msra.mxu0 %v10009
  %10021 = vmatpush.bf16.msra.mxu0 %v9999
  %10022 = vmatmul.bf16.gmra.mxu0 %v10006
  %v10023 = vpop.f32.mrf.mxu0
  %v10024 = vadd.f32 0.0, %v10023
  %v10025 = vpop.f32.mrf.mxu0
  %v10026 = vadd.f32 0.0, %v10025
  %10027 = vdwg.mxu0
  %10028 = vmatpush.bf16.msra.mxu0 0
  %10029 = vmatpush.bf16.msra.mxu0 0
  %10030 = vmatpush.bf16.msra.mxu0 0
  %10031 = vmatpush.bf16.msra.mxu0 0
  %10032 = vmatpush.bf16.msra.mxu0 0
  %10033 = vmatpush.bf16.msra.mxu0 0
  %10034 = vmatpush.bf16.msra.mxu0 %v10012
  %10035 = vmatpush.bf16.msra.mxu0 %v10000
  %10036 = vmatmul.bf16.gmra.mxu0 %v10006
  %v10037 = vpop.f32.mrf.mxu0
  %v10038 = vadd.f32 0.0, %v10037
  %v10039 = vpop.f32.mrf.mxu0
  %v10040 = vadd.f32 0.0, %v10039
  %10041 = vdwg.mxu0
  %v10042 = vadd.f32 %v9977, %v10024
  %v10043 = vadd.f32 %v9978, %v10038
  %v10044 = vadd.f32 %v9979, %v10026
  %v10045 = vadd.f32 %v9980, %v10040
  %s10046 = scalar_lea.vmem %s5, 288
  %v10047 = vld [vmem:[%s10046] sm:$0xff]
  %v10048 = vld [vmem:[%s10046 + $0x8] sm:$0xff]
  %v10049 = vld [vmem:[%s10046 + $0x10] sm:$0x33]
  %v10052 = vunpack.c.l.b16 %v9225
  %v10053 = vunpack.c.l.b16 %v9226
  %v10054 = vpack.c.b16 %v10053, %v10052
  %v10058 = vunpack.c.l.b16 %v10047
  %v10059 = vunpack.c.h.b16 %v10047
  %v10060 = vunpack.c.l.b16 %v10048
  %v10061 = vunpack.c.h.b16 %v10048
  %v10062 = vunpack.c.l.b16 %v10049
  %v10063 = vunpack.c.h.b16 %v10049
  %v10064 = vpack.c.b16 %v10060, %v10058
  %v10065 = vpack.c.b16 %v10061, %v10059
  %v10066 = vpack.c.b16 %v10062, %v10062
  %v10067 = vpack.c.b16 %v10063, %v10063
  %v10071 = vsel %vm9300, %v10054, 0
  %v10074 = vsel %vm9304, %v10066, 0
  %v10077 = vsel %vm9304, %v10067, 0
  %10079 = vmatpush.bf16.msra.mxu0 0
  %10080 = vmatpush.bf16.msra.mxu0 0
  %10081 = vmatpush.bf16.msra.mxu0 0
  %10082 = vmatpush.bf16.msra.mxu0 0
  %10083 = vmatpush.bf16.msra.mxu0 0
  %10084 = vmatpush.bf16.msra.mxu0 0
  %10085 = vmatpush.bf16.msra.mxu0 %v10074
  %10086 = vmatpush.bf16.msra.mxu0 %v10064
  %10087 = vmatmul.bf16.gmra.mxu0 %v10071
  %v10088 = vpop.f32.mrf.mxu0
  %v10089 = vadd.f32 0.0, %v10088
  %v10090 = vpop.f32.mrf.mxu0
  %v10091 = vadd.f32 0.0, %v10090
  %10092 = vdwg.mxu0
  %10093 = vmatpush.bf16.msra.mxu0 0
  %10094 = vmatpush.bf16.msra.mxu0 0
  %10095 = vmatpush.bf16.msra.mxu0 0
  %10096 = vmatpush.bf16.msra.mxu0 0
  %10097 = vmatpush.bf16.msra.mxu0 0
  %10098 = vmatpush.bf16.msra.mxu0 0
  %10099 = vmatpush.bf16.msra.mxu0 %v10077
  %10100 = vmatpush.bf16.msra.mxu0 %v10065
  %10101 = vmatmul.bf16.gmra.mxu0 %v10071
  %v10102 = vpop.f32.mrf.mxu0
  %v10103 = vadd.f32 0.0, %v10102
  %v10104 = vpop.f32.mrf.mxu0
  %v10105 = vadd.f32 0.0, %v10104
  %10106 = vdwg.mxu0
  %v10107 = vadd.f32 %v10042, %v10089
  %v10108 = vadd.f32 %v10043, %v10103
  %v10109 = vadd.f32 %v10044, %v10091
  %v10110 = vadd.f32 %v10045, %v10105
  %s10111 = scalar_lea.vmem %s5, 312
  %v10112 = vld [vmem:[%s10111] sm:$0xff]
  %v10113 = vld [vmem:[%s10111 + $0x8] sm:$0xff]
  %v10114 = vld [vmem:[%s10111 + $0x10] sm:$0x33]
  %v10117 = vunpack.c.l.b16 %v9227
  %v10118 = vunpack.c.l.b16 %v9228
  %v10119 = vpack.c.b16 %v10118, %v10117
  %v10123 = vunpack.c.l.b16 %v10112
  %v10124 = vunpack.c.h.b16 %v10112
  %v10125 = vunpack.c.l.b16 %v10113
  %v10126 = vunpack.c.h.b16 %v10113
  %v10127 = vunpack.c.l.b16 %v10114
  %v10128 = vunpack.c.h.b16 %v10114
  %v10129 = vpack.c.b16 %v10125, %v10123
  %v10130 = vpack.c.b16 %v10126, %v10124
  %v10131 = vpack.c.b16 %v10127, %v10127
  %v10132 = vpack.c.b16 %v10128, %v10128
  %v10136 = vsel %vm9300, %v10119, 0
  %v10139 = vsel %vm9304, %v10131, 0
  %v10142 = vsel %vm9304, %v10132, 0
  %10144 = vmatpush.bf16.msra.mxu0 0
  %10145 = vmatpush.bf16.msra.mxu0 0
  %10146 = vmatpush.bf16.msra.mxu0 0
  %10147 = vmatpush.bf16.msra.mxu0 0
  %10148 = vmatpush.bf16.msra.mxu0 0
  %10149 = vmatpush.bf16.msra.mxu0 0
  %10150 = vmatpush.bf16.msra.mxu0 %v10139
  %10151 = vmatpush.bf16.msra.mxu0 %v10129
  %10152 = vmatmul.bf16.gmra.mxu0 %v10136
  %v10153 = vpop.f32.mrf.mxu0
  %v10154 = vadd.f32 0.0, %v10153
  %v10155 = vpop.f32.mrf.mxu0
  %v10156 = vadd.f32 0.0, %v10155
  %10157 = vdwg.mxu0
  %10158 = vmatpush.bf16.msra.mxu0 0
  %10159 = vmatpush.bf16.msra.mxu0 0
  %10160 = vmatpush.bf16.msra.mxu0 0
  %10161 = vmatpush.bf16.msra.mxu0 0
  %10162 = vmatpush.bf16.msra.mxu0 0
  %10163 = vmatpush.bf16.msra.mxu0 0
  %10164 = vmatpush.bf16.msra.mxu0 %v10142
  %10165 = vmatpush.bf16.msra.mxu0 %v10130
  %10166 = vmatmul.bf16.gmra.mxu0 %v10136
  %v10167 = vpop.f32.mrf.mxu0
  %v10168 = vadd.f32 0.0, %v10167
  %v10169 = vpop.f32.mrf.mxu0
  %v10170 = vadd.f32 0.0, %v10169
  %10171 = vdwg.mxu0
  %v10172 = vadd.f32 %v10107, %v10154
  %v10173 = vadd.f32 %v10108, %v10168
  %v10174 = vadd.f32 %v10109, %v10156
  %v10175 = vadd.f32 %v10110, %v10170
  %s10176 = scalar_lea.vmem %s5, 336
  %v10177 = vld [vmem:[%s10176] sm:$0xff]
  %v10178 = vld [vmem:[%s10176 + $0x8] sm:$0xff]
  %v10179 = vld [vmem:[%s10176 + $0x10] sm:$0x33]
  %v10182 = vunpack.c.l.b16 %v9229
  %v10183 = vunpack.c.l.b16 %v9230
  %v10184 = vpack.c.b16 %v10183, %v10182
  %v10188 = vunpack.c.l.b16 %v10177
  %v10189 = vunpack.c.h.b16 %v10177
  %v10190 = vunpack.c.l.b16 %v10178
  %v10191 = vunpack.c.h.b16 %v10178
  %v10192 = vunpack.c.l.b16 %v10179
  %v10193 = vunpack.c.h.b16 %v10179
  %v10194 = vpack.c.b16 %v10190, %v10188
  %v10195 = vpack.c.b16 %v10191, %v10189
  %v10196 = vpack.c.b16 %v10192, %v10192
  %v10197 = vpack.c.b16 %v10193, %v10193
  %v10201 = vsel %vm9300, %v10184, 0
  %v10204 = vsel %vm9304, %v10196, 0
  %v10207 = vsel %vm9304, %v10197, 0
  %10209 = vmatpush.bf16.msra.mxu0 0
  %10210 = vmatpush.bf16.msra.mxu0 0
  %10211 = vmatpush.bf16.msra.mxu0 0
  %10212 = vmatpush.bf16.msra.mxu0 0
  %10213 = vmatpush.bf16.msra.mxu0 0
  %10214 = vmatpush.bf16.msra.mxu0 0
  %10215 = vmatpush.bf16.msra.mxu0 %v10204
  %10216 = vmatpush.bf16.msra.mxu0 %v10194
  %10217 = vmatmul.bf16.gmra.mxu0 %v10201
  %v10218 = vpop.f32.mrf.mxu0
  %v10219 = vadd.f32 0.0, %v10218
  %v10220 = vpop.f32.mrf.mxu0
  %v10221 = vadd.f32 0.0, %v10220
  %10222 = vdwg.mxu0
  %10223 = vmatpush.bf16.msra.mxu0 0
  %10224 = vmatpush.bf16.msra.mxu0 0
  %10225 = vmatpush.bf16.msra.mxu0 0
  %10226 = vmatpush.bf16.msra.mxu0 0
  %10227 = vmatpush.bf16.msra.mxu0 0
  %10228 = vmatpush.bf16.msra.mxu0 0
  %10229 = vmatpush.bf16.msra.mxu0 %v10207
  %10230 = vmatpush.bf16.msra.mxu0 %v10195
  %10231 = vmatmul.bf16.gmra.mxu0 %v10201
  %v10232 = vpop.f32.mrf.mxu0
  %v10233 = vadd.f32 0.0, %v10232
  %v10234 = vpop.f32.mrf.mxu0
  %v10235 = vadd.f32 0.0, %v10234
  %10236 = vdwg.mxu0
  %v10237 = vadd.f32 %v10172, %v10219
  %v10238 = vadd.f32 %v10173, %v10233
  %v10239 = vadd.f32 %v10174, %v10221
  %v10240 = vadd.f32 %v10175, %v10235
  %s10241 = scalar_lea.vmem %s5, 360
  %v10242 = vld [vmem:[%s10241] sm:$0xff]
  %v10243 = vld [vmem:[%s10241 + $0x8] sm:$0xff]
  %v10244 = vld [vmem:[%s10241 + $0x10] sm:$0x33]
  %v10247 = vunpack.c.l.b16 %v9231
  %v10248 = vunpack.c.l.b16 %v9232
  %v10249 = vpack.c.b16 %v10248, %v10247
  %v10253 = vunpack.c.l.b16 %v10242
  %v10254 = vunpack.c.h.b16 %v10242
  %v10255 = vunpack.c.l.b16 %v10243
  %v10256 = vunpack.c.h.b16 %v10243
  %v10257 = vunpack.c.l.b16 %v10244
  %v10258 = vunpack.c.h.b16 %v10244
  %v10259 = vpack.c.b16 %v10255, %v10253
  %v10260 = vpack.c.b16 %v10256, %v10254
  %v10261 = vpack.c.b16 %v10257, %v10257
  %v10262 = vpack.c.b16 %v10258, %v10258
  %v10266 = vsel %vm9300, %v10249, 0
  %v10269 = vsel %vm9304, %v10261, 0
  %v10272 = vsel %vm9304, %v10262, 0
  %10274 = vmatpush.bf16.msra.mxu0 0
  %10275 = vmatpush.bf16.msra.mxu0 0
  %10276 = vmatpush.bf16.msra.mxu0 0
  %10277 = vmatpush.bf16.msra.mxu0 0
  %10278 = vmatpush.bf16.msra.mxu0 0
  %10279 = vmatpush.bf16.msra.mxu0 0
  %10280 = vmatpush.bf16.msra.mxu0 %v10269
  %10281 = vmatpush.bf16.msra.mxu0 %v10259
  %10282 = vmatmul.bf16.gmra.mxu0 %v10266
  %v10283 = vpop.f32.mrf.mxu0
  %v10284 = vadd.f32 0.0, %v10283
  %v10285 = vpop.f32.mrf.mxu0
  %v10286 = vadd.f32 0.0, %v10285
  %10287 = vdwg.mxu0
  %10288 = vmatpush.bf16.msra.mxu0 0
  %10289 = vmatpush.bf16.msra.mxu0 0
  %10290 = vmatpush.bf16.msra.mxu0 0
  %10291 = vmatpush.bf16.msra.mxu0 0
  %10292 = vmatpush.bf16.msra.mxu0 0
  %10293 = vmatpush.bf16.msra.mxu0 0
  %10294 = vmatpush.bf16.msra.mxu0 %v10272
  %10295 = vmatpush.bf16.msra.mxu0 %v10260
  %10296 = vmatmul.bf16.gmra.mxu0 %v10266
  %v10297 = vpop.f32.mrf.mxu0
  %v10298 = vadd.f32 0.0, %v10297
  %v10299 = vpop.f32.mrf.mxu0
  %v10300 = vadd.f32 0.0, %v10299
  %10301 = vdwg.mxu0
  %v10302 = vadd.f32 %v10237, %v10284
  %v10303 = vadd.f32 %v10238, %v10298
  %v10304 = vadd.f32 %v10239, %v10286
  %v10305 = vadd.f32 %v10240, %v10300
  %s10306 = scalar_lea.vmem %s5, 384
  %v10307 = vld [vmem:[%s10306] sm:$0xff]
  %v10308 = vld [vmem:[%s10306 + $0x8] sm:$0xff]
  %v10309 = vld [vmem:[%s10306 + $0x10] sm:$0x33]
  %v10312 = vunpack.c.l.b16 %v9233
  %v10313 = vunpack.c.l.b16 %v9234
  %v10314 = vpack.c.b16 %v10313, %v10312
  %v10318 = vunpack.c.l.b16 %v10307
  %v10319 = vunpack.c.h.b16 %v10307
  %v10320 = vunpack.c.l.b16 %v10308
  %v10321 = vunpack.c.h.b16 %v10308
  %v10322 = vunpack.c.l.b16 %v10309
  %v10323 = vunpack.c.h.b16 %v10309
  %v10324 = vpack.c.b16 %v10320, %v10318
  %v10325 = vpack.c.b16 %v10321, %v10319
  %v10326 = vpack.c.b16 %v10322, %v10322
  %v10327 = vpack.c.b16 %v10323, %v10323
  %v10331 = vsel %vm9300, %v10314, 0
  %v10334 = vsel %vm9304, %v10326, 0
  %v10337 = vsel %vm9304, %v10327, 0
  %10339 = vmatpush.bf16.msra.mxu0 0
  %10340 = vmatpush.bf16.msra.mxu0 0
  %10341 = vmatpush.bf16.msra.mxu0 0
  %10342 = vmatpush.bf16.msra.mxu0 0
  %10343 = vmatpush.bf16.msra.mxu0 0
  %10344 = vmatpush.bf16.msra.mxu0 0
  %10345 = vmatpush.bf16.msra.mxu0 %v10334
  %10346 = vmatpush.bf16.msra.mxu0 %v10324
  %10347 = vmatmul.bf16.gmra.mxu0 %v10331
  %v10348 = vpop.f32.mrf.mxu0
  %v10349 = vadd.f32 0.0, %v10348
  %v10350 = vpop.f32.mrf.mxu0
  %v10351 = vadd.f32 0.0, %v10350
  %10352 = vdwg.mxu0
  %10353 = vmatpush.bf16.msra.mxu0 0
  %10354 = vmatpush.bf16.msra.mxu0 0
  %10355 = vmatpush.bf16.msra.mxu0 0
  %10356 = vmatpush.bf16.msra.mxu0 0
  %10357 = vmatpush.bf16.msra.mxu0 0
  %10358 = vmatpush.bf16.msra.mxu0 0
  %10359 = vmatpush.bf16.msra.mxu0 %v10337
  %10360 = vmatpush.bf16.msra.mxu0 %v10325
  %10361 = vmatmul.bf16.gmra.mxu0 %v10331
  %v10362 = vpop.f32.mrf.mxu0
  %v10363 = vadd.f32 0.0, %v10362
  %v10364 = vpop.f32.mrf.mxu0
  %v10365 = vadd.f32 0.0, %v10364
  %10366 = vdwg.mxu0
  %v10367 = vadd.f32 %v10302, %v10349
  %v10368 = vadd.f32 %v10303, %v10363
  %v10369 = vadd.f32 %v10304, %v10351
  %v10370 = vadd.f32 %v10305, %v10365
  %s10371 = scalar_lea.vmem %s5, 408
  %v10372 = vld [vmem:[%s10371] sm:$0xff]
  %v10373 = vld [vmem:[%s10371 + $0x8] sm:$0xff]
  %v10374 = vld [vmem:[%s10371 + $0x10] sm:$0x33]
  %v10377 = vunpack.c.l.b16 %v9235
  %v10378 = vunpack.c.l.b16 %v9236
  %v10379 = vpack.c.b16 %v10378, %v10377
  %v10383 = vunpack.c.l.b16 %v10372
  %v10384 = vunpack.c.h.b16 %v10372
  %v10385 = vunpack.c.l.b16 %v10373
  %v10386 = vunpack.c.h.b16 %v10373
  %v10387 = vunpack.c.l.b16 %v10374
  %v10388 = vunpack.c.h.b16 %v10374
  %v10389 = vpack.c.b16 %v10385, %v10383
  %v10390 = vpack.c.b16 %v10386, %v10384
  %v10391 = vpack.c.b16 %v10387, %v10387
  %v10392 = vpack.c.b16 %v10388, %v10388
  %v10396 = vsel %vm9300, %v10379, 0
  %v10399 = vsel %vm9304, %v10391, 0
  %v10402 = vsel %vm9304, %v10392, 0
  %10404 = vmatpush.bf16.msra.mxu0 0
  %10405 = vmatpush.bf16.msra.mxu0 0
  %10406 = vmatpush.bf16.msra.mxu0 0
  %10407 = vmatpush.bf16.msra.mxu0 0
  %10408 = vmatpush.bf16.msra.mxu0 0
  %10409 = vmatpush.bf16.msra.mxu0 0
  %10410 = vmatpush.bf16.msra.mxu0 %v10399
  %10411 = vmatpush.bf16.msra.mxu0 %v10389
  %10412 = vmatmul.bf16.gmra.mxu0 %v10396
  %v10413 = vpop.f32.mrf.mxu0
  %v10414 = vadd.f32 0.0, %v10413
  %v10415 = vpop.f32.mrf.mxu0
  %v10416 = vadd.f32 0.0, %v10415
  %10417 = vdwg.mxu0
  %10418 = vmatpush.bf16.msra.mxu0 0
  %10419 = vmatpush.bf16.msra.mxu0 0
  %10420 = vmatpush.bf16.msra.mxu0 0
  %10421 = vmatpush.bf16.msra.mxu0 0
  %10422 = vmatpush.bf16.msra.mxu0 0
  %10423 = vmatpush.bf16.msra.mxu0 0
  %10424 = vmatpush.bf16.msra.mxu0 %v10402
  %10425 = vmatpush.bf16.msra.mxu0 %v10390
  %10426 = vmatmul.bf16.gmra.mxu0 %v10396
  %v10427 = vpop.f32.mrf.mxu0
  %v10428 = vadd.f32 0.0, %v10427
  %v10429 = vpop.f32.mrf.mxu0
  %v10430 = vadd.f32 0.0, %v10429
  %10431 = vdwg.mxu0
  %v10432 = vadd.f32 %v10367, %v10414
  %v10433 = vadd.f32 %v10368, %v10428
  %v10434 = vadd.f32 %v10369, %v10416
  %v10435 = vadd.f32 %v10370, %v10430
  %s10436 = scalar_lea.vmem %s5, 432
  %v10437 = vld [vmem:[%s10436] sm:$0xff]
  %v10438 = vld [vmem:[%s10436 + $0x8] sm:$0xff]
  %v10439 = vld [vmem:[%s10436 + $0x10] sm:$0x33]
  %v10442 = vunpack.c.l.b16 %v9237
  %v10443 = vunpack.c.l.b16 %v9238
  %v10444 = vpack.c.b16 %v10443, %v10442
  %v10448 = vunpack.c.l.b16 %v10437
  %v10449 = vunpack.c.h.b16 %v10437
  %v10450 = vunpack.c.l.b16 %v10438
  %v10451 = vunpack.c.h.b16 %v10438
  %v10452 = vunpack.c.l.b16 %v10439
  %v10453 = vunpack.c.h.b16 %v10439
  %v10454 = vpack.c.b16 %v10450, %v10448
  %v10455 = vpack.c.b16 %v10451, %v10449
  %v10456 = vpack.c.b16 %v10452, %v10452
  %v10457 = vpack.c.b16 %v10453, %v10453
  %v10461 = vsel %vm9300, %v10444, 0
  %v10464 = vsel %vm9304, %v10456, 0
  %v10467 = vsel %vm9304, %v10457, 0
  %10469 = vmatpush.bf16.msra.mxu0 0
  %10470 = vmatpush.bf16.msra.mxu0 0
  %10471 = vmatpush.bf16.msra.mxu0 0
  %10472 = vmatpush.bf16.msra.mxu0 0
  %10473 = vmatpush.bf16.msra.mxu0 0
  %10474 = vmatpush.bf16.msra.mxu0 0
  %10475 = vmatpush.bf16.msra.mxu0 %v10464
  %10476 = vmatpush.bf16.msra.mxu0 %v10454
  %10477 = vmatmul.bf16.gmra.mxu0 %v10461
  %v10478 = vpop.f32.mrf.mxu0
  %v10479 = vadd.f32 0.0, %v10478
  %v10480 = vpop.f32.mrf.mxu0
  %v10481 = vadd.f32 0.0, %v10480
  %10482 = vdwg.mxu0
  %10483 = vmatpush.bf16.msra.mxu0 0
  %10484 = vmatpush.bf16.msra.mxu0 0
  %10485 = vmatpush.bf16.msra.mxu0 0
  %10486 = vmatpush.bf16.msra.mxu0 0
  %10487 = vmatpush.bf16.msra.mxu0 0
  %10488 = vmatpush.bf16.msra.mxu0 0
  %10489 = vmatpush.bf16.msra.mxu0 %v10467
  %10490 = vmatpush.bf16.msra.mxu0 %v10455
  %10491 = vmatmul.bf16.gmra.mxu0 %v10461
  %v10492 = vpop.f32.mrf.mxu0
  %v10493 = vadd.f32 0.0, %v10492
  %v10494 = vpop.f32.mrf.mxu0
  %v10495 = vadd.f32 0.0, %v10494
  %10496 = vdwg.mxu0
  %v10497 = vadd.f32 %v10432, %v10479
  %v10498 = vadd.f32 %v10433, %v10493
  %v10499 = vadd.f32 %v10434, %v10481
  %v10500 = vadd.f32 %v10435, %v10495
  %s10501 = scalar_lea.vmem %s5, 456
  %v10502 = vld [vmem:[%s10501] sm:$0xff]
  %v10503 = vld [vmem:[%s10501 + $0x8] sm:$0xff]
  %v10504 = vld [vmem:[%s10501 + $0x10] sm:$0x33]
  %v10507 = vunpack.c.l.b16 %v9239
  %v10508 = vunpack.c.l.b16 %v9240
  %v10509 = vpack.c.b16 %v10508, %v10507
  %v10513 = vunpack.c.l.b16 %v10502
  %v10514 = vunpack.c.h.b16 %v10502
  %v10515 = vunpack.c.l.b16 %v10503
  %v10516 = vunpack.c.h.b16 %v10503
  %v10517 = vunpack.c.l.b16 %v10504
  %v10518 = vunpack.c.h.b16 %v10504
  %v10519 = vpack.c.b16 %v10515, %v10513
  %v10520 = vpack.c.b16 %v10516, %v10514
  %v10521 = vpack.c.b16 %v10517, %v10517
  %v10522 = vpack.c.b16 %v10518, %v10518
  %v10526 = vsel %vm9300, %v10509, 0
  %v10529 = vsel %vm9304, %v10521, 0
  %v10532 = vsel %vm9304, %v10522, 0
  %10534 = vmatpush.bf16.msra.mxu0 0
  %10535 = vmatpush.bf16.msra.mxu0 0
  %10536 = vmatpush.bf16.msra.mxu0 0
  %10537 = vmatpush.bf16.msra.mxu0 0
  %10538 = vmatpush.bf16.msra.mxu0 0
  %10539 = vmatpush.bf16.msra.mxu0 0
  %10540 = vmatpush.bf16.msra.mxu0 %v10529
  %10541 = vmatpush.bf16.msra.mxu0 %v10519
  %10542 = vmatmul.bf16.gmra.mxu0 %v10526
  %v10543 = vpop.f32.mrf.mxu0
  %v10544 = vadd.f32 0.0, %v10543
  %v10545 = vpop.f32.mrf.mxu0
  %v10546 = vadd.f32 0.0, %v10545
  %10547 = vdwg.mxu0
  %10548 = vmatpush.bf16.msra.mxu0 0
  %10549 = vmatpush.bf16.msra.mxu0 0
  %10550 = vmatpush.bf16.msra.mxu0 0
  %10551 = vmatpush.bf16.msra.mxu0 0
  %10552 = vmatpush.bf16.msra.mxu0 0
  %10553 = vmatpush.bf16.msra.mxu0 0
  %10554 = vmatpush.bf16.msra.mxu0 %v10532
  %10555 = vmatpush.bf16.msra.mxu0 %v10520
  %10556 = vmatmul.bf16.gmra.mxu0 %v10526
  %v10557 = vpop.f32.mrf.mxu0
  %v10558 = vadd.f32 0.0, %v10557
  %v10559 = vpop.f32.mrf.mxu0
  %v10560 = vadd.f32 0.0, %v10559
  %10561 = vdwg.mxu0
  %v10562 = vadd.f32 %v10497, %v10544
  %v10563 = vadd.f32 %v10498, %v10558
  %v10564 = vadd.f32 %v10499, %v10546
  %v10565 = vadd.f32 %v10500, %v10560
  %s10566 = scalar_lea.vmem %s5, 480
  %v10567 = vld [vmem:[%s10566] sm:$0xff]
  %v10568 = vld [vmem:[%s10566 + $0x8] sm:$0xff]
  %v10569 = vld [vmem:[%s10566 + $0x10] sm:$0x33]
  %v10572 = vunpack.c.l.b16 %v9241
  %v10573 = vunpack.c.l.b16 %v9242
  %v10574 = vpack.c.b16 %v10573, %v10572
  %v10578 = vunpack.c.l.b16 %v10567
  %v10579 = vunpack.c.h.b16 %v10567
  %v10580 = vunpack.c.l.b16 %v10568
  %v10581 = vunpack.c.h.b16 %v10568
  %v10582 = vunpack.c.l.b16 %v10569
  %v10583 = vunpack.c.h.b16 %v10569
  %v10584 = vpack.c.b16 %v10580, %v10578
  %v10585 = vpack.c.b16 %v10581, %v10579
  %v10586 = vpack.c.b16 %v10582, %v10582
  %v10587 = vpack.c.b16 %v10583, %v10583
  %v10591 = vsel %vm9300, %v10574, 0
  %v10594 = vsel %vm9304, %v10586, 0
  %v10597 = vsel %vm9304, %v10587, 0
  %10599 = vmatpush.bf16.msra.mxu0 0
  %10600 = vmatpush.bf16.msra.mxu0 0
  %10601 = vmatpush.bf16.msra.mxu0 0
  %10602 = vmatpush.bf16.msra.mxu0 0
  %10603 = vmatpush.bf16.msra.mxu0 0
  %10604 = vmatpush.bf16.msra.mxu0 0
  %10605 = vmatpush.bf16.msra.mxu0 %v10594
  %10606 = vmatpush.bf16.msra.mxu0 %v10584
  %10607 = vmatmul.bf16.gmra.mxu0 %v10591
  %v10608 = vpop.f32.mrf.mxu0
  %v10609 = vadd.f32 0.0, %v10608
  %v10610 = vpop.f32.mrf.mxu0
  %v10611 = vadd.f32 0.0, %v10610
  %10612 = vdwg.mxu0
  %10613 = vmatpush.bf16.msra.mxu0 0
  %10614 = vmatpush.bf16.msra.mxu0 0
  %10615 = vmatpush.bf16.msra.mxu0 0
  %10616 = vmatpush.bf16.msra.mxu0 0
  %10617 = vmatpush.bf16.msra.mxu0 0
  %10618 = vmatpush.bf16.msra.mxu0 0
  %10619 = vmatpush.bf16.msra.mxu0 %v10597
  %10620 = vmatpush.bf16.msra.mxu0 %v10585
  %10621 = vmatmul.bf16.gmra.mxu0 %v10591
  %v10622 = vpop.f32.mrf.mxu0
  %v10623 = vadd.f32 0.0, %v10622
  %v10624 = vpop.f32.mrf.mxu0
  %v10625 = vadd.f32 0.0, %v10624
  %10626 = vdwg.mxu0
  %v10627 = vadd.f32 %v10562, %v10609
  %v10628 = vadd.f32 %v10563, %v10623
  %v10629 = vadd.f32 %v10564, %v10611
  %v10630 = vadd.f32 %v10565, %v10625
  %s10631 = scalar_lea.vmem %s5, 504
  %v10632 = vld [vmem:[%s10631] sm:$0xff]
  %v10633 = vld [vmem:[%s10631 + $0x8] sm:$0xff]
  %v10634 = vld [vmem:[%s10631 + $0x10] sm:$0x33]
  %v10637 = vunpack.c.l.b16 %v9243
  %v10638 = vunpack.c.l.b16 %v9244
  %v10639 = vpack.c.b16 %v10638, %v10637
  %v10643 = vunpack.c.l.b16 %v10632
  %v10644 = vunpack.c.h.b16 %v10632
  %v10645 = vunpack.c.l.b16 %v10633
  %v10646 = vunpack.c.h.b16 %v10633
  %v10647 = vunpack.c.l.b16 %v10634
  %v10648 = vunpack.c.h.b16 %v10634
  %v10649 = vpack.c.b16 %v10645, %v10643
  %v10650 = vpack.c.b16 %v10646, %v10644
  %v10651 = vpack.c.b16 %v10647, %v10647
  %v10652 = vpack.c.b16 %v10648, %v10648
  %v10656 = vsel %vm9300, %v10639, 0
  %v10659 = vsel %vm9304, %v10651, 0
  %v10662 = vsel %vm9304, %v10652, 0
  %10664 = vmatpush.bf16.msra.mxu0 0
  %10665 = vmatpush.bf16.msra.mxu0 0
  %10666 = vmatpush.bf16.msra.mxu0 0
  %10667 = vmatpush.bf16.msra.mxu0 0
  %10668 = vmatpush.bf16.msra.mxu0 0
  %10669 = vmatpush.bf16.msra.mxu0 0
  %10670 = vmatpush.bf16.msra.mxu0 %v10659
  %10671 = vmatpush.bf16.msra.mxu0 %v10649
  %10672 = vmatmul.bf16.gmra.mxu0 %v10656
  %v10673 = vpop.f32.mrf.mxu0
  %v10674 = vadd.f32 0.0, %v10673
  %v10675 = vpop.f32.mrf.mxu0
  %v10676 = vadd.f32 0.0, %v10675
  %10677 = vdwg.mxu0
  %10678 = vmatpush.bf16.msra.mxu0 0
  %10679 = vmatpush.bf16.msra.mxu0 0
  %10680 = vmatpush.bf16.msra.mxu0 0
  %10681 = vmatpush.bf16.msra.mxu0 0
  %10682 = vmatpush.bf16.msra.mxu0 0
  %10683 = vmatpush.bf16.msra.mxu0 0
  %10684 = vmatpush.bf16.msra.mxu0 %v10662
  %10685 = vmatpush.bf16.msra.mxu0 %v10650
  %10686 = vmatmul.bf16.gmra.mxu0 %v10656
  %v10687 = vpop.f32.mrf.mxu0
  %v10688 = vadd.f32 0.0, %v10687
  %v10689 = vpop.f32.mrf.mxu0
  %v10690 = vadd.f32 0.0, %v10689
  %10691 = vdwg.mxu0
  %v10692 = vadd.f32 %v10627, %v10674
  %v10693 = vadd.f32 %v10628, %v10688
  %v10694 = vadd.f32 %v10629, %v10676
  %v10695 = vadd.f32 %v10630, %v10690
  %s10696 = scalar_lea.vmem %s5, 528
  %v10697 = vld [vmem:[%s10696] sm:$0xff]
  %v10698 = vld [vmem:[%s10696 + $0x8] sm:$0xff]
  %v10699 = vld [vmem:[%s10696 + $0x10] sm:$0x33]
  %v10702 = vunpack.c.l.b16 %v9245
  %v10703 = vunpack.c.l.b16 %v9246
  %v10704 = vpack.c.b16 %v10703, %v10702
  %v10708 = vunpack.c.l.b16 %v10697
  %v10709 = vunpack.c.h.b16 %v10697
  %v10710 = vunpack.c.l.b16 %v10698
  %v10711 = vunpack.c.h.b16 %v10698
  %v10712 = vunpack.c.l.b16 %v10699
  %v10713 = vunpack.c.h.b16 %v10699
  %v10714 = vpack.c.b16 %v10710, %v10708
  %v10715 = vpack.c.b16 %v10711, %v10709
  %v10716 = vpack.c.b16 %v10712, %v10712
  %v10717 = vpack.c.b16 %v10713, %v10713
  %v10721 = vsel %vm9300, %v10704, 0
  %v10724 = vsel %vm9304, %v10716, 0
  %v10727 = vsel %vm9304, %v10717, 0
  %10729 = vmatpush.bf16.msra.mxu0 0
  %10730 = vmatpush.bf16.msra.mxu0 0
  %10731 = vmatpush.bf16.msra.mxu0 0
  %10732 = vmatpush.bf16.msra.mxu0 0
  %10733 = vmatpush.bf16.msra.mxu0 0
  %10734 = vmatpush.bf16.msra.mxu0 0
  %10735 = vmatpush.bf16.msra.mxu0 %v10724
  %10736 = vmatpush.bf16.msra.mxu0 %v10714
  %10737 = vmatmul.bf16.gmra.mxu0 %v10721
  %v10738 = vpop.f32.mrf.mxu0
  %v10739 = vadd.f32 0.0, %v10738
  %v10740 = vpop.f32.mrf.mxu0
  %v10741 = vadd.f32 0.0, %v10740
  %10742 = vdwg.mxu0
  %10743 = vmatpush.bf16.msra.mxu0 0
  %10744 = vmatpush.bf16.msra.mxu0 0
  %10745 = vmatpush.bf16.msra.mxu0 0
  %10746 = vmatpush.bf16.msra.mxu0 0
  %10747 = vmatpush.bf16.msra.mxu0 0
  %10748 = vmatpush.bf16.msra.mxu0 0
  %10749 = vmatpush.bf16.msra.mxu0 %v10727
  %10750 = vmatpush.bf16.msra.mxu0 %v10715
  %10751 = vmatmul.bf16.gmra.mxu0 %v10721
  %v10752 = vpop.f32.mrf.mxu0
  %v10753 = vadd.f32 0.0, %v10752
  %v10754 = vpop.f32.mrf.mxu0
  %v10755 = vadd.f32 0.0, %v10754
  %10756 = vdwg.mxu0
  %v10757 = vadd.f32 %v10692, %v10739
  %v10758 = vadd.f32 %v10693, %v10753
  %v10759 = vadd.f32 %v10694, %v10741
  %v10760 = vadd.f32 %v10695, %v10755
  %s10761 = scalar_lea.vmem %s5, 552
  %v10762 = vld [vmem:[%s10761] sm:$0xff]
  %v10763 = vld [vmem:[%s10761 + $0x8] sm:$0xff]
  %v10764 = vld [vmem:[%s10761 + $0x10] sm:$0x33]
  %v10767 = vunpack.c.l.b16 %v9247
  %v10768 = vunpack.c.l.b16 %v9248
  %v10769 = vpack.c.b16 %v10768, %v10767
  %v10773 = vunpack.c.l.b16 %v10762
  %v10774 = vunpack.c.h.b16 %v10762
  %v10775 = vunpack.c.l.b16 %v10763
  %v10776 = vunpack.c.h.b16 %v10763
  %v10777 = vunpack.c.l.b16 %v10764
  %v10778 = vunpack.c.h.b16 %v10764
  %v10779 = vpack.c.b16 %v10775, %v10773
  %v10780 = vpack.c.b16 %v10776, %v10774
  %v10781 = vpack.c.b16 %v10777, %v10777
  %v10782 = vpack.c.b16 %v10778, %v10778
  %v10786 = vsel %vm9300, %v10769, 0
  %v10789 = vsel %vm9304, %v10781, 0
  %v10792 = vsel %vm9304, %v10782, 0
  %10794 = vmatpush.bf16.msra.mxu0 0
  %10795 = vmatpush.bf16.msra.mxu0 0
  %10796 = vmatpush.bf16.msra.mxu0 0
  %10797 = vmatpush.bf16.msra.mxu0 0
  %10798 = vmatpush.bf16.msra.mxu0 0
  %10799 = vmatpush.bf16.msra.mxu0 0
  %10800 = vmatpush.bf16.msra.mxu0 %v10789
  %10801 = vmatpush.bf16.msra.mxu0 %v10779
  %10802 = vmatmul.bf16.gmra.mxu0 %v10786
  %v10803 = vpop.f32.mrf.mxu0
  %v10804 = vadd.f32 0.0, %v10803
  %v10805 = vpop.f32.mrf.mxu0
  %v10806 = vadd.f32 0.0, %v10805
  %10807 = vdwg.mxu0
  %10808 = vmatpush.bf16.msra.mxu0 0
  %10809 = vmatpush.bf16.msra.mxu0 0
  %10810 = vmatpush.bf16.msra.mxu0 0
  %10811 = vmatpush.bf16.msra.mxu0 0
  %10812 = vmatpush.bf16.msra.mxu0 0
  %10813 = vmatpush.bf16.msra.mxu0 0
  %10814 = vmatpush.bf16.msra.mxu0 %v10792
  %10815 = vmatpush.bf16.msra.mxu0 %v10780
  %10816 = vmatmul.bf16.gmra.mxu0 %v10786
  %v10817 = vpop.f32.mrf.mxu0
  %v10818 = vadd.f32 0.0, %v10817
  %v10819 = vpop.f32.mrf.mxu0
  %v10820 = vadd.f32 0.0, %v10819
  %10821 = vdwg.mxu0
  %v10822 = vadd.f32 %v10757, %v10804
  %v10823 = vadd.f32 %v10758, %v10818
  %v10824 = vadd.f32 %v10759, %v10806
  %v10825 = vadd.f32 %v10760, %v10820
  %s10826 = scalar_lea.vmem %s5, 576
  %v10827 = vld [vmem:[%s10826] sm:$0xff]
  %v10828 = vld [vmem:[%s10826 + $0x8] sm:$0xff]
  %v10829 = vld [vmem:[%s10826 + $0x10] sm:$0x33]
  %v10832 = vunpack.c.l.b16 %v9249
  %v10833 = vunpack.c.l.b16 %v9250
  %v10834 = vpack.c.b16 %v10833, %v10832
  %v10838 = vunpack.c.l.b16 %v10827
  %v10839 = vunpack.c.h.b16 %v10827
  %v10840 = vunpack.c.l.b16 %v10828
  %v10841 = vunpack.c.h.b16 %v10828
  %v10842 = vunpack.c.l.b16 %v10829
  %v10843 = vunpack.c.h.b16 %v10829
  %v10844 = vpack.c.b16 %v10840, %v10838
  %v10845 = vpack.c.b16 %v10841, %v10839
  %v10846 = vpack.c.b16 %v10842, %v10842
  %v10847 = vpack.c.b16 %v10843, %v10843
  %v10851 = vsel %vm9300, %v10834, 0
  %v10854 = vsel %vm9304, %v10846, 0
  %v10857 = vsel %vm9304, %v10847, 0
  %10859 = vmatpush.bf16.msra.mxu0 0
  %10860 = vmatpush.bf16.msra.mxu0 0
  %10861 = vmatpush.bf16.msra.mxu0 0
  %10862 = vmatpush.bf16.msra.mxu0 0
  %10863 = vmatpush.bf16.msra.mxu0 0
  %10864 = vmatpush.bf16.msra.mxu0 0
  %10865 = vmatpush.bf16.msra.mxu0 %v10854
  %10866 = vmatpush.bf16.msra.mxu0 %v10844
  %10867 = vmatmul.bf16.gmra.mxu0 %v10851
  %v10868 = vpop.f32.mrf.mxu0
  %v10869 = vadd.f32 0.0, %v10868
  %v10870 = vpop.f32.mrf.mxu0
  %v10871 = vadd.f32 0.0, %v10870
  %10872 = vdwg.mxu0
  %10873 = vmatpush.bf16.msra.mxu0 0
  %10874 = vmatpush.bf16.msra.mxu0 0
  %10875 = vmatpush.bf16.msra.mxu0 0
  %10876 = vmatpush.bf16.msra.mxu0 0
  %10877 = vmatpush.bf16.msra.mxu0 0
  %10878 = vmatpush.bf16.msra.mxu0 0
  %10879 = vmatpush.bf16.msra.mxu0 %v10857
  %10880 = vmatpush.bf16.msra.mxu0 %v10845
  %10881 = vmatmul.bf16.gmra.mxu0 %v10851
  %v10882 = vpop.f32.mrf.mxu0
  %v10883 = vadd.f32 0.0, %v10882
  %v10884 = vpop.f32.mrf.mxu0
  %v10885 = vadd.f32 0.0, %v10884
  %10886 = vdwg.mxu0
  %v10887 = vadd.f32 %v10822, %v10869
  %v10888 = vadd.f32 %v10823, %v10883
  %v10889 = vadd.f32 %v10824, %v10871
  %v10890 = vadd.f32 %v10825, %v10885
  %s10891 = scalar_lea.vmem %s5, 600
  %v10892 = vld [vmem:[%s10891] sm:$0xff]
  %v10893 = vld [vmem:[%s10891 + $0x8] sm:$0xff]
  %v10894 = vld [vmem:[%s10891 + $0x10] sm:$0x33]
  %v10897 = vunpack.c.l.b16 %v9251
  %v10898 = vunpack.c.l.b16 %v9252
  %v10899 = vpack.c.b16 %v10898, %v10897
  %v10903 = vunpack.c.l.b16 %v10892
  %v10904 = vunpack.c.h.b16 %v10892
  %v10905 = vunpack.c.l.b16 %v10893
  %v10906 = vunpack.c.h.b16 %v10893
  %v10907 = vunpack.c.l.b16 %v10894
  %v10908 = vunpack.c.h.b16 %v10894
  %v10909 = vpack.c.b16 %v10905, %v10903
  %v10910 = vpack.c.b16 %v10906, %v10904
  %v10911 = vpack.c.b16 %v10907, %v10907
  %v10912 = vpack.c.b16 %v10908, %v10908
  %v10916 = vsel %vm9300, %v10899, 0
  %v10919 = vsel %vm9304, %v10911, 0
  %v10922 = vsel %vm9304, %v10912, 0
  %10924 = vmatpush.bf16.msra.mxu0 0
  %10925 = vmatpush.bf16.msra.mxu0 0
  %10926 = vmatpush.bf16.msra.mxu0 0
  %10927 = vmatpush.bf16.msra.mxu0 0
  %10928 = vmatpush.bf16.msra.mxu0 0
  %10929 = vmatpush.bf16.msra.mxu0 0
  %10930 = vmatpush.bf16.msra.mxu0 %v10919
  %10931 = vmatpush.bf16.msra.mxu0 %v10909
  %10932 = vmatmul.bf16.gmra.mxu0 %v10916
  %v10933 = vpop.f32.mrf.mxu0
  %v10934 = vadd.f32 0.0, %v10933
  %v10935 = vpop.f32.mrf.mxu0
  %v10936 = vadd.f32 0.0, %v10935
  %10937 = vdwg.mxu0
  %10938 = vmatpush.bf16.msra.mxu0 0
  %10939 = vmatpush.bf16.msra.mxu0 0
  %10940 = vmatpush.bf16.msra.mxu0 0
  %10941 = vmatpush.bf16.msra.mxu0 0
  %10942 = vmatpush.bf16.msra.mxu0 0
  %10943 = vmatpush.bf16.msra.mxu0 0
  %10944 = vmatpush.bf16.msra.mxu0 %v10922
  %10945 = vmatpush.bf16.msra.mxu0 %v10910
  %10946 = vmatmul.bf16.gmra.mxu0 %v10916
  %v10947 = vpop.f32.mrf.mxu0
  %v10948 = vadd.f32 0.0, %v10947
  %v10949 = vpop.f32.mrf.mxu0
  %v10950 = vadd.f32 0.0, %v10949
  %10951 = vdwg.mxu0
  %v10952 = vadd.f32 %v10887, %v10934
  %v10953 = vadd.f32 %v10888, %v10948
  %v10954 = vadd.f32 %v10889, %v10936
  %v10955 = vadd.f32 %v10890, %v10950
  %s10956 = scalar_lea.vmem %s5, 624
  %v10957 = vld [vmem:[%s10956] sm:$0xff]
  %v10958 = vld [vmem:[%s10956 + $0x8] sm:$0xff]
  %v10959 = vld [vmem:[%s10956 + $0x10] sm:$0x33]
  %v10962 = vunpack.c.l.b16 %v9253
  %v10963 = vunpack.c.l.b16 %v9254
  %v10964 = vpack.c.b16 %v10963, %v10962
  %v10968 = vunpack.c.l.b16 %v10957
  %v10969 = vunpack.c.h.b16 %v10957
  %v10970 = vunpack.c.l.b16 %v10958
  %v10971 = vunpack.c.h.b16 %v10958
  %v10972 = vunpack.c.l.b16 %v10959
  %v10973 = vunpack.c.h.b16 %v10959
  %v10974 = vpack.c.b16 %v10970, %v10968
  %v10975 = vpack.c.b16 %v10971, %v10969
  %v10976 = vpack.c.b16 %v10972, %v10972
  %v10977 = vpack.c.b16 %v10973, %v10973
  %v10981 = vsel %vm9300, %v10964, 0
  %v10984 = vsel %vm9304, %v10976, 0
  %v10987 = vsel %vm9304, %v10977, 0
  %10989 = vmatpush.bf16.msra.mxu0 0
  %10990 = vmatpush.bf16.msra.mxu0 0
  %10991 = vmatpush.bf16.msra.mxu0 0
  %10992 = vmatpush.bf16.msra.mxu0 0
  %10993 = vmatpush.bf16.msra.mxu0 0
  %10994 = vmatpush.bf16.msra.mxu0 0
  %10995 = vmatpush.bf16.msra.mxu0 %v10984
  %10996 = vmatpush.bf16.msra.mxu0 %v10974
  %10997 = vmatmul.bf16.gmra.mxu0 %v10981
  %v10998 = vpop.f32.mrf.mxu0
  %v10999 = vadd.f32 0.0, %v10998
  %v11000 = vpop.f32.mrf.mxu0
  %v11001 = vadd.f32 0.0, %v11000
  %11002 = vdwg.mxu0
  %11003 = vmatpush.bf16.msra.mxu0 0
  %11004 = vmatpush.bf16.msra.mxu0 0
  %11005 = vmatpush.bf16.msra.mxu0 0
  %11006 = vmatpush.bf16.msra.mxu0 0
  %11007 = vmatpush.bf16.msra.mxu0 0
  %11008 = vmatpush.bf16.msra.mxu0 0
  %11009 = vmatpush.bf16.msra.mxu0 %v10987
  %11010 = vmatpush.bf16.msra.mxu0 %v10975
  %11011 = vmatmul.bf16.gmra.mxu0 %v10981
  %v11012 = vpop.f32.mrf.mxu0
  %v11013 = vadd.f32 0.0, %v11012
  %v11014 = vpop.f32.mrf.mxu0
  %v11015 = vadd.f32 0.0, %v11014
  %11016 = vdwg.mxu0
  %v11017 = vadd.f32 %v10952, %v10999
  %v11018 = vadd.f32 %v10953, %v11013
  %v11019 = vadd.f32 %v10954, %v11001
  %v11020 = vadd.f32 %v10955, %v11015
  %s11021 = scalar_lea.vmem %s5, 648
  %v11022 = vld [vmem:[%s11021] sm:$0xff]
  %v11023 = vld [vmem:[%s11021 + $0x8] sm:$0xff]
  %v11024 = vld [vmem:[%s11021 + $0x10] sm:$0x33]
  %v11027 = vunpack.c.l.b16 %v9255
  %v11028 = vunpack.c.l.b16 %v9256
  %v11029 = vpack.c.b16 %v11028, %v11027
  %v11033 = vunpack.c.l.b16 %v11022
  %v11034 = vunpack.c.h.b16 %v11022
  %v11035 = vunpack.c.l.b16 %v11023
  %v11036 = vunpack.c.h.b16 %v11023
  %v11037 = vunpack.c.l.b16 %v11024
  %v11038 = vunpack.c.h.b16 %v11024
  %v11039 = vpack.c.b16 %v11035, %v11033
  %v11040 = vpack.c.b16 %v11036, %v11034
  %v11041 = vpack.c.b16 %v11037, %v11037
  %v11042 = vpack.c.b16 %v11038, %v11038
  %v11046 = vsel %vm9300, %v11029, 0
  %v11049 = vsel %vm9304, %v11041, 0
  %v11052 = vsel %vm9304, %v11042, 0
  %11054 = vmatpush.bf16.msra.mxu0 0
  %11055 = vmatpush.bf16.msra.mxu0 0
  %11056 = vmatpush.bf16.msra.mxu0 0
  %11057 = vmatpush.bf16.msra.mxu0 0
  %11058 = vmatpush.bf16.msra.mxu0 0
  %11059 = vmatpush.bf16.msra.mxu0 0
  %11060 = vmatpush.bf16.msra.mxu0 %v11049
  %11061 = vmatpush.bf16.msra.mxu0 %v11039
  %11062 = vmatmul.bf16.gmra.mxu0 %v11046
  %v11063 = vpop.f32.mrf.mxu0
  %v11064 = vadd.f32 0.0, %v11063
  %v11065 = vpop.f32.mrf.mxu0
  %v11066 = vadd.f32 0.0, %v11065
  %11067 = vdwg.mxu0
  %11068 = vmatpush.bf16.msra.mxu0 0
  %11069 = vmatpush.bf16.msra.mxu0 0
  %11070 = vmatpush.bf16.msra.mxu0 0
  %11071 = vmatpush.bf16.msra.mxu0 0
  %11072 = vmatpush.bf16.msra.mxu0 0
  %11073 = vmatpush.bf16.msra.mxu0 0
  %11074 = vmatpush.bf16.msra.mxu0 %v11052
  %11075 = vmatpush.bf16.msra.mxu0 %v11040
  %11076 = vmatmul.bf16.gmra.mxu0 %v11046
  %v11077 = vpop.f32.mrf.mxu0
  %v11078 = vadd.f32 0.0, %v11077
  %v11079 = vpop.f32.mrf.mxu0
  %v11080 = vadd.f32 0.0, %v11079
  %11081 = vdwg.mxu0
  %v11082 = vadd.f32 %v11017, %v11064
  %v11083 = vadd.f32 %v11018, %v11078
  %v11084 = vadd.f32 %v11019, %v11066
  %v11085 = vadd.f32 %v11020, %v11080
  %s11086 = scalar_lea.vmem %s5, 672
  %v11087 = vld [vmem:[%s11086] sm:$0xff]
  %v11088 = vld [vmem:[%s11086 + $0x8] sm:$0xff]
  %v11089 = vld [vmem:[%s11086 + $0x10] sm:$0x33]
  %v11092 = vunpack.c.l.b16 %v9257
  %v11093 = vunpack.c.l.b16 %v9258
  %v11094 = vpack.c.b16 %v11093, %v11092
  %v11098 = vunpack.c.l.b16 %v11087
  %v11099 = vunpack.c.h.b16 %v11087
  %v11100 = vunpack.c.l.b16 %v11088
  %v11101 = vunpack.c.h.b16 %v11088
  %v11102 = vunpack.c.l.b16 %v11089
  %v11103 = vunpack.c.h.b16 %v11089
  %v11104 = vpack.c.b16 %v11100, %v11098
  %v11105 = vpack.c.b16 %v11101, %v11099
  %v11106 = vpack.c.b16 %v11102, %v11102
  %v11107 = vpack.c.b16 %v11103, %v11103
  %v11111 = vsel %vm9300, %v11094, 0
  %v11114 = vsel %vm9304, %v11106, 0
  %v11117 = vsel %vm9304, %v11107, 0
  %11119 = vmatpush.bf16.msra.mxu0 0
  %11120 = vmatpush.bf16.msra.mxu0 0
  %11121 = vmatpush.bf16.msra.mxu0 0
  %11122 = vmatpush.bf16.msra.mxu0 0
  %11123 = vmatpush.bf16.msra.mxu0 0
  %11124 = vmatpush.bf16.msra.mxu0 0
  %11125 = vmatpush.bf16.msra.mxu0 %v11114
  %11126 = vmatpush.bf16.msra.mxu0 %v11104
  %11127 = vmatmul.bf16.gmra.mxu0 %v11111
  %v11128 = vpop.f32.mrf.mxu0
  %v11129 = vadd.f32 0.0, %v11128
  %v11130 = vpop.f32.mrf.mxu0
  %v11131 = vadd.f32 0.0, %v11130
  %11132 = vdwg.mxu0
  %11133 = vmatpush.bf16.msra.mxu0 0
  %11134 = vmatpush.bf16.msra.mxu0 0
  %11135 = vmatpush.bf16.msra.mxu0 0
  %11136 = vmatpush.bf16.msra.mxu0 0
  %11137 = vmatpush.bf16.msra.mxu0 0
  %11138 = vmatpush.bf16.msra.mxu0 0
  %11139 = vmatpush.bf16.msra.mxu0 %v11117
  %11140 = vmatpush.bf16.msra.mxu0 %v11105
  %11141 = vmatmul.bf16.gmra.mxu0 %v11111
  %v11142 = vpop.f32.mrf.mxu0
  %v11143 = vadd.f32 0.0, %v11142
  %v11144 = vpop.f32.mrf.mxu0
  %v11145 = vadd.f32 0.0, %v11144
  %11146 = vdwg.mxu0
  %v11147 = vadd.f32 %v11082, %v11129
  %v11148 = vadd.f32 %v11083, %v11143
  %v11149 = vadd.f32 %v11084, %v11131
  %v11150 = vadd.f32 %v11085, %v11145
  %s11151 = scalar_lea.vmem %s5, 696
  %v11152 = vld [vmem:[%s11151] sm:$0xff]
  %v11153 = vld [vmem:[%s11151 + $0x8] sm:$0xff]
  %v11154 = vld [vmem:[%s11151 + $0x10] sm:$0x33]
  %v11157 = vunpack.c.l.b16 %v9259
  %v11158 = vunpack.c.l.b16 %v9260
  %v11159 = vpack.c.b16 %v11158, %v11157
  %v11163 = vunpack.c.l.b16 %v11152
  %v11164 = vunpack.c.h.b16 %v11152
  %v11165 = vunpack.c.l.b16 %v11153
  %v11166 = vunpack.c.h.b16 %v11153
  %v11167 = vunpack.c.l.b16 %v11154
  %v11168 = vunpack.c.h.b16 %v11154
  %v11169 = vpack.c.b16 %v11165, %v11163
  %v11170 = vpack.c.b16 %v11166, %v11164
  %v11171 = vpack.c.b16 %v11167, %v11167
  %v11172 = vpack.c.b16 %v11168, %v11168
  %v11176 = vsel %vm9300, %v11159, 0
  %v11179 = vsel %vm9304, %v11171, 0
  %v11182 = vsel %vm9304, %v11172, 0
  %11184 = vmatpush.bf16.msra.mxu0 0
  %11185 = vmatpush.bf16.msra.mxu0 0
  %11186 = vmatpush.bf16.msra.mxu0 0
  %11187 = vmatpush.bf16.msra.mxu0 0
  %11188 = vmatpush.bf16.msra.mxu0 0
  %11189 = vmatpush.bf16.msra.mxu0 0
  %11190 = vmatpush.bf16.msra.mxu0 %v11179
  %11191 = vmatpush.bf16.msra.mxu0 %v11169
  %11192 = vmatmul.bf16.gmra.mxu0 %v11176
  %v11193 = vpop.f32.mrf.mxu0
  %v11194 = vadd.f32 0.0, %v11193
  %v11195 = vpop.f32.mrf.mxu0
  %v11196 = vadd.f32 0.0, %v11195
  %11197 = vdwg.mxu0
  %11198 = vmatpush.bf16.msra.mxu0 0
  %11199 = vmatpush.bf16.msra.mxu0 0
  %11200 = vmatpush.bf16.msra.mxu0 0
  %11201 = vmatpush.bf16.msra.mxu0 0
  %11202 = vmatpush.bf16.msra.mxu0 0
  %11203 = vmatpush.bf16.msra.mxu0 0
  %11204 = vmatpush.bf16.msra.mxu0 %v11182
  %11205 = vmatpush.bf16.msra.mxu0 %v11170
  %11206 = vmatmul.bf16.gmra.mxu0 %v11176
  %v11207 = vpop.f32.mrf.mxu0
  %v11208 = vadd.f32 0.0, %v11207
  %v11209 = vpop.f32.mrf.mxu0
  %v11210 = vadd.f32 0.0, %v11209
  %11211 = vdwg.mxu0
  %v11212 = vadd.f32 %v11147, %v11194
  %v11213 = vadd.f32 %v11148, %v11208
  %v11214 = vadd.f32 %v11149, %v11196
  %v11215 = vadd.f32 %v11150, %v11210
  %s11216 = scalar_lea.vmem %s5, 720
  %v11217 = vld [vmem:[%s11216] sm:$0xff]
  %v11218 = vld [vmem:[%s11216 + $0x8] sm:$0xff]
  %v11219 = vld [vmem:[%s11216 + $0x10] sm:$0x33]
  %v11222 = vunpack.c.l.b16 %v9261
  %v11223 = vunpack.c.l.b16 %v9262
  %v11224 = vpack.c.b16 %v11223, %v11222
  %v11228 = vunpack.c.l.b16 %v11217
  %v11229 = vunpack.c.h.b16 %v11217
  %v11230 = vunpack.c.l.b16 %v11218
  %v11231 = vunpack.c.h.b16 %v11218
  %v11232 = vunpack.c.l.b16 %v11219
  %v11233 = vunpack.c.h.b16 %v11219
  %v11234 = vpack.c.b16 %v11230, %v11228
  %v11235 = vpack.c.b16 %v11231, %v11229
  %v11236 = vpack.c.b16 %v11232, %v11232
  %v11237 = vpack.c.b16 %v11233, %v11233
  %v11241 = vsel %vm9300, %v11224, 0
  %v11244 = vsel %vm9304, %v11236, 0
  %v11247 = vsel %vm9304, %v11237, 0
  %11249 = vmatpush.bf16.msra.mxu0 0
  %11250 = vmatpush.bf16.msra.mxu0 0
  %11251 = vmatpush.bf16.msra.mxu0 0
  %11252 = vmatpush.bf16.msra.mxu0 0
  %11253 = vmatpush.bf16.msra.mxu0 0
  %11254 = vmatpush.bf16.msra.mxu0 0
  %11255 = vmatpush.bf16.msra.mxu0 %v11244
  %11256 = vmatpush.bf16.msra.mxu0 %v11234
  %11257 = vmatmul.bf16.gmra.mxu0 %v11241
  %v11258 = vpop.f32.mrf.mxu0
  %v11259 = vadd.f32 0.0, %v11258
  %v11260 = vpop.f32.mrf.mxu0
  %v11261 = vadd.f32 0.0, %v11260
  %11262 = vdwg.mxu0
  %11263 = vmatpush.bf16.msra.mxu0 0
  %11264 = vmatpush.bf16.msra.mxu0 0
  %11265 = vmatpush.bf16.msra.mxu0 0
  %11266 = vmatpush.bf16.msra.mxu0 0
  %11267 = vmatpush.bf16.msra.mxu0 0
  %11268 = vmatpush.bf16.msra.mxu0 0
  %11269 = vmatpush.bf16.msra.mxu0 %v11247
  %11270 = vmatpush.bf16.msra.mxu0 %v11235
  %11271 = vmatmul.bf16.gmra.mxu0 %v11241
  %v11272 = vpop.f32.mrf.mxu0
  %v11273 = vadd.f32 0.0, %v11272
  %v11274 = vpop.f32.mrf.mxu0
  %v11275 = vadd.f32 0.0, %v11274
  %11276 = vdwg.mxu0
  %v11277 = vadd.f32 %v11212, %v11259
  %v11278 = vadd.f32 %v11213, %v11273
  %v11279 = vadd.f32 %v11214, %v11261
  %v11280 = vadd.f32 %v11215, %v11275
  %s11281 = scalar_lea.vmem %s5, 744
  %v11282 = vld [vmem:[%s11281] sm:$0xff]
  %v11283 = vld [vmem:[%s11281 + $0x8] sm:$0xff]
  %v11284 = vld [vmem:[%s11281 + $0x10] sm:$0x33]
  %v11287 = vunpack.c.l.b16 %v9263
  %v11288 = vunpack.c.l.b16 %v9264
  %v11289 = vpack.c.b16 %v11288, %v11287
  %v11293 = vunpack.c.l.b16 %v11282
  %v11294 = vunpack.c.h.b16 %v11282
  %v11295 = vunpack.c.l.b16 %v11283
  %v11296 = vunpack.c.h.b16 %v11283
  %v11297 = vunpack.c.l.b16 %v11284
  %v11298 = vunpack.c.h.b16 %v11284
  %v11299 = vpack.c.b16 %v11295, %v11293
  %v11300 = vpack.c.b16 %v11296, %v11294
  %v11301 = vpack.c.b16 %v11297, %v11297
  %v11302 = vpack.c.b16 %v11298, %v11298
  %v11306 = vsel %vm9300, %v11289, 0
  %v11309 = vsel %vm9304, %v11301, 0
  %v11312 = vsel %vm9304, %v11302, 0
  %11314 = vmatpush.bf16.msra.mxu0 0
  %11315 = vmatpush.bf16.msra.mxu0 0
  %11316 = vmatpush.bf16.msra.mxu0 0
  %11317 = vmatpush.bf16.msra.mxu0 0
  %11318 = vmatpush.bf16.msra.mxu0 0
  %11319 = vmatpush.bf16.msra.mxu0 0
  %11320 = vmatpush.bf16.msra.mxu0 %v11309
  %11321 = vmatpush.bf16.msra.mxu0 %v11299
  %11322 = vmatmul.bf16.gmra.mxu0 %v11306
  %v11323 = vpop.f32.mrf.mxu0
  %v11324 = vadd.f32 0.0, %v11323
  %v11325 = vpop.f32.mrf.mxu0
  %v11326 = vadd.f32 0.0, %v11325
  %11327 = vdwg.mxu0
  %11328 = vmatpush.bf16.msra.mxu0 0
  %11329 = vmatpush.bf16.msra.mxu0 0
  %11330 = vmatpush.bf16.msra.mxu0 0
  %11331 = vmatpush.bf16.msra.mxu0 0
  %11332 = vmatpush.bf16.msra.mxu0 0
  %11333 = vmatpush.bf16.msra.mxu0 0
  %11334 = vmatpush.bf16.msra.mxu0 %v11312
  %11335 = vmatpush.bf16.msra.mxu0 %v11300
  %11336 = vmatmul.bf16.gmra.mxu0 %v11306
  %v11337 = vpop.f32.mrf.mxu0
  %v11338 = vadd.f32 0.0, %v11337
  %v11339 = vpop.f32.mrf.mxu0
  %v11340 = vadd.f32 0.0, %v11339
  %11341 = vdwg.mxu0
  %v11342 = vadd.f32 %v11277, %v11324
  %v11343 = vadd.f32 %v11278, %v11338
  %v11344 = vadd.f32 %v11279, %v11326
  %v11345 = vadd.f32 %v11280, %v11340
  %s11346 = scalar_lea.vmem %s5, 768
  %v11347 = vld [vmem:[%s11346] sm:$0xff]
  %v11348 = vld [vmem:[%s11346 + $0x8] sm:$0xff]
  %v11349 = vld [vmem:[%s11346 + $0x10] sm:$0x33]
  %v11352 = vunpack.c.l.b16 %v9265
  %v11353 = vunpack.c.l.b16 %v9266
  %v11354 = vpack.c.b16 %v11353, %v11352
  %v11358 = vunpack.c.l.b16 %v11347
  %v11359 = vunpack.c.h.b16 %v11347
  %v11360 = vunpack.c.l.b16 %v11348
  %v11361 = vunpack.c.h.b16 %v11348
  %v11362 = vunpack.c.l.b16 %v11349
  %v11363 = vunpack.c.h.b16 %v11349
  %v11364 = vpack.c.b16 %v11360, %v11358
  %v11365 = vpack.c.b16 %v11361, %v11359
  %v11366 = vpack.c.b16 %v11362, %v11362
  %v11367 = vpack.c.b16 %v11363, %v11363
  %v11371 = vsel %vm9300, %v11354, 0
  %v11374 = vsel %vm9304, %v11366, 0
  %v11377 = vsel %vm9304, %v11367, 0
  %11379 = vmatpush.bf16.msra.mxu0 0
  %11380 = vmatpush.bf16.msra.mxu0 0
  %11381 = vmatpush.bf16.msra.mxu0 0
  %11382 = vmatpush.bf16.msra.mxu0 0
  %11383 = vmatpush.bf16.msra.mxu0 0
  %11384 = vmatpush.bf16.msra.mxu0 0
  %11385 = vmatpush.bf16.msra.mxu0 %v11374
  %11386 = vmatpush.bf16.msra.mxu0 %v11364
  %11387 = vmatmul.bf16.gmra.mxu0 %v11371
  %v11388 = vpop.f32.mrf.mxu0
  %v11389 = vadd.f32 0.0, %v11388
  %v11390 = vpop.f32.mrf.mxu0
  %v11391 = vadd.f32 0.0, %v11390
  %11392 = vdwg.mxu0
  %11393 = vmatpush.bf16.msra.mxu0 0
  %11394 = vmatpush.bf16.msra.mxu0 0
  %11395 = vmatpush.bf16.msra.mxu0 0
  %11396 = vmatpush.bf16.msra.mxu0 0
  %11397 = vmatpush.bf16.msra.mxu0 0
  %11398 = vmatpush.bf16.msra.mxu0 0
  %11399 = vmatpush.bf16.msra.mxu0 %v11377
  %11400 = vmatpush.bf16.msra.mxu0 %v11365
  %11401 = vmatmul.bf16.gmra.mxu0 %v11371
  %v11402 = vpop.f32.mrf.mxu0
  %v11403 = vadd.f32 0.0, %v11402
  %v11404 = vpop.f32.mrf.mxu0
  %v11405 = vadd.f32 0.0, %v11404
  %11406 = vdwg.mxu0
  %v11407 = vadd.f32 %v11342, %v11389
  %v11408 = vadd.f32 %v11343, %v11403
  %v11409 = vadd.f32 %v11344, %v11391
  %v11410 = vadd.f32 %v11345, %v11405
  %s11411 = scalar_lea.vmem %s5, 792
  %v11412 = vld [vmem:[%s11411] sm:$0xff]
  %v11413 = vld [vmem:[%s11411 + $0x8] sm:$0xff]
  %v11414 = vld [vmem:[%s11411 + $0x10] sm:$0x33]
  %v11417 = vunpack.c.l.b16 %v9267
  %v11418 = vunpack.c.l.b16 %v9268
  %v11419 = vpack.c.b16 %v11418, %v11417
  %v11423 = vunpack.c.l.b16 %v11412
  %v11424 = vunpack.c.h.b16 %v11412
  %v11425 = vunpack.c.l.b16 %v11413
  %v11426 = vunpack.c.h.b16 %v11413
  %v11427 = vunpack.c.l.b16 %v11414
  %v11428 = vunpack.c.h.b16 %v11414
  %v11429 = vpack.c.b16 %v11425, %v11423
  %v11430 = vpack.c.b16 %v11426, %v11424
  %v11431 = vpack.c.b16 %v11427, %v11427
  %v11432 = vpack.c.b16 %v11428, %v11428
  %v11436 = vsel %vm9300, %v11419, 0
  %v11439 = vsel %vm9304, %v11431, 0
  %v11442 = vsel %vm9304, %v11432, 0
  %11444 = vmatpush.bf16.msra.mxu0 0
  %11445 = vmatpush.bf16.msra.mxu0 0
  %11446 = vmatpush.bf16.msra.mxu0 0
  %11447 = vmatpush.bf16.msra.mxu0 0
  %11448 = vmatpush.bf16.msra.mxu0 0
  %11449 = vmatpush.bf16.msra.mxu0 0
  %11450 = vmatpush.bf16.msra.mxu0 %v11439
  %11451 = vmatpush.bf16.msra.mxu0 %v11429
  %11452 = vmatmul.bf16.gmra.mxu0 %v11436
  %v11453 = vpop.f32.mrf.mxu0
  %v11454 = vadd.f32 0.0, %v11453
  %v11455 = vpop.f32.mrf.mxu0
  %v11456 = vadd.f32 0.0, %v11455
  %11457 = vdwg.mxu0
  %11458 = vmatpush.bf16.msra.mxu0 0
  %11459 = vmatpush.bf16.msra.mxu0 0
  %11460 = vmatpush.bf16.msra.mxu0 0
  %11461 = vmatpush.bf16.msra.mxu0 0
  %11462 = vmatpush.bf16.msra.mxu0 0
  %11463 = vmatpush.bf16.msra.mxu0 0
  %11464 = vmatpush.bf16.msra.mxu0 %v11442
  %11465 = vmatpush.bf16.msra.mxu0 %v11430
  %11466 = vmatmul.bf16.gmra.mxu0 %v11436
  %v11467 = vpop.f32.mrf.mxu0
  %v11468 = vadd.f32 0.0, %v11467
  %v11469 = vpop.f32.mrf.mxu0
  %v11470 = vadd.f32 0.0, %v11469
  %11471 = vdwg.mxu0
  %v11472 = vadd.f32 %v11407, %v11454
  %v11473 = vadd.f32 %v11408, %v11468
  %v11474 = vadd.f32 %v11409, %v11456
  %v11475 = vadd.f32 %v11410, %v11470
  %s11476 = scalar_lea.vmem %s5, 816
  %v11477 = vld [vmem:[%s11476] sm:$0xff]
  %v11478 = vld [vmem:[%s11476 + $0x8] sm:$0xff]
  %v11479 = vld [vmem:[%s11476 + $0x10] sm:$0x33]
  %v11482 = vunpack.c.l.b16 %v9269
  %v11483 = vunpack.c.l.b16 %v9270
  %v11484 = vpack.c.b16 %v11483, %v11482
  %v11488 = vunpack.c.l.b16 %v11477
  %v11489 = vunpack.c.h.b16 %v11477
  %v11490 = vunpack.c.l.b16 %v11478
  %v11491 = vunpack.c.h.b16 %v11478
  %v11492 = vunpack.c.l.b16 %v11479
  %v11493 = vunpack.c.h.b16 %v11479
  %v11494 = vpack.c.b16 %v11490, %v11488
  %v11495 = vpack.c.b16 %v11491, %v11489
  %v11496 = vpack.c.b16 %v11492, %v11492
  %v11497 = vpack.c.b16 %v11493, %v11493
  %v11501 = vsel %vm9300, %v11484, 0
  %v11504 = vsel %vm9304, %v11496, 0
  %v11507 = vsel %vm9304, %v11497, 0
  %11509 = vmatpush.bf16.msra.mxu0 0
  %11510 = vmatpush.bf16.msra.mxu0 0
  %11511 = vmatpush.bf16.msra.mxu0 0
  %11512 = vmatpush.bf16.msra.mxu0 0
  %11513 = vmatpush.bf16.msra.mxu0 0
  %11514 = vmatpush.bf16.msra.mxu0 0
  %11515 = vmatpush.bf16.msra.mxu0 %v11504
  %11516 = vmatpush.bf16.msra.mxu0 %v11494
  %11517 = vmatmul.bf16.gmra.mxu0 %v11501
  %v11518 = vpop.f32.mrf.mxu0
  %v11519 = vadd.f32 0.0, %v11518
  %v11520 = vpop.f32.mrf.mxu0
  %v11521 = vadd.f32 0.0, %v11520
  %11522 = vdwg.mxu0
  %11523 = vmatpush.bf16.msra.mxu0 0
  %11524 = vmatpush.bf16.msra.mxu0 0
  %11525 = vmatpush.bf16.msra.mxu0 0
  %11526 = vmatpush.bf16.msra.mxu0 0
  %11527 = vmatpush.bf16.msra.mxu0 0
  %11528 = vmatpush.bf16.msra.mxu0 0
  %11529 = vmatpush.bf16.msra.mxu0 %v11507
  %11530 = vmatpush.bf16.msra.mxu0 %v11495
  %11531 = vmatmul.bf16.gmra.mxu0 %v11501
  %v11532 = vpop.f32.mrf.mxu0
  %v11533 = vadd.f32 0.0, %v11532
  %v11534 = vpop.f32.mrf.mxu0
  %v11535 = vadd.f32 0.0, %v11534
  %11536 = vdwg.mxu0
  %v11537 = vadd.f32 %v11472, %v11519
  %v11538 = vadd.f32 %v11473, %v11533
  %v11539 = vadd.f32 %v11474, %v11521
  %v11540 = vadd.f32 %v11475, %v11535
  %s11541 = scalar_lea.vmem %s5, 840
  %v11542 = vld [vmem:[%s11541] sm:$0xff]
  %v11543 = vld [vmem:[%s11541 + $0x8] sm:$0xff]
  %v11544 = vld [vmem:[%s11541 + $0x10] sm:$0x33]
  %v11547 = vunpack.c.l.b16 %v9271
  %v11548 = vunpack.c.l.b16 %v9272
  %v11549 = vpack.c.b16 %v11548, %v11547
  %v11553 = vunpack.c.l.b16 %v11542
  %v11554 = vunpack.c.h.b16 %v11542
  %v11555 = vunpack.c.l.b16 %v11543
  %v11556 = vunpack.c.h.b16 %v11543
  %v11557 = vunpack.c.l.b16 %v11544
  %v11558 = vunpack.c.h.b16 %v11544
  %v11559 = vpack.c.b16 %v11555, %v11553
  %v11560 = vpack.c.b16 %v11556, %v11554
  %v11561 = vpack.c.b16 %v11557, %v11557
  %v11562 = vpack.c.b16 %v11558, %v11558
  %v11566 = vsel %vm9300, %v11549, 0
  %v11569 = vsel %vm9304, %v11561, 0
  %v11572 = vsel %vm9304, %v11562, 0
  %11574 = vmatpush.bf16.msra.mxu0 0
  %11575 = vmatpush.bf16.msra.mxu0 0
  %11576 = vmatpush.bf16.msra.mxu0 0
  %11577 = vmatpush.bf16.msra.mxu0 0
  %11578 = vmatpush.bf16.msra.mxu0 0
  %11579 = vmatpush.bf16.msra.mxu0 0
  %11580 = vmatpush.bf16.msra.mxu0 %v11569
  %11581 = vmatpush.bf16.msra.mxu0 %v11559
  %11582 = vmatmul.bf16.gmra.mxu0 %v11566
  %v11583 = vpop.f32.mrf.mxu0
  %v11584 = vadd.f32 0.0, %v11583
  %v11585 = vpop.f32.mrf.mxu0
  %v11586 = vadd.f32 0.0, %v11585
  %11587 = vdwg.mxu0
  %11588 = vmatpush.bf16.msra.mxu0 0
  %11589 = vmatpush.bf16.msra.mxu0 0
  %11590 = vmatpush.bf16.msra.mxu0 0
  %11591 = vmatpush.bf16.msra.mxu0 0
  %11592 = vmatpush.bf16.msra.mxu0 0
  %11593 = vmatpush.bf16.msra.mxu0 0
  %11594 = vmatpush.bf16.msra.mxu0 %v11572
  %11595 = vmatpush.bf16.msra.mxu0 %v11560
  %11596 = vmatmul.bf16.gmra.mxu0 %v11566
  %v11597 = vpop.f32.mrf.mxu0
  %v11598 = vadd.f32 0.0, %v11597
  %v11599 = vpop.f32.mrf.mxu0
  %v11600 = vadd.f32 0.0, %v11599
  %11601 = vdwg.mxu0
  %v11602 = vadd.f32 %v11537, %v11584
  %v11603 = vadd.f32 %v11538, %v11598
  %v11604 = vadd.f32 %v11539, %v11586
  %v11605 = vadd.f32 %v11540, %v11600
  %v11606 = vld [vmem:[%s6] sm:$0x3]
  %v11608 = vperm.slane %v11606, 0
  %v11609 = vperm.slane %v11606, 1
  %v11612 = vadd.f32 %v11602, %v11608
  %v11613 = vadd.f32 %v11603, %v11609
  %v11614 = vadd.f32 %v11604, %v11608
  %v11615 = vadd.f32 %v11605, %v11609
  %v11616 = vmax.f32 %v11612, 0.0
  %v11617 = vmax.f32 %v11613, 0.0
  %v11618 = vmax.f32 %v11614, 0.0
  %v11619 = vmax.f32 %v11615, 0.0
  %11620 = vst [vmem:[%s7] sm:$0xff] %v11616
  %vm11621 = vcmask 588800
  %11622 = vst.msk [vmem:[%s7 + $0x8] sm:$0xff] %vm11621, %v11617
  %11623 = vst [vmem:[%s7 + $0x10] sm:$0xff] %v11618
  %11624 = vst.msk [vmem:[%s7 + $0x18] sm:$0xff] %vm11621, %v11619
  // Predicated region
  $region30: #{shared_cnn_forward.1} parent=0 // pred_check
    _
  $region31: #{shared_cnn_forward.1} parent=0 // pred_check_branch
    %11626 = sbr.rel (0) target = $region33
  $region32: #{shared_cnn_forward.1} parent=0 // pred_region
    _
  $region33: #{shared_cnn_forward.1} parent=0 // pred_fallthru
    _
  // Predicated region
  $region34: #{shared_cnn_forward.1} parent=0 // pred_check
    _
  $region35: #{shared_cnn_forward.1} parent=0 // pred_check_branch
    %11628 = sbr.rel (0) target = $region37
  $region36: #{shared_cnn_forward.1} parent=0 // pred_region
    _
  $region37: #{shared_cnn_forward.1} parent=0 // pred_fallthru
    _

</llo_original>
